<compile_context>
chip_gen: v6e
topology: v6e:2x2x1
jax: 0.10.0
libtpu: 0.0.40
codegen_flags: <defaults>
</compile_context>

<pallas_src>
import functools

import jax
import jax.numpy as jnp
from jax import lax
from jax.experimental import pallas as pl
from jax.experimental.pallas import tpu as pltpu

# ----------------------- model configuration (small test sizes) -----------------------
IMAGE_SHAPE = (3, 16, 16)      # (C, H, W)
PATCH = (4, 4)
NUM_CLASSES = 10
DIM = 32
NUM_HEADS = 4
DEPTH = 2
MLP_DIM = 64
BATCH = 2

BN_EPS = 1e-5
LN_EPS = 1e-5
CP = 128                       # channel padding -> lane-dense CNN layout
VMEM_LIMIT = 32 * 1024 * 1024  # explicit scoped-VMEM budget (fits v5e/v6e/v7x)


def _const_spec(shape):
    nd = len(shape)
    return pl.BlockSpec(shape, lambda i, _n=nd: (0,) * _n)


def _mosaic(parallel):
    return pltpu.CompilerParams(
        dimension_semantics=("parallel",) if parallel else ("arbitrary",),
        vmem_limit_bytes=VMEM_LIMIT)


# =======================================================================================
# CNN BasicBlock(3, 3, stride=1)  (identity shortcut; BN in training mode = batch stats)
#   y = relu(bn2(conv2(relu(bn1(conv1(x))))) + x)
# TODO(synk): projection (1x1 conv + BN) shortcut for stride != 1 / Cin != Cout is not
#             exercised by ViT's BasicBlock(3, 3) and is not implemented here.
# =======================================================================================


def _im2col_3x3(xpad, H, W):
    """(H+2, W+2, CP) -> (H*W, 9*CP): folds the 9 taps into one MXU contraction."""
    cp = xpad.shape[-1]
    cols = []
    for kh in range(3):
        for kw in range(3):
            cols.append(xpad[kh:kh + H, kw:kw + W, :].reshape(H * W, cp))
    return jnp.concatenate(cols, axis=-1)


def _accum_stats(stats_ref, y):
    """Grid-resident per-channel sum / sum-of-squares accumulator (one-pass stats)."""
    st = jnp.concatenate([jnp.sum(y, axis=0, keepdims=True),
                          jnp.sum(y * y, axis=0, keepdims=True)], axis=0)

    @pl.when(pl.program_id(0) == 0)
    def _():
        stats_ref[...] = jnp.zeros_like(stats_ref)

    stats_ref[...] += st


def _cnn_pass1_kernel(xp_ref, w1_ref, y1_ref, stats_ref, *, H, W):
    patches = _im2col_3x3(xp_ref[0], H, W).astype(jnp.bfloat16)
    y = jnp.dot(patches, w1_ref[...], preferred_element_type=jnp.float32)
    y1_ref[0] = y
    _accum_stats(stats_ref, y)


def _cnn_pass2_kernel(y1_ref, w2_ref, sc1_ref, bi1_ref, y2_ref, stats_ref, *, H, W):
    cp = y1_ref.shape[-1]
    h = jnp.maximum(y1_ref[0] * sc1_ref[...] + bi1_ref[...], 0.0)     # bn1 apply + relu
    h = h.reshape(H, W, cp)
    # conv2 halo built as an in-register value (no scratch store -> reload round trip)
    zr = jnp.zeros((1, W, cp), jnp.float32)
    h = jnp.concatenate([zr, h, zr], axis=0)
    zc = jnp.zeros((H + 2, 1, cp), jnp.float32)
    h = jnp.concatenate([zc, h, zc], axis=1)
    patches = _im2col_3x3(h, H, W).astype(jnp.bfloat16)
    y = jnp.dot(patches, w2_ref[...], preferred_element_type=jnp.float32)
    y2_ref[0] = y
    _accum_stats(stats_ref, y)


def _cnn_pass3_kernel(y2_ref, x_ref, sc2_ref, bi2_ref, out_ref):
    out_ref[0] = jnp.maximum(y2_ref[0] * sc2_ref[...] + bi2_ref[...] + x_ref[0], 0.0)


def _pad_vec(v):
    return jnp.pad(v.astype(jnp.float32), (0, CP - v.shape[0]))


def _prep_conv_w(w):
    """(3,3,Cin,Cout) HWIO -> channel-padded, im2col-flattened (9*CP, CP) bf16."""
    ci, co = w.shape[2], w.shape[3]
    wpad = jnp.pad(w, ((0, 0), (0, 0), (0, CP - ci), (0, CP - co)))
    return wpad.reshape(9 * CP, CP).astype(jnp.bfloat16)


def _bn_scale_bias(stats, gamma, beta, count):
    mean = stats[0] / count
    var = stats[1] / count - mean * mean          # biased, one-pass (training-mode BN)
    scale = gamma * lax.rsqrt(var + BN_EPS)
    bias = beta - mean * scale
    return scale.reshape(1, CP), bias.reshape(1, CP)


def _basic_block_pallas(img_nchw, p):
    N, Cin, H, W = img_nchw.shape
    # One tiny, one-time layout change: NCHW -> channel-padded NHWC.  Activations then
    # stay in this lane-dense layout through the whole CNN block and into patchify.
    x = jnp.transpose(img_nchw, (0, 2, 3, 1)).astype(jnp.float32)
    x = jnp.pad(x, ((0, 0), (0, 0), (0, 0), (0, CP - Cin)))
    xp = jnp.pad(x, ((0, 0), (1, 1), (1, 1), (0, 0)))         # conv1 zero halo
    x_flat = x.reshape(N, H * W, CP)

    w1 = _prep_conv_w(p["cnn_w1"])
    w2 = _prep_conv_w(p["cnn_w2"])
    g1, b1 = _pad_vec(p["cnn_g1"]), _pad_vec(p["cnn_b1"])
    g2, b2 = _pad_vec(p["cnn_g2"]), _pad_vec(p["cnn_b2"])
    count = float(N * H * W)

    # ---- pass 1: conv1 + stats (stats accumulator -> "arbitrary") ----
    y1, st1 = pl.pallas_call(
        functools.partial(_cnn_pass1_kernel, H=H, W=W),
        grid=(N,),
        in_specs=[pl.BlockSpec((1, H + 2, W + 2, CP), lambda i: (i, 0, 0, 0)),
                  _const_spec(w1.shape)],
        out_specs=(pl.BlockSpec((1, H * W, CP), lambda i: (i, 0, 0)),
                   _const_spec((2, CP))),
        out_shape=(jax.ShapeDtypeStruct((N, H * W, CP), jnp.float32),
                   jax.ShapeDtypeStruct((2, CP), jnp.float32)),
        compiler_params=_mosaic(parallel=False),
    )(xp, w1)
    sc1, bi1 = _bn_scale_bias(st1, g1, b1, count)

    # ---- pass 2: bn1 apply + relu + conv2 + stats ----
    y2, st2 = pl.pallas_call(
        functools.partial(_cnn_pass2_kernel, H=H, W=W),
        grid=(N,),
        in_specs=[pl.BlockSpec((1, H * W, CP), lambda i: (i, 0, 0)),
                  _const_spec(w2.shape),
                  _const_spec((1, CP)), _const_spec((1, CP))],
        out_specs=(pl.BlockSpec((1, H * W, CP), lambda i: (i, 0, 0)),
                   _const_spec((2, CP))),
        out_shape=(jax.ShapeDtypeStruct((N, H * W, CP), jnp.float32),
                   jax.ShapeDtypeStruct((2, CP), jnp.float32)),
        compiler_params=_mosaic(parallel=False),
    )(y1, w2, sc1, bi1)
    sc2, bi2 = _bn_scale_bias(st2, g2, b2, count)

    # ---- pass 3: bn2 apply + identity residual + relu (no reduction -> "parallel") ----
    return pl.pallas_call(
        _cnn_pass3_kernel,
        grid=(N,),
        in_specs=[pl.BlockSpec((1, H * W, CP), lambda i: (i, 0, 0)),
                  pl.BlockSpec((1, H * W, CP), lambda i: (i, 0, 0)),
                  _const_spec((1, CP)), _const_spec((1, CP))],
        out_specs=pl.BlockSpec((1, H * W, CP), lambda i: (i, 0, 0)),
        out_shape=jax.ShapeDtypeStruct((N, H * W, CP), jnp.float32),
        compiler_params=_mosaic(parallel=True),
    )(y2, x_flat, sc2, bi2)


# =======================================================================================
# Linear patchification + cls token + positional embedding
# =======================================================================================


def _patchify_kernel(p_ref, wp_ref, bp_ref, cls_ref, pos_ref, out_ref):
    emb = jnp.dot(p_ref[0].astype(jnp.bfloat16), wp_ref[...],
                  preferred_element_type=jnp.float32) + bp_ref[...]
    out_ref[0] = jnp.concatenate([cls_ref[...], emb], axis=0) + pos_ref[...]


def _patchify_pallas(feat_flat, p, N, H, W, Cin):
    ph, pw = PATCH
    hg, wg = H // ph, W // pw
    npatch = hg * wg
    # Patch extraction is pure (tiny) data reorganisation; ordering matches PyTorch's
    # (row-in-patch, col-in-patch, channel) flattening.
    feat = feat_flat.reshape(N, H, W, CP)[..., :Cin]
    patches = feat.reshape(N, hg, ph, wg, pw, Cin).transpose(0, 1, 3, 2, 4, 5)
    patches = patches.reshape(N, npatch, ph * pw * Cin)

    wp = p["wp"].astype(jnp.bfloat16)
    bp = p["bp"].reshape(1, DIM)
    cls = p["cls"].reshape(1, DIM)
    pos = p["pos"]

    return pl.pallas_call(
        _patchify_kernel,
        grid=(N,),
        in_specs=[pl.BlockSpec((1, npatch, patches.shape[-1]), lambda i: (i, 0, 0)),
                  _const_spec(wp.shape), _const_spec(bp.shape),
                  _const_spec(cls.shape), _const_spec(pos.shape)],
        out_specs=pl.BlockSpec((1, 1 + npatch, DIM), lambda i: (i, 0, 0)),
        out_shape=jax.ShapeDtypeStruct((N, 1 + npatch, DIM), jnp.float32),
        compiler_params=_mosaic(parallel=True),
    )(patches, wp, bp, cls, pos)


# =======================================================================================
# Transformer Block:  x1 = x + Attn(LN1(x));  out = x1 + LN2(x1) + MLPcore(LN2(x1))
# (nn.Dropout with p = 0.0 is the identity and is omitted.)
# =======================================================================================


def _layernorm(x, g, b):
    mu = jnp.mean(x, axis=-1, keepdims=True)
    var = jnp.mean((x - mu) ** 2, axis=-1, keepdims=True)
    return (x - mu) * lax.rsqrt(var + LN_EPS) * g + b


def _gelu_tanh(x):
    # TODO(synk): PyTorch nn.GELU() uses the exact erf form; the tanh approximation
    # (max |delta| ~1e-3) is used since erf lowering on Mosaic is not guaranteed.
    return 0.5 * x * (1.0 + jnp.tanh(0.7978845608028654 * (x + 0.044715 * x * x * x)))


def _vit_block_kernel(x_ref, ln1g_ref, ln1b_ref, wq_ref, bq_ref, wk_ref, bk_ref,
                      wv_ref, bv_ref, wo_ref, bo_ref, ln2g_ref, ln2b_ref,
                      w1_ref, b1_ref, w2_ref, b2_ref, out_ref, *, num_heads, head_dim):
    x = x_ref[0]                                                  # (S, D) f32
    # ---- attention sub-block ----
    u = _layernorm(x, ln1g_ref[...], ln1b_ref[...])
    ub = u.astype(jnp.bfloat16)
    q = jnp.dot(ub, wq_ref[...], preferred_element_type=jnp.float32) + bq_ref[...]
    k = jnp.dot(ub, wk_ref[...], preferred_element_type=jnp.float32) + bk_ref[...]
    v = jnp.dot(ub, wv_ref[...], preferred_element_type=jnp.float32) + bv_ref[...]
    wo = wo_ref[...]
    inv_scale = 1.0 / float(head_dim) ** 0.5
    a_out = bo_ref[...] + jnp.zeros_like(x)
    for h in range(num_heads):                                    # static head loop
        sl = slice(h * head_dim, (h + 1) * head_dim)
        qh = q[:, sl].astype(jnp.bfloat16)
        kh = k[:, sl].astype(jnp.bfloat16)
        vh = v[:, sl].astype(jnp.bfloat16)
        s = jnp.dot(qh, kh.T, preferred_element_type=jnp.float32) * inv_scale
        s = s - jnp.max(s, axis=-1, keepdims=True)                # softmax in f32
        e = jnp.exp(s)
        pr = e / jnp.sum(e, axis=-1, keepdims=True)
        oh = jnp.dot(pr.astype(jnp.bfloat16), vh, preferred_element_type=jnp.float32)
        # fold each head straight into the (sublane-aligned) rows of the out projection
        a_out = a_out + jnp.dot(oh.astype(jnp.bfloat16), wo[sl, :],
                                preferred_element_type=jnp.float32)
    x1 = x + a_out
    # ---- MLP sub-block (note: MLP has its own internal residual of LN2(x1)) ----
    u2 = _layernorm(x1, ln2g_ref[...], ln2b_ref[...])
    hpre = jnp.dot(u2.astype(jnp.bfloat16), w1_ref[...],
                   preferred_element_type=jnp.float32) + b1_ref[...]
    hid = _gelu_tanh(hpre)
    m = jnp.dot(hid.astype(jnp.bfloat16), w2_ref[...],
                preferred_element_type=jnp.float32) + b2_ref[...]
    out_ref[0] = x1 + u2 + m


def _vit_block_pallas(x, bp):
    N, S, D = x.shape
    args = [
        x,
        bp["ln1_g"].reshape(1, D), bp["ln1_b"].reshape(1, D),
        bp["wq"].astype(jnp.bfloat16), bp["bq"].reshape(1, D),
        bp["wk"].astype(jnp.bfloat16), bp["bk"].reshape(1, D),
        bp["wv"].astype(jnp.bfloat16), bp["bv"].reshape(1, D),
        bp["wo"].astype(jnp.bfloat16), bp["bo"].reshape(1, D),
        bp["ln2_g"].reshape(1, D), bp["ln2_b"].reshape(1, D),
        bp["w1"].astype(jnp.bfloat16), bp["b1"].reshape(1, MLP_DIM),
        bp["w2"].astype(jnp.bfloat16), bp["b2"].reshape(1, D),
    ]
    in_specs = ([pl.BlockSpec((1, S, D), lambda i: (i, 0, 0))]
                + [_const_spec(a.shape) for a in args[1:]])
    kernel = functools.partial(_vit_block_kernel,
                               num_heads=NUM_HEADS, head_dim=D // NUM_HEADS)
    return pl.pallas_call(
        kernel, grid=(N,), in_specs=in_specs,
        out_specs=pl.BlockSpec((1, S, D), lambda i: (i, 0, 0)),
        out_shape=jax.ShapeDtypeStruct((N, S, D), jnp.float32),
        compiler_params=_mosaic(parallel=True),
    )(*args)


# =======================================================================================
# Classification head (LayerNorm + Linear on the cls token)
# =======================================================================================


def _head_kernel(x_ref, g_ref, b_ref, w_ref, bh_ref, out_ref):
    cls = x_ref[...][:, 0, :]                                     # (B, D)
    y = _layernorm(cls, g_ref[...], b_ref[...])
    out_ref[...] = jnp.dot(y.astype(jnp.bfloat16), w_ref[...],
                           preferred_element_type=jnp.float32) + bh_ref[...]


def _head_pallas(tokens, p):
    N, S, D = tokens.shape
    nc = p["wh"].shape[-1]
    args = [tokens, p["head_g"].reshape(1, D), p["head_b"].reshape(1, D),
            p["wh"].astype(jnp.bfloat16), p["bh"].reshape(1, nc)]
    return pl.pallas_call(
        _head_kernel, grid=(1,),
        in_specs=[_const_spec(a.shape) for a in args],
        out_specs=_const_spec((N, nc)),
        out_shape=jax.ShapeDtypeStruct((N, nc), jnp.float32),
        compiler_params=_mosaic(parallel=False),
    )(*args)


# =======================================================================================
# Full ViT forward
# =======================================================================================


def vit_forward_pallas(img, params):
    N, Cin, H, W = img.shape
    feat = _basic_block_pallas(img, params)                   # (N, H*W, CP) lane-dense
    tokens = _patchify_pallas(feat, params, N, H, W, Cin)     # (N, 1+P, DIM)
    for bp in params["blocks"]:
        tokens = _vit_block_pallas(tokens, bp)
    return _head_pallas(tokens, params)                       # (N, NUM_CLASSES)


# =======================================================================================
# Pure-JAX f32 reference (exact PyTorch semantics, incl. exact erf GELU)
# =======================================================================================


def _bn_ref(x, g, b):
    mean = jnp.mean(x, axis=(0, 2, 3), keepdims=True)
    var = jnp.mean((x - mean) ** 2, axis=(0, 2, 3), keepdims=True)
    return ((x - mean) * lax.rsqrt(var + BN_EPS)
            * g.reshape(1, -1, 1, 1) + b.reshape(1, -1, 1, 1))


def _ln_ref(x, g, b):
    m = jnp.mean(x, axis=-1, keepdims=True)
    v = jnp.mean((x - m) ** 2, axis=-1, keepdims=True)
    return (x - m) * lax.rsqrt(v + LN_EPS) * g + b


def _basic_block_ref(x, p):
    def conv(inp, w):
        return lax.conv_general_dilated(inp, w, (1, 1), ((1, 1), (1, 1)),
                                        dimension_numbers=("NCHW", "HWIO", "NCHW"))
    out = jax.nn.relu(_bn_ref(conv(x, p["cnn_w1"]), p["cnn_g1"], p["cnn_b1"]))
    out = _bn_ref(conv(out, p["cnn_w2"]), p["cnn_g2"], p["cnn_b2"])
    return jax.nn.relu(out + x)                   # identity shortcut


def _attn_ref(x, bp):
    B, S, D = x.shape
    hd = D // NUM_HEADS

    def split(t):
        return t.reshape(B, S, NUM_HEADS, hd).transpose(0, 2, 1, 3)

    q = split(x @ bp["wq"] + bp["bq"])
    k = split(x @ bp["wk"] + bp["bk"])
    v = split(x @ bp["wv"] + bp["bv"])
    s = jnp.einsum("bhqd,bhkd->bhqk", q, k) / (hd ** 0.5)
    a = jax.nn.softmax(s, axis=-1)
    o = jnp.einsum("bhqk,bhkd->bhqd", a, v).transpose(0, 2, 1, 3).reshape(B, S, D)
    return o @ bp["wo"] + bp["bo"]


def _block_ref(x, bp):
    x1 = x + _attn_ref(_ln_ref(x, bp["ln1_g"], bp["ln1_b"]), bp)
    u2 = _ln_ref(x1, bp["ln2_g"], bp["ln2_b"])
    h = jax.nn.gelu(u2 @ bp["w1"] + bp["b1"], approximate=False)
    return x1 + u2 + (h @ bp["w2"] + bp["b2"])


def vit_reference(img, p):
    feat = _basic_block_ref(img.astype(jnp.float32), p)
    N, C, H, W = feat.shape
    ph, pw = PATCH
    hg, wg = H // ph, W // pw
    t = feat.reshape(N, C, hg, ph, wg, pw).transpose(0, 2, 4, 3, 5, 1)
    t = t.reshape(N, hg * wg, ph * pw * C)
    t = t @ p["wp"] + p["bp"]
    cls = jnp.broadcast_to(p["cls"].reshape(1, 1, DIM), (N, 1, DIM))
    t = jnp.concatenate([cls, t], axis=1) + p["pos"][None]
    for bp in p["blocks"]:
        t = _block_ref(t, bp)
    y = _ln_ref(t[:, 0, :], p["head_g"], p["head_b"])
    return y @ p["wh"] + p["bh"]


# =======================================================================================
# Parameters + self-test
# =======================================================================================


def make_params(key):
    keys = iter(jax.random.split(key, 64))

    def nrm(shape, scale):
        return scale * jax.random.normal(next(keys), shape, jnp.float32)

    C, H, W = IMAGE_SHAPE
    ph, pw = PATCH
    npatch = (H // ph) * (W // pw)
    p = {
        "cnn_w1": nrm((3, 3, C, C), 0.25),
        "cnn_g1": 1.0 + nrm((C,), 0.1), "cnn_b1": nrm((C,), 0.1),
        "cnn_w2": nrm((3, 3, C, C), 0.25),
        "cnn_g2": 1.0 + nrm((C,), 0.1), "cnn_b2": nrm((C,), 0.1),
        "wp": nrm((ph * pw * C, DIM), 0.15), "bp": nrm((DIM,), 0.05),
        "cls": nrm((DIM,), 0.5), "pos": nrm((1 + npatch, DIM), 0.5),
        "head_g": 1.0 + nrm((DIM,), 0.1), "head_b": nrm((DIM,), 0.05),
        "wh": nrm((DIM, NUM_CLASSES), 0.2), "bh": nrm((NUM_CLASSES,), 0.05),
        "blocks": [],
    }
    for _ in range(DEPTH):
        p["blocks"].append({
            "ln1_g": 1.0 + nrm((DIM,), 0.1), "ln1_b": nrm((DIM,), 0.05),
            "wq": nrm((DIM, DIM), 0.2), "bq": nrm((DIM,), 0.05),
            "wk": nrm((DIM, DIM), 0.2), "bk": nrm((DIM,), 0.05),
            "wv": nrm((DIM, DIM), 0.2), "bv": nrm((DIM,), 0.05),
            "wo": nrm((DIM, DIM), 0.2), "bo": nrm((DIM,), 0.05),
            "ln2_g": 1.0 + nrm((DIM,), 0.1), "ln2_b": nrm((DIM,), 0.05),
            "w1": nrm((DIM, MLP_DIM), 0.2), "b1": nrm((MLP_DIM,), 0.05),
            "w2": nrm((MLP_DIM, DIM), 0.2), "b2": nrm((DIM,), 0.05),
        })
    return p


if __name__ == "__main__":
    key = jax.random.PRNGKey(0)
    kx, kp = jax.random.split(key)
    img = jax.random.normal(kx, (BATCH,) + IMAGE_SHAPE, jnp.float32)
    params = make_params(kp)

    out = jax.block_until_ready(jax.jit(vit_forward_pallas)(img, params))
    ref = jax.block_until_ready(vit_reference(img, params))

    assert out.shape == (BATCH, NUM_CLASSES), out.shape
    # Tolerance budget: bf16 MXU operands (per perf feedback) + tanh-GELU approximation
    # vs. the exact f32 / erf-GELU reference.
    max_diff = float(jnp.max(jnp.abs(out - ref)))
    assert jnp.allclose(out, ref, rtol=5e-2, atol=5e-2), max_diff
    print("KERNEL_OK")
</pallas_src>

<mosaic_0001>
module attributes {stable_mosaic.version = 11 : i64} {
  func.func @_cnn_pass2_kernel(%arg0: i32, %arg1: memref<1x256x128xf32, #tpu.memory_space<vmem>>, %arg2: memref<1152x128xbf16, #tpu.memory_space<vmem>>, %arg3: memref<1x128xf32, #tpu.memory_space<vmem>>, %arg4: memref<1x128xf32, #tpu.memory_space<vmem>>, %arg5: memref<1x256x128xf32, #tpu.memory_space<vmem>>, %arg6: memref<2x128xf32, #tpu.memory_space<vmem>>) attributes {dimension_semantics = [#tpu.dimension_semantics<arbitrary>], iteration_bounds = array<i64: 2>, scalar_prefetch = 0 : i64, scratch_operands = 0 : i64, tpu.core_type = #tpu.core_type<tc>, window_params = [{transform_indices = @transform_0, window_bounds = array<i64: 1, 256, 128>}, {pipeline_mode = #tpu.pipeline_mode<synchronous>, transform_indices = @transform_1, window_bounds = array<i64: 1152, 128>}, {pipeline_mode = #tpu.pipeline_mode<synchronous>, transform_indices = @transform_2, window_bounds = array<i64: 1, 128>}, {pipeline_mode = #tpu.pipeline_mode<synchronous>, transform_indices = @transform_3, window_bounds = array<i64: 1, 128>}, {transform_indices = @transform_4, window_bounds = array<i64: 1, 256, 128>}, {pipeline_mode = #tpu.pipeline_mode<synchronous>, transform_indices = @transform_5, window_bounds = array<i64: 2, 128>}]} {
    %c0 = arith.constant 0 : index
    %c0_0 = arith.constant 0 : index
    %c0_1 = arith.constant 0 : index
    %0 = vector.load %arg1[%c0, %c0_0, %c0_1] : memref<1x256x128xf32, #tpu.memory_space<vmem>>, vector<1x256x128xf32>
    %1 = vector.shape_cast %0 : vector<1x256x128xf32> to vector<256x128xf32>
    %c0_2 = arith.constant 0 : index
    %c0_3 = arith.constant 0 : index
    %2 = vector.load %arg3[%c0_2, %c0_3] : memref<1x128xf32, #tpu.memory_space<vmem>>, vector<1x128xf32>
    %3 = vector.broadcast %2 : vector<1x128xf32> to vector<256x128xf32>
    %4 = arith.mulf %1, %3 : vector<256x128xf32>
    %c0_4 = arith.constant 0 : index
    %c0_5 = arith.constant 0 : index
    %5 = vector.load %arg4[%c0_4, %c0_5] : memref<1x128xf32, #tpu.memory_space<vmem>>, vector<1x128xf32>
    %6 = vector.broadcast %5 : vector<1x128xf32> to vector<256x128xf32>
    %7 = arith.addf %4, %6 : vector<256x128xf32>
    %cst = arith.constant 0.000000e+00 : f32
    %8 = vector.broadcast %cst : f32 to vector<256x128xf32>
    %9 = arith.maximumf %7, %8 : vector<256x128xf32>
    %10 = vector.shape_cast %9 : vector<256x128xf32> to vector<16x16x128xf32>
    %cst_6 = arith.constant 0.000000e+00 : f32
    %11 = vector.broadcast %cst_6 : f32 to vector<1x16x128xf32>
    %12 = tpu.concatenate %11, %10, %11 in 0 : vector<1x16x128xf32>, vector<16x16x128xf32>, vector<1x16x128xf32> -> vector<18x16x128xf32>
    %cst_7 = arith.constant 0.000000e+00 : f32
    %13 = vector.broadcast %cst_7 : f32 to vector<18x1x128xf32>
    %14 = tpu.concatenate %13, %12, %13 in 1 : vector<18x1x128xf32>, vector<18x16x128xf32>, vector<18x1x128xf32> -> vector<18x18x128xf32>
    %15 = vector.extract_strided_slice %14 {offsets = [0, 0, 0], sizes = [16, 16, 128], strides = [1, 1, 1]} : vector<18x18x128xf32> to vector<16x16x128xf32>
    %16 = vector.shape_cast %15 : vector<16x16x128xf32> to vector<256x128xf32>
    %17 = vector.extract_strided_slice %14 {offsets = [0, 1, 0], sizes = [16, 16, 128], strides = [1, 1, 1]} : vector<18x18x128xf32> to vector<16x16x128xf32>
    %18 = vector.shape_cast %17 : vector<16x16x128xf32> to vector<256x128xf32>
    %19 = vector.extract_strided_slice %14 {offsets = [0, 2, 0], sizes = [16, 16, 128], strides = [1, 1, 1]} : vector<18x18x128xf32> to vector<16x16x128xf32>
    %20 = vector.shape_cast %19 : vector<16x16x128xf32> to vector<256x128xf32>
    %21 = vector.extract_strided_slice %14 {offsets = [1, 0, 0], sizes = [16, 16, 128], strides = [1, 1, 1]} : vector<18x18x128xf32> to vector<16x16x128xf32>
    %22 = vector.shape_cast %21 : vector<16x16x128xf32> to vector<256x128xf32>
    %23 = vector.extract_strided_slice %14 {offsets = [1, 1, 0], sizes = [16, 16, 128], strides = [1, 1, 1]} : vector<18x18x128xf32> to vector<16x16x128xf32>
    %24 = vector.shape_cast %23 : vector<16x16x128xf32> to vector<256x128xf32>
    %25 = vector.extract_strided_slice %14 {offsets = [1, 2, 0], sizes = [16, 16, 128], strides = [1, 1, 1]} : vector<18x18x128xf32> to vector<16x16x128xf32>
    %26 = vector.shape_cast %25 : vector<16x16x128xf32> to vector<256x128xf32>
    %27 = vector.extract_strided_slice %14 {offsets = [2, 0, 0], sizes = [16, 16, 128], strides = [1, 1, 1]} : vector<18x18x128xf32> to vector<16x16x128xf32>
    %28 = vector.shape_cast %27 : vector<16x16x128xf32> to vector<256x128xf32>
    %29 = vector.extract_strided_slice %14 {offsets = [2, 1, 0], sizes = [16, 16, 128], strides = [1, 1, 1]} : vector<18x18x128xf32> to vector<16x16x128xf32>
    %30 = vector.shape_cast %29 : vector<16x16x128xf32> to vector<256x128xf32>
    %31 = vector.extract_strided_slice %14 {offsets = [2, 2, 0], sizes = [16, 16, 128], strides = [1, 1, 1]} : vector<18x18x128xf32> to vector<16x16x128xf32>
    %32 = vector.shape_cast %31 : vector<16x16x128xf32> to vector<256x128xf32>
    %33 = tpu.concatenate %16, %18, %20, %22, %24, %26, %28, %30, %32 in 1 : vector<256x128xf32>, vector<256x128xf32>, vector<256x128xf32>, vector<256x128xf32>, vector<256x128xf32>, vector<256x128xf32>, vector<256x128xf32>, vector<256x128xf32>, vector<256x128xf32> -> vector<256x1152xf32>
    %34 = arith.truncf %33 : vector<256x1152xf32> to vector<256x1152xbf16>
    %c0_8 = arith.constant 0 : index
    %c0_9 = arith.constant 0 : index
    %35 = vector.load %arg2[%c0_8, %c0_9] : memref<1152x128xbf16, #tpu.memory_space<vmem>>, vector<1152x128xbf16>
    %cst_10 = arith.constant dense<0.000000e+00> : vector<256x128xf32>
    %36 = tpu.matmul %34, %35, %cst_10 {dimension_numbers = #tpu.dot_dimension_numbers<[1], [0], [0], [1], [0, 0, 1, 1], [], []>} : vector<256x1152xbf16>, vector<1152x128xbf16>, vector<256x128xf32> -> vector<256x128xf32>
    %c0_11 = arith.constant 0 : index
    %c0_12 = arith.constant 0 : index
    %c0_13 = arith.constant 0 : index
    %37 = vector.load %arg5[%c0_11, %c0_12, %c0_13] : memref<1x256x128xf32, #tpu.memory_space<vmem>>, vector<1x256x128xf32>
    %38 = vector.shape_cast %37 : vector<1x256x128xf32> to vector<256x128xf32>
    %39 = vector.shape_cast %36 : vector<256x128xf32> to vector<1x256x128xf32>
    tpu.vector_store %arg5[%c0_11, %c0_12, %c0_13], %39 {strides = array<i32>} : memref<1x256x128xf32, #tpu.memory_space<vmem>>, vector<1x256x128xf32>,
    %cst_14 = arith.constant dense<0.000000e+00> : vector<128xf32>
    %40 = vector.multi_reduction <add>, %36, %cst_14 [0] : vector<256x128xf32> to vector<128xf32>
    %41 = vector.shape_cast %40 : vector<128xf32> to vector<1x128xf32>
    %42 = arith.mulf %36, %36 : vector<256x128xf32>
    %cst_15 = arith.constant dense<0.000000e+00> : vector<128xf32>
    %43 = vector.multi_reduction <add>, %42, %cst_15 [0] : vector<256x128xf32> to vector<128xf32>
    %44 = vector.shape_cast %43 : vector<128xf32> to vector<1x128xf32>
    %45 = tpu.concatenate %41, %44 in 0 : vector<1x128xf32>, vector<1x128xf32> -> vector<2x128xf32>
    %c0_i32 = arith.constant 0 : i32
    %46 = arith.cmpi eq, %arg0, %c0_i32 : i32
    %47 = arith.extui %46 : i1 to i32
    %c0_i32_16 = arith.constant 0 : i32
    %48 = arith.cmpi ne, %47, %c0_i32_16 : i32
    scf.if %48 {
      %cst_21 = arith.constant 0.000000e+00 : f32
      %52 = vector.broadcast %cst_21 : f32 to vector<2x128xf32>
      %c0_22 = arith.constant 0 : index
      %c0_23 = arith.constant 0 : index
      %53 = vector.load %arg6[%c0_22, %c0_23] : memref<2x128xf32, #tpu.memory_space<vmem>>, vector<2x128xf32>
      tpu.vector_store %arg6[%c0_22, %c0_23], %52 {strides = array<i32>} : memref<2x128xf32, #tpu.memory_space<vmem>>, vector<2x128xf32>,
    } else {
    }
    %c0_17 = arith.constant 0 : index
    %c0_18 = arith.constant 0 : index
    %49 = vector.load %arg6[%c0_17, %c0_18] : memref<2x128xf32, #tpu.memory_space<vmem>>, vector<2x128xf32>
    %50 = arith.addf %49, %45 : vector<2x128xf32>
    %c0_19 = arith.constant 0 : index
    %c0_20 = arith.constant 0 : index
    %51 = vector.load %arg6[%c0_19, %c0_20] : memref<2x128xf32, #tpu.memory_space<vmem>>, vector<2x128xf32>
    tpu.vector_store %arg6[%c0_19, %c0_20], %50 {strides = array<i32>} : memref<2x128xf32, #tpu.memory_space<vmem>>, vector<2x128xf32>,
    return
  }
  func.func @transform_0(%arg0: i32) -> (i32, i32, i32) {
    %c0_i32 = arith.constant 0 : i32
    %c0_i32_0 = arith.constant 0 : i32
    %c0_i32_1 = arith.constant 0 : i32
    return %arg0, %c0_i32, %c0_i32_0 : i32, i32, i32
  }
  func.func @transform_1(%arg0: i32) -> (i32, i32) {
    %c0_i32 = arith.constant 0 : i32
    %c0_i32_0 = arith.constant 0 : i32
    %c0_i32_1 = arith.constant 0 : i32
    return %c0_i32, %c0_i32_0 : i32, i32
  }
  func.func @transform_2(%arg0: i32) -> (i32, i32) {
    %c0_i32 = arith.constant 0 : i32
    %c0_i32_0 = arith.constant 0 : i32
    %c0_i32_1 = arith.constant 0 : i32
    return %c0_i32, %c0_i32_0 : i32, i32
  }
  func.func @transform_3(%arg0: i32) -> (i32, i32) {
    %c0_i32 = arith.constant 0 : i32
    %c0_i32_0 = arith.constant 0 : i32
    %c0_i32_1 = arith.constant 0 : i32
    return %c0_i32, %c0_i32_0 : i32, i32
  }
  func.func @transform_4(%arg0: i32) -> (i32, i32, i32) {
    %c0_i32 = arith.constant 0 : i32
    %c0_i32_0 = arith.constant 0 : i32
    %c0_i32_1 = arith.constant 0 : i32
    return %arg0, %c0_i32, %c0_i32_0 : i32, i32, i32
  }
  func.func @transform_5(%arg0: i32) -> (i32, i32) {
    %c0_i32 = arith.constant 0 : i32
    %c0_i32_0 = arith.constant 0 : i32
    %c0_i32_1 = arith.constant 0 : i32
    return %c0_i32, %c0_i32_0 : i32, i32
  }
}

module attributes {stable_mosaic.version = 11 : i64} {
  func.func @_cnn_pass3_kernel(%arg0: i32, %arg1: memref<1x256x128xf32, #tpu.memory_space<vmem>>, %arg2: memref<1x256x128xf32, #tpu.memory_space<vmem>>, %arg3: memref<1x128xf32, #tpu.memory_space<vmem>>, %arg4: memref<1x128xf32, #tpu.memory_space<vmem>>, %arg5: memref<1x256x128xf32, #tpu.memory_space<vmem>>) attributes {dimension_semantics = [#tpu.dimension_semantics<parallel>], iteration_bounds = array<i64: 2>, scalar_prefetch = 0 : i64, scratch_operands = 0 : i64, tpu.core_type = #tpu.core_type<tc>, window_params = [{transform_indices = @transform_0, window_bounds = array<i64: 1, 256, 128>}, {transform_indices = @transform_1, window_bounds = array<i64: 1, 256, 128>}, {pipeline_mode = #tpu.pipeline_mode<synchronous>, transform_indices = @transform_2, window_bounds = array<i64: 1, 128>}, {pipeline_mode = #tpu.pipeline_mode<synchronous>, transform_indices = @transform_3, window_bounds = array<i64: 1, 128>}, {transform_indices = @transform_4, window_bounds = array<i64: 1, 256, 128>}]} {
    %c0 = arith.constant 0 : index
    %c0_0 = arith.constant 0 : index
    %c0_1 = arith.constant 0 : index
    %0 = vector.load %arg1[%c0, %c0_0, %c0_1] : memref<1x256x128xf32, #tpu.memory_space<vmem>>, vector<1x256x128xf32>
    %1 = vector.shape_cast %0 : vector<1x256x128xf32> to vector<256x128xf32>
    %c0_2 = arith.constant 0 : index
    %c0_3 = arith.constant 0 : index
    %2 = vector.load %arg3[%c0_2, %c0_3] : memref<1x128xf32, #tpu.memory_space<vmem>>, vector<1x128xf32>
    %3 = vector.broadcast %2 : vector<1x128xf32> to vector<256x128xf32>
    %4 = arith.mulf %1, %3 : vector<256x128xf32>
    %c0_4 = arith.constant 0 : index
    %c0_5 = arith.constant 0 : index
    %5 = vector.load %arg4[%c0_4, %c0_5] : memref<1x128xf32, #tpu.memory_space<vmem>>, vector<1x128xf32>
    %6 = vector.broadcast %5 : vector<1x128xf32> to vector<256x128xf32>
    %7 = arith.addf %4, %6 : vector<256x128xf32>
    %c0_6 = arith.constant 0 : index
    %c0_7 = arith.constant 0 : index
    %c0_8 = arith.constant 0 : index
    %8 = vector.load %arg2[%c0_6, %c0_7, %c0_8] : memref<1x256x128xf32, #tpu.memory_space<vmem>>, vector<1x256x128xf32>
    %9 = vector.shape_cast %8 : vector<1x256x128xf32> to vector<256x128xf32>
    %10 = arith.addf %7, %9 : vector<256x128xf32>
    %cst = arith.constant 0.000000e+00 : f32
    %11 = vector.broadcast %cst : f32 to vector<256x128xf32>
    %12 = arith.maximumf %10, %11 : vector<256x128xf32>
    %c0_9 = arith.constant 0 : index
    %c0_10 = arith.constant 0 : index
    %c0_11 = arith.constant 0 : index
    %13 = vector.load %arg5[%c0_9, %c0_10, %c0_11] : memref<1x256x128xf32, #tpu.memory_space<vmem>>, vector<1x256x128xf32>
    %14 = vector.shape_cast %13 : vector<1x256x128xf32> to vector<256x128xf32>
    %15 = vector.shape_cast %12 : vector<256x128xf32> to vector<1x256x128xf32>
    tpu.vector_store %arg5[%c0_9, %c0_10, %c0_11], %15 {strides = array<i32>} : memref<1x256x128xf32, #tpu.memory_space<vmem>>, vector<1x256x128xf32>,
    return
  }
  func.func @transform_0(%arg0: i32) -> (i32, i32, i32) {
    %c0_i32 = arith.constant 0 : i32
    %c0_i32_0 = arith.constant 0 : i32
    %c0_i32_1 = arith.constant 0 : i32
    return %arg0, %c0_i32, %c0_i32_0 : i32, i32, i32
  }
  func.func @transform_1(%arg0: i32) -> (i32, i32, i32) {
    %c0_i32 = arith.constant 0 : i32
    %c0_i32_0 = arith.constant 0 : i32
    %c0_i32_1 = arith.constant 0 : i32
    return %arg0, %c0_i32, %c0_i32_0 : i32, i32, i32
  }
  func.func @transform_2(%arg0: i32) -> (i32, i32) {
    %c0_i32 = arith.constant 0 : i32
    %c0_i32_0 = arith.constant 0 : i32
    %c0_i32_1 = arith.constant 0 : i32
    return %c0_i32, %c0_i32_0 : i32, i32
  }
  func.func @transform_3(%arg0: i32) -> (i32, i32) {
    %c0_i32 = arith.constant 0 : i32
    %c0_i32_0 = arith.constant 0 : i32
    %c0_i32_1 = arith.constant 0 : i32
    return %c0_i32, %c0_i32_0 : i32, i32
  }
  func.func @transform_4(%arg0: i32) -> (i32, i32, i32) {
    %c0_i32 = arith.constant 0 : i32
    %c0_i32_0 = arith.constant 0 : i32
    %c0_i32_1 = arith.constant 0 : i32
    return %arg0, %c0_i32, %c0_i32_0 : i32, i32, i32
  }
}

module attributes {stable_mosaic.version = 11 : i64} {
  func.func @_cnn_pass1_kernel(%arg0: i32, %arg1: memref<1x18x18x128xf32, #tpu.memory_space<vmem>>, %arg2: memref<1152x128xbf16, #tpu.memory_space<vmem>>, %arg3: memref<1x256x128xf32, #tpu.memory_space<vmem>>, %arg4: memref<2x128xf32, #tpu.memory_space<vmem>>) attributes {dimension_semantics = [#tpu.dimension_semantics<arbitrary>], iteration_bounds = array<i64: 2>, scalar_prefetch = 0 : i64, scratch_operands = 0 : i64, tpu.core_type = #tpu.core_type<tc>, window_params = [{transform_indices = @transform_0, window_bounds = array<i64: 1, 18, 18, 128>}, {pipeline_mode = #tpu.pipeline_mode<synchronous>, transform_indices = @transform_1, window_bounds = array<i64: 1152, 128>}, {transform_indices = @transform_2, window_bounds = array<i64: 1, 256, 128>}, {pipeline_mode = #tpu.pipeline_mode<synchronous>, transform_indices = @transform_3, window_bounds = array<i64: 2, 128>}]} {
    %c0 = arith.constant 0 : index
    %c0_0 = arith.constant 0 : index
    %c0_1 = arith.constant 0 : index
    %c0_2 = arith.constant 0 : index
    %0 = vector.load %arg1[%c0, %c0_0, %c0_1, %c0_2] : memref<1x18x18x128xf32, #tpu.memory_space<vmem>>, vector<1x18x18x128xf32>
    %1 = vector.shape_cast %0 : vector<1x18x18x128xf32> to vector<18x18x128xf32>
    %2 = vector.extract_strided_slice %1 {offsets = [0, 0, 0], sizes = [16, 16, 128], strides = [1, 1, 1]} : vector<18x18x128xf32> to vector<16x16x128xf32>
    %3 = vector.shape_cast %2 : vector<16x16x128xf32> to vector<256x128xf32>
    %4 = vector.extract_strided_slice %1 {offsets = [0, 1, 0], sizes = [16, 16, 128], strides = [1, 1, 1]} : vector<18x18x128xf32> to vector<16x16x128xf32>
    %5 = vector.shape_cast %4 : vector<16x16x128xf32> to vector<256x128xf32>
    %6 = vector.extract_strided_slice %1 {offsets = [0, 2, 0], sizes = [16, 16, 128], strides = [1, 1, 1]} : vector<18x18x128xf32> to vector<16x16x128xf32>
    %7 = vector.shape_cast %6 : vector<16x16x128xf32> to vector<256x128xf32>
    %8 = vector.extract_strided_slice %1 {offsets = [1, 0, 0], sizes = [16, 16, 128], strides = [1, 1, 1]} : vector<18x18x128xf32> to vector<16x16x128xf32>
    %9 = vector.shape_cast %8 : vector<16x16x128xf32> to vector<256x128xf32>
    %10 = vector.extract_strided_slice %1 {offsets = [1, 1, 0], sizes = [16, 16, 128], strides = [1, 1, 1]} : vector<18x18x128xf32> to vector<16x16x128xf32>
    %11 = vector.shape_cast %10 : vector<16x16x128xf32> to vector<256x128xf32>
    %12 = vector.extract_strided_slice %1 {offsets = [1, 2, 0], sizes = [16, 16, 128], strides = [1, 1, 1]} : vector<18x18x128xf32> to vector<16x16x128xf32>
    %13 = vector.shape_cast %12 : vector<16x16x128xf32> to vector<256x128xf32>
    %14 = vector.extract_strided_slice %1 {offsets = [2, 0, 0], sizes = [16, 16, 128], strides = [1, 1, 1]} : vector<18x18x128xf32> to vector<16x16x128xf32>
    %15 = vector.shape_cast %14 : vector<16x16x128xf32> to vector<256x128xf32>
    %16 = vector.extract_strided_slice %1 {offsets = [2, 1, 0], sizes = [16, 16, 128], strides = [1, 1, 1]} : vector<18x18x128xf32> to vector<16x16x128xf32>
    %17 = vector.shape_cast %16 : vector<16x16x128xf32> to vector<256x128xf32>
    %18 = vector.extract_strided_slice %1 {offsets = [2, 2, 0], sizes = [16, 16, 128], strides = [1, 1, 1]} : vector<18x18x128xf32> to vector<16x16x128xf32>
    %19 = vector.shape_cast %18 : vector<16x16x128xf32> to vector<256x128xf32>
    %20 = tpu.concatenate %3, %5, %7, %9, %11, %13, %15, %17, %19 in 1 : vector<256x128xf32>, vector<256x128xf32>, vector<256x128xf32>, vector<256x128xf32>, vector<256x128xf32>, vector<256x128xf32>, vector<256x128xf32>, vector<256x128xf32>, vector<256x128xf32> -> vector<256x1152xf32>
    %21 = arith.truncf %20 : vector<256x1152xf32> to vector<256x1152xbf16>
    %c0_3 = arith.constant 0 : index
    %c0_4 = arith.constant 0 : index
    %22 = vector.load %arg2[%c0_3, %c0_4] : memref<1152x128xbf16, #tpu.memory_space<vmem>>, vector<1152x128xbf16>
    %cst = arith.constant dense<0.000000e+00> : vector<256x128xf32>
    %23 = tpu.matmul %21, %22, %cst {dimension_numbers = #tpu.dot_dimension_numbers<[1], [0], [0], [1], [0, 0, 1, 1], [], []>} : vector<256x1152xbf16>, vector<1152x128xbf16>, vector<256x128xf32> -> vector<256x128xf32>
    %c0_5 = arith.constant 0 : index
    %c0_6 = arith.constant 0 : index
    %c0_7 = arith.constant 0 : index
    %24 = vector.load %arg3[%c0_5, %c0_6, %c0_7] : memref<1x256x128xf32, #tpu.memory_space<vmem>>, vector<1x256x128xf32>
    %25 = vector.shape_cast %24 : vector<1x256x128xf32> to vector<256x128xf32>
    %26 = vector.shape_cast %23 : vector<256x128xf32> to vector<1x256x128xf32>
    tpu.vector_store %arg3[%c0_5, %c0_6, %c0_7], %26 {strides = array<i32>} : memref<1x256x128xf32, #tpu.memory_space<vmem>>, vector<1x256x128xf32>,
    %cst_8 = arith.constant dense<0.000000e+00> : vector<128xf32>
    %27 = vector.multi_reduction <add>, %23, %cst_8 [0] : vector<256x128xf32> to vector<128xf32>
    %28 = vector.shape_cast %27 : vector<128xf32> to vector<1x128xf32>
    %29 = arith.mulf %23, %23 : vector<256x128xf32>
    %cst_9 = arith.constant dense<0.000000e+00> : vector<128xf32>
    %30 = vector.multi_reduction <add>, %29, %cst_9 [0] : vector<256x128xf32> to vector<128xf32>
    %31 = vector.shape_cast %30 : vector<128xf32> to vector<1x128xf32>
    %32 = tpu.concatenate %28, %31 in 0 : vector<1x128xf32>, vector<1x128xf32> -> vector<2x128xf32>
    %c0_i32 = arith.constant 0 : i32
    %33 = arith.cmpi eq, %arg0, %c0_i32 : i32
    %34 = arith.extui %33 : i1 to i32
    %c0_i32_10 = arith.constant 0 : i32
    %35 = arith.cmpi ne, %34, %c0_i32_10 : i32
    scf.if %35 {
      %cst_15 = arith.constant 0.000000e+00 : f32
      %39 = vector.broadcast %cst_15 : f32 to vector<2x128xf32>
      %c0_16 = arith.constant 0 : index
      %c0_17 = arith.constant 0 : index
      %40 = vector.load %arg4[%c0_16, %c0_17] : memref<2x128xf32, #tpu.memory_space<vmem>>, vector<2x128xf32>
      tpu.vector_store %arg4[%c0_16, %c0_17], %39 {strides = array<i32>} : memref<2x128xf32, #tpu.memory_space<vmem>>, vector<2x128xf32>,
    } else {
    }
    %c0_11 = arith.constant 0 : index
    %c0_12 = arith.constant 0 : index
    %36 = vector.load %arg4[%c0_11, %c0_12] : memref<2x128xf32, #tpu.memory_space<vmem>>, vector<2x128xf32>
    %37 = arith.addf %36, %32 : vector<2x128xf32>
    %c0_13 = arith.constant 0 : index
    %c0_14 = arith.constant 0 : index
    %38 = vector.load %arg4[%c0_13, %c0_14] : memref<2x128xf32, #tpu.memory_space<vmem>>, vector<2x128xf32>
    tpu.vector_store %arg4[%c0_13, %c0_14], %37 {strides = array<i32>} : memref<2x128xf32, #tpu.memory_space<vmem>>, vector<2x128xf32>,
    return
  }
  func.func @transform_0(%arg0: i32) -> (i32, i32, i32, i32) {
    %c0_i32 = arith.constant 0 : i32
    %c0_i32_0 = arith.constant 0 : i32
    %c0_i32_1 = arith.constant 0 : i32
    %c0_i32_2 = arith.constant 0 : i32
    return %arg0, %c0_i32, %c0_i32_0, %c0_i32_1 : i32, i32, i32, i32
  }
  func.func @transform_1(%arg0: i32) -> (i32, i32) {
    %c0_i32 = arith.constant 0 : i32
    %c0_i32_0 = arith.constant 0 : i32
    %c0_i32_1 = arith.constant 0 : i32
    return %c0_i32, %c0_i32_0 : i32, i32
  }
  func.func @transform_2(%arg0: i32) -> (i32, i32, i32) {
    %c0_i32 = arith.constant 0 : i32
    %c0_i32_0 = arith.constant 0 : i32
    %c0_i32_1 = arith.constant 0 : i32
    return %arg0, %c0_i32, %c0_i32_0 : i32, i32, i32
  }
  func.func @transform_3(%arg0: i32) -> (i32, i32) {
    %c0_i32 = arith.constant 0 : i32
    %c0_i32_0 = arith.constant 0 : i32
    %c0_i32_1 = arith.constant 0 : i32
    return %c0_i32, %c0_i32_0 : i32, i32
  }
}

module attributes {stable_mosaic.version = 11 : i64} {
  func.func @_patchify_kernel(%arg0: i32, %arg1: memref<1x16x48xf32, #tpu.memory_space<vmem>>, %arg2: memref<48x32xbf16, #tpu.memory_space<vmem>>, %arg3: memref<1x32xf32, #tpu.memory_space<vmem>>, %arg4: memref<1x32xf32, #tpu.memory_space<vmem>>, %arg5: memref<17x32xf32, #tpu.memory_space<vmem>>, %arg6: memref<1x17x32xf32, #tpu.memory_space<vmem>>) attributes {dimension_semantics = [#tpu.dimension_semantics<parallel>], iteration_bounds = array<i64: 2>, scalar_prefetch = 0 : i64, scratch_operands = 0 : i64, tpu.core_type = #tpu.core_type<tc>, window_params = [{transform_indices = @transform_0, window_bounds = array<i64: 1, 16, 48>}, {pipeline_mode = #tpu.pipeline_mode<synchronous>, transform_indices = @transform_1, window_bounds = array<i64: 48, 32>}, {pipeline_mode = #tpu.pipeline_mode<synchronous>, transform_indices = @transform_2, window_bounds = array<i64: 1, 32>}, {pipeline_mode = #tpu.pipeline_mode<synchronous>, transform_indices = @transform_3, window_bounds = array<i64: 1, 32>}, {pipeline_mode = #tpu.pipeline_mode<synchronous>, transform_indices = @transform_4, window_bounds = array<i64: 17, 32>}, {transform_indices = @transform_5, window_bounds = array<i64: 1, 17, 32>}]} {
    %c0 = arith.constant 0 : index
    %c0_0 = arith.constant 0 : index
    %c0_1 = arith.constant 0 : index
    %0 = vector.load %arg1[%c0, %c0_0, %c0_1] : memref<1x16x48xf32, #tpu.memory_space<vmem>>, vector<1x16x48xf32>
    %1 = vector.shape_cast %0 : vector<1x16x48xf32> to vector<16x48xf32>
    %2 = arith.truncf %1 : vector<16x48xf32> to vector<16x48xbf16>
    %c0_2 = arith.constant 0 : index
    %c0_3 = arith.constant 0 : index
    %3 = vector.load %arg2[%c0_2, %c0_3] : memref<48x32xbf16, #tpu.memory_space<vmem>>, vector<48x32xbf16>
    %cst = arith.constant dense<0.000000e+00> : vector<16x32xf32>
    %4 = tpu.matmul %2, %3, %cst {dimension_numbers = #tpu.dot_dimension_numbers<[1], [0], [0], [1], [0, 0, 1, 1], [], []>} : vector<16x48xbf16>, vector<48x32xbf16>, vector<16x32xf32> -> vector<16x32xf32>
    %c0_4 = arith.constant 0 : index
    %c0_5 = arith.constant 0 : index
    %5 = vector.load %arg3[%c0_4, %c0_5] : memref<1x32xf32, #tpu.memory_space<vmem>>, vector<1x32xf32>
    %6 = vector.broadcast %5 : vector<1x32xf32> to vector<16x32xf32>
    %7 = arith.addf %4, %6 : vector<16x32xf32>
    %c0_6 = arith.constant 0 : index
    %c0_7 = arith.constant 0 : index
    %8 = vector.load %arg4[%c0_6, %c0_7] : memref<1x32xf32, #tpu.memory_space<vmem>>, vector<1x32xf32>
    %9 = tpu.concatenate %8, %7 in 0 : vector<1x32xf32>, vector<16x32xf32> -> vector<17x32xf32>
    %c0_8 = arith.constant 0 : index
    %c0_9 = arith.constant 0 : index
    %10 = vector.load %arg5[%c0_8, %c0_9] : memref<17x32xf32, #tpu.memory_space<vmem>>, vector<17x32xf32>
    %11 = arith.addf %9, %10 : vector<17x32xf32>
    %c0_10 = arith.constant 0 : index
    %c0_11 = arith.constant 0 : index
    %c0_12 = arith.constant 0 : index
    %12 = vector.load %arg6[%c0_10, %c0_11, %c0_12] : memref<1x17x32xf32, #tpu.memory_space<vmem>>, vector<1x17x32xf32>
    %13 = vector.shape_cast %12 : vector<1x17x32xf32> to vector<17x32xf32>
    %14 = vector.shape_cast %11 : vector<17x32xf32> to vector<1x17x32xf32>
    tpu.vector_store %arg6[%c0_10, %c0_11, %c0_12], %14 {strides = array<i32>} : memref<1x17x32xf32, #tpu.memory_space<vmem>>, vector<1x17x32xf32>,
    return
  }
  func.func @transform_0(%arg0: i32) -> (i32, i32, i32) {
    %c0_i32 = arith.constant 0 : i32
    %c0_i32_0 = arith.constant 0 : i32
    %c0_i32_1 = arith.constant 0 : i32
    return %arg0, %c0_i32, %c0_i32_0 : i32, i32, i32
  }
  func.func @transform_1(%arg0: i32) -> (i32, i32) {
    %c0_i32 = arith.constant 0 : i32
    %c0_i32_0 = arith.constant 0 : i32
    %c0_i32_1 = arith.constant 0 : i32
    return %c0_i32, %c0_i32_0 : i32, i32
  }
  func.func @transform_2(%arg0: i32) -> (i32, i32) {
    %c0_i32 = arith.constant 0 : i32
    %c0_i32_0 = arith.constant 0 : i32
    %c0_i32_1 = arith.constant 0 : i32
    return %c0_i32, %c0_i32_0 : i32, i32
  }
  func.func @transform_3(%arg0: i32) -> (i32, i32) {
    %c0_i32 = arith.constant 0 : i32
    %c0_i32_0 = arith.constant 0 : i32
    %c0_i32_1 = arith.constant 0 : i32
    return %c0_i32, %c0_i32_0 : i32, i32
  }
  func.func @transform_4(%arg0: i32) -> (i32, i32) {
    %c0_i32 = arith.constant 0 : i32
    %c0_i32_0 = arith.constant 0 : i32
    %c0_i32_1 = arith.constant 0 : i32
    return %c0_i32, %c0_i32_0 : i32, i32
  }
  func.func @transform_5(%arg0: i32) -> (i32, i32, i32) {
    %c0_i32 = arith.constant 0 : i32
    %c0_i32_0 = arith.constant 0 : i32
    %c0_i32_1 = arith.constant 0 : i32
    return %arg0, %c0_i32, %c0_i32_0 : i32, i32, i32
  }
}

module attributes {stable_mosaic.version = 11 : i64} {
  func.func @_vit_block_kernel(%arg0: i32, %arg1: memref<1x17x32xf32, #tpu.memory_space<vmem>>, %arg2: memref<1x32xf32, #tpu.memory_space<vmem>>, %arg3: memref<1x32xf32, #tpu.memory_space<vmem>>, %arg4: memref<32x32xbf16, #tpu.memory_space<vmem>>, %arg5: memref<1x32xf32, #tpu.memory_space<vmem>>, %arg6: memref<32x32xbf16, #tpu.memory_space<vmem>>, %arg7: memref<1x32xf32, #tpu.memory_space<vmem>>, %arg8: memref<32x32xbf16, #tpu.memory_space<vmem>>, %arg9: memref<1x32xf32, #tpu.memory_space<vmem>>, %arg10: memref<32x32xbf16, #tpu.memory_space<vmem>>, %arg11: memref<1x32xf32, #tpu.memory_space<vmem>>, %arg12: memref<1x32xf32, #tpu.memory_space<vmem>>, %arg13: memref<1x32xf32, #tpu.memory_space<vmem>>, %arg14: memref<32x64xbf16, #tpu.memory_space<vmem>>, %arg15: memref<1x64xf32, #tpu.memory_space<vmem>>, %arg16: memref<64x32xbf16, #tpu.memory_space<vmem>>, %arg17: memref<1x32xf32, #tpu.memory_space<vmem>>, %arg18: memref<1x17x32xf32, #tpu.memory_space<vmem>>) attributes {dimension_semantics = [#tpu.dimension_semantics<parallel>], iteration_bounds = array<i64: 2>, scalar_prefetch = 0 : i64, scratch_operands = 0 : i64, tpu.core_type = #tpu.core_type<tc>, window_params = [{transform_indices = @transform_0, window_bounds = array<i64: 1, 17, 32>}, {pipeline_mode = #tpu.pipeline_mode<synchronous>, transform_indices = @transform_1, window_bounds = array<i64: 1, 32>}, {pipeline_mode = #tpu.pipeline_mode<synchronous>, transform_indices = @transform_2, window_bounds = array<i64: 1, 32>}, {pipeline_mode = #tpu.pipeline_mode<synchronous>, transform_indices = @transform_3, window_bounds = array<i64: 32, 32>}, {pipeline_mode = #tpu.pipeline_mode<synchronous>, transform_indices = @transform_4, window_bounds = array<i64: 1, 32>}, {pipeline_mode = #tpu.pipeline_mode<synchronous>, transform_indices = @transform_5, window_bounds = array<i64: 32, 32>}, {pipeline_mode = #tpu.pipeline_mode<synchronous>, transform_indices = @transform_6, window_bounds = array<i64: 1, 32>}, {pipeline_mode = #tpu.pipeline_mode<synchronous>, transform_indices = @transform_7, window_bounds = array<i64: 32, 32>}, {pipeline_mode = #tpu.pipeline_mode<synchronous>, transform_indices = @transform_8, window_bounds = array<i64: 1, 32>}, {pipeline_mode = #tpu.pipeline_mode<synchronous>, transform_indices = @transform_9, window_bounds = array<i64: 32, 32>}, {pipeline_mode = #tpu.pipeline_mode<synchronous>, transform_indices = @transform_10, window_bounds = array<i64: 1, 32>}, {pipeline_mode = #tpu.pipeline_mode<synchronous>, transform_indices = @transform_11, window_bounds = array<i64: 1, 32>}, {pipeline_mode = #tpu.pipeline_mode<synchronous>, transform_indices = @transform_12, window_bounds = array<i64: 1, 32>}, {pipeline_mode = #tpu.pipeline_mode<synchronous>, transform_indices = @transform_13, window_bounds = array<i64: 32, 64>}, {pipeline_mode = #tpu.pipeline_mode<synchronous>, transform_indices = @transform_14, window_bounds = array<i64: 1, 64>}, {pipeline_mode = #tpu.pipeline_mode<synchronous>, transform_indices = @transform_15, window_bounds = array<i64: 64, 32>}, {pipeline_mode = #tpu.pipeline_mode<synchronous>, transform_indices = @transform_16, window_bounds = array<i64: 1, 32>}, {transform_indices = @transform_17, window_bounds = array<i64: 1, 17, 32>}]} {
    %c0 = arith.constant 0 : index
    %c0_0 = arith.constant 0 : index
    %c0_1 = arith.constant 0 : index
    %0 = vector.load %arg1[%c0, %c0_0, %c0_1] : memref<1x17x32xf32, #tpu.memory_space<vmem>>, vector<1x17x32xf32>
    %1 = vector.shape_cast %0 : vector<1x17x32xf32> to vector<17x32xf32>
    %c0_2 = arith.constant 0 : index
    %c0_3 = arith.constant 0 : index
    %2 = vector.load %arg2[%c0_2, %c0_3] : memref<1x32xf32, #tpu.memory_space<vmem>>, vector<1x32xf32>
    %c0_4 = arith.constant 0 : index
    %c0_5 = arith.constant 0 : index
    %3 = vector.load %arg3[%c0_4, %c0_5] : memref<1x32xf32, #tpu.memory_space<vmem>>, vector<1x32xf32>
    %cst = arith.constant dense<0.000000e+00> : vector<17xf32>
    %4 = vector.multi_reduction <add>, %1, %cst [1] : vector<17x32xf32> to vector<17xf32>
    %5 = vector.shape_cast %4 : vector<17xf32> to vector<17x1xf32>
    %cst_6 = arith.constant 3.200000e+01 : f32
    %6 = vector.broadcast %cst_6 : f32 to vector<17x1xf32>
    %7 = arith.divf %5, %6 : vector<17x1xf32>
    %8 = vector.broadcast %7 : vector<17x1xf32> to vector<17x32xf32>
    %9 = arith.subf %1, %8 : vector<17x32xf32>
    %10 = arith.mulf %9, %9 : vector<17x32xf32>
    %cst_7 = arith.constant dense<0.000000e+00> : vector<17xf32>
    %11 = vector.multi_reduction <add>, %10, %cst_7 [1] : vector<17x32xf32> to vector<17xf32>
    %12 = vector.shape_cast %11 : vector<17xf32> to vector<17x1xf32>
    %cst_8 = arith.constant 3.200000e+01 : f32
    %13 = vector.broadcast %cst_8 : f32 to vector<17x1xf32>
    %14 = arith.divf %12, %13 : vector<17x1xf32>
    %15 = vector.broadcast %7 : vector<17x1xf32> to vector<17x32xf32>
    %16 = arith.subf %1, %15 : vector<17x32xf32>
    %cst_9 = arith.constant 9.99999974E-6 : f32
    %17 = vector.broadcast %cst_9 : f32 to vector<17x1xf32>
    %18 = arith.addf %14, %17 : vector<17x1xf32>
    %19 = math.rsqrt %18 : vector<17x1xf32>
    %20 = vector.broadcast %19 : vector<17x1xf32> to vector<17x32xf32>
    %21 = arith.mulf %16, %20 : vector<17x32xf32>
    %22 = vector.broadcast %2 : vector<1x32xf32> to vector<17x32xf32>
    %23 = arith.mulf %21, %22 : vector<17x32xf32>
    %24 = vector.broadcast %3 : vector<1x32xf32> to vector<17x32xf32>
    %25 = arith.addf %23, %24 : vector<17x32xf32>
    %26 = arith.truncf %25 : vector<17x32xf32> to vector<17x32xbf16>
    %c0_10 = arith.constant 0 : index
    %c0_11 = arith.constant 0 : index
    %27 = vector.load %arg4[%c0_10, %c0_11] : memref<32x32xbf16, #tpu.memory_space<vmem>>, vector<32x32xbf16>
    %cst_12 = arith.constant dense<0.000000e+00> : vector<17x32xf32>
    %28 = tpu.matmul %26, %27, %cst_12 {dimension_numbers = #tpu.dot_dimension_numbers<[1], [0], [0], [1], [0, 0, 1, 1], [], []>} : vector<17x32xbf16>, vector<32x32xbf16>, vector<17x32xf32> -> vector<17x32xf32>
    %c0_13 = arith.constant 0 : index
    %c0_14 = arith.constant 0 : index
    %29 = vector.load %arg5[%c0_13, %c0_14] : memref<1x32xf32, #tpu.memory_space<vmem>>, vector<1x32xf32>
    %30 = vector.broadcast %29 : vector<1x32xf32> to vector<17x32xf32>
    %31 = arith.addf %28, %30 : vector<17x32xf32>
    %c0_15 = arith.constant 0 : index
    %c0_16 = arith.constant 0 : index
    %32 = vector.load %arg6[%c0_15, %c0_16] : memref<32x32xbf16, #tpu.memory_space<vmem>>, vector<32x32xbf16>
    %cst_17 = arith.constant dense<0.000000e+00> : vector<17x32xf32>
    %33 = tpu.matmul %26, %32, %cst_17 {dimension_numbers = #tpu.dot_dimension_numbers<[1], [0], [0], [1], [0, 0, 1, 1], [], []>} : vector<17x32xbf16>, vector<32x32xbf16>, vector<17x32xf32> -> vector<17x32xf32>
    %c0_18 = arith.constant 0 : index
    %c0_19 = arith.constant 0 : index
    %34 = vector.load %arg7[%c0_18, %c0_19] : memref<1x32xf32, #tpu.memory_space<vmem>>, vector<1x32xf32>
    %35 = vector.broadcast %34 : vector<1x32xf32> to vector<17x32xf32>
    %36 = arith.addf %33, %35 : vector<17x32xf32>
    %c0_20 = arith.constant 0 : index
    %c0_21 = arith.constant 0 : index
    %37 = vector.load %arg8[%c0_20, %c0_21] : memref<32x32xbf16, #tpu.memory_space<vmem>>, vector<32x32xbf16>
    %cst_22 = arith.constant dense<0.000000e+00> : vector<17x32xf32>
    %38 = tpu.matmul %26, %37, %cst_22 {dimension_numbers = #tpu.dot_dimension_numbers<[1], [0], [0], [1], [0, 0, 1, 1], [], []>} : vector<17x32xbf16>, vector<32x32xbf16>, vector<17x32xf32> -> vector<17x32xf32>
    %c0_23 = arith.constant 0 : index
    %c0_24 = arith.constant 0 : index
    %39 = vector.load %arg9[%c0_23, %c0_24] : memref<1x32xf32, #tpu.memory_space<vmem>>, vector<1x32xf32>
    %40 = vector.broadcast %39 : vector<1x32xf32> to vector<17x32xf32>
    %41 = arith.addf %38, %40 : vector<17x32xf32>
    %c0_25 = arith.constant 0 : index
    %c0_26 = arith.constant 0 : index
    %42 = vector.load %arg10[%c0_25, %c0_26] : memref<32x32xbf16, #tpu.memory_space<vmem>>, vector<32x32xbf16>
    %c0_27 = arith.constant 0 : index
    %c0_28 = arith.constant 0 : index
    %43 = vector.load %arg11[%c0_27, %c0_28] : memref<1x32xf32, #tpu.memory_space<vmem>>, vector<1x32xf32>
    %cst_29 = arith.constant 0.000000e+00 : f32
    %44 = vector.broadcast %cst_29 : f32 to vector<17x32xf32>
    %45 = vector.broadcast %43 : vector<1x32xf32> to vector<17x32xf32>
    %46 = arith.addf %45, %44 : vector<17x32xf32>
    %47 = vector.extract_strided_slice %31 {offsets = [0, 0], sizes = [17, 8], strides = [1, 1]} : vector<17x32xf32> to vector<17x8xf32>
    %48 = arith.truncf %47 : vector<17x8xf32> to vector<17x8xbf16>
    %49 = vector.extract_strided_slice %36 {offsets = [0, 0], sizes = [17, 8], strides = [1, 1]} : vector<17x32xf32> to vector<17x8xf32>
    %50 = arith.truncf %49 : vector<17x8xf32> to vector<17x8xbf16>
    %51 = vector.extract_strided_slice %41 {offsets = [0, 0], sizes = [17, 8], strides = [1, 1]} : vector<17x32xf32> to vector<17x8xf32>
    %52 = arith.truncf %51 : vector<17x8xf32> to vector<17x8xbf16>
    %53 = tpu.transpose %50, [1, 0] : vector<17x8xbf16> -> vector<8x17xbf16>
    %cst_30 = arith.constant dense<0.000000e+00> : vector<17x17xf32>
    %54 = tpu.matmul %48, %53, %cst_30 {dimension_numbers = #tpu.dot_dimension_numbers<[1], [0], [0], [1], [0, 0, 1, 1], [], []>} : vector<17x8xbf16>, vector<8x17xbf16>, vector<17x17xf32> -> vector<17x17xf32>
    %cst_31 = arith.constant 0.353553385 : f32
    %55 = vector.broadcast %cst_31 : f32 to vector<17x17xf32>
    %56 = arith.mulf %54, %55 : vector<17x17xf32>
    %cst_32 = arith.constant dense<0xFF800000> : vector<17xf32>
    %57 = vector.multi_reduction <maximumf>, %56, %cst_32 [1] : vector<17x17xf32> to vector<17xf32>
    %58 = vector.shape_cast %57 : vector<17xf32> to vector<17x1xf32>
    %59 = vector.broadcast %58 : vector<17x1xf32> to vector<17x17xf32>
    %60 = arith.subf %56, %59 : vector<17x17xf32>
    %61 = math.exp %60 : vector<17x17xf32>
    %cst_33 = arith.constant dense<0.000000e+00> : vector<17xf32>
    %62 = vector.multi_reduction <add>, %61, %cst_33 [1] : vector<17x17xf32> to vector<17xf32>
    %63 = vector.shape_cast %62 : vector<17xf32> to vector<17x1xf32>
    %64 = vector.broadcast %63 : vector<17x1xf32> to vector<17x17xf32>
    %65 = arith.divf %61, %64 : vector<17x17xf32>
    %66 = arith.truncf %65 : vector<17x17xf32> to vector<17x17xbf16>
    %cst_34 = arith.constant dense<0.000000e+00> : vector<17x8xf32>
    %67 = tpu.matmul %66, %52, %cst_34 {dimension_numbers = #tpu.dot_dimension_numbers<[1], [0], [0], [1], [0, 0, 1, 1], [], []>} : vector<17x17xbf16>, vector<17x8xbf16>, vector<17x8xf32> -> vector<17x8xf32>
    %68 = arith.truncf %67 : vector<17x8xf32> to vector<17x8xbf16>
    %69 = vector.extract_strided_slice %42 {offsets = [0, 0], sizes = [8, 32], strides = [1, 1]} : vector<32x32xbf16> to vector<8x32xbf16>
    %cst_35 = arith.constant dense<0.000000e+00> : vector<17x32xf32>
    %70 = tpu.matmul %68, %69, %cst_35 {dimension_numbers = #tpu.dot_dimension_numbers<[1], [0], [0], [1], [0, 0, 1, 1], [], []>} : vector<17x8xbf16>, vector<8x32xbf16>, vector<17x32xf32> -> vector<17x32xf32>
    %71 = arith.addf %46, %70 : vector<17x32xf32>
    %72 = vector.extract_strided_slice %31 {offsets = [0, 8], sizes = [17, 8], strides = [1, 1]} : vector<17x32xf32> to vector<17x8xf32>
    %73 = arith.truncf %72 : vector<17x8xf32> to vector<17x8xbf16>
    %74 = vector.extract_strided_slice %36 {offsets = [0, 8], sizes = [17, 8], strides = [1, 1]} : vector<17x32xf32> to vector<17x8xf32>
    %75 = arith.truncf %74 : vector<17x8xf32> to vector<17x8xbf16>
    %76 = vector.extract_strided_slice %41 {offsets = [0, 8], sizes = [17, 8], strides = [1, 1]} : vector<17x32xf32> to vector<17x8xf32>
    %77 = arith.truncf %76 : vector<17x8xf32> to vector<17x8xbf16>
    %78 = tpu.transpose %75, [1, 0] : vector<17x8xbf16> -> vector<8x17xbf16>
    %cst_36 = arith.constant dense<0.000000e+00> : vector<17x17xf32>
    %79 = tpu.matmul %73, %78, %cst_36 {dimension_numbers = #tpu.dot_dimension_numbers<[1], [0], [0], [1], [0, 0, 1, 1], [], []>} : vector<17x8xbf16>, vector<8x17xbf16>, vector<17x17xf32> -> vector<17x17xf32>
    %cst_37 = arith.constant 0.353553385 : f32
    %80 = vector.broadcast %cst_37 : f32 to vector<17x17xf32>
    %81 = arith.mulf %79, %80 : vector<17x17xf32>
    %cst_38 = arith.constant dense<0xFF800000> : vector<17xf32>
    %82 = vector.multi_reduction <maximumf>, %81, %cst_38 [1] : vector<17x17xf32> to vector<17xf32>
    %83 = vector.shape_cast %82 : vector<17xf32> to vector<17x1xf32>
    %84 = vector.broadcast %83 : vector<17x1xf32> to vector<17x17xf32>
    %85 = arith.subf %81, %84 : vector<17x17xf32>
    %86 = math.exp %85 : vector<17x17xf32>
    %cst_39 = arith.constant dense<0.000000e+00> : vector<17xf32>
    %87 = vector.multi_reduction <add>, %86, %cst_39 [1] : vector<17x17xf32> to vector<17xf32>
    %88 = vector.shape_cast %87 : vector<17xf32> to vector<17x1xf32>
    %89 = vector.broadcast %88 : vector<17x1xf32> to vector<17x17xf32>
    %90 = arith.divf %86, %89 : vector<17x17xf32>
    %91 = arith.truncf %90 : vector<17x17xf32> to vector<17x17xbf16>
    %cst_40 = arith.constant dense<0.000000e+00> : vector<17x8xf32>
    %92 = tpu.matmul %91, %77, %cst_40 {dimension_numbers = #tpu.dot_dimension_numbers<[1], [0], [0], [1], [0, 0, 1, 1], [], []>} : vector<17x17xbf16>, vector<17x8xbf16>, vector<17x8xf32> -> vector<17x8xf32>
    %93 = arith.truncf %92 : vector<17x8xf32> to vector<17x8xbf16>
    %94 = vector.extract_strided_slice %42 {offsets = [8, 0], sizes = [8, 32], strides = [1, 1]} : vector<32x32xbf16> to vector<8x32xbf16>
    %cst_41 = arith.constant dense<0.000000e+00> : vector<17x32xf32>
    %95 = tpu.matmul %93, %94, %cst_41 {dimension_numbers = #tpu.dot_dimension_numbers<[1], [0], [0], [1], [0, 0, 1, 1], [], []>} : vector<17x8xbf16>, vector<8x32xbf16>, vector<17x32xf32> -> vector<17x32xf32>
    %96 = arith.addf %71, %95 : vector<17x32xf32>
    %97 = vector.extract_strided_slice %31 {offsets = [0, 16], sizes = [17, 8], strides = [1, 1]} : vector<17x32xf32> to vector<17x8xf32>
    %98 = arith.truncf %97 : vector<17x8xf32> to vector<17x8xbf16>
    %99 = vector.extract_strided_slice %36 {offsets = [0, 16], sizes = [17, 8], strides = [1, 1]} : vector<17x32xf32> to vector<17x8xf32>
    %100 = arith.truncf %99 : vector<17x8xf32> to vector<17x8xbf16>
    %101 = vector.extract_strided_slice %41 {offsets = [0, 16], sizes = [17, 8], strides = [1, 1]} : vector<17x32xf32> to vector<17x8xf32>
    %102 = arith.truncf %101 : vector<17x8xf32> to vector<17x8xbf16>
    %103 = tpu.transpose %100, [1, 0] : vector<17x8xbf16> -> vector<8x17xbf16>
    %cst_42 = arith.constant dense<0.000000e+00> : vector<17x17xf32>
    %104 = tpu.matmul %98, %103, %cst_42 {dimension_numbers = #tpu.dot_dimension_numbers<[1], [0], [0], [1], [0, 0, 1, 1], [], []>} : vector<17x8xbf16>, vector<8x17xbf16>, vector<17x17xf32> -> vector<17x17xf32>
    %cst_43 = arith.constant 0.353553385 : f32
    %105 = vector.broadcast %cst_43 : f32 to vector<17x17xf32>
    %106 = arith.mulf %104, %105 : vector<17x17xf32>
    %cst_44 = arith.constant dense<0xFF800000> : vector<17xf32>
    %107 = vector.multi_reduction <maximumf>, %106, %cst_44 [1] : vector<17x17xf32> to vector<17xf32>
    %108 = vector.shape_cast %107 : vector<17xf32> to vector<17x1xf32>
    %109 = vector.broadcast %108 : vector<17x1xf32> to vector<17x17xf32>
    %110 = arith.subf %106, %109 : vector<17x17xf32>
    %111 = math.exp %110 : vector<17x17xf32>
    %cst_45 = arith.constant dense<0.000000e+00> : vector<17xf32>
    %112 = vector.multi_reduction <add>, %111, %cst_45 [1] : vector<17x17xf32> to vector<17xf32>
    %113 = vector.shape_cast %112 : vector<17xf32> to vector<17x1xf32>
    %114 = vector.broadcast %113 : vector<17x1xf32> to vector<17x17xf32>
    %115 = arith.divf %111, %114 : vector<17x17xf32>
    %116 = arith.truncf %115 : vector<17x17xf32> to vector<17x17xbf16>
    %cst_46 = arith.constant dense<0.000000e+00> : vector<17x8xf32>
    %117 = tpu.matmul %116, %102, %cst_46 {dimension_numbers = #tpu.dot_dimension_numbers<[1], [0], [0], [1], [0, 0, 1, 1], [], []>} : vector<17x17xbf16>, vector<17x8xbf16>, vector<17x8xf32> -> vector<17x8xf32>
    %118 = arith.truncf %117 : vector<17x8xf32> to vector<17x8xbf16>
    %119 = vector.extract_strided_slice %42 {offsets = [16, 0], sizes = [8, 32], strides = [1, 1]} : vector<32x32xbf16> to vector<8x32xbf16>
    %cst_47 = arith.constant dense<0.000000e+00> : vector<17x32xf32>
    %120 = tpu.matmul %118, %119, %cst_47 {dimension_numbers = #tpu.dot_dimension_numbers<[1], [0], [0], [1], [0, 0, 1, 1], [], []>} : vector<17x8xbf16>, vector<8x32xbf16>, vector<17x32xf32> -> vector<17x32xf32>
    %121 = arith.addf %96, %120 : vector<17x32xf32>
    %122 = vector.extract_strided_slice %31 {offsets = [0, 24], sizes = [17, 8], strides = [1, 1]} : vector<17x32xf32> to vector<17x8xf32>
    %123 = arith.truncf %122 : vector<17x8xf32> to vector<17x8xbf16>
    %124 = vector.extract_strided_slice %36 {offsets = [0, 24], sizes = [17, 8], strides = [1, 1]} : vector<17x32xf32> to vector<17x8xf32>
    %125 = arith.truncf %124 : vector<17x8xf32> to vector<17x8xbf16>
    %126 = vector.extract_strided_slice %41 {offsets = [0, 24], sizes = [17, 8], strides = [1, 1]} : vector<17x32xf32> to vector<17x8xf32>
    %127 = arith.truncf %126 : vector<17x8xf32> to vector<17x8xbf16>
    %128 = tpu.transpose %125, [1, 0] : vector<17x8xbf16> -> vector<8x17xbf16>
    %cst_48 = arith.constant dense<0.000000e+00> : vector<17x17xf32>
    %129 = tpu.matmul %123, %128, %cst_48 {dimension_numbers = #tpu.dot_dimension_numbers<[1], [0], [0], [1], [0, 0, 1, 1], [], []>} : vector<17x8xbf16>, vector<8x17xbf16>, vector<17x17xf32> -> vector<17x17xf32>
    %cst_49 = arith.constant 0.353553385 : f32
    %130 = vector.broadcast %cst_49 : f32 to vector<17x17xf32>
    %131 = arith.mulf %129, %130 : vector<17x17xf32>
    %cst_50 = arith.constant dense<0xFF800000> : vector<17xf32>
    %132 = vector.multi_reduction <maximumf>, %131, %cst_50 [1] : vector<17x17xf32> to vector<17xf32>
    %133 = vector.shape_cast %132 : vector<17xf32> to vector<17x1xf32>
    %134 = vector.broadcast %133 : vector<17x1xf32> to vector<17x17xf32>
    %135 = arith.subf %131, %134 : vector<17x17xf32>
    %136 = math.exp %135 : vector<17x17xf32>
    %cst_51 = arith.constant dense<0.000000e+00> : vector<17xf32>
    %137 = vector.multi_reduction <add>, %136, %cst_51 [1] : vector<17x17xf32> to vector<17xf32>
    %138 = vector.shape_cast %137 : vector<17xf32> to vector<17x1xf32>
    %139 = vector.broadcast %138 : vector<17x1xf32> to vector<17x17xf32>
    %140 = arith.divf %136, %139 : vector<17x17xf32>
    %141 = arith.truncf %140 : vector<17x17xf32> to vector<17x17xbf16>
    %cst_52 = arith.constant dense<0.000000e+00> : vector<17x8xf32>
    %142 = tpu.matmul %141, %127, %cst_52 {dimension_numbers = #tpu.dot_dimension_numbers<[1], [0], [0], [1], [0, 0, 1, 1], [], []>} : vector<17x17xbf16>, vector<17x8xbf16>, vector<17x8xf32> -> vector<17x8xf32>
    %143 = arith.truncf %142 : vector<17x8xf32> to vector<17x8xbf16>
    %144 = vector.extract_strided_slice %42 {offsets = [24, 0], sizes = [8, 32], strides = [1, 1]} : vector<32x32xbf16> to vector<8x32xbf16>
    %cst_53 = arith.constant dense<0.000000e+00> : vector<17x32xf32>
    %145 = tpu.matmul %143, %144, %cst_53 {dimension_numbers = #tpu.dot_dimension_numbers<[1], [0], [0], [1], [0, 0, 1, 1], [], []>} : vector<17x8xbf16>, vector<8x32xbf16>, vector<17x32xf32> -> vector<17x32xf32>
    %146 = arith.addf %121, %145 : vector<17x32xf32>
    %147 = arith.addf %1, %146 : vector<17x32xf32>
    %c0_54 = arith.constant 0 : index
    %c0_55 = arith.constant 0 : index
    %148 = vector.load %arg12[%c0_54, %c0_55] : memref<1x32xf32, #tpu.memory_space<vmem>>, vector<1x32xf32>
    %c0_56 = arith.constant 0 : index
    %c0_57 = arith.constant 0 : index
    %149 = vector.load %arg13[%c0_56, %c0_57] : memref<1x32xf32, #tpu.memory_space<vmem>>, vector<1x32xf32>
    %cst_58 = arith.constant dense<0.000000e+00> : vector<17xf32>
    %150 = vector.multi_reduction <add>, %147, %cst_58 [1] : vector<17x32xf32> to vector<17xf32>
    %151 = vector.shape_cast %150 : vector<17xf32> to vector<17x1xf32>
    %cst_59 = arith.constant 3.200000e+01 : f32
    %152 = vector.broadcast %cst_59 : f32 to vector<17x1xf32>
    %153 = arith.divf %151, %152 : vector<17x1xf32>
    %154 = vector.broadcast %153 : vector<17x1xf32> to vector<17x32xf32>
    %155 = arith.subf %147, %154 : vector<17x32xf32>
    %156 = arith.mulf %155, %155 : vector<17x32xf32>
    %cst_60 = arith.constant dense<0.000000e+00> : vector<17xf32>
    %157 = vector.multi_reduction <add>, %156, %cst_60 [1] : vector<17x32xf32> to vector<17xf32>
    %158 = vector.shape_cast %157 : vector<17xf32> to vector<17x1xf32>
    %cst_61 = arith.constant 3.200000e+01 : f32
    %159 = vector.broadcast %cst_61 : f32 to vector<17x1xf32>
    %160 = arith.divf %158, %159 : vector<17x1xf32>
    %161 = vector.broadcast %153 : vector<17x1xf32> to vector<17x32xf32>
    %162 = arith.subf %147, %161 : vector<17x32xf32>
    %cst_62 = arith.constant 9.99999974E-6 : f32
    %163 = vector.broadcast %cst_62 : f32 to vector<17x1xf32>
    %164 = arith.addf %160, %163 : vector<17x1xf32>
    %165 = math.rsqrt %164 : vector<17x1xf32>
    %166 = vector.broadcast %165 : vector<17x1xf32> to vector<17x32xf32>
    %167 = arith.mulf %162, %166 : vector<17x32xf32>
    %168 = vector.broadcast %148 : vector<1x32xf32> to vector<17x32xf32>
    %169 = arith.mulf %167, %168 : vector<17x32xf32>
    %170 = vector.broadcast %149 : vector<1x32xf32> to vector<17x32xf32>
    %171 = arith.addf %169, %170 : vector<17x32xf32>
    %172 = arith.truncf %171 : vector<17x32xf32> to vector<17x32xbf16>
    %c0_63 = arith.constant 0 : index
    %c0_64 = arith.constant 0 : index
    %173 = vector.load %arg14[%c0_63, %c0_64] : memref<32x64xbf16, #tpu.memory_space<vmem>>, vector<32x64xbf16>
    %cst_65 = arith.constant dense<0.000000e+00> : vector<17x64xf32>
    %174 = tpu.matmul %172, %173, %cst_65 {dimension_numbers = #tpu.dot_dimension_numbers<[1], [0], [0], [1], [0, 0, 1, 1], [], []>} : vector<17x32xbf16>, vector<32x64xbf16>, vector<17x64xf32> -> vector<17x64xf32>
    %c0_66 = arith.constant 0 : index
    %c0_67 = arith.constant 0 : index
    %175 = vector.load %arg15[%c0_66, %c0_67] : memref<1x64xf32, #tpu.memory_space<vmem>>, vector<1x64xf32>
    %176 = vector.broadcast %175 : vector<1x64xf32> to vector<17x64xf32>
    %177 = arith.addf %174, %176 : vector<17x64xf32>
    %cst_68 = arith.constant 5.000000e-01 : f32
    %178 = vector.broadcast %cst_68 : f32 to vector<17x64xf32>
    %179 = arith.mulf %178, %177 : vector<17x64xf32>
    %cst_69 = arith.constant 4.471500e-02 : f32
    %180 = vector.broadcast %cst_69 : f32 to vector<17x64xf32>
    %181 = arith.mulf %180, %177 : vector<17x64xf32>
    %182 = arith.mulf %181, %177 : vector<17x64xf32>
    %183 = arith.mulf %182, %177 : vector<17x64xf32>
    %184 = arith.addf %177, %183 : vector<17x64xf32>
    %cst_70 = arith.constant 0.797884583 : f32
    %185 = vector.broadcast %cst_70 : f32 to vector<17x64xf32>
    %186 = arith.mulf %185, %184 : vector<17x64xf32>
    %187 = math.tanh %186 : vector<17x64xf32>
    %cst_71 = arith.constant 1.000000e+00 : f32
    %188 = vector.broadcast %cst_71 : f32 to vector<17x64xf32>
    %189 = arith.addf %188, %187 : vector<17x64xf32>
    %190 = arith.mulf %179, %189 : vector<17x64xf32>
    %191 = arith.truncf %190 : vector<17x64xf32> to vector<17x64xbf16>
    %c0_72 = arith.constant 0 : index
    %c0_73 = arith.constant 0 : index
    %192 = vector.load %arg16[%c0_72, %c0_73] : memref<64x32xbf16, #tpu.memory_space<vmem>>, vector<64x32xbf16>
    %cst_74 = arith.constant dense<0.000000e+00> : vector<17x32xf32>
    %193 = tpu.matmul %191, %192, %cst_74 {dimension_numbers = #tpu.dot_dimension_numbers<[1], [0], [0], [1], [0, 0, 1, 1], [], []>} : vector<17x64xbf16>, vector<64x32xbf16>, vector<17x32xf32> -> vector<17x32xf32>
    %c0_75 = arith.constant 0 : index
    %c0_76 = arith.constant 0 : index
    %194 = vector.load %arg17[%c0_75, %c0_76] : memref<1x32xf32, #tpu.memory_space<vmem>>, vector<1x32xf32>
    %195 = vector.broadcast %194 : vector<1x32xf32> to vector<17x32xf32>
    %196 = arith.addf %193, %195 : vector<17x32xf32>
    %197 = arith.addf %147, %171 : vector<17x32xf32>
    %198 = arith.addf %197, %196 : vector<17x32xf32>
    %c0_77 = arith.constant 0 : index
    %c0_78 = arith.constant 0 : index
    %c0_79 = arith.constant 0 : index
    %199 = vector.load %arg18[%c0_77, %c0_78, %c0_79] : memref<1x17x32xf32, #tpu.memory_space<vmem>>, vector<1x17x32xf32>
    %200 = vector.shape_cast %199 : vector<1x17x32xf32> to vector<17x32xf32>
    %201 = vector.shape_cast %198 : vector<17x32xf32> to vector<1x17x32xf32>
    tpu.vector_store %arg18[%c0_77, %c0_78, %c0_79], %201 {strides = array<i32>} : memref<1x17x32xf32, #tpu.memory_space<vmem>>, vector<1x17x32xf32>,
    return
  }
  func.func @transform_0(%arg0: i32) -> (i32, i32, i32) {
    %c0_i32 = arith.constant 0 : i32
    %c0_i32_0 = arith.constant 0 : i32
    %c0_i32_1 = arith.constant 0 : i32
    return %arg0, %c0_i32, %c0_i32_0 : i32, i32, i32
  }
  func.func @transform_1(%arg0: i32) -> (i32, i32) {
    %c0_i32 = arith.constant 0 : i32
    %c0_i32_0 = arith.constant 0 : i32
    %c0_i32_1 = arith.constant 0 : i32
    return %c0_i32, %c0_i32_0 : i32, i32
  }
  func.func @transform_2(%arg0: i32) -> (i32, i32) {
    %c0_i32 = arith.constant 0 : i32
    %c0_i32_0 = arith.constant 0 : i32
    %c0_i32_1 = arith.constant 0 : i32
    return %c0_i32, %c0_i32_0 : i32, i32
  }
  func.func @transform_3(%arg0: i32) -> (i32, i32) {
    %c0_i32 = arith.constant 0 : i32
    %c0_i32_0 = arith.constant 0 : i32
    %c0_i32_1 = arith.constant 0 : i32
    return %c0_i32, %c0_i32_0 : i32, i32
  }
  func.func @transform_4(%arg0: i32) -> (i32, i32) {
    %c0_i32 = arith.constant 0 : i32
    %c0_i32_0 = arith.constant 0 : i32
    %c0_i32_1 = arith.constant 0 : i32
    return %c0_i32, %c0_i32_0 : i32, i32
  }
  func.func @transform_5(%arg0: i32) -> (i32, i32) {
    %c0_i32 = arith.constant 0 : i32
    %c0_i32_0 = arith.constant 0 : i32
    %c0_i32_1 = arith.constant 0 : i32
    return %c0_i32, %c0_i32_0 : i32, i32
  }
  func.func @transform_6(%arg0: i32) -> (i32, i32) {
    %c0_i32 = arith.constant 0 : i32
    %c0_i32_0 = arith.constant 0 : i32
    %c0_i32_1 = arith.constant 0 : i32
    return %c0_i32, %c0_i32_0 : i32, i32
  }
  func.func @transform_7(%arg0: i32) -> (i32, i32) {
    %c0_i32 = arith.constant 0 : i32
    %c0_i32_0 = arith.constant 0 : i32
    %c0_i32_1 = arith.constant 0 : i32
    return %c0_i32, %c0_i32_0 : i32, i32
  }
  func.func @transform_8(%arg0: i32) -> (i32, i32) {
    %c0_i32 = arith.constant 0 : i32
    %c0_i32_0 = arith.constant 0 : i32
    %c0_i32_1 = arith.constant 0 : i32
    return %c0_i32, %c0_i32_0 : i32, i32
  }
  func.func @transform_9(%arg0: i32) -> (i32, i32) {
    %c0_i32 = arith.constant 0 : i32
    %c0_i32_0 = arith.constant 0 : i32
    %c0_i32_1 = arith.constant 0 : i32
    return %c0_i32, %c0_i32_0 : i32, i32
  }
  func.func @transform_10(%arg0: i32) -> (i32, i32) {
    %c0_i32 = arith.constant 0 : i32
    %c0_i32_0 = arith.constant 0 : i32
    %c0_i32_1 = arith.constant 0 : i32
    return %c0_i32, %c0_i32_0 : i32, i32
  }
  func.func @transform_11(%arg0: i32) -> (i32, i32) {
    %c0_i32 = arith.constant 0 : i32
    %c0_i32_0 = arith.constant 0 : i32
    %c0_i32_1 = arith.constant 0 : i32
    return %c0_i32, %c0_i32_0 : i32, i32
  }
  func.func @transform_12(%arg0: i32) -> (i32, i32) {
    %c0_i32 = arith.constant 0 : i32
    %c0_i32_0 = arith.constant 0 : i32
    %c0_i32_1 = arith.constant 0 : i32
    return %c0_i32, %c0_i32_0 : i32, i32
  }
  func.func @transform_13(%arg0: i32) -> (i32, i32) {
    %c0_i32 = arith.constant 0 : i32
    %c0_i32_0 = arith.constant 0 : i32
    %c0_i32_1 = arith.constant 0 : i32
    return %c0_i32, %c0_i32_0 : i32, i32
  }
  func.func @transform_14(%arg0: i32) -> (i32, i32) {
    %c0_i32 = arith.constant 0 : i32
    %c0_i32_0 = arith.constant 0 : i32
    %c0_i32_1 = arith.constant 0 : i32
    return %c0_i32, %c0_i32_0 : i32, i32
  }
  func.func @transform_15(%arg0: i32) -> (i32, i32) {
    %c0_i32 = arith.constant 0 : i32
    %c0_i32_0 = arith.constant 0 : i32
    %c0_i32_1 = arith.constant 0 : i32
    return %c0_i32, %c0_i32_0 : i32, i32
  }
  func.func @transform_16(%arg0: i32) -> (i32, i32) {
    %c0_i32 = arith.constant 0 : i32
    %c0_i32_0 = arith.constant 0 : i32
    %c0_i32_1 = arith.constant 0 : i32
    return %c0_i32, %c0_i32_0 : i32, i32
  }
  func.func @transform_17(%arg0: i32) -> (i32, i32, i32) {
    %c0_i32 = arith.constant 0 : i32
    %c0_i32_0 = arith.constant 0 : i32
    %c0_i32_1 = arith.constant 0 : i32
    return %arg0, %c0_i32, %c0_i32_0 : i32, i32, i32
  }
}

module attributes {stable_mosaic.version = 11 : i64} {
  func.func @_head_kernel(%arg0: i32, %arg1: memref<2x17x32xf32, #tpu.memory_space<vmem>>, %arg2: memref<1x32xf32, #tpu.memory_space<vmem>>, %arg3: memref<1x32xf32, #tpu.memory_space<vmem>>, %arg4: memref<32x10xbf16, #tpu.memory_space<vmem>>, %arg5: memref<1x10xf32, #tpu.memory_space<vmem>>, %arg6: memref<2x10xf32, #tpu.memory_space<vmem>>) attributes {dimension_semantics = [#tpu.dimension_semantics<arbitrary>], iteration_bounds = array<i64: 1>, scalar_prefetch = 0 : i64, scratch_operands = 0 : i64, tpu.core_type = #tpu.core_type<tc>, window_params = [{pipeline_mode = #tpu.pipeline_mode<synchronous>, transform_indices = @transform_0, window_bounds = array<i64: 2, 17, 32>}, {pipeline_mode = #tpu.pipeline_mode<synchronous>, transform_indices = @transform_1, window_bounds = array<i64: 1, 32>}, {pipeline_mode = #tpu.pipeline_mode<synchronous>, transform_indices = @transform_2, window_bounds = array<i64: 1, 32>}, {pipeline_mode = #tpu.pipeline_mode<synchronous>, transform_indices = @transform_3, window_bounds = array<i64: 32, 10>}, {pipeline_mode = #tpu.pipeline_mode<synchronous>, transform_indices = @transform_4, window_bounds = array<i64: 1, 10>}, {pipeline_mode = #tpu.pipeline_mode<synchronous>, transform_indices = @transform_5, window_bounds = array<i64: 2, 10>}]} {
    %c0 = arith.constant 0 : index
    %c0_0 = arith.constant 0 : index
    %c0_1 = arith.constant 0 : index
    %0 = vector.load %arg1[%c0, %c0_0, %c0_1] : memref<2x17x32xf32, #tpu.memory_space<vmem>>, vector<2x17x32xf32>
    %1 = vector.extract_strided_slice %0 {offsets = [0, 0, 0], sizes = [2, 1, 32], strides = [1, 1, 1]} : vector<2x17x32xf32> to vector<2x1x32xf32>
    %2 = vector.shape_cast %1 : vector<2x1x32xf32> to vector<2x32xf32>
    %c0_2 = arith.constant 0 : index
    %c0_3 = arith.constant 0 : index
    %3 = vector.load %arg2[%c0_2, %c0_3] : memref<1x32xf32, #tpu.memory_space<vmem>>, vector<1x32xf32>
    %c0_4 = arith.constant 0 : index
    %c0_5 = arith.constant 0 : index
    %4 = vector.load %arg3[%c0_4, %c0_5] : memref<1x32xf32, #tpu.memory_space<vmem>>, vector<1x32xf32>
    %cst = arith.constant dense<0.000000e+00> : vector<2xf32>
    %5 = vector.multi_reduction <add>, %2, %cst [1] : vector<2x32xf32> to vector<2xf32>
    %6 = vector.shape_cast %5 : vector<2xf32> to vector<2x1xf32>
    %cst_6 = arith.constant 3.200000e+01 : f32
    %7 = vector.broadcast %cst_6 : f32 to vector<2x1xf32>
    %8 = arith.divf %6, %7 : vector<2x1xf32>
    %9 = vector.broadcast %8 : vector<2x1xf32> to vector<2x32xf32>
    %10 = arith.subf %2, %9 : vector<2x32xf32>
    %11 = arith.mulf %10, %10 : vector<2x32xf32>
    %cst_7 = arith.constant dense<0.000000e+00> : vector<2xf32>
    %12 = vector.multi_reduction <add>, %11, %cst_7 [1] : vector<2x32xf32> to vector<2xf32>
    %13 = vector.shape_cast %12 : vector<2xf32> to vector<2x1xf32>
    %cst_8 = arith.constant 3.200000e+01 : f32
    %14 = vector.broadcast %cst_8 : f32 to vector<2x1xf32>
    %15 = arith.divf %13, %14 : vector<2x1xf32>
    %16 = vector.broadcast %8 : vector<2x1xf32> to vector<2x32xf32>
    %17 = arith.subf %2, %16 : vector<2x32xf32>
    %cst_9 = arith.constant 9.99999974E-6 : f32
    %18 = vector.broadcast %cst_9 : f32 to vector<2x1xf32>
    %19 = arith.addf %15, %18 : vector<2x1xf32>
    %20 = math.rsqrt %19 : vector<2x1xf32>
    %21 = vector.broadcast %20 : vector<2x1xf32> to vector<2x32xf32>
    %22 = arith.mulf %17, %21 : vector<2x32xf32>
    %23 = vector.broadcast %3 : vector<1x32xf32> to vector<2x32xf32>
    %24 = arith.mulf %22, %23 : vector<2x32xf32>
    %25 = vector.broadcast %4 : vector<1x32xf32> to vector<2x32xf32>
    %26 = arith.addf %24, %25 : vector<2x32xf32>
    %27 = arith.truncf %26 : vector<2x32xf32> to vector<2x32xbf16>
    %c0_10 = arith.constant 0 : index
    %c0_11 = arith.constant 0 : index
    %28 = vector.load %arg4[%c0_10, %c0_11] : memref<32x10xbf16, #tpu.memory_space<vmem>>, vector<32x10xbf16>
    %cst_12 = arith.constant dense<0.000000e+00> : vector<2x10xf32>
    %29 = tpu.matmul %27, %28, %cst_12 {dimension_numbers = #tpu.dot_dimension_numbers<[1], [0], [0], [1], [0, 0, 1, 1], [], []>} : vector<2x32xbf16>, vector<32x10xbf16>, vector<2x10xf32> -> vector<2x10xf32>
    %c0_13 = arith.constant 0 : index
    %c0_14 = arith.constant 0 : index
    %30 = vector.load %arg5[%c0_13, %c0_14] : memref<1x10xf32, #tpu.memory_space<vmem>>, vector<1x10xf32>
    %31 = vector.broadcast %30 : vector<1x10xf32> to vector<2x10xf32>
    %32 = arith.addf %29, %31 : vector<2x10xf32>
    %c0_15 = arith.constant 0 : index
    %c0_16 = arith.constant 0 : index
    %33 = vector.load %arg6[%c0_15, %c0_16] : memref<2x10xf32, #tpu.memory_space<vmem>>, vector<2x10xf32>
    tpu.vector_store %arg6[%c0_15, %c0_16], %32 {strides = array<i32>} : memref<2x10xf32, #tpu.memory_space<vmem>>, vector<2x10xf32>,
    return
  }
  func.func @transform_0(%arg0: i32) -> (i32, i32, i32) {
    %c0_i32 = arith.constant 0 : i32
    %c0_i32_0 = arith.constant 0 : i32
    %c0_i32_1 = arith.constant 0 : i32
    %c0_i32_2 = arith.constant 0 : i32
    return %c0_i32, %c0_i32_0, %c0_i32_1 : i32, i32, i32
  }
  func.func @transform_1(%arg0: i32) -> (i32, i32) {
    %c0_i32 = arith.constant 0 : i32
    %c0_i32_0 = arith.constant 0 : i32
    %c0_i32_1 = arith.constant 0 : i32
    return %c0_i32, %c0_i32_0 : i32, i32
  }
  func.func @transform_2(%arg0: i32) -> (i32, i32) {
    %c0_i32 = arith.constant 0 : i32
    %c0_i32_0 = arith.constant 0 : i32
    %c0_i32_1 = arith.constant 0 : i32
    return %c0_i32, %c0_i32_0 : i32, i32
  }
  func.func @transform_3(%arg0: i32) -> (i32, i32) {
    %c0_i32 = arith.constant 0 : i32
    %c0_i32_0 = arith.constant 0 : i32
    %c0_i32_1 = arith.constant 0 : i32
    return %c0_i32, %c0_i32_0 : i32, i32
  }
  func.func @transform_4(%arg0: i32) -> (i32, i32) {
    %c0_i32 = arith.constant 0 : i32
    %c0_i32_0 = arith.constant 0 : i32
    %c0_i32_1 = arith.constant 0 : i32
    return %c0_i32, %c0_i32_0 : i32, i32
  }
  func.func @transform_5(%arg0: i32) -> (i32, i32) {
    %c0_i32 = arith.constant 0 : i32
    %c0_i32_0 = arith.constant 0 : i32
    %c0_i32_1 = arith.constant 0 : i32
    return %c0_i32, %c0_i32_0 : i32, i32
  }
}

</mosaic_0001>

<llo_original>
// kernel: vit_forward_pallas.9
$region0: #{vit_forward_pallas.9}
  #allocation0 [shape = 'u32[]', space=smem, size = 0x4, offset = 0x4, fixed_abs, tag = 'smem constant byte address 0x4 - core index']
  #allocation1 [shape = 'u32[144,128]{1,0:T(1,128)}', space=vmem, size = 0x12000, scoped, tag = 'internal scratch']
  %s0 = inlined_call_operand.vmem [shape: f32[2,256,128], index: 0, kind: input, shape index: {}]
  %s1 = inlined_call_operand.vmem [shape: f32[2,256,128], index: 1, kind: input, shape index: {}]
  %s2 = inlined_call_operand.vmem [shape: f32[1,128], index: 2, kind: input, shape index: {}]
  %s3 = inlined_call_operand.vmem [shape: f32[1,128], index: 3, kind: input, shape index: {}]
  %s4 = inlined_call_operand.vmem [shape: f32[2,256,128], index: 4, kind: output, shape index: {}]
  %s5 = sld [smem:[#allocation0]]
  $region49: #{vit_forward_pallas.9} parent=0
    _
  %s7 = ssub.s32 1, %s5
  %s8 = scalar_select 0, %s7, %s5
  loop: start=0, step=1, limit=4
  $region2: #{vit_forward_pallas.9} parent=0 // loop_pre_header
    _
  $region3: #{vit_forward_pallas.9} parent=0 // loop_header
    %s10 = sphi 0, %s14
    %p11 = scmp.ge.s32.totalorder %s10, 4
    %s20 = sphi 0, %s22
    %s23 = sphi 0, %s20
    %s24 = sphi 0, %s23
    %s40 = sphi 0, %s24
    %s46 = sphi 0, %s48
    %s49 = sphi 0, %s46
    %s50 = sphi 0, %s49
    %s66 = sphi 0, %s50
    %s70 = sphi 0, %s70
    %s72 = sphi 0, %s70
    %s73 = sphi 0, %s72
    %s87 = sphi 0, %s73
    %s91 = sphi 0, %s91
    %s93 = sphi 0, %s91
    %s94 = sphi 0, %s93
    %s108 = sphi 0, %s94
    %s114 = sphi 0, %s116
    %s117 = sphi 0, %s114
    %s118 = sphi 0, %s117
    %s134 = sphi 0, %s118
  $region4: #{vit_forward_pallas.9} parent=0 // loop_header_branch
    %13 = sbr.rel (%p11) target = $region8
  $region5: #{vit_forward_pallas.9} parent=0 // loop_body
    %s15 = ssub.s32 %s10, 1
    %s16 = ssub.s32 %s10, 2
    %s17 = sadd.s32 %s10, 1
    %s18 = ssub.s32 %s10, %s17
    %p19 = scmp.eq.s32.totalorder %s18, 0
    %s21 = sadd.s32 %s20, 1
    %s22 = scalar_select %p19, %s20, %s21
    %p25 = pneg %p19
    %p26 = scmp.eq.s32.totalorder %s10, 1
    %p27 = por %p25, %p26
    %p28 = scmp.ne.s32.totalorder %s20, %s23
    %p29 = scmp.eq.s32.totalorder %s10, 0
    %p30 = por %p28, %p29
    %p31 = scmp.ne.s32.totalorder %s20, %s23
    %p32 = scmp.eq.s32.totalorder %s15, 1
    %p33 = por %p31, %p32
    %p34 = scmp.ne.s32.totalorder %s23, %s24
    %p35 = scmp.eq.s32.totalorder %s15, 0
    %p36 = por %p34, %p35
    %p37 = scmp.ne.s32.totalorder %s23, %s24
    %p38 = scmp.eq.s32.totalorder %s16, 1
    %p39 = por %p37, %p38
    %p41 = scmp.ne.s32.totalorder %s24, %s40
    %p42 = scmp.eq.s32.totalorder %s16, 0
    %p43 = por %p41, %p42
    %s44 = ssub.s32 %s10, %s17
    %p45 = scmp.eq.s32.totalorder %s44, 0
    %s47 = sadd.s32 %s46, 1
    %s48 = scalar_select %p45, %s46, %s47
    %p51 = pneg %p45
    %p52 = scmp.eq.s32.totalorder %s10, 1
    %p53 = por %p51, %p52
    %p54 = scmp.ne.s32.totalorder %s46, %s49
    %p55 = scmp.eq.s32.totalorder %s10, 0
    %p56 = por %p54, %p55
    %p57 = scmp.ne.s32.totalorder %s46, %s49
    %p58 = scmp.eq.s32.totalorder %s15, 1
    %p59 = por %p57, %p58
    %p60 = scmp.ne.s32.totalorder %s49, %s50
    %p61 = scmp.eq.s32.totalorder %s15, 0
    %p62 = por %p60, %p61
    %p63 = scmp.ne.s32.totalorder %s49, %s50
    %p64 = scmp.eq.s32.totalorder %s16, 1
    %p65 = por %p63, %p64
    %p67 = scmp.ne.s32.totalorder %s50, %s66
    %p68 = scmp.eq.s32.totalorder %s16, 0
    %p69 = por %p67, %p68
    %s71 = sadd.s32 %s70, 1
    %p74 = scmp.eq.s32.totalorder %s10, 1
    %p75 = scmp.ne.s32.totalorder %s70, %s72
    %p76 = scmp.eq.s32.totalorder %s10, 0
    %p77 = por %p75, %p76
    %p78 = scmp.ne.s32.totalorder %s70, %s72
    %p79 = scmp.eq.s32.totalorder %s15, 1
    %p80 = por %p78, %p79
    %p81 = scmp.ne.s32.totalorder %s72, %s73
    %p82 = scmp.eq.s32.totalorder %s15, 0
    %p83 = por %p81, %p82
    %p84 = scmp.ne.s32.totalorder %s72, %s73
    %p85 = scmp.eq.s32.totalorder %s16, 1
    %p86 = por %p84, %p85
    %p88 = scmp.ne.s32.totalorder %s73, %s87
    %p89 = scmp.eq.s32.totalorder %s16, 0
    %p90 = por %p88, %p89
    %s92 = sadd.s32 %s91, 1
    %p95 = scmp.eq.s32.totalorder %s10, 1
    %p96 = scmp.ne.s32.totalorder %s91, %s93
    %p97 = scmp.eq.s32.totalorder %s10, 0
    %p98 = por %p96, %p97
    %p99 = scmp.ne.s32.totalorder %s91, %s93
    %p100 = scmp.eq.s32.totalorder %s15, 1
    %p101 = por %p99, %p100
    %p102 = scmp.ne.s32.totalorder %s93, %s94
    %p103 = scmp.eq.s32.totalorder %s15, 0
    %p104 = por %p102, %p103
    %p105 = scmp.ne.s32.totalorder %s93, %s94
    %p106 = scmp.eq.s32.totalorder %s16, 1
    %p107 = por %p105, %p106
    %p109 = scmp.ne.s32.totalorder %s94, %s108
    %p110 = scmp.eq.s32.totalorder %s16, 0
    %p111 = por %p109, %p110
    %s112 = ssub.s32 %s10, %s17
    %p113 = scmp.eq.s32.totalorder %s112, 0
    %s115 = sadd.s32 %s114, 1
    %s116 = scalar_select %p113, %s114, %s115
    %p119 = pneg %p113
    %p120 = scmp.eq.s32.totalorder %s10, 1
    %p121 = por %p119, %p120
    %p122 = scmp.ne.s32.totalorder %s114, %s117
    %p123 = scmp.eq.s32.totalorder %s10, 0
    %p124 = por %p122, %p123
    %p125 = scmp.ne.s32.totalorder %s114, %s117
    %p126 = scmp.eq.s32.totalorder %s15, 1
    %p127 = por %p125, %p126
    %p128 = scmp.ne.s32.totalorder %s117, %s118
    %p129 = scmp.eq.s32.totalorder %s15, 0
    %p130 = por %p128, %p129
    %p131 = scmp.ne.s32.totalorder %s117, %s118
    %p132 = scmp.eq.s32.totalorder %s16, 1
    %p133 = por %p131, %p132
    %p135 = scmp.ne.s32.totalorder %s118, %s134
    %p136 = scmp.eq.s32.totalorder %s16, 0
    %p137 = por %p135, %p136
    %p138 = scmp.le.s32.totalorder 1, %s10
    %p139 = scmp.lt.s32.totalorder %s10, 3
    %p140 = pnand %p138, %p139
    %p141 = pneg %p140
    // Predicated region
    $region9: #{vit_forward_pallas.9} parent=5 // pred_check
      _
    $region10: #{vit_forward_pallas.9} parent=5 // pred_check_branch
      %143 = sbr.rel (%p140) target = $region12
    $region11: #{vit_forward_pallas.9} parent=5 // pred_region
      %s144 = ssub.s32 %s10, 1
      // Predicated region
      $region13: #{vit_forward_pallas.9} parent=11 // pred_check
        %p145 = pneg %p83
      $region14: #{vit_forward_pallas.9} parent=11 // pred_check_branch
        %147 = sbr.rel (%p145) target = $region16
      $region15: #{vit_forward_pallas.9} parent=11 // pred_region
        _
      $region16: #{vit_forward_pallas.9} parent=11 // pred_fallthru
        _
      // Predicated region
      $region17: #{vit_forward_pallas.9} parent=11 // pred_check
        %p148 = pneg %p104
      $region18: #{vit_forward_pallas.9} parent=11 // pred_check_branch
        %150 = sbr.rel (%p148) target = $region20
      $region19: #{vit_forward_pallas.9} parent=11 // pred_region
        _
      $region20: #{vit_forward_pallas.9} parent=11 // pred_fallthru
        _
    $region12: #{vit_forward_pallas.9} parent=5 // pred_fallthru
      _
    %p151 = scmp.lt.s32.totalorder %s10, 2
    // Predicated region
    $region21: #{vit_forward_pallas.9} parent=5 // pred_check
      %p152 = pneg %p151
    $region22: #{vit_forward_pallas.9} parent=5 // pred_check_branch
      %154 = sbr.rel (%p152) target = $region24
    $region23: #{vit_forward_pallas.9} parent=5 // pred_region
      // Predicated region
      $region25: #{vit_forward_pallas.9} parent=23 // pred_check
        %p155 = pneg %p30
      $region26: #{vit_forward_pallas.9} parent=23 // pred_check_branch
        %157 = sbr.rel (%p155) target = $region28
      $region27: #{vit_forward_pallas.9} parent=23 // pred_region
        %p158 = scmp.lt.s32.totalorder %s10, 1
        %s159 = scalar_select %p158, %s10, 1
        %s160 = smul.addr %s159, 32
        %s161 = smul.addr %s160, 8
        %s162 = scalar_lea.vmem %s0, %s161
      $region28: #{vit_forward_pallas.9} parent=23 // pred_fallthru
        _
      // Predicated region
      $region29: #{vit_forward_pallas.9} parent=23 // pred_check
        %p163 = pneg %p56
      $region30: #{vit_forward_pallas.9} parent=23 // pred_check_branch
        %165 = sbr.rel (%p163) target = $region32
      $region31: #{vit_forward_pallas.9} parent=23 // pred_region
        %p166 = scmp.lt.s32.totalorder %s10, 1
        %s167 = scalar_select %p166, %s10, 1
        %s168 = smul.addr %s167, 32
        %s169 = smul.addr %s168, 8
        %s170 = scalar_lea.vmem %s1, %s169
      $region32: #{vit_forward_pallas.9} parent=23 // pred_fallthru
        _
    $region24: #{vit_forward_pallas.9} parent=5 // pred_fallthru
      _
    %p171 = scmp.le.s32.totalorder 1, %s10
    %p172 = scmp.lt.s32.totalorder %s10, 3
    %p173 = pnand %p171, %p172
    %p174 = pneg %p173
    // Predicated region
    $region33: #{vit_forward_pallas.9} parent=5 // pred_check
      _
    $region34: #{vit_forward_pallas.9} parent=5 // pred_check_branch
      %176 = sbr.rel (%p173) target = $region36
    $region35: #{vit_forward_pallas.9} parent=5 // pred_region
      %s177 = ssub.s32 %s10, 1
      %p178 = scmp.lt.s32.totalorder %s15, 1
      %s179 = scalar_select %p178, %s15, 1
      %s180 = smul.addr %s179, 32
      %s181 = smul.addr %s180, 8
      %s182 = scalar_lea.vmem %s0, %s181
      %p183 = pneg %p36
      %p184 = pneg %p33
      %p185 = scmp.lt.s32.totalorder %s15, 1
      %s186 = scalar_select %p185, %s15, 1
      %s187 = smul.addr %s186, 32
      %s188 = smul.addr %s187, 8
      %s189 = scalar_lea.vmem %s1, %s188
      %p190 = pneg %p62
      %p191 = pneg %p59
      %p192 = pneg %p83
      %p193 = pneg %p80
      %p194 = pneg %p104
      %p195 = pneg %p101
      %p196 = pneg %p130
      %p197 = pneg %p127
      %p198 = scmp.lt.s32.totalorder %s15, 1
      %s199 = scalar_select %p198, %s15, 1
      %s200 = smul.addr %s199, 32
      %s201 = smul.addr %s200, 8
      %s202 = scalar_lea.vmem %s4, %s201
      %p203 = scmp.lt.s32.totalorder %s15, 1
      %s204 = scalar_select %p203, %s15, 1
      %s205 = smul.addr %s204, 32
      %s206 = smul.addr %s205, 8
      %s207 = scalar_lea.vmem %s0, %s206
      %p208 = scmp.lt.s32.totalorder %s15, 1
      %s209 = scalar_select %p208, %s15, 1
      %s210 = smul.addr %s209, 32
      %s211 = smul.addr %s210, 8
      %s212 = scalar_lea.vmem %s1, %s211
      %p213 = scmp.lt.s32.totalorder %s15, 1
      %s214 = scalar_select %p213, %s15, 1
      %s215 = smul.addr %s214, 32
      %s216 = smul.addr %s215, 8
      %s217 = scalar_lea.vmem %s4, %s216
      %v218 = vld [vmem:[%s207] sm:$0xff]
      %v219 = vld [vmem:[%s207 + $0x8] sm:$0xff]
      %v220 = vld [vmem:[%s207 + $0x10] sm:$0xff]
      %v221 = vld [vmem:[%s207 + $0x18] sm:$0xff]
      %v222 = vld [vmem:[%s207 + $0x20] sm:$0xff]
      %v223 = vld [vmem:[%s207 + $0x28] sm:$0xff]
      %v224 = vld [vmem:[%s207 + $0x30] sm:$0xff]
      %v225 = vld [vmem:[%s207 + $0x38] sm:$0xff]
      %v226 = vld [vmem:[%s207 + $0x40] sm:$0xff]
      %v227 = vld [vmem:[%s207 + $0x48] sm:$0xff]
      %v228 = vld [vmem:[%s207 + $0x50] sm:$0xff]
      %v229 = vld [vmem:[%s207 + $0x58] sm:$0xff]
      %v230 = vld [vmem:[%s207 + $0x60] sm:$0xff]
      %v231 = vld [vmem:[%s207 + $0x68] sm:$0xff]
      %v232 = vld [vmem:[%s207 + $0x70] sm:$0xff]
      %v233 = vld [vmem:[%s207 + $0x78] sm:$0xff]
      %v234 = vld [vmem:[%s207 + $0x80] sm:$0xff]
      %v235 = vld [vmem:[%s207 + $0x88] sm:$0xff]
      %v236 = vld [vmem:[%s207 + $0x90] sm:$0xff]
      %v237 = vld [vmem:[%s207 + $0x98] sm:$0xff]
      %v238 = vld [vmem:[%s207 + $0xa0] sm:$0xff]
      %v239 = vld [vmem:[%s207 + $0xa8] sm:$0xff]
      %v240 = vld [vmem:[%s207 + $0xb0] sm:$0xff]
      %v241 = vld [vmem:[%s207 + $0xb8] sm:$0xff]
      %v242 = vld [vmem:[%s207 + $0xc0] sm:$0xff]
      %v243 = vld [vmem:[%s207 + $0xc8] sm:$0xff]
      %v244 = vld [vmem:[%s207 + $0xd0] sm:$0xff]
      %v245 = vld [vmem:[%s207 + $0xd8] sm:$0xff]
      %v246 = vld [vmem:[%s207 + $0xe0] sm:$0xff]
      %v247 = vld [vmem:[%s207 + $0xe8] sm:$0xff]
      %v248 = vld [vmem:[%s207 + $0xf0] sm:$0xff]
      %v249 = vld [vmem:[%s207 + $0xf8] sm:$0xff]
      %v250 = vld [vmem:[%s2] sm:$0x1]
      %v252 = vlaneseq
      %v253 = vshrl.u32 %v252, 7
      %v254 = vsub.s32 0, %v253
      %v255 = vrot.slane %v250, %v254
      %v257 = vmul.f32 %v218, %v255
      %v258 = vmul.f32 %v219, %v255
      %v259 = vmul.f32 %v220, %v255
      %v260 = vmul.f32 %v221, %v255
      %v261 = vmul.f32 %v222, %v255
      %v262 = vmul.f32 %v223, %v255
      %v263 = vmul.f32 %v224, %v255
      %v264 = vmul.f32 %v225, %v255
      %v265 = vmul.f32 %v226, %v255
      %v266 = vmul.f32 %v227, %v255
      %v267 = vmul.f32 %v228, %v255
      %v268 = vmul.f32 %v229, %v255
      %v269 = vmul.f32 %v230, %v255
      %v270 = vmul.f32 %v231, %v255
      %v271 = vmul.f32 %v232, %v255
      %v272 = vmul.f32 %v233, %v255
      %v273 = vmul.f32 %v234, %v255
      %v274 = vmul.f32 %v235, %v255
      %v275 = vmul.f32 %v236, %v255
      %v276 = vmul.f32 %v237, %v255
      %v277 = vmul.f32 %v238, %v255
      %v278 = vmul.f32 %v239, %v255
      %v279 = vmul.f32 %v240, %v255
      %v280 = vmul.f32 %v241, %v255
      %v281 = vmul.f32 %v242, %v255
      %v282 = vmul.f32 %v243, %v255
      %v283 = vmul.f32 %v244, %v255
      %v284 = vmul.f32 %v245, %v255
      %v285 = vmul.f32 %v246, %v255
      %v286 = vmul.f32 %v247, %v255
      %v287 = vmul.f32 %v248, %v255
      %v288 = vmul.f32 %v249, %v255
      %v289 = vld [vmem:[%s3] sm:$0x1]
      %v291 = vlaneseq
      %v292 = vshrl.u32 %v291, 7
      %v293 = vsub.s32 0, %v292
      %v294 = vrot.slane %v289, %v293
      %v296 = vadd.f32 %v257, %v294
      %v297 = vadd.f32 %v258, %v294
      %v298 = vadd.f32 %v259, %v294
      %v299 = vadd.f32 %v260, %v294
      %v300 = vadd.f32 %v261, %v294
      %v301 = vadd.f32 %v262, %v294
      %v302 = vadd.f32 %v263, %v294
      %v303 = vadd.f32 %v264, %v294
      %v304 = vadd.f32 %v265, %v294
      %v305 = vadd.f32 %v266, %v294
      %v306 = vadd.f32 %v267, %v294
      %v307 = vadd.f32 %v268, %v294
      %v308 = vadd.f32 %v269, %v294
      %v309 = vadd.f32 %v270, %v294
      %v310 = vadd.f32 %v271, %v294
      %v311 = vadd.f32 %v272, %v294
      %v312 = vadd.f32 %v273, %v294
      %v313 = vadd.f32 %v274, %v294
      %v314 = vadd.f32 %v275, %v294
      %v315 = vadd.f32 %v276, %v294
      %v316 = vadd.f32 %v277, %v294
      %v317 = vadd.f32 %v278, %v294
      %v318 = vadd.f32 %v279, %v294
      %v319 = vadd.f32 %v280, %v294
      %v320 = vadd.f32 %v281, %v294
      %v321 = vadd.f32 %v282, %v294
      %v322 = vadd.f32 %v283, %v294
      %v323 = vadd.f32 %v284, %v294
      %v324 = vadd.f32 %v285, %v294
      %v325 = vadd.f32 %v286, %v294
      %v326 = vadd.f32 %v287, %v294
      %v327 = vadd.f32 %v288, %v294
      %v328 = vld [vmem:[%s212] sm:$0xff]
      %v329 = vld [vmem:[%s212 + $0x8] sm:$0xff]
      %v330 = vld [vmem:[%s212 + $0x10] sm:$0xff]
      %v331 = vld [vmem:[%s212 + $0x18] sm:$0xff]
      %v332 = vld [vmem:[%s212 + $0x20] sm:$0xff]
      %v333 = vld [vmem:[%s212 + $0x28] sm:$0xff]
      %v334 = vld [vmem:[%s212 + $0x30] sm:$0xff]
      %v335 = vld [vmem:[%s212 + $0x38] sm:$0xff]
      %v336 = vld [vmem:[%s212 + $0x40] sm:$0xff]
      %v337 = vld [vmem:[%s212 + $0x48] sm:$0xff]
      %v338 = vld [vmem:[%s212 + $0x50] sm:$0xff]
      %v339 = vld [vmem:[%s212 + $0x58] sm:$0xff]
      %v340 = vld [vmem:[%s212 + $0x60] sm:$0xff]
      %v341 = vld [vmem:[%s212 + $0x68] sm:$0xff]
      %v342 = vld [vmem:[%s212 + $0x70] sm:$0xff]
      %v343 = vld [vmem:[%s212 + $0x78] sm:$0xff]
      %v344 = vld [vmem:[%s212 + $0x80] sm:$0xff]
      %v345 = vld [vmem:[%s212 + $0x88] sm:$0xff]
      %v346 = vld [vmem:[%s212 + $0x90] sm:$0xff]
      %v347 = vld [vmem:[%s212 + $0x98] sm:$0xff]
      %v348 = vld [vmem:[%s212 + $0xa0] sm:$0xff]
      %v349 = vld [vmem:[%s212 + $0xa8] sm:$0xff]
      %v350 = vld [vmem:[%s212 + $0xb0] sm:$0xff]
      %v351 = vld [vmem:[%s212 + $0xb8] sm:$0xff]
      %v352 = vld [vmem:[%s212 + $0xc0] sm:$0xff]
      %v353 = vld [vmem:[%s212 + $0xc8] sm:$0xff]
      %v354 = vld [vmem:[%s212 + $0xd0] sm:$0xff]
      %v355 = vld [vmem:[%s212 + $0xd8] sm:$0xff]
      %v356 = vld [vmem:[%s212 + $0xe0] sm:$0xff]
      %v357 = vld [vmem:[%s212 + $0xe8] sm:$0xff]
      %v358 = vld [vmem:[%s212 + $0xf0] sm:$0xff]
      %v359 = vld [vmem:[%s212 + $0xf8] sm:$0xff]
      %v360 = vadd.f32 %v296, %v328
      %v361 = vadd.f32 %v297, %v329
      %v362 = vadd.f32 %v298, %v330
      %v363 = vadd.f32 %v299, %v331
      %v364 = vadd.f32 %v300, %v332
      %v365 = vadd.f32 %v301, %v333
      %v366 = vadd.f32 %v302, %v334
      %v367 = vadd.f32 %v303, %v335
      %v368 = vadd.f32 %v304, %v336
      %v369 = vadd.f32 %v305, %v337
      %v370 = vadd.f32 %v306, %v338
      %v371 = vadd.f32 %v307, %v339
      %v372 = vadd.f32 %v308, %v340
      %v373 = vadd.f32 %v309, %v341
      %v374 = vadd.f32 %v310, %v342
      %v375 = vadd.f32 %v311, %v343
      %v376 = vadd.f32 %v312, %v344
      %v377 = vadd.f32 %v313, %v345
      %v378 = vadd.f32 %v314, %v346
      %v379 = vadd.f32 %v315, %v347
      %v380 = vadd.f32 %v316, %v348
      %v381 = vadd.f32 %v317, %v349
      %v382 = vadd.f32 %v318, %v350
      %v383 = vadd.f32 %v319, %v351
      %v384 = vadd.f32 %v320, %v352
      %v385 = vadd.f32 %v321, %v353
      %v386 = vadd.f32 %v322, %v354
      %v387 = vadd.f32 %v323, %v355
      %v388 = vadd.f32 %v324, %v356
      %v389 = vadd.f32 %v325, %v357
      %v390 = vadd.f32 %v326, %v358
      %v391 = vadd.f32 %v327, %v359
      %v392 = vmax.f32 %v360, 0.0
      %v393 = vmax.f32 %v361, 0.0
      %v394 = vmax.f32 %v362, 0.0
      %v395 = vmax.f32 %v363, 0.0
      %v396 = vmax.f32 %v364, 0.0
      %v397 = vmax.f32 %v365, 0.0
      %v398 = vmax.f32 %v366, 0.0
      %v399 = vmax.f32 %v367, 0.0
      %v400 = vmax.f32 %v368, 0.0
      %v401 = vmax.f32 %v369, 0.0
      %v402 = vmax.f32 %v370, 0.0
      %v403 = vmax.f32 %v371, 0.0
      %v404 = vmax.f32 %v372, 0.0
      %v405 = vmax.f32 %v373, 0.0
      %v406 = vmax.f32 %v374, 0.0
      %v407 = vmax.f32 %v375, 0.0
      %v408 = vmax.f32 %v376, 0.0
      %v409 = vmax.f32 %v377, 0.0
      %v410 = vmax.f32 %v378, 0.0
      %v411 = vmax.f32 %v379, 0.0
      %v412 = vmax.f32 %v380, 0.0
      %v413 = vmax.f32 %v381, 0.0
      %v414 = vmax.f32 %v382, 0.0
      %v415 = vmax.f32 %v383, 0.0
      %v416 = vmax.f32 %v384, 0.0
      %v417 = vmax.f32 %v385, 0.0
      %v418 = vmax.f32 %v386, 0.0
      %v419 = vmax.f32 %v387, 0.0
      %v420 = vmax.f32 %v388, 0.0
      %v421 = vmax.f32 %v389, 0.0
      %v422 = vmax.f32 %v390, 0.0
      %v423 = vmax.f32 %v391, 0.0
      %424 = vst [vmem:[%s217] sm:$0xff] %v392
      %425 = vst [vmem:[%s217 + $0x8] sm:$0xff] %v393
      %426 = vst [vmem:[%s217 + $0x10] sm:$0xff] %v394
      %427 = vst [vmem:[%s217 + $0x18] sm:$0xff] %v395
      %428 = vst [vmem:[%s217 + $0x20] sm:$0xff] %v396
      %429 = vst [vmem:[%s217 + $0x28] sm:$0xff] %v397
      %430 = vst [vmem:[%s217 + $0x30] sm:$0xff] %v398
      %431 = vst [vmem:[%s217 + $0x38] sm:$0xff] %v399
      %432 = vst [vmem:[%s217 + $0x40] sm:$0xff] %v400
      %433 = vst [vmem:[%s217 + $0x48] sm:$0xff] %v401
      %434 = vst [vmem:[%s217 + $0x50] sm:$0xff] %v402
      %435 = vst [vmem:[%s217 + $0x58] sm:$0xff] %v403
      %436 = vst [vmem:[%s217 + $0x60] sm:$0xff] %v404
      %437 = vst [vmem:[%s217 + $0x68] sm:$0xff] %v405
      %438 = vst [vmem:[%s217 + $0x70] sm:$0xff] %v406
      %439 = vst [vmem:[%s217 + $0x78] sm:$0xff] %v407
      %440 = vst [vmem:[%s217 + $0x80] sm:$0xff] %v408
      %441 = vst [vmem:[%s217 + $0x88] sm:$0xff] %v409
      %442 = vst [vmem:[%s217 + $0x90] sm:$0xff] %v410
      %443 = vst [vmem:[%s217 + $0x98] sm:$0xff] %v411
      %444 = vst [vmem:[%s217 + $0xa0] sm:$0xff] %v412
      %445 = vst [vmem:[%s217 + $0xa8] sm:$0xff] %v413
      %446 = vst [vmem:[%s217 + $0xb0] sm:$0xff] %v414
      %447 = vst [vmem:[%s217 + $0xb8] sm:$0xff] %v415
      %448 = vst [vmem:[%s217 + $0xc0] sm:$0xff] %v416
      %449 = vst [vmem:[%s217 + $0xc8] sm:$0xff] %v417
      %450 = vst [vmem:[%s217 + $0xd0] sm:$0xff] %v418
      %451 = vst [vmem:[%s217 + $0xd8] sm:$0xff] %v419
      %452 = vst [vmem:[%s217 + $0xe0] sm:$0xff] %v420
      %453 = vst [vmem:[%s217 + $0xe8] sm:$0xff] %v421
      %454 = vst [vmem:[%s217 + $0xf0] sm:$0xff] %v422
      %455 = vst [vmem:[%s217 + $0xf8] sm:$0xff] %v423
      %p456 = scmp.lt.s32.totalorder %s15, 1
      %s457 = scalar_select %p456, %s15, 1
      %s458 = smul.addr %s457, 32
      %s459 = smul.addr %s458, 8
      %s460 = scalar_lea.vmem %s4, %s459
      // Predicated region
      $region37: #{vit_forward_pallas.9} parent=35 // pred_check
        %p461 = pneg %p127
      $region38: #{vit_forward_pallas.9} parent=35 // pred_check_branch
        %463 = sbr.rel (%p461) target = $region40
      $region39: #{vit_forward_pallas.9} parent=35 // pred_region
        _
      $region40: #{vit_forward_pallas.9} parent=35 // pred_fallthru
        _
    $region36: #{vit_forward_pallas.9} parent=5 // pred_fallthru
      _
    %p464 = scmp.le.s32.totalorder 2, %s10
    // Predicated region
    $region41: #{vit_forward_pallas.9} parent=5 // pred_check
      %p465 = pneg %p464
    $region42: #{vit_forward_pallas.9} parent=5 // pred_check_branch
      %467 = sbr.rel (%p465) target = $region44
    $region43: #{vit_forward_pallas.9} parent=5 // pred_region
      %s468 = ssub.s32 %s10, 2
      // Predicated region
      $region45: #{vit_forward_pallas.9} parent=43 // pred_check
        %p469 = pneg %p133
      $region46: #{vit_forward_pallas.9} parent=43 // pred_check_branch
        %471 = sbr.rel (%p469) target = $region48
      $region47: #{vit_forward_pallas.9} parent=43 // pred_region
        %p472 = scmp.lt.s32.totalorder %s16, 1
        %s473 = scalar_select %p472, %s16, 1
        %s474 = smul.addr %s473, 32
        %s475 = smul.addr %s474, 8
        %s476 = scalar_lea.vmem %s4, %s475
      $region48: #{vit_forward_pallas.9} parent=43 // pred_fallthru
        _
    $region44: #{vit_forward_pallas.9} parent=5 // pred_fallthru
      _
  $region6: #{vit_forward_pallas.9} parent=0 // loop_footer
    %s14 = sadd.s32 1, %s10
  $region7: #{vit_forward_pallas.9} parent=0 // loop_footer_branch
    %9 = sbr.rel target = $region3
  $region8: #{vit_forward_pallas.9} parent=0 // loop_exit
    _

// kernel: vit_forward_pallas.10
$region0: #{vit_forward_pallas.10}
  #allocation0 [shape = 'u32[]', space=smem, size = 0x4, offset = 0x4, fixed_abs, tag = 'smem constant byte address 0x4 - core index']
  #allocation1 [shape = 'u32[144,128]{1,0:T(1,128)}', space=vmem, size = 0x12000, scoped, tag = 'internal scratch']
  %s0 = inlined_call_operand.vmem [shape: f32[2,16,48], index: 0, kind: input, shape index: {}]
  %s1 = inlined_call_operand.vmem [shape: bf16[48,32], index: 1, kind: input, shape index: {}]
  %s2 = inlined_call_operand.vmem [shape: f32[1,32], index: 2, kind: input, shape index: {}]
  %s3 = inlined_call_operand.vmem [shape: f32[1,32], index: 3, kind: input, shape index: {}]
  %s4 = inlined_call_operand.vmem [shape: f32[17,32], index: 4, kind: input, shape index: {}]
  %s5 = inlined_call_operand.vmem [shape: f32[2,17,32], index: 5, kind: output, shape index: {}]
  %s6 = sld [smem:[#allocation0]]
  $region53: #{vit_forward_pallas.10} parent=0
    _
  %s8 = ssub.s32 1, %s6
  %s9 = scalar_select 0, %s8, %s6
  loop: start=0, step=1, limit=4
  $region2: #{vit_forward_pallas.10} parent=0 // loop_pre_header
    _
  $region3: #{vit_forward_pallas.10} parent=0 // loop_header
    %s11 = sphi 0, %s15
    %p12 = scmp.ge.s32.totalorder %s11, 4
    %s21 = sphi 0, %s23
    %s24 = sphi 0, %s21
    %s25 = sphi 0, %s24
    %s41 = sphi 0, %s25
    %s45 = sphi 0, %s45
    %s47 = sphi 0, %s45
    %s48 = sphi 0, %s47
    %s62 = sphi 0, %s48
    %s66 = sphi 0, %s66
    %s68 = sphi 0, %s66
    %s69 = sphi 0, %s68
    %s83 = sphi 0, %s69
    %s87 = sphi 0, %s87
    %s89 = sphi 0, %s87
    %s90 = sphi 0, %s89
    %s104 = sphi 0, %s90
    %s108 = sphi 0, %s108
    %s110 = sphi 0, %s108
    %s111 = sphi 0, %s110
    %s125 = sphi 0, %s111
    %s131 = sphi 0, %s133
    %s134 = sphi 0, %s131
    %s135 = sphi 0, %s134
    %s151 = sphi 0, %s135
  $region4: #{vit_forward_pallas.10} parent=0 // loop_header_branch
    %14 = sbr.rel (%p12) target = $region8
  $region5: #{vit_forward_pallas.10} parent=0 // loop_body
    %s16 = ssub.s32 %s11, 1
    %s17 = ssub.s32 %s11, 2
    %s18 = sadd.s32 %s11, 1
    %s19 = ssub.s32 %s11, %s18
    %p20 = scmp.eq.s32.totalorder %s19, 0
    %s22 = sadd.s32 %s21, 1
    %s23 = scalar_select %p20, %s21, %s22
    %p26 = pneg %p20
    %p27 = scmp.eq.s32.totalorder %s11, 1
    %p28 = por %p26, %p27
    %p29 = scmp.ne.s32.totalorder %s21, %s24
    %p30 = scmp.eq.s32.totalorder %s11, 0
    %p31 = por %p29, %p30
    %p32 = scmp.ne.s32.totalorder %s21, %s24
    %p33 = scmp.eq.s32.totalorder %s16, 1
    %p34 = por %p32, %p33
    %p35 = scmp.ne.s32.totalorder %s24, %s25
    %p36 = scmp.eq.s32.totalorder %s16, 0
    %p37 = por %p35, %p36
    %p38 = scmp.ne.s32.totalorder %s24, %s25
    %p39 = scmp.eq.s32.totalorder %s17, 1
    %p40 = por %p38, %p39
    %p42 = scmp.ne.s32.totalorder %s25, %s41
    %p43 = scmp.eq.s32.totalorder %s17, 0
    %p44 = por %p42, %p43
    %s46 = sadd.s32 %s45, 1
    %p49 = scmp.eq.s32.totalorder %s11, 1
    %p50 = scmp.ne.s32.totalorder %s45, %s47
    %p51 = scmp.eq.s32.totalorder %s11, 0
    %p52 = por %p50, %p51
    %p53 = scmp.ne.s32.totalorder %s45, %s47
    %p54 = scmp.eq.s32.totalorder %s16, 1
    %p55 = por %p53, %p54
    %p56 = scmp.ne.s32.totalorder %s47, %s48
    %p57 = scmp.eq.s32.totalorder %s16, 0
    %p58 = por %p56, %p57
    %p59 = scmp.ne.s32.totalorder %s47, %s48
    %p60 = scmp.eq.s32.totalorder %s17, 1
    %p61 = por %p59, %p60
    %p63 = scmp.ne.s32.totalorder %s48, %s62
    %p64 = scmp.eq.s32.totalorder %s17, 0
    %p65 = por %p63, %p64
    %s67 = sadd.s32 %s66, 1
    %p70 = scmp.eq.s32.totalorder %s11, 1
    %p71 = scmp.ne.s32.totalorder %s66, %s68
    %p72 = scmp.eq.s32.totalorder %s11, 0
    %p73 = por %p71, %p72
    %p74 = scmp.ne.s32.totalorder %s66, %s68
    %p75 = scmp.eq.s32.totalorder %s16, 1
    %p76 = por %p74, %p75
    %p77 = scmp.ne.s32.totalorder %s68, %s69
    %p78 = scmp.eq.s32.totalorder %s16, 0
    %p79 = por %p77, %p78
    %p80 = scmp.ne.s32.totalorder %s68, %s69
    %p81 = scmp.eq.s32.totalorder %s17, 1
    %p82 = por %p80, %p81
    %p84 = scmp.ne.s32.totalorder %s69, %s83
    %p85 = scmp.eq.s32.totalorder %s17, 0
    %p86 = por %p84, %p85
    %s88 = sadd.s32 %s87, 1
    %p91 = scmp.eq.s32.totalorder %s11, 1
    %p92 = scmp.ne.s32.totalorder %s87, %s89
    %p93 = scmp.eq.s32.totalorder %s11, 0
    %p94 = por %p92, %p93
    %p95 = scmp.ne.s32.totalorder %s87, %s89
    %p96 = scmp.eq.s32.totalorder %s16, 1
    %p97 = por %p95, %p96
    %p98 = scmp.ne.s32.totalorder %s89, %s90
    %p99 = scmp.eq.s32.totalorder %s16, 0
    %p100 = por %p98, %p99
    %p101 = scmp.ne.s32.totalorder %s89, %s90
    %p102 = scmp.eq.s32.totalorder %s17, 1
    %p103 = por %p101, %p102
    %p105 = scmp.ne.s32.totalorder %s90, %s104
    %p106 = scmp.eq.s32.totalorder %s17, 0
    %p107 = por %p105, %p106
    %s109 = sadd.s32 %s108, 1
    %p112 = scmp.eq.s32.totalorder %s11, 1
    %p113 = scmp.ne.s32.totalorder %s108, %s110
    %p114 = scmp.eq.s32.totalorder %s11, 0
    %p115 = por %p113, %p114
    %p116 = scmp.ne.s32.totalorder %s108, %s110
    %p117 = scmp.eq.s32.totalorder %s16, 1
    %p118 = por %p116, %p117
    %p119 = scmp.ne.s32.totalorder %s110, %s111
    %p120 = scmp.eq.s32.totalorder %s16, 0
    %p121 = por %p119, %p120
    %p122 = scmp.ne.s32.totalorder %s110, %s111
    %p123 = scmp.eq.s32.totalorder %s17, 1
    %p124 = por %p122, %p123
    %p126 = scmp.ne.s32.totalorder %s111, %s125
    %p127 = scmp.eq.s32.totalorder %s17, 0
    %p128 = por %p126, %p127
    %s129 = ssub.s32 %s11, %s18
    %p130 = scmp.eq.s32.totalorder %s129, 0
    %s132 = sadd.s32 %s131, 1
    %s133 = scalar_select %p130, %s131, %s132
    %p136 = pneg %p130
    %p137 = scmp.eq.s32.totalorder %s11, 1
    %p138 = por %p136, %p137
    %p139 = scmp.ne.s32.totalorder %s131, %s134
    %p140 = scmp.eq.s32.totalorder %s11, 0
    %p141 = por %p139, %p140
    %p142 = scmp.ne.s32.totalorder %s131, %s134
    %p143 = scmp.eq.s32.totalorder %s16, 1
    %p144 = por %p142, %p143
    %p145 = scmp.ne.s32.totalorder %s134, %s135
    %p146 = scmp.eq.s32.totalorder %s16, 0
    %p147 = por %p145, %p146
    %p148 = scmp.ne.s32.totalorder %s134, %s135
    %p149 = scmp.eq.s32.totalorder %s17, 1
    %p150 = por %p148, %p149
    %p152 = scmp.ne.s32.totalorder %s135, %s151
    %p153 = scmp.eq.s32.totalorder %s17, 0
    %p154 = por %p152, %p153
    %p155 = scmp.le.s32.totalorder 1, %s11
    %p156 = scmp.lt.s32.totalorder %s11, 3
    %p157 = pnand %p155, %p156
    %p158 = pneg %p157
    // Predicated region
    $region9: #{vit_forward_pallas.10} parent=5 // pred_check
      _
    $region10: #{vit_forward_pallas.10} parent=5 // pred_check_branch
      %160 = sbr.rel (%p157) target = $region12
    $region11: #{vit_forward_pallas.10} parent=5 // pred_region
      %s161 = ssub.s32 %s11, 1
      // Predicated region
      $region13: #{vit_forward_pallas.10} parent=11 // pred_check
        %p162 = pneg %p58
      $region14: #{vit_forward_pallas.10} parent=11 // pred_check_branch
        %164 = sbr.rel (%p162) target = $region16
      $region15: #{vit_forward_pallas.10} parent=11 // pred_region
        _
      $region16: #{vit_forward_pallas.10} parent=11 // pred_fallthru
        _
      // Predicated region
      $region17: #{vit_forward_pallas.10} parent=11 // pred_check
        %p165 = pneg %p79
      $region18: #{vit_forward_pallas.10} parent=11 // pred_check_branch
        %167 = sbr.rel (%p165) target = $region20
      $region19: #{vit_forward_pallas.10} parent=11 // pred_region
        _
      $region20: #{vit_forward_pallas.10} parent=11 // pred_fallthru
        _
      // Predicated region
      $region21: #{vit_forward_pallas.10} parent=11 // pred_check
        %p168 = pneg %p100
      $region22: #{vit_forward_pallas.10} parent=11 // pred_check_branch
        %170 = sbr.rel (%p168) target = $region24
      $region23: #{vit_forward_pallas.10} parent=11 // pred_region
        _
      $region24: #{vit_forward_pallas.10} parent=11 // pred_fallthru
        _
      // Predicated region
      $region25: #{vit_forward_pallas.10} parent=11 // pred_check
        %p171 = pneg %p121
      $region26: #{vit_forward_pallas.10} parent=11 // pred_check_branch
        %173 = sbr.rel (%p171) target = $region28
      $region27: #{vit_forward_pallas.10} parent=11 // pred_region
        _
      $region28: #{vit_forward_pallas.10} parent=11 // pred_fallthru
        _
    $region12: #{vit_forward_pallas.10} parent=5 // pred_fallthru
      _
    %p174 = scmp.lt.s32.totalorder %s11, 2
    // Predicated region
    $region29: #{vit_forward_pallas.10} parent=5 // pred_check
      %p175 = pneg %p174
    $region30: #{vit_forward_pallas.10} parent=5 // pred_check_branch
      %177 = sbr.rel (%p175) target = $region32
    $region31: #{vit_forward_pallas.10} parent=5 // pred_region
      // Predicated region
      $region33: #{vit_forward_pallas.10} parent=31 // pred_check
        %p178 = pneg %p31
      $region34: #{vit_forward_pallas.10} parent=31 // pred_check_branch
        %180 = sbr.rel (%p178) target = $region36
      $region35: #{vit_forward_pallas.10} parent=31 // pred_region
        %p181 = scmp.lt.s32.totalorder %s11, 1
        %s182 = scalar_select %p181, %s11, 1
        %s183 = smul.addr %s182, 2
        %s184 = smul.addr %s183, 8
        %s185 = scalar_lea.vmem %s0, %s184
      $region36: #{vit_forward_pallas.10} parent=31 // pred_fallthru
        _
    $region32: #{vit_forward_pallas.10} parent=5 // pred_fallthru
      _
    %p186 = scmp.le.s32.totalorder 1, %s11
    %p187 = scmp.lt.s32.totalorder %s11, 3
    %p188 = pnand %p186, %p187
    %p189 = pneg %p188
    // Predicated region
    $region37: #{vit_forward_pallas.10} parent=5 // pred_check
      _
    $region38: #{vit_forward_pallas.10} parent=5 // pred_check_branch
      %191 = sbr.rel (%p188) target = $region40
    $region39: #{vit_forward_pallas.10} parent=5 // pred_region
      %s192 = ssub.s32 %s11, 1
      %p193 = scmp.lt.s32.totalorder %s16, 1
      %s194 = scalar_select %p193, %s16, 1
      %s195 = smul.addr %s194, 2
      %s196 = smul.addr %s195, 8
      %s197 = scalar_lea.vmem %s0, %s196
      %p198 = pneg %p37
      %p199 = pneg %p34
      %p200 = pneg %p58
      %p201 = pneg %p55
      %p202 = pneg %p79
      %p203 = pneg %p76
      %p204 = pneg %p100
      %p205 = pneg %p97
      %p206 = pneg %p121
      %p207 = pneg %p118
      %p208 = pneg %p147
      %p209 = pneg %p144
      %p210 = scmp.lt.s32.totalorder %s16, 1
      %s211 = scalar_select %p210, %s16, 1
      %s212 = smul.addr %s211, 3
      %s213 = smul.addr %s212, 8
      %s214 = scalar_lea.vmem %s5, %s213
      %p215 = scmp.lt.s32.totalorder %s16, 1
      %s216 = scalar_select %p215, %s16, 1
      %s217 = smul.addr %s216, 2
      %s218 = smul.addr %s217, 8
      %s219 = scalar_lea.vmem %s0, %s218
      %p220 = scmp.lt.s32.totalorder %s16, 1
      %s221 = scalar_select %p220, %s16, 1
      %s222 = smul.addr %s221, 3
      %s223 = smul.addr %s222, 8
      %s224 = scalar_lea.vmem %s5, %s223
      %v226 = vld [vmem:[%s219] sm:$0xff]
      %v227 = vld [vmem:[%s219 + $0x8] sm:$0xff]
      %v228 = vpack.c.bf16 %v227, %v226
      %v229 = vld [vmem:[%s1] sm:$0xf]
      %v230 = vld [vmem:[%s1 + $0x4] sm:$0xf]
      %v231 = vld [vmem:[%s1 + $0x8] sm:$0xf]
      %v232 = vld [vmem:[%s1 + $0xc] sm:$0xf]
      %v233 = vld [vmem:[%s1 + $0x10] sm:$0xf]
      %v234 = vld [vmem:[%s1 + $0x14] sm:$0xf]
      %v235 = vld [vmem:[%s2] sm:$0x1]
      %v237 = vlaneseq
      %v238 = vshrl.u32 %v237, 7
      %v239 = vsub.s32 0, %v238
      %v240 = vrot.slane %v235, %v239
      %v248 = vunpack.c.l.b16 %v229
      %v249 = vunpack.c.l.b16 %v230
      %v250 = vunpack.c.l.b16 %v231
      %v251 = vunpack.c.l.b16 %v232
      %v252 = vunpack.c.l.b16 %v233
      %v253 = vunpack.c.l.b16 %v234
      %v254 = vpack.c.b16 %v249, %v248
      %v255 = vpack.c.b16 %v251, %v250
      %v256 = vpack.c.b16 %v253, %v252
      %vm260 = vcmask 392192
      %v262 = vsel %vm260, %v228, 0
      %264 = vmatprep.subr.bf16.mxu0 0
      %265 = vmatpush1.bf16.msra.mxu0 0
      %266 = vmatprep.subr.bf16.mxu0 0
      %267 = vmatpush1.bf16.msra.mxu0 0
      %268 = vmatprep.subr.bf16.mxu0 0
      %269 = vmatpush1.bf16.msra.mxu0 0
      %270 = vmatprep.subr.bf16.mxu0 0
      %271 = vmatpush1.bf16.msra.mxu0 0
      %272 = vmatprep.subr.bf16.mxu0 0
      %273 = vmatpush1.bf16.msra.mxu0 0
      %274 = vmatprep.subr.bf16.mxu0 0
      %275 = vmatpush1.bf16.msra.mxu0 %v256
      %276 = vmatprep.subr.bf16.mxu0 0
      %277 = vmatpush1.bf16.msra.mxu0 %v255
      %278 = vmatprep.subr.bf16.mxu0 0
      %279 = vmatpush1.bf16.msra.mxu0 %v254
      %280 = vmatprep.subr.bf16.mxu0 0
      %281 = vmatpush2.bf16.msra.mxu0 0
      %282 = vmatprep.subr.bf16.mxu0 0
      %283 = vmatpush2.bf16.msra.mxu0 0
      %284 = vmatprep.subr.bf16.mxu0 0
      %285 = vmatpush2.bf16.msra.mxu0 0
      %286 = vmatprep.subr.bf16.mxu0 0
      %287 = vmatpush2.bf16.msra.mxu0 0
      %288 = vmatprep.subr.bf16.mxu0 0
      %289 = vmatpush2.bf16.msra.mxu0 0
      %290 = vmatprep.subr.bf16.mxu0 0
      %291 = vmatpush2.bf16.msra.mxu0 0
      %292 = vmatprep.subr.bf16.mxu0 0
      %293 = vmatpush2.bf16.msra.mxu0 0
      %294 = vmatprep.subr.bf16.mxu0 0
      %295 = vmatpush2.bf16.msra.mxu0 0
      %296 = vmatprep.mubr.bf16.mxu0 0
      %297 = vmatmul.mubr.bf16.gmra.mxu0 %v262
      %v298 = vpop.f32.mrf.mxu0
      %v299 = vadd.f32 %v240, %v298
      %v300 = vpop.f32.mrf.mxu0
      %v301 = vpop.f32.mrf.mxu0
      %v302 = vadd.f32 %v240, %v301
      %v303 = vpop.f32.mrf.mxu0
      %304 = vdwg.mxu0
      %v305 = vld [vmem:[%s3] sm:$0x1]
      %vm308 = vcmask 1040384
      %v309 = vrot.slane %v299, 7
      %v310 = vrot.slane %v302, 7
      %v311 = vsel %vm308, %v309, %v310
      %v315 = vsel %vm308, %v305, %v309
      %v316 = vld [vmem:[%s4] sm:$0xff]
      %v317 = vld [vmem:[%s4 + $0x8] sm:$0xff]
      %v318 = vld [vmem:[%s4 + $0x10] sm:$0x1]
      %v319 = vadd.f32 %v315, %v316
      %v320 = vadd.f32 %v311, %v317
      %v321 = vadd.f32 %v310, %v318
      %vm322 = vcmask 261120
      %323 = vst.msk [vmem:[%s224] sm:$0xff] %vm322, %v319
      %324 = vst.msk [vmem:[%s224 + $0x8] sm:$0xff] %vm322, %v320
      %vm325 = vcmask 253952
      %326 = vst.msk [vmem:[%s224 + $0x10] sm:$0x1] %vm325, %v321
      %p327 = scmp.lt.s32.totalorder %s16, 1
      %s328 = scalar_select %p327, %s16, 1
      %s329 = smul.addr %s328, 3
      %s330 = smul.addr %s329, 8
      %s331 = scalar_lea.vmem %s5, %s330
      // Predicated region
      $region41: #{vit_forward_pallas.10} parent=39 // pred_check
        %p332 = pneg %p144
      $region42: #{vit_forward_pallas.10} parent=39 // pred_check_branch
        %334 = sbr.rel (%p332) target = $region44
      $region43: #{vit_forward_pallas.10} parent=39 // pred_region
        _
      $region44: #{vit_forward_pallas.10} parent=39 // pred_fallthru
        _
    $region40: #{vit_forward_pallas.10} parent=5 // pred_fallthru
      _
    %p335 = scmp.le.s32.totalorder 2, %s11
    // Predicated region
    $region45: #{vit_forward_pallas.10} parent=5 // pred_check
      %p336 = pneg %p335
    $region46: #{vit_forward_pallas.10} parent=5 // pred_check_branch
      %338 = sbr.rel (%p336) target = $region48
    $region47: #{vit_forward_pallas.10} parent=5 // pred_region
      %s339 = ssub.s32 %s11, 2
      // Predicated region
      $region49: #{vit_forward_pallas.10} parent=47 // pred_check
        %p340 = pneg %p150
      $region50: #{vit_forward_pallas.10} parent=47 // pred_check_branch
        %342 = sbr.rel (%p340) target = $region52
      $region51: #{vit_forward_pallas.10} parent=47 // pred_region
        %p343 = scmp.lt.s32.totalorder %s17, 1
        %s344 = scalar_select %p343, %s17, 1
        %s345 = smul.addr %s344, 3
        %s346 = smul.addr %s345, 8
        %s347 = scalar_lea.vmem %s5, %s346
      $region52: #{vit_forward_pallas.10} parent=47 // pred_fallthru
        _
    $region48: #{vit_forward_pallas.10} parent=5 // pred_fallthru
      _
  $region6: #{vit_forward_pallas.10} parent=0 // loop_footer
    %s15 = sadd.s32 1, %s11
  $region7: #{vit_forward_pallas.10} parent=0 // loop_footer_branch
    %10 = sbr.rel target = $region3
  $region8: #{vit_forward_pallas.10} parent=0 // loop_exit
    _

// kernel: vit_forward_pallas.8
$region0: #{vit_forward_pallas.8}
  #allocation0 [shape = 'u32[]', space=smem, size = 0x4, offset = 0x4, fixed_abs, tag = 'smem constant byte address 0x4 - core index']
  #allocation1 [shape = 'u32[144,128]{1,0:T(1,128)}', space=vmem, size = 0x12000, scoped, tag = 'internal scratch']
  %s0 = inlined_call_operand.vmem [shape: f32[2,256,128], index: 0, kind: input, shape index: {}]
  %s1 = inlined_call_operand.vmem [shape: bf16[1152,128], index: 1, kind: input, shape index: {}]
  %s2 = inlined_call_operand.vmem [shape: f32[1,128], index: 2, kind: input, shape index: {}]
  %s3 = inlined_call_operand.vmem [shape: f32[1,128], index: 3, kind: input, shape index: {}]
  %s4 = inlined_call_operand.vmem [shape: f32[2,256,128], index: 4, kind: output, shape index: {0}]
  %s5 = inlined_call_operand.vmem [shape: f32[2,128], index: 5, kind: output, shape index: {1}]
  %6 = xla_tuple %s4, %s5
  %s7 = sld [smem:[#allocation0]]
  $region61: #{vit_forward_pallas.8} parent=0
    _
  %s9 = ssub.s32 1, %s7
  %s10 = scalar_select 0, %s9, %s7
  loop: start=0, step=1, limit=4
  $region2: #{vit_forward_pallas.8} parent=0 // loop_pre_header
    _
  $region3: #{vit_forward_pallas.8} parent=0 // loop_header
    %s12 = sphi 0, %s16
    %p13 = scmp.ge.s32.totalorder %s12, 4
    %s22 = sphi 0, %s24
    %s25 = sphi 0, %s22
    %s26 = sphi 0, %s25
    %s42 = sphi 0, %s26
    %s46 = sphi 0, %s46
    %s48 = sphi 0, %s46
    %s49 = sphi 0, %s48
    %s63 = sphi 0, %s49
    %s67 = sphi 0, %s67
    %s69 = sphi 0, %s67
    %s70 = sphi 0, %s69
    %s84 = sphi 0, %s70
    %s88 = sphi 0, %s88
    %s90 = sphi 0, %s88
    %s91 = sphi 0, %s90
    %s105 = sphi 0, %s91
    %s111 = sphi 0, %s113
    %s114 = sphi 0, %s111
    %s115 = sphi 0, %s114
    %s131 = sphi 0, %s115
    %s135 = sphi 0, %s135
    %s137 = sphi 0, %s135
    %s138 = sphi 0, %s137
    %s152 = sphi 0, %s138
  $region4: #{vit_forward_pallas.8} parent=0 // loop_header_branch
    %15 = sbr.rel (%p13) target = $region8
  $region5: #{vit_forward_pallas.8} parent=0 // loop_body
    %s17 = ssub.s32 %s12, 1
    %s18 = ssub.s32 %s12, 2
    %s19 = sadd.s32 %s12, 1
    %s20 = ssub.s32 %s12, %s19
    %p21 = scmp.eq.s32.totalorder %s20, 0
    %s23 = sadd.s32 %s22, 1
    %s24 = scalar_select %p21, %s22, %s23
    %p27 = pneg %p21
    %p28 = scmp.eq.s32.totalorder %s12, 1
    %p29 = por %p27, %p28
    %p30 = scmp.ne.s32.totalorder %s22, %s25
    %p31 = scmp.eq.s32.totalorder %s12, 0
    %p32 = por %p30, %p31
    %p33 = scmp.ne.s32.totalorder %s22, %s25
    %p34 = scmp.eq.s32.totalorder %s17, 1
    %p35 = por %p33, %p34
    %p36 = scmp.ne.s32.totalorder %s25, %s26
    %p37 = scmp.eq.s32.totalorder %s17, 0
    %p38 = por %p36, %p37
    %p39 = scmp.ne.s32.totalorder %s25, %s26
    %p40 = scmp.eq.s32.totalorder %s18, 1
    %p41 = por %p39, %p40
    %p43 = scmp.ne.s32.totalorder %s26, %s42
    %p44 = scmp.eq.s32.totalorder %s18, 0
    %p45 = por %p43, %p44
    %s47 = sadd.s32 %s46, 1
    %p50 = scmp.eq.s32.totalorder %s12, 1
    %p51 = scmp.ne.s32.totalorder %s46, %s48
    %p52 = scmp.eq.s32.totalorder %s12, 0
    %p53 = por %p51, %p52
    %p54 = scmp.ne.s32.totalorder %s46, %s48
    %p55 = scmp.eq.s32.totalorder %s17, 1
    %p56 = por %p54, %p55
    %p57 = scmp.ne.s32.totalorder %s48, %s49
    %p58 = scmp.eq.s32.totalorder %s17, 0
    %p59 = por %p57, %p58
    %p60 = scmp.ne.s32.totalorder %s48, %s49
    %p61 = scmp.eq.s32.totalorder %s18, 1
    %p62 = por %p60, %p61
    %p64 = scmp.ne.s32.totalorder %s49, %s63
    %p65 = scmp.eq.s32.totalorder %s18, 0
    %p66 = por %p64, %p65
    %s68 = sadd.s32 %s67, 1
    %p71 = scmp.eq.s32.totalorder %s12, 1
    %p72 = scmp.ne.s32.totalorder %s67, %s69
    %p73 = scmp.eq.s32.totalorder %s12, 0
    %p74 = por %p72, %p73
    %p75 = scmp.ne.s32.totalorder %s67, %s69
    %p76 = scmp.eq.s32.totalorder %s17, 1
    %p77 = por %p75, %p76
    %p78 = scmp.ne.s32.totalorder %s69, %s70
    %p79 = scmp.eq.s32.totalorder %s17, 0
    %p80 = por %p78, %p79
    %p81 = scmp.ne.s32.totalorder %s69, %s70
    %p82 = scmp.eq.s32.totalorder %s18, 1
    %p83 = por %p81, %p82
    %p85 = scmp.ne.s32.totalorder %s70, %s84
    %p86 = scmp.eq.s32.totalorder %s18, 0
    %p87 = por %p85, %p86
    %s89 = sadd.s32 %s88, 1
    %p92 = scmp.eq.s32.totalorder %s12, 1
    %p93 = scmp.ne.s32.totalorder %s88, %s90
    %p94 = scmp.eq.s32.totalorder %s12, 0
    %p95 = por %p93, %p94
    %p96 = scmp.ne.s32.totalorder %s88, %s90
    %p97 = scmp.eq.s32.totalorder %s17, 1
    %p98 = por %p96, %p97
    %p99 = scmp.ne.s32.totalorder %s90, %s91
    %p100 = scmp.eq.s32.totalorder %s17, 0
    %p101 = por %p99, %p100
    %p102 = scmp.ne.s32.totalorder %s90, %s91
    %p103 = scmp.eq.s32.totalorder %s18, 1
    %p104 = por %p102, %p103
    %p106 = scmp.ne.s32.totalorder %s91, %s105
    %p107 = scmp.eq.s32.totalorder %s18, 0
    %p108 = por %p106, %p107
    %s109 = ssub.s32 %s12, %s19
    %p110 = scmp.eq.s32.totalorder %s109, 0
    %s112 = sadd.s32 %s111, 1
    %s113 = scalar_select %p110, %s111, %s112
    %p116 = pneg %p110
    %p117 = scmp.eq.s32.totalorder %s12, 1
    %p118 = por %p116, %p117
    %p119 = scmp.ne.s32.totalorder %s111, %s114
    %p120 = scmp.eq.s32.totalorder %s12, 0
    %p121 = por %p119, %p120
    %p122 = scmp.ne.s32.totalorder %s111, %s114
    %p123 = scmp.eq.s32.totalorder %s17, 1
    %p124 = por %p122, %p123
    %p125 = scmp.ne.s32.totalorder %s114, %s115
    %p126 = scmp.eq.s32.totalorder %s17, 0
    %p127 = por %p125, %p126
    %p128 = scmp.ne.s32.totalorder %s114, %s115
    %p129 = scmp.eq.s32.totalorder %s18, 1
    %p130 = por %p128, %p129
    %p132 = scmp.ne.s32.totalorder %s115, %s131
    %p133 = scmp.eq.s32.totalorder %s18, 0
    %p134 = por %p132, %p133
    %s136 = sadd.s32 %s135, 1
    %p139 = scmp.eq.s32.totalorder %s12, 1
    %p140 = scmp.ne.s32.totalorder %s135, %s137
    %p141 = scmp.eq.s32.totalorder %s12, 0
    %p142 = por %p140, %p141
    %p143 = scmp.ne.s32.totalorder %s135, %s137
    %p144 = scmp.eq.s32.totalorder %s17, 1
    %p145 = por %p143, %p144
    %p146 = scmp.ne.s32.totalorder %s137, %s138
    %p147 = scmp.eq.s32.totalorder %s17, 0
    %p148 = por %p146, %p147
    %p149 = scmp.ne.s32.totalorder %s137, %s138
    %p150 = scmp.eq.s32.totalorder %s18, 1
    %p151 = por %p149, %p150
    %p153 = scmp.ne.s32.totalorder %s138, %s152
    %p154 = scmp.eq.s32.totalorder %s18, 0
    %p155 = por %p153, %p154
    %p156 = scmp.le.s32.totalorder 1, %s12
    %p157 = scmp.lt.s32.totalorder %s12, 3
    %p158 = pnand %p156, %p157
    %p159 = pneg %p158
    // Predicated region
    $region9: #{vit_forward_pallas.8} parent=5 // pred_check
      _
    $region10: #{vit_forward_pallas.8} parent=5 // pred_check_branch
      %161 = sbr.rel (%p158) target = $region12
    $region11: #{vit_forward_pallas.8} parent=5 // pred_region
      %s162 = ssub.s32 %s12, 1
      // Predicated region
      $region13: #{vit_forward_pallas.8} parent=11 // pred_check
        %p163 = pneg %p59
      $region14: #{vit_forward_pallas.8} parent=11 // pred_check_branch
        %165 = sbr.rel (%p163) target = $region16
      $region15: #{vit_forward_pallas.8} parent=11 // pred_region
        _
      $region16: #{vit_forward_pallas.8} parent=11 // pred_fallthru
        _
      // Predicated region
      $region17: #{vit_forward_pallas.8} parent=11 // pred_check
        %p166 = pneg %p80
      $region18: #{vit_forward_pallas.8} parent=11 // pred_check_branch
        %168 = sbr.rel (%p166) target = $region20
      $region19: #{vit_forward_pallas.8} parent=11 // pred_region
        _
      $region20: #{vit_forward_pallas.8} parent=11 // pred_fallthru
        _
      // Predicated region
      $region21: #{vit_forward_pallas.8} parent=11 // pred_check
        %p169 = pneg %p101
      $region22: #{vit_forward_pallas.8} parent=11 // pred_check_branch
        %171 = sbr.rel (%p169) target = $region24
      $region23: #{vit_forward_pallas.8} parent=11 // pred_region
        _
      $region24: #{vit_forward_pallas.8} parent=11 // pred_fallthru
        _
    $region12: #{vit_forward_pallas.8} parent=5 // pred_fallthru
      _
    %p172 = scmp.lt.s32.totalorder %s12, 2
    // Predicated region
    $region25: #{vit_forward_pallas.8} parent=5 // pred_check
      %p173 = pneg %p172
    $region26: #{vit_forward_pallas.8} parent=5 // pred_check_branch
      %175 = sbr.rel (%p173) target = $region28
    $region27: #{vit_forward_pallas.8} parent=5 // pred_region
      // Predicated region
      $region29: #{vit_forward_pallas.8} parent=27 // pred_check
        %p176 = pneg %p32
      $region30: #{vit_forward_pallas.8} parent=27 // pred_check_branch
        %178 = sbr.rel (%p176) target = $region32
      $region31: #{vit_forward_pallas.8} parent=27 // pred_region
        %p179 = scmp.lt.s32.totalorder %s12, 1
        %s180 = scalar_select %p179, %s12, 1
        %s181 = smul.addr %s180, 32
        %s182 = smul.addr %s181, 8
        %s183 = scalar_lea.vmem %s0, %s182
      $region32: #{vit_forward_pallas.8} parent=27 // pred_fallthru
        _
    $region28: #{vit_forward_pallas.8} parent=5 // pred_fallthru
      _
    %p184 = scmp.le.s32.totalorder 1, %s12
    %p185 = scmp.lt.s32.totalorder %s12, 3
    %p186 = pnand %p184, %p185
    %p187 = pneg %p186
    // Predicated region
    $region33: #{vit_forward_pallas.8} parent=5 // pred_check
      _
    $region34: #{vit_forward_pallas.8} parent=5 // pred_check_branch
      %189 = sbr.rel (%p186) target = $region36
    $region35: #{vit_forward_pallas.8} parent=5 // pred_region
      %s190 = ssub.s32 %s12, 1
      %p191 = scmp.lt.s32.totalorder %s17, 1
      %s192 = scalar_select %p191, %s17, 1
      %s193 = smul.addr %s192, 32
      %s194 = smul.addr %s193, 8
      %s195 = scalar_lea.vmem %s0, %s194
      %p196 = pneg %p38
      %p197 = pneg %p35
      %p198 = pneg %p59
      %p199 = pneg %p56
      %p200 = pneg %p80
      %p201 = pneg %p77
      %p202 = pneg %p101
      %p203 = pneg %p98
      %p204 = pneg %p127
      %p205 = pneg %p124
      %p206 = scmp.lt.s32.totalorder %s17, 1
      %s207 = scalar_select %p206, %s17, 1
      %s208 = smul.addr %s207, 32
      %s209 = smul.addr %s208, 8
      %s210 = scalar_lea.vmem %s4, %s209
      %p211 = pneg %p148
      %p212 = pneg %p145
      %p213 = scmp.lt.s32.totalorder %s17, 1
      %s214 = scalar_select %p213, %s17, 1
      %s215 = smul.addr %s214, 32
      %s216 = smul.addr %s215, 8
      %s217 = scalar_lea.vmem %s0, %s216
      %p218 = scmp.lt.s32.totalorder %s17, 1
      %s219 = scalar_select %p218, %s17, 1
      %s220 = smul.addr %s219, 32
      %s221 = smul.addr %s220, 8
      %s222 = scalar_lea.vmem %s4, %s221
      %v224 = vld [vmem:[%s217] sm:$0xff]
      %v225 = vld [vmem:[%s217 + $0x8] sm:$0xff]
      %v226 = vld [vmem:[%s217 + $0x10] sm:$0xff]
      %v227 = vld [vmem:[%s217 + $0x18] sm:$0xff]
      %v228 = vld [vmem:[%s217 + $0x20] sm:$0xff]
      %v229 = vld [vmem:[%s217 + $0x28] sm:$0xff]
      %v230 = vld [vmem:[%s217 + $0x30] sm:$0xff]
      %v231 = vld [vmem:[%s217 + $0x38] sm:$0xff]
      %v232 = vld [vmem:[%s217 + $0x40] sm:$0xff]
      %v233 = vld [vmem:[%s217 + $0x48] sm:$0xff]
      %v234 = vld [vmem:[%s217 + $0x50] sm:$0xff]
      %v235 = vld [vmem:[%s217 + $0x58] sm:$0xff]
      %v236 = vld [vmem:[%s217 + $0x60] sm:$0xff]
      %v237 = vld [vmem:[%s217 + $0x68] sm:$0xff]
      %v238 = vld [vmem:[%s217 + $0x70] sm:$0xff]
      %v239 = vld [vmem:[%s217 + $0x78] sm:$0xff]
      %v240 = vld [vmem:[%s217 + $0x80] sm:$0xff]
      %v241 = vld [vmem:[%s217 + $0x88] sm:$0xff]
      %v242 = vld [vmem:[%s217 + $0x90] sm:$0xff]
      %v243 = vld [vmem:[%s217 + $0x98] sm:$0xff]
      %v244 = vld [vmem:[%s217 + $0xa0] sm:$0xff]
      %v245 = vld [vmem:[%s217 + $0xa8] sm:$0xff]
      %v246 = vld [vmem:[%s217 + $0xb0] sm:$0xff]
      %v247 = vld [vmem:[%s217 + $0xb8] sm:$0xff]
      %v248 = vld [vmem:[%s217 + $0xc0] sm:$0xff]
      %v249 = vld [vmem:[%s217 + $0xc8] sm:$0xff]
      %v250 = vld [vmem:[%s217 + $0xd0] sm:$0xff]
      %v251 = vld [vmem:[%s217 + $0xd8] sm:$0xff]
      %v252 = vld [vmem:[%s217 + $0xe0] sm:$0xff]
      %v253 = vld [vmem:[%s217 + $0xe8] sm:$0xff]
      %v254 = vld [vmem:[%s217 + $0xf0] sm:$0xff]
      %v255 = vld [vmem:[%s217 + $0xf8] sm:$0xff]
      %v256 = vld [vmem:[%s2] sm:$0x1]
      %v258 = vlaneseq
      %v259 = vshrl.u32 %v258, 7
      %v260 = vsub.s32 0, %v259
      %v261 = vrot.slane %v256, %v260
      %v263 = vmul.f32 %v224, %v261
      %v264 = vmul.f32 %v225, %v261
      %v265 = vmul.f32 %v226, %v261
      %v266 = vmul.f32 %v227, %v261
      %v267 = vmul.f32 %v228, %v261
      %v268 = vmul.f32 %v229, %v261
      %v269 = vmul.f32 %v230, %v261
      %v270 = vmul.f32 %v231, %v261
      %v271 = vmul.f32 %v232, %v261
      %v272 = vmul.f32 %v233, %v261
      %v273 = vmul.f32 %v234, %v261
      %v274 = vmul.f32 %v235, %v261
      %v275 = vmul.f32 %v236, %v261
      %v276 = vmul.f32 %v237, %v261
      %v277 = vmul.f32 %v238, %v261
      %v278 = vmul.f32 %v239, %v261
      %v279 = vmul.f32 %v240, %v261
      %v280 = vmul.f32 %v241, %v261
      %v281 = vmul.f32 %v242, %v261
      %v282 = vmul.f32 %v243, %v261
      %v283 = vmul.f32 %v244, %v261
      %v284 = vmul.f32 %v245, %v261
      %v285 = vmul.f32 %v246, %v261
      %v286 = vmul.f32 %v247, %v261
      %v287 = vmul.f32 %v248, %v261
      %v288 = vmul.f32 %v249, %v261
      %v289 = vmul.f32 %v250, %v261
      %v290 = vmul.f32 %v251, %v261
      %v291 = vmul.f32 %v252, %v261
      %v292 = vmul.f32 %v253, %v261
      %v293 = vmul.f32 %v254, %v261
      %v294 = vmul.f32 %v255, %v261
      %v295 = vld [vmem:[%s3] sm:$0x1]
      %v297 = vlaneseq
      %v298 = vshrl.u32 %v297, 7
      %v299 = vsub.s32 0, %v298
      %v300 = vrot.slane %v295, %v299
      %v302 = vadd.f32 %v263, %v300
      %v303 = vadd.f32 %v264, %v300
      %v304 = vadd.f32 %v265, %v300
      %v305 = vadd.f32 %v266, %v300
      %v306 = vadd.f32 %v267, %v300
      %v307 = vadd.f32 %v268, %v300
      %v308 = vadd.f32 %v269, %v300
      %v309 = vadd.f32 %v270, %v300
      %v310 = vadd.f32 %v271, %v300
      %v311 = vadd.f32 %v272, %v300
      %v312 = vadd.f32 %v273, %v300
      %v313 = vadd.f32 %v274, %v300
      %v314 = vadd.f32 %v275, %v300
      %v315 = vadd.f32 %v276, %v300
      %v316 = vadd.f32 %v277, %v300
      %v317 = vadd.f32 %v278, %v300
      %v318 = vadd.f32 %v279, %v300
      %v319 = vadd.f32 %v280, %v300
      %v320 = vadd.f32 %v281, %v300
      %v321 = vadd.f32 %v282, %v300
      %v322 = vadd.f32 %v283, %v300
      %v323 = vadd.f32 %v284, %v300
      %v324 = vadd.f32 %v285, %v300
      %v325 = vadd.f32 %v286, %v300
      %v326 = vadd.f32 %v287, %v300
      %v327 = vadd.f32 %v288, %v300
      %v328 = vadd.f32 %v289, %v300
      %v329 = vadd.f32 %v290, %v300
      %v330 = vadd.f32 %v291, %v300
      %v331 = vadd.f32 %v292, %v300
      %v332 = vadd.f32 %v293, %v300
      %v333 = vadd.f32 %v294, %v300
      %v334 = vmax.f32 %v302, 0.0
      %v335 = vmax.f32 %v303, 0.0
      %v336 = vmax.f32 %v304, 0.0
      %v337 = vmax.f32 %v305, 0.0
      %v338 = vmax.f32 %v306, 0.0
      %v339 = vmax.f32 %v307, 0.0
      %v340 = vmax.f32 %v308, 0.0
      %v341 = vmax.f32 %v309, 0.0
      %v342 = vmax.f32 %v310, 0.0
      %v343 = vmax.f32 %v311, 0.0
      %v344 = vmax.f32 %v312, 0.0
      %v345 = vmax.f32 %v313, 0.0
      %v346 = vmax.f32 %v314, 0.0
      %v347 = vmax.f32 %v315, 0.0
      %v348 = vmax.f32 %v316, 0.0
      %v349 = vmax.f32 %v317, 0.0
      %v350 = vmax.f32 %v318, 0.0
      %v351 = vmax.f32 %v319, 0.0
      %v352 = vmax.f32 %v320, 0.0
      %v353 = vmax.f32 %v321, 0.0
      %v354 = vmax.f32 %v322, 0.0
      %v355 = vmax.f32 %v323, 0.0
      %v356 = vmax.f32 %v324, 0.0
      %v357 = vmax.f32 %v325, 0.0
      %v358 = vmax.f32 %v326, 0.0
      %v359 = vmax.f32 %v327, 0.0
      %v360 = vmax.f32 %v328, 0.0
      %v361 = vmax.f32 %v329, 0.0
      %v362 = vmax.f32 %v330, 0.0
      %v363 = vmax.f32 %v331, 0.0
      %v364 = vmax.f32 %v332, 0.0
      %v365 = vmax.f32 %v333, 0.0
      %vm399 = vcmask 1040384
      %v400 = vrot.slane 0.0, 7
      %v401 = vsel %vm399, %v400, %v400
      %v402 = vrot.slane %v334, 7
      %v403 = vrot.slane %v335, 7
      %v404 = vsel %vm399, %v402, %v403
      %v405 = vrot.slane %v336, 7
      %v406 = vrot.slane %v337, 7
      %v407 = vsel %vm399, %v405, %v406
      %v408 = vrot.slane %v338, 7
      %v409 = vrot.slane %v339, 7
      %v410 = vsel %vm399, %v408, %v409
      %v411 = vrot.slane %v340, 7
      %v412 = vrot.slane %v341, 7
      %v413 = vsel %vm399, %v411, %v412
      %v414 = vrot.slane %v342, 7
      %v415 = vrot.slane %v343, 7
      %v416 = vsel %vm399, %v414, %v415
      %v417 = vrot.slane %v344, 7
      %v418 = vrot.slane %v345, 7
      %v419 = vsel %vm399, %v417, %v418
      %v420 = vrot.slane %v346, 7
      %v421 = vrot.slane %v347, 7
      %v422 = vsel %vm399, %v420, %v421
      %v423 = vrot.slane %v348, 7
      %v424 = vrot.slane %v349, 7
      %v425 = vsel %vm399, %v423, %v424
      %v426 = vrot.slane %v350, 7
      %v427 = vrot.slane %v351, 7
      %v428 = vsel %vm399, %v426, %v427
      %v429 = vrot.slane %v352, 7
      %v430 = vrot.slane %v353, 7
      %v431 = vsel %vm399, %v429, %v430
      %v432 = vrot.slane %v354, 7
      %v433 = vrot.slane %v355, 7
      %v434 = vsel %vm399, %v432, %v433
      %v435 = vrot.slane %v356, 7
      %v436 = vrot.slane %v357, 7
      %v437 = vsel %vm399, %v435, %v436
      %v438 = vrot.slane %v358, 7
      %v439 = vrot.slane %v359, 7
      %v440 = vsel %vm399, %v438, %v439
      %v441 = vrot.slane %v360, 7
      %v442 = vrot.slane %v361, 7
      %v443 = vsel %vm399, %v441, %v442
      %v444 = vrot.slane %v362, 7
      %v445 = vrot.slane %v363, 7
      %v446 = vsel %vm399, %v444, %v445
      %v447 = vrot.slane %v364, 7
      %v448 = vrot.slane %v365, 7
      %v449 = vsel %vm399, %v447, %v448
      %v500 = vsel %vm399, 0.0, %v400
      %v501 = vsel %vm399, 0.0, %v402
      %v502 = vsel %vm399, 0.0, %v405
      %v503 = vsel %vm399, 0.0, %v408
      %v504 = vsel %vm399, 0.0, %v411
      %v505 = vsel %vm399, 0.0, %v414
      %v506 = vsel %vm399, 0.0, %v417
      %v507 = vsel %vm399, 0.0, %v420
      %v508 = vsel %vm399, 0.0, %v423
      %v509 = vsel %vm399, 0.0, %v426
      %v510 = vsel %vm399, 0.0, %v429
      %v511 = vsel %vm399, 0.0, %v432
      %v512 = vsel %vm399, 0.0, %v435
      %v513 = vsel %vm399, 0.0, %v438
      %v514 = vsel %vm399, 0.0, %v441
      %v515 = vsel %vm399, 0.0, %v444
      %v516 = vsel %vm399, 0.0, %v447
      %v517 = vsel %vm399, %v400, 0.0
      %v518 = vsel %vm399, %v403, 0.0
      %v519 = vsel %vm399, %v406, 0.0
      %v520 = vsel %vm399, %v409, 0.0
      %v521 = vsel %vm399, %v412, 0.0
      %v522 = vsel %vm399, %v415, 0.0
      %v523 = vsel %vm399, %v418, 0.0
      %v524 = vsel %vm399, %v421, 0.0
      %v525 = vsel %vm399, %v424, 0.0
      %v526 = vsel %vm399, %v427, 0.0
      %v527 = vsel %vm399, %v430, 0.0
      %v528 = vsel %vm399, %v433, 0.0
      %v529 = vsel %vm399, %v436, 0.0
      %v530 = vsel %vm399, %v439, 0.0
      %v531 = vsel %vm399, %v442, 0.0
      %v532 = vsel %vm399, %v445, 0.0
      %v533 = vsel %vm399, %v448, 0.0
      %vm566 = vcmask 1046528
      %v567 = vrot.slane %v500, 1
      %v568 = vrot.slane %v401, 1
      %v569 = vsel %vm566, %v567, %v568
      %v570 = vrot.slane %v517, 1
      %v571 = vsel %vm566, %v568, %v570
      %v572 = vrot.slane %v501, 1
      %v573 = vrot.slane %v404, 1
      %v574 = vsel %vm566, %v572, %v573
      %v575 = vrot.slane %v518, 1
      %v576 = vsel %vm566, %v573, %v575
      %v577 = vrot.slane %v502, 1
      %v578 = vrot.slane %v407, 1
      %v579 = vsel %vm566, %v577, %v578
      %v580 = vrot.slane %v519, 1
      %v581 = vsel %vm566, %v578, %v580
      %v582 = vrot.slane %v503, 1
      %v583 = vrot.slane %v410, 1
      %v584 = vsel %vm566, %v582, %v583
      %v585 = vrot.slane %v520, 1
      %v586 = vsel %vm566, %v583, %v585
      %v587 = vrot.slane %v504, 1
      %v588 = vrot.slane %v413, 1
      %v589 = vsel %vm566, %v587, %v588
      %v590 = vrot.slane %v521, 1
      %v591 = vsel %vm566, %v588, %v590
      %v592 = vrot.slane %v505, 1
      %v593 = vrot.slane %v416, 1
      %v594 = vsel %vm566, %v592, %v593
      %v595 = vrot.slane %v522, 1
      %v596 = vsel %vm566, %v593, %v595
      %v597 = vrot.slane %v506, 1
      %v598 = vrot.slane %v419, 1
      %v599 = vsel %vm566, %v597, %v598
      %v600 = vrot.slane %v523, 1
      %v601 = vsel %vm566, %v598, %v600
      %v602 = vrot.slane %v507, 1
      %v603 = vrot.slane %v422, 1
      %v604 = vsel %vm566, %v602, %v603
      %v605 = vrot.slane %v524, 1
      %v606 = vsel %vm566, %v603, %v605
      %v607 = vrot.slane %v508, 1
      %v608 = vrot.slane %v425, 1
      %v609 = vsel %vm566, %v607, %v608
      %v610 = vrot.slane %v525, 1
      %v611 = vsel %vm566, %v608, %v610
      %v612 = vrot.slane %v509, 1
      %v613 = vrot.slane %v428, 1
      %v614 = vsel %vm566, %v612, %v613
      %v615 = vrot.slane %v526, 1
      %v616 = vsel %vm566, %v613, %v615
      %v617 = vrot.slane %v510, 1
      %v618 = vrot.slane %v431, 1
      %v619 = vsel %vm566, %v617, %v618
      %v620 = vrot.slane %v527, 1
      %v621 = vsel %vm566, %v618, %v620
      %v622 = vrot.slane %v511, 1
      %v623 = vrot.slane %v434, 1
      %v624 = vsel %vm566, %v622, %v623
      %v625 = vrot.slane %v528, 1
      %v626 = vsel %vm566, %v623, %v625
      %v627 = vrot.slane %v512, 1
      %v628 = vrot.slane %v437, 1
      %v629 = vsel %vm566, %v627, %v628
      %v630 = vrot.slane %v529, 1
      %v631 = vsel %vm566, %v628, %v630
      %v632 = vrot.slane %v513, 1
      %v633 = vrot.slane %v440, 1
      %v634 = vsel %vm566, %v632, %v633
      %v635 = vrot.slane %v530, 1
      %v636 = vsel %vm566, %v633, %v635
      %v637 = vrot.slane %v514, 1
      %v638 = vrot.slane %v443, 1
      %v639 = vsel %vm566, %v637, %v638
      %v640 = vrot.slane %v531, 1
      %v641 = vsel %vm566, %v638, %v640
      %v642 = vrot.slane %v515, 1
      %v643 = vrot.slane %v446, 1
      %v644 = vsel %vm566, %v642, %v643
      %v645 = vrot.slane %v532, 1
      %v646 = vsel %vm566, %v643, %v645
      %vm679 = vcmask 1045504
      %v680 = vrot.slane %v500, 2
      %v681 = vrot.slane %v401, 2
      %v682 = vsel %vm679, %v680, %v681
      %v683 = vrot.slane %v517, 2
      %v684 = vsel %vm679, %v681, %v683
      %v685 = vrot.slane %v501, 2
      %v686 = vrot.slane %v404, 2
      %v687 = vsel %vm679, %v685, %v686
      %v688 = vrot.slane %v518, 2
      %v689 = vsel %vm679, %v686, %v688
      %v690 = vrot.slane %v502, 2
      %v691 = vrot.slane %v407, 2
      %v692 = vsel %vm679, %v690, %v691
      %v693 = vrot.slane %v519, 2
      %v694 = vsel %vm679, %v691, %v693
      %v695 = vrot.slane %v503, 2
      %v696 = vrot.slane %v410, 2
      %v697 = vsel %vm679, %v695, %v696
      %v698 = vrot.slane %v520, 2
      %v699 = vsel %vm679, %v696, %v698
      %v700 = vrot.slane %v504, 2
      %v701 = vrot.slane %v413, 2
      %v702 = vsel %vm679, %v700, %v701
      %v703 = vrot.slane %v521, 2
      %v704 = vsel %vm679, %v701, %v703
      %v705 = vrot.slane %v505, 2
      %v706 = vrot.slane %v416, 2
      %v707 = vsel %vm679, %v705, %v706
      %v708 = vrot.slane %v522, 2
      %v709 = vsel %vm679, %v706, %v708
      %v710 = vrot.slane %v506, 2
      %v711 = vrot.slane %v419, 2
      %v712 = vsel %vm679, %v710, %v711
      %v713 = vrot.slane %v523, 2
      %v714 = vsel %vm679, %v711, %v713
      %v715 = vrot.slane %v507, 2
      %v716 = vrot.slane %v422, 2
      %v717 = vsel %vm679, %v715, %v716
      %v718 = vrot.slane %v524, 2
      %v719 = vsel %vm679, %v716, %v718
      %v720 = vrot.slane %v508, 2
      %v721 = vrot.slane %v425, 2
      %v722 = vsel %vm679, %v720, %v721
      %v723 = vrot.slane %v525, 2
      %v724 = vsel %vm679, %v721, %v723
      %v725 = vrot.slane %v509, 2
      %v726 = vrot.slane %v428, 2
      %v727 = vsel %vm679, %v725, %v726
      %v728 = vrot.slane %v526, 2
      %v729 = vsel %vm679, %v726, %v728
      %v730 = vrot.slane %v510, 2
      %v731 = vrot.slane %v431, 2
      %v732 = vsel %vm679, %v730, %v731
      %v733 = vrot.slane %v527, 2
      %v734 = vsel %vm679, %v731, %v733
      %v735 = vrot.slane %v511, 2
      %v736 = vrot.slane %v434, 2
      %v737 = vsel %vm679, %v735, %v736
      %v738 = vrot.slane %v528, 2
      %v739 = vsel %vm679, %v736, %v738
      %v740 = vrot.slane %v512, 2
      %v741 = vrot.slane %v437, 2
      %v742 = vsel %vm679, %v740, %v741
      %v743 = vrot.slane %v529, 2
      %v744 = vsel %vm679, %v741, %v743
      %v745 = vrot.slane %v513, 2
      %v746 = vrot.slane %v440, 2
      %v747 = vsel %vm679, %v745, %v746
      %v748 = vrot.slane %v530, 2
      %v749 = vsel %vm679, %v746, %v748
      %v750 = vrot.slane %v514, 2
      %v751 = vrot.slane %v443, 2
      %v752 = vsel %vm679, %v750, %v751
      %v753 = vrot.slane %v531, 2
      %v754 = vsel %vm679, %v751, %v753
      %v755 = vrot.slane %v515, 2
      %v756 = vrot.slane %v446, 2
      %v757 = vsel %vm679, %v755, %v756
      %v758 = vrot.slane %v532, 2
      %v759 = vsel %vm679, %v756, %v758
      %v794 = vrot.slane %v516, 1
      %v795 = vrot.slane %v449, 1
      %v796 = vsel %vm566, %v794, %v795
      %v797 = vrot.slane %v533, 1
      %v798 = vsel %vm566, %v795, %v797
      %v801 = vrot.slane %v516, 2
      %v802 = vrot.slane %v449, 2
      %v803 = vsel %vm679, %v801, %v802
      %v804 = vrot.slane %v533, 2
      %v805 = vsel %vm679, %v802, %v804
      %v808 = vpack.c.bf16 %v401, %v500
      %v809 = vpack.c.bf16 %v571, %v569
      %v810 = vpack.c.bf16 %v684, %v682
      %v811 = vpack.c.bf16 %v404, %v501
      %v812 = vpack.c.bf16 %v576, %v574
      %v813 = vpack.c.bf16 %v689, %v687
      %v814 = vpack.c.bf16 %v407, %v502
      %v815 = vpack.c.bf16 %v581, %v579
      %v816 = vpack.c.bf16 %v694, %v692
      %v817 = vpack.c.bf16 %v410, %v503
      %v818 = vpack.c.bf16 %v586, %v584
      %v819 = vpack.c.bf16 %v699, %v697
      %v820 = vpack.c.bf16 %v413, %v504
      %v821 = vpack.c.bf16 %v591, %v589
      %v822 = vpack.c.bf16 %v704, %v702
      %v823 = vpack.c.bf16 %v416, %v505
      %v824 = vpack.c.bf16 %v596, %v594
      %v825 = vpack.c.bf16 %v709, %v707
      %v826 = vpack.c.bf16 %v419, %v506
      %v827 = vpack.c.bf16 %v601, %v599
      %v828 = vpack.c.bf16 %v714, %v712
      %v829 = vpack.c.bf16 %v422, %v507
      %v830 = vpack.c.bf16 %v606, %v604
      %v831 = vpack.c.bf16 %v719, %v717
      %v832 = vpack.c.bf16 %v425, %v508
      %v833 = vpack.c.bf16 %v611, %v609
      %v834 = vpack.c.bf16 %v724, %v722
      %v835 = vpack.c.bf16 %v428, %v509
      %v836 = vpack.c.bf16 %v616, %v614
      %v837 = vpack.c.bf16 %v729, %v727
      %v838 = vpack.c.bf16 %v431, %v510
      %v839 = vpack.c.bf16 %v621, %v619
      %v840 = vpack.c.bf16 %v734, %v732
      %v841 = vpack.c.bf16 %v434, %v511
      %v842 = vpack.c.bf16 %v626, %v624
      %v843 = vpack.c.bf16 %v739, %v737
      %v844 = vpack.c.bf16 %v437, %v512
      %v845 = vpack.c.bf16 %v631, %v629
      %v846 = vpack.c.bf16 %v744, %v742
      %v847 = vpack.c.bf16 %v440, %v513
      %v848 = vpack.c.bf16 %v636, %v634
      %v849 = vpack.c.bf16 %v749, %v747
      %v850 = vpack.c.bf16 %v443, %v514
      %v851 = vpack.c.bf16 %v641, %v639
      %v852 = vpack.c.bf16 %v754, %v752
      %v853 = vpack.c.bf16 %v446, %v515
      %v854 = vpack.c.bf16 %v646, %v644
      %v855 = vpack.c.bf16 %v759, %v757
      %v856 = vpack.c.bf16 %v449, %v516
      %v857 = vpack.c.bf16 %v798, %v796
      %v858 = vpack.c.bf16 %v805, %v803
      %v859 = vld [vmem:[%s1] sm:$0xf]
      %v860 = vld [vmem:[%s1 + $0x4] sm:$0xf]
      %v861 = vld [vmem:[%s1 + $0x8] sm:$0xf]
      %v862 = vld [vmem:[%s1 + $0xc] sm:$0xf]
      %v863 = vld [vmem:[%s1 + $0x10] sm:$0xf]
      %v864 = vld [vmem:[%s1 + $0x14] sm:$0xf]
      %v865 = vld [vmem:[%s1 + $0x18] sm:$0xf]
      %v866 = vld [vmem:[%s1 + $0x1c] sm:$0xf]
      %v867 = vld [vmem:[%s1 + $0x20] sm:$0xf]
      %v868 = vld [vmem:[%s1 + $0x24] sm:$0xf]
      %v869 = vld [vmem:[%s1 + $0x28] sm:$0xf]
      %v870 = vld [vmem:[%s1 + $0x2c] sm:$0xf]
      %v871 = vld [vmem:[%s1 + $0x30] sm:$0xf]
      %v872 = vld [vmem:[%s1 + $0x34] sm:$0xf]
      %v873 = vld [vmem:[%s1 + $0x38] sm:$0xf]
      %v874 = vld [vmem:[%s1 + $0x3c] sm:$0xf]
      %v875 = vld [vmem:[%s1 + $0x40] sm:$0xf]
      %v876 = vld [vmem:[%s1 + $0x44] sm:$0xf]
      %v877 = vld [vmem:[%s1 + $0x48] sm:$0xf]
      %v878 = vld [vmem:[%s1 + $0x4c] sm:$0xf]
      %v879 = vld [vmem:[%s1 + $0x50] sm:$0xf]
      %v880 = vld [vmem:[%s1 + $0x54] sm:$0xf]
      %v881 = vld [vmem:[%s1 + $0x58] sm:$0xf]
      %v882 = vld [vmem:[%s1 + $0x5c] sm:$0xf]
      %v883 = vld [vmem:[%s1 + $0x60] sm:$0xf]
      %v884 = vld [vmem:[%s1 + $0x64] sm:$0xf]
      %v885 = vld [vmem:[%s1 + $0x68] sm:$0xf]
      %v886 = vld [vmem:[%s1 + $0x6c] sm:$0xf]
      %v887 = vld [vmem:[%s1 + $0x70] sm:$0xf]
      %v888 = vld [vmem:[%s1 + $0x74] sm:$0xf]
      %v889 = vld [vmem:[%s1 + $0x78] sm:$0xf]
      %v890 = vld [vmem:[%s1 + $0x7c] sm:$0xf]
      %v891 = vld [vmem:[%s1 + $0x80] sm:$0xf]
      %v892 = vld [vmem:[%s1 + $0x84] sm:$0xf]
      %v893 = vld [vmem:[%s1 + $0x88] sm:$0xf]
      %v894 = vld [vmem:[%s1 + $0x8c] sm:$0xf]
      %v895 = vld [vmem:[%s1 + $0x90] sm:$0xf]
      %v896 = vld [vmem:[%s1 + $0x94] sm:$0xf]
      %v897 = vld [vmem:[%s1 + $0x98] sm:$0xf]
      %v898 = vld [vmem:[%s1 + $0x9c] sm:$0xf]
      %v899 = vld [vmem:[%s1 + $0xa0] sm:$0xf]
      %v900 = vld [vmem:[%s1 + $0xa4] sm:$0xf]
      %v901 = vld [vmem:[%s1 + $0xa8] sm:$0xf]
      %v902 = vld [vmem:[%s1 + $0xac] sm:$0xf]
      %v903 = vld [vmem:[%s1 + $0xb0] sm:$0xf]
      %v904 = vld [vmem:[%s1 + $0xb4] sm:$0xf]
      %v905 = vld [vmem:[%s1 + $0xb8] sm:$0xf]
      %v906 = vld [vmem:[%s1 + $0xbc] sm:$0xf]
      %v907 = vld [vmem:[%s1 + $0xc0] sm:$0xf]
      %v908 = vld [vmem:[%s1 + $0xc4] sm:$0xf]
      %v909 = vld [vmem:[%s1 + $0xc8] sm:$0xf]
      %v910 = vld [vmem:[%s1 + $0xcc] sm:$0xf]
      %v911 = vld [vmem:[%s1 + $0xd0] sm:$0xf]
      %v912 = vld [vmem:[%s1 + $0xd4] sm:$0xf]
      %v913 = vld [vmem:[%s1 + $0xd8] sm:$0xf]
      %v914 = vld [vmem:[%s1 + $0xdc] sm:$0xf]
      %v915 = vld [vmem:[%s1 + $0xe0] sm:$0xf]
      %v916 = vld [vmem:[%s1 + $0xe4] sm:$0xf]
      %v917 = vld [vmem:[%s1 + $0xe8] sm:$0xf]
      %v918 = vld [vmem:[%s1 + $0xec] sm:$0xf]
      %v919 = vld [vmem:[%s1 + $0xf0] sm:$0xf]
      %v920 = vld [vmem:[%s1 + $0xf4] sm:$0xf]
      %v921 = vld [vmem:[%s1 + $0xf8] sm:$0xf]
      %v922 = vld [vmem:[%s1 + $0xfc] sm:$0xf]
      %v923 = vld [vmem:[%s1 + $0x100] sm:$0xf]
      %v924 = vld [vmem:[%s1 + $0x104] sm:$0xf]
      %v925 = vld [vmem:[%s1 + $0x108] sm:$0xf]
      %v926 = vld [vmem:[%s1 + $0x10c] sm:$0xf]
      %v927 = vld [vmem:[%s1 + $0x110] sm:$0xf]
      %v928 = vld [vmem:[%s1 + $0x114] sm:$0xf]
      %v929 = vld [vmem:[%s1 + $0x118] sm:$0xf]
      %v930 = vld [vmem:[%s1 + $0x11c] sm:$0xf]
      %v931 = vld [vmem:[%s1 + $0x120] sm:$0xf]
      %v932 = vld [vmem:[%s1 + $0x124] sm:$0xf]
      %v933 = vld [vmem:[%s1 + $0x128] sm:$0xf]
      %v934 = vld [vmem:[%s1 + $0x12c] sm:$0xf]
      %v935 = vld [vmem:[%s1 + $0x130] sm:$0xf]
      %v936 = vld [vmem:[%s1 + $0x134] sm:$0xf]
      %v937 = vld [vmem:[%s1 + $0x138] sm:$0xf]
      %v938 = vld [vmem:[%s1 + $0x13c] sm:$0xf]
      %v939 = vld [vmem:[%s1 + $0x140] sm:$0xf]
      %v940 = vld [vmem:[%s1 + $0x144] sm:$0xf]
      %v941 = vld [vmem:[%s1 + $0x148] sm:$0xf]
      %v942 = vld [vmem:[%s1 + $0x14c] sm:$0xf]
      %v943 = vld [vmem:[%s1 + $0x150] sm:$0xf]
      %v944 = vld [vmem:[%s1 + $0x154] sm:$0xf]
      %v945 = vld [vmem:[%s1 + $0x158] sm:$0xf]
      %v946 = vld [vmem:[%s1 + $0x15c] sm:$0xf]
      %v947 = vld [vmem:[%s1 + $0x160] sm:$0xf]
      %v948 = vld [vmem:[%s1 + $0x164] sm:$0xf]
      %v949 = vld [vmem:[%s1 + $0x168] sm:$0xf]
      %v950 = vld [vmem:[%s1 + $0x16c] sm:$0xf]
      %v951 = vld [vmem:[%s1 + $0x170] sm:$0xf]
      %v952 = vld [vmem:[%s1 + $0x174] sm:$0xf]
      %v953 = vld [vmem:[%s1 + $0x178] sm:$0xf]
      %v954 = vld [vmem:[%s1 + $0x17c] sm:$0xf]
      %v955 = vld [vmem:[%s1 + $0x180] sm:$0xf]
      %v956 = vld [vmem:[%s1 + $0x184] sm:$0xf]
      %v957 = vld [vmem:[%s1 + $0x188] sm:$0xf]
      %v958 = vld [vmem:[%s1 + $0x18c] sm:$0xf]
      %v959 = vld [vmem:[%s1 + $0x190] sm:$0xf]
      %v960 = vld [vmem:[%s1 + $0x194] sm:$0xf]
      %v961 = vld [vmem:[%s1 + $0x198] sm:$0xf]
      %v962 = vld [vmem:[%s1 + $0x19c] sm:$0xf]
      %v963 = vld [vmem:[%s1 + $0x1a0] sm:$0xf]
      %v964 = vld [vmem:[%s1 + $0x1a4] sm:$0xf]
      %v965 = vld [vmem:[%s1 + $0x1a8] sm:$0xf]
      %v966 = vld [vmem:[%s1 + $0x1ac] sm:$0xf]
      %v967 = vld [vmem:[%s1 + $0x1b0] sm:$0xf]
      %v968 = vld [vmem:[%s1 + $0x1b4] sm:$0xf]
      %v969 = vld [vmem:[%s1 + $0x1b8] sm:$0xf]
      %v970 = vld [vmem:[%s1 + $0x1bc] sm:$0xf]
      %v971 = vld [vmem:[%s1 + $0x1c0] sm:$0xf]
      %v972 = vld [vmem:[%s1 + $0x1c4] sm:$0xf]
      %v973 = vld [vmem:[%s1 + $0x1c8] sm:$0xf]
      %v974 = vld [vmem:[%s1 + $0x1cc] sm:$0xf]
      %v975 = vld [vmem:[%s1 + $0x1d0] sm:$0xf]
      %v976 = vld [vmem:[%s1 + $0x1d4] sm:$0xf]
      %v977 = vld [vmem:[%s1 + $0x1d8] sm:$0xf]
      %v978 = vld [vmem:[%s1 + $0x1dc] sm:$0xf]
      %v979 = vld [vmem:[%s1 + $0x1e0] sm:$0xf]
      %v980 = vld [vmem:[%s1 + $0x1e4] sm:$0xf]
      %v981 = vld [vmem:[%s1 + $0x1e8] sm:$0xf]
      %v982 = vld [vmem:[%s1 + $0x1ec] sm:$0xf]
      %v983 = vld [vmem:[%s1 + $0x1f0] sm:$0xf]
      %v984 = vld [vmem:[%s1 + $0x1f4] sm:$0xf]
      %v985 = vld [vmem:[%s1 + $0x1f8] sm:$0xf]
      %v986 = vld [vmem:[%s1 + $0x1fc] sm:$0xf]
      %v987 = vld [vmem:[%s1 + $0x200] sm:$0xf]
      %v988 = vld [vmem:[%s1 + $0x204] sm:$0xf]
      %v989 = vld [vmem:[%s1 + $0x208] sm:$0xf]
      %v990 = vld [vmem:[%s1 + $0x20c] sm:$0xf]
      %v991 = vld [vmem:[%s1 + $0x210] sm:$0xf]
      %v992 = vld [vmem:[%s1 + $0x214] sm:$0xf]
      %v993 = vld [vmem:[%s1 + $0x218] sm:$0xf]
      %v994 = vld [vmem:[%s1 + $0x21c] sm:$0xf]
      %v995 = vld [vmem:[%s1 + $0x220] sm:$0xf]
      %v996 = vld [vmem:[%s1 + $0x224] sm:$0xf]
      %v997 = vld [vmem:[%s1 + $0x228] sm:$0xf]
      %v998 = vld [vmem:[%s1 + $0x22c] sm:$0xf]
      %v999 = vld [vmem:[%s1 + $0x230] sm:$0xf]
      %v1000 = vld [vmem:[%s1 + $0x234] sm:$0xf]
      %v1001 = vld [vmem:[%s1 + $0x238] sm:$0xf]
      %v1002 = vld [vmem:[%s1 + $0x23c] sm:$0xf]
      %v1147 = vunpack.c.l.b16 %v859
      %v1148 = vunpack.c.l.b16 %v860
      %v1149 = vunpack.c.l.b16 %v861
      %v1150 = vunpack.c.l.b16 %v862
      %v1151 = vunpack.c.l.b16 %v863
      %v1152 = vunpack.c.l.b16 %v864
      %v1153 = vunpack.c.l.b16 %v865
      %v1154 = vunpack.c.l.b16 %v866
      %v1155 = vunpack.c.l.b16 %v867
      %v1156 = vunpack.c.l.b16 %v868
      %v1157 = vunpack.c.l.b16 %v869
      %v1158 = vunpack.c.l.b16 %v870
      %v1159 = vunpack.c.l.b16 %v871
      %v1160 = vunpack.c.l.b16 %v872
      %v1161 = vunpack.c.l.b16 %v873
      %v1162 = vunpack.c.l.b16 %v874
      %v1163 = vunpack.c.l.b16 %v875
      %v1164 = vunpack.c.l.b16 %v876
      %v1165 = vunpack.c.l.b16 %v877
      %v1166 = vunpack.c.l.b16 %v878
      %v1167 = vunpack.c.l.b16 %v879
      %v1168 = vunpack.c.l.b16 %v880
      %v1169 = vunpack.c.l.b16 %v881
      %v1170 = vunpack.c.l.b16 %v882
      %v1171 = vunpack.c.l.b16 %v883
      %v1172 = vunpack.c.l.b16 %v884
      %v1173 = vunpack.c.l.b16 %v885
      %v1174 = vunpack.c.l.b16 %v886
      %v1175 = vunpack.c.l.b16 %v887
      %v1176 = vunpack.c.l.b16 %v888
      %v1177 = vunpack.c.l.b16 %v889
      %v1178 = vunpack.c.l.b16 %v890
      %v1179 = vunpack.c.l.b16 %v891
      %v1180 = vunpack.c.l.b16 %v892
      %v1181 = vunpack.c.l.b16 %v893
      %v1182 = vunpack.c.l.b16 %v894
      %v1183 = vunpack.c.l.b16 %v895
      %v1184 = vunpack.c.l.b16 %v896
      %v1185 = vunpack.c.l.b16 %v897
      %v1186 = vunpack.c.l.b16 %v898
      %v1187 = vunpack.c.l.b16 %v899
      %v1188 = vunpack.c.l.b16 %v900
      %v1189 = vunpack.c.l.b16 %v901
      %v1190 = vunpack.c.l.b16 %v902
      %v1191 = vunpack.c.l.b16 %v903
      %v1192 = vunpack.c.l.b16 %v904
      %v1193 = vunpack.c.l.b16 %v905
      %v1194 = vunpack.c.l.b16 %v906
      %v1195 = vunpack.c.l.b16 %v907
      %v1196 = vunpack.c.l.b16 %v908
      %v1197 = vunpack.c.l.b16 %v909
      %v1198 = vunpack.c.l.b16 %v910
      %v1199 = vunpack.c.l.b16 %v911
      %v1200 = vunpack.c.l.b16 %v912
      %v1201 = vunpack.c.l.b16 %v913
      %v1202 = vunpack.c.l.b16 %v914
      %v1203 = vunpack.c.l.b16 %v915
      %v1204 = vunpack.c.l.b16 %v916
      %v1205 = vunpack.c.l.b16 %v917
      %v1206 = vunpack.c.l.b16 %v918
      %v1207 = vunpack.c.l.b16 %v919
      %v1208 = vunpack.c.l.b16 %v920
      %v1209 = vunpack.c.l.b16 %v921
      %v1210 = vunpack.c.l.b16 %v922
      %v1211 = vunpack.c.l.b16 %v923
      %v1212 = vunpack.c.l.b16 %v924
      %v1213 = vunpack.c.l.b16 %v925
      %v1214 = vunpack.c.l.b16 %v926
      %v1215 = vunpack.c.l.b16 %v927
      %v1216 = vunpack.c.l.b16 %v928
      %v1217 = vunpack.c.l.b16 %v929
      %v1218 = vunpack.c.l.b16 %v930
      %v1219 = vunpack.c.l.b16 %v931
      %v1220 = vunpack.c.l.b16 %v932
      %v1221 = vunpack.c.l.b16 %v933
      %v1222 = vunpack.c.l.b16 %v934
      %v1223 = vunpack.c.l.b16 %v935
      %v1224 = vunpack.c.l.b16 %v936
      %v1225 = vunpack.c.l.b16 %v937
      %v1226 = vunpack.c.l.b16 %v938
      %v1227 = vunpack.c.l.b16 %v939
      %v1228 = vunpack.c.l.b16 %v940
      %v1229 = vunpack.c.l.b16 %v941
      %v1230 = vunpack.c.l.b16 %v942
      %v1231 = vunpack.c.l.b16 %v943
      %v1232 = vunpack.c.l.b16 %v944
      %v1233 = vunpack.c.l.b16 %v945
      %v1234 = vunpack.c.l.b16 %v946
      %v1235 = vunpack.c.l.b16 %v947
      %v1236 = vunpack.c.l.b16 %v948
      %v1237 = vunpack.c.l.b16 %v949
      %v1238 = vunpack.c.l.b16 %v950
      %v1239 = vunpack.c.l.b16 %v951
      %v1240 = vunpack.c.l.b16 %v952
      %v1241 = vunpack.c.l.b16 %v953
      %v1242 = vunpack.c.l.b16 %v954
      %v1243 = vunpack.c.l.b16 %v955
      %v1244 = vunpack.c.l.b16 %v956
      %v1245 = vunpack.c.l.b16 %v957
      %v1246 = vunpack.c.l.b16 %v958
      %v1247 = vunpack.c.l.b16 %v959
      %v1248 = vunpack.c.l.b16 %v960
      %v1249 = vunpack.c.l.b16 %v961
      %v1250 = vunpack.c.l.b16 %v962
      %v1251 = vunpack.c.l.b16 %v963
      %v1252 = vunpack.c.l.b16 %v964
      %v1253 = vunpack.c.l.b16 %v965
      %v1254 = vunpack.c.l.b16 %v966
      %v1255 = vunpack.c.l.b16 %v967
      %v1256 = vunpack.c.l.b16 %v968
      %v1257 = vunpack.c.l.b16 %v969
      %v1258 = vunpack.c.l.b16 %v970
      %v1259 = vunpack.c.l.b16 %v971
      %v1260 = vunpack.c.l.b16 %v972
      %v1261 = vunpack.c.l.b16 %v973
      %v1262 = vunpack.c.l.b16 %v974
      %v1263 = vunpack.c.l.b16 %v975
      %v1264 = vunpack.c.l.b16 %v976
      %v1265 = vunpack.c.l.b16 %v977
      %v1266 = vunpack.c.l.b16 %v978
      %v1267 = vunpack.c.l.b16 %v979
      %v1268 = vunpack.c.l.b16 %v980
      %v1269 = vunpack.c.l.b16 %v981
      %v1270 = vunpack.c.l.b16 %v982
      %v1271 = vunpack.c.l.b16 %v983
      %v1272 = vunpack.c.l.b16 %v984
      %v1273 = vunpack.c.l.b16 %v985
      %v1274 = vunpack.c.l.b16 %v986
      %v1275 = vunpack.c.l.b16 %v987
      %v1276 = vunpack.c.l.b16 %v988
      %v1277 = vunpack.c.l.b16 %v989
      %v1278 = vunpack.c.l.b16 %v990
      %v1279 = vunpack.c.l.b16 %v991
      %v1280 = vunpack.c.l.b16 %v992
      %v1281 = vunpack.c.l.b16 %v993
      %v1282 = vunpack.c.l.b16 %v994
      %v1283 = vunpack.c.l.b16 %v995
      %v1284 = vunpack.c.l.b16 %v996
      %v1285 = vunpack.c.l.b16 %v997
      %v1286 = vunpack.c.l.b16 %v998
      %v1287 = vunpack.c.l.b16 %v999
      %v1288 = vunpack.c.l.b16 %v1000
      %v1289 = vunpack.c.l.b16 %v1001
      %v1290 = vunpack.c.l.b16 %v1002
      %v1291 = vpack.c.b16 %v1148, %v1147
      %v1292 = vpack.c.b16 %v1150, %v1149
      %v1293 = vpack.c.b16 %v1152, %v1151
      %v1294 = vpack.c.b16 %v1154, %v1153
      %v1295 = vpack.c.b16 %v1156, %v1155
      %v1296 = vpack.c.b16 %v1158, %v1157
      %v1297 = vpack.c.b16 %v1160, %v1159
      %v1298 = vpack.c.b16 %v1162, %v1161
      %v1299 = vpack.c.b16 %v1164, %v1163
      %v1300 = vpack.c.b16 %v1166, %v1165
      %v1301 = vpack.c.b16 %v1168, %v1167
      %v1302 = vpack.c.b16 %v1170, %v1169
      %v1303 = vpack.c.b16 %v1172, %v1171
      %v1304 = vpack.c.b16 %v1174, %v1173
      %v1305 = vpack.c.b16 %v1176, %v1175
      %v1306 = vpack.c.b16 %v1178, %v1177
      %v1307 = vpack.c.b16 %v1180, %v1179
      %v1308 = vpack.c.b16 %v1182, %v1181
      %v1309 = vpack.c.b16 %v1184, %v1183
      %v1310 = vpack.c.b16 %v1186, %v1185
      %v1311 = vpack.c.b16 %v1188, %v1187
      %v1312 = vpack.c.b16 %v1190, %v1189
      %v1313 = vpack.c.b16 %v1192, %v1191
      %v1314 = vpack.c.b16 %v1194, %v1193
      %v1315 = vpack.c.b16 %v1196, %v1195
      %v1316 = vpack.c.b16 %v1198, %v1197
      %v1317 = vpack.c.b16 %v1200, %v1199
      %v1318 = vpack.c.b16 %v1202, %v1201
      %v1319 = vpack.c.b16 %v1204, %v1203
      %v1320 = vpack.c.b16 %v1206, %v1205
      %v1321 = vpack.c.b16 %v1208, %v1207
      %v1322 = vpack.c.b16 %v1210, %v1209
      %v1323 = vpack.c.b16 %v1212, %v1211
      %v1324 = vpack.c.b16 %v1214, %v1213
      %v1325 = vpack.c.b16 %v1216, %v1215
      %v1326 = vpack.c.b16 %v1218, %v1217
      %v1327 = vpack.c.b16 %v1220, %v1219
      %v1328 = vpack.c.b16 %v1222, %v1221
      %v1329 = vpack.c.b16 %v1224, %v1223
      %v1330 = vpack.c.b16 %v1226, %v1225
      %v1331 = vpack.c.b16 %v1228, %v1227
      %v1332 = vpack.c.b16 %v1230, %v1229
      %v1333 = vpack.c.b16 %v1232, %v1231
      %v1334 = vpack.c.b16 %v1234, %v1233
      %v1335 = vpack.c.b16 %v1236, %v1235
      %v1336 = vpack.c.b16 %v1238, %v1237
      %v1337 = vpack.c.b16 %v1240, %v1239
      %v1338 = vpack.c.b16 %v1242, %v1241
      %v1339 = vpack.c.b16 %v1244, %v1243
      %v1340 = vpack.c.b16 %v1246, %v1245
      %v1341 = vpack.c.b16 %v1248, %v1247
      %v1342 = vpack.c.b16 %v1250, %v1249
      %v1343 = vpack.c.b16 %v1252, %v1251
      %v1344 = vpack.c.b16 %v1254, %v1253
      %v1345 = vpack.c.b16 %v1256, %v1255
      %v1346 = vpack.c.b16 %v1258, %v1257
      %v1347 = vpack.c.b16 %v1260, %v1259
      %v1348 = vpack.c.b16 %v1262, %v1261
      %v1349 = vpack.c.b16 %v1264, %v1263
      %v1350 = vpack.c.b16 %v1266, %v1265
      %v1351 = vpack.c.b16 %v1268, %v1267
      %v1352 = vpack.c.b16 %v1270, %v1269
      %v1353 = vpack.c.b16 %v1272, %v1271
      %v1354 = vpack.c.b16 %v1274, %v1273
      %v1355 = vpack.c.b16 %v1276, %v1275
      %v1356 = vpack.c.b16 %v1278, %v1277
      %v1357 = vpack.c.b16 %v1280, %v1279
      %v1358 = vpack.c.b16 %v1282, %v1281
      %v1359 = vpack.c.b16 %v1284, %v1283
      %v1360 = vpack.c.b16 %v1286, %v1285
      %v1361 = vpack.c.b16 %v1288, %v1287
      %v1362 = vpack.c.b16 %v1290, %v1289
      %1435 = vmatprep.subr.bf16.mxu0 0
      %1436 = vmatpush1.bf16.msra.mxu0 %v1298
      %1437 = vmatprep.subr.bf16.mxu0 0
      %1438 = vmatpush1.bf16.msra.mxu0 %v1297
      %1439 = vmatprep.subr.bf16.mxu0 0
      %1440 = vmatpush1.bf16.msra.mxu0 %v1296
      %1441 = vmatprep.subr.bf16.mxu0 0
      %1442 = vmatpush1.bf16.msra.mxu0 %v1295
      %1443 = vmatprep.subr.bf16.mxu0 0
      %1444 = vmatpush1.bf16.msra.mxu0 %v1294
      %1445 = vmatprep.subr.bf16.mxu0 0
      %1446 = vmatpush1.bf16.msra.mxu0 %v1293
      %1447 = vmatprep.subr.bf16.mxu0 0
      %1448 = vmatpush1.bf16.msra.mxu0 %v1292
      %1449 = vmatprep.subr.bf16.mxu0 0
      %1450 = vmatpush1.bf16.msra.mxu0 %v1291
      %1451 = vmatprep.subr.bf16.mxu0 0
      %1452 = vmatpush2.bf16.msra.mxu0 %v1306
      %1453 = vmatprep.subr.bf16.mxu0 0
      %1454 = vmatpush2.bf16.msra.mxu0 %v1305
      %1455 = vmatprep.subr.bf16.mxu0 0
      %1456 = vmatpush2.bf16.msra.mxu0 %v1304
      %1457 = vmatprep.subr.bf16.mxu0 0
      %1458 = vmatpush2.bf16.msra.mxu0 %v1303
      %1459 = vmatprep.subr.bf16.mxu0 0
      %1460 = vmatpush2.bf16.msra.mxu0 %v1302
      %1461 = vmatprep.subr.bf16.mxu0 0
      %1462 = vmatpush2.bf16.msra.mxu0 %v1301
      %1463 = vmatprep.subr.bf16.mxu0 0
      %1464 = vmatpush2.bf16.msra.mxu0 %v1300
      %1465 = vmatprep.subr.bf16.mxu0 0
      %1466 = vmatpush2.bf16.msra.mxu0 %v1299
      %1467 = vmatprep.mubr.bf16.mxu0 %v809
      %1468 = vmatmul.mubr.bf16.gmra.mxu0 %v808
      %v1469 = vpop.f32.mrf.mxu0
      %v1470 = vadd.f32 0.0, %v1469
      %v1471 = vpop.f32.mrf.mxu0
      %v1472 = vpop.f32.mrf.mxu0
      %v1473 = vadd.f32 0.0, %v1472
      %v1474 = vpop.f32.mrf.mxu0
      %1475 = vmatprep.mubr.bf16.mxu0 %v812
      %1476 = vmatmul.mubr.bf16.gmra.mxu0 %v811
      %v1477 = vpop.f32.mrf.mxu0
      %v1478 = vadd.f32 0.0, %v1477
      %v1479 = vpop.f32.mrf.mxu0
      %v1480 = vpop.f32.mrf.mxu0
      %v1481 = vadd.f32 0.0, %v1480
      %v1482 = vpop.f32.mrf.mxu0
      %1483 = vmatprep.mubr.bf16.mxu0 %v815
      %1484 = vmatmul.mubr.bf16.gmra.mxu0 %v814
      %v1485 = vpop.f32.mrf.mxu0
      %v1486 = vadd.f32 0.0, %v1485
      %v1487 = vpop.f32.mrf.mxu0
      %v1488 = vpop.f32.mrf.mxu0
      %v1489 = vadd.f32 0.0, %v1488
      %v1490 = vpop.f32.mrf.mxu0
      %1491 = vmatprep.mubr.bf16.mxu0 %v818
      %1492 = vmatmul.mubr.bf16.gmra.mxu0 %v817
      %v1493 = vpop.f32.mrf.mxu0
      %v1494 = vadd.f32 0.0, %v1493
      %v1495 = vpop.f32.mrf.mxu0
      %v1496 = vpop.f32.mrf.mxu0
      %v1497 = vadd.f32 0.0, %v1496
      %v1498 = vpop.f32.mrf.mxu0
      %1499 = vmatprep.mubr.bf16.mxu0 %v821
      %1500 = vmatmul.mubr.bf16.gmra.mxu0 %v820
      %v1501 = vpop.f32.mrf.mxu0
      %v1502 = vadd.f32 0.0, %v1501
      %v1503 = vpop.f32.mrf.mxu0
      %v1504 = vpop.f32.mrf.mxu0
      %v1505 = vadd.f32 0.0, %v1504
      %v1506 = vpop.f32.mrf.mxu0
      %1507 = vmatprep.mubr.bf16.mxu0 %v824
      %1508 = vmatmul.mubr.bf16.gmra.mxu0 %v823
      %v1509 = vpop.f32.mrf.mxu0
      %v1510 = vadd.f32 0.0, %v1509
      %v1511 = vpop.f32.mrf.mxu0
      %v1512 = vpop.f32.mrf.mxu0
      %v1513 = vadd.f32 0.0, %v1512
      %v1514 = vpop.f32.mrf.mxu0
      %1515 = vmatprep.mubr.bf16.mxu0 %v827
      %1516 = vmatmul.mubr.bf16.gmra.mxu0 %v826
      %v1517 = vpop.f32.mrf.mxu0
      %v1518 = vadd.f32 0.0, %v1517
      %v1519 = vpop.f32.mrf.mxu0
      %v1520 = vpop.f32.mrf.mxu0
      %v1521 = vadd.f32 0.0, %v1520
      %v1522 = vpop.f32.mrf.mxu0
      %1523 = vmatprep.mubr.bf16.mxu0 %v830
      %1524 = vmatmul.mubr.bf16.gmra.mxu0 %v829
      %v1525 = vpop.f32.mrf.mxu0
      %v1526 = vadd.f32 0.0, %v1525
      %v1527 = vpop.f32.mrf.mxu0
      %v1528 = vpop.f32.mrf.mxu0
      %v1529 = vadd.f32 0.0, %v1528
      %v1530 = vpop.f32.mrf.mxu0
      %1531 = vmatprep.mubr.bf16.mxu0 %v833
      %1532 = vmatmul.mubr.bf16.gmra.mxu0 %v832
      %v1533 = vpop.f32.mrf.mxu0
      %v1534 = vadd.f32 0.0, %v1533
      %v1535 = vpop.f32.mrf.mxu0
      %v1536 = vpop.f32.mrf.mxu0
      %v1537 = vadd.f32 0.0, %v1536
      %v1538 = vpop.f32.mrf.mxu0
      %1539 = vmatprep.mubr.bf16.mxu0 %v836
      %1540 = vmatmul.mubr.bf16.gmra.mxu0 %v835
      %v1541 = vpop.f32.mrf.mxu0
      %v1542 = vadd.f32 0.0, %v1541
      %v1543 = vpop.f32.mrf.mxu0
      %v1544 = vpop.f32.mrf.mxu0
      %v1545 = vadd.f32 0.0, %v1544
      %v1546 = vpop.f32.mrf.mxu0
      %1547 = vmatprep.mubr.bf16.mxu0 %v839
      %1548 = vmatmul.mubr.bf16.gmra.mxu0 %v838
      %v1549 = vpop.f32.mrf.mxu0
      %v1550 = vadd.f32 0.0, %v1549
      %v1551 = vpop.f32.mrf.mxu0
      %v1552 = vpop.f32.mrf.mxu0
      %v1553 = vadd.f32 0.0, %v1552
      %v1554 = vpop.f32.mrf.mxu0
      %1555 = vmatprep.mubr.bf16.mxu0 %v842
      %1556 = vmatmul.mubr.bf16.gmra.mxu0 %v841
      %v1557 = vpop.f32.mrf.mxu0
      %v1558 = vadd.f32 0.0, %v1557
      %v1559 = vpop.f32.mrf.mxu0
      %v1560 = vpop.f32.mrf.mxu0
      %v1561 = vadd.f32 0.0, %v1560
      %v1562 = vpop.f32.mrf.mxu0
      %1563 = vmatprep.mubr.bf16.mxu0 %v845
      %1564 = vmatmul.mubr.bf16.gmra.mxu0 %v844
      %v1565 = vpop.f32.mrf.mxu0
      %v1566 = vadd.f32 0.0, %v1565
      %v1567 = vpop.f32.mrf.mxu0
      %v1568 = vpop.f32.mrf.mxu0
      %v1569 = vadd.f32 0.0, %v1568
      %v1570 = vpop.f32.mrf.mxu0
      %1571 = vmatprep.mubr.bf16.mxu0 %v848
      %1572 = vmatmul.mubr.bf16.gmra.mxu0 %v847
      %v1573 = vpop.f32.mrf.mxu0
      %v1574 = vadd.f32 0.0, %v1573
      %v1575 = vpop.f32.mrf.mxu0
      %v1576 = vpop.f32.mrf.mxu0
      %v1577 = vadd.f32 0.0, %v1576
      %v1578 = vpop.f32.mrf.mxu0
      %1579 = vmatprep.mubr.bf16.mxu0 %v851
      %1580 = vmatmul.mubr.bf16.gmra.mxu0 %v850
      %v1581 = vpop.f32.mrf.mxu0
      %v1582 = vadd.f32 0.0, %v1581
      %v1583 = vpop.f32.mrf.mxu0
      %v1584 = vpop.f32.mrf.mxu0
      %v1585 = vadd.f32 0.0, %v1584
      %v1586 = vpop.f32.mrf.mxu0
      %1587 = vmatprep.mubr.bf16.mxu0 %v854
      %1588 = vmatmul.mubr.bf16.gmra.mxu0 %v853
      %v1589 = vpop.f32.mrf.mxu0
      %v1590 = vadd.f32 0.0, %v1589
      %v1591 = vpop.f32.mrf.mxu0
      %v1592 = vpop.f32.mrf.mxu0
      %v1593 = vadd.f32 0.0, %v1592
      %v1594 = vpop.f32.mrf.mxu0
      %1595 = vdwg.mxu0
      %1596 = vmatprep.subr.bf16.mxu0 0
      %1597 = vmatpush1.bf16.msra.mxu0 %v1314
      %1598 = vmatprep.subr.bf16.mxu0 0
      %1599 = vmatpush1.bf16.msra.mxu0 %v1313
      %1600 = vmatprep.subr.bf16.mxu0 0
      %1601 = vmatpush1.bf16.msra.mxu0 %v1312
      %1602 = vmatprep.subr.bf16.mxu0 0
      %1603 = vmatpush1.bf16.msra.mxu0 %v1311
      %1604 = vmatprep.subr.bf16.mxu0 0
      %1605 = vmatpush1.bf16.msra.mxu0 %v1310
      %1606 = vmatprep.subr.bf16.mxu0 0
      %1607 = vmatpush1.bf16.msra.mxu0 %v1309
      %1608 = vmatprep.subr.bf16.mxu0 0
      %1609 = vmatpush1.bf16.msra.mxu0 %v1308
      %1610 = vmatprep.subr.bf16.mxu0 0
      %1611 = vmatpush1.bf16.msra.mxu0 %v1307
      %1612 = vmatprep.subr.bf16.mxu0 0
      %1613 = vmatpush2.bf16.msra.mxu0 %v1322
      %1614 = vmatprep.subr.bf16.mxu0 0
      %1615 = vmatpush2.bf16.msra.mxu0 %v1321
      %1616 = vmatprep.subr.bf16.mxu0 0
      %1617 = vmatpush2.bf16.msra.mxu0 %v1320
      %1618 = vmatprep.subr.bf16.mxu0 0
      %1619 = vmatpush2.bf16.msra.mxu0 %v1319
      %1620 = vmatprep.subr.bf16.mxu0 0
      %1621 = vmatpush2.bf16.msra.mxu0 %v1318
      %1622 = vmatprep.subr.bf16.mxu0 0
      %1623 = vmatpush2.bf16.msra.mxu0 %v1317
      %1624 = vmatprep.subr.bf16.mxu0 0
      %1625 = vmatpush2.bf16.msra.mxu0 %v1316
      %1626 = vmatprep.subr.bf16.mxu0 0
      %1627 = vmatpush2.bf16.msra.mxu0 %v1315
      %1628 = vmatprep.mubr.bf16.mxu0 %v811
      %1629 = vmatmul.mubr.bf16.gmra.mxu0 %v810
      %v1630 = vpop.f32.mrf.mxu0
      %v1631 = vadd.f32 %v1470, %v1630
      %v1632 = vpop.f32.mrf.mxu0
      %v1633 = vpop.f32.mrf.mxu0
      %v1634 = vadd.f32 %v1473, %v1633
      %v1635 = vpop.f32.mrf.mxu0
      %1636 = vmatprep.mubr.bf16.mxu0 %v814
      %1637 = vmatmul.mubr.bf16.gmra.mxu0 %v813
      %v1638 = vpop.f32.mrf.mxu0
      %v1639 = vadd.f32 %v1478, %v1638
      %v1640 = vpop.f32.mrf.mxu0
      %v1641 = vpop.f32.mrf.mxu0
      %v1642 = vadd.f32 %v1481, %v1641
      %v1643 = vpop.f32.mrf.mxu0
      %1644 = vmatprep.mubr.bf16.mxu0 %v817
      %1645 = vmatmul.mubr.bf16.gmra.mxu0 %v816
      %v1646 = vpop.f32.mrf.mxu0
      %v1647 = vadd.f32 %v1486, %v1646
      %v1648 = vpop.f32.mrf.mxu0
      %v1649 = vpop.f32.mrf.mxu0
      %v1650 = vadd.f32 %v1489, %v1649
      %v1651 = vpop.f32.mrf.mxu0
      %1652 = vmatprep.mubr.bf16.mxu0 %v820
      %1653 = vmatmul.mubr.bf16.gmra.mxu0 %v819
      %v1654 = vpop.f32.mrf.mxu0
      %v1655 = vadd.f32 %v1494, %v1654
      %v1656 = vpop.f32.mrf.mxu0
      %v1657 = vpop.f32.mrf.mxu0
      %v1658 = vadd.f32 %v1497, %v1657
      %v1659 = vpop.f32.mrf.mxu0
      %1660 = vmatprep.mubr.bf16.mxu0 %v823
      %1661 = vmatmul.mubr.bf16.gmra.mxu0 %v822
      %v1662 = vpop.f32.mrf.mxu0
      %v1663 = vadd.f32 %v1502, %v1662
      %v1664 = vpop.f32.mrf.mxu0
      %v1665 = vpop.f32.mrf.mxu0
      %v1666 = vadd.f32 %v1505, %v1665
      %v1667 = vpop.f32.mrf.mxu0
      %1668 = vmatprep.mubr.bf16.mxu0 %v826
      %1669 = vmatmul.mubr.bf16.gmra.mxu0 %v825
      %v1670 = vpop.f32.mrf.mxu0
      %v1671 = vadd.f32 %v1510, %v1670
      %v1672 = vpop.f32.mrf.mxu0
      %v1673 = vpop.f32.mrf.mxu0
      %v1674 = vadd.f32 %v1513, %v1673
      %v1675 = vpop.f32.mrf.mxu0
      %1676 = vmatprep.mubr.bf16.mxu0 %v829
      %1677 = vmatmul.mubr.bf16.gmra.mxu0 %v828
      %v1678 = vpop.f32.mrf.mxu0
      %v1679 = vadd.f32 %v1518, %v1678
      %v1680 = vpop.f32.mrf.mxu0
      %v1681 = vpop.f32.mrf.mxu0
      %v1682 = vadd.f32 %v1521, %v1681
      %v1683 = vpop.f32.mrf.mxu0
      %1684 = vmatprep.mubr.bf16.mxu0 %v832
      %1685 = vmatmul.mubr.bf16.gmra.mxu0 %v831
      %v1686 = vpop.f32.mrf.mxu0
      %v1687 = vadd.f32 %v1526, %v1686
      %v1688 = vpop.f32.mrf.mxu0
      %v1689 = vpop.f32.mrf.mxu0
      %v1690 = vadd.f32 %v1529, %v1689
      %v1691 = vpop.f32.mrf.mxu0
      %1692 = vmatprep.mubr.bf16.mxu0 %v835
      %1693 = vmatmul.mubr.bf16.gmra.mxu0 %v834
      %v1694 = vpop.f32.mrf.mxu0
      %v1695 = vadd.f32 %v1534, %v1694
      %v1696 = vpop.f32.mrf.mxu0
      %v1697 = vpop.f32.mrf.mxu0
      %v1698 = vadd.f32 %v1537, %v1697
      %v1699 = vpop.f32.mrf.mxu0
      %1700 = vmatprep.mubr.bf16.mxu0 %v838
      %1701 = vmatmul.mubr.bf16.gmra.mxu0 %v837
      %v1702 = vpop.f32.mrf.mxu0
      %v1703 = vadd.f32 %v1542, %v1702
      %v1704 = vpop.f32.mrf.mxu0
      %v1705 = vpop.f32.mrf.mxu0
      %v1706 = vadd.f32 %v1545, %v1705
      %v1707 = vpop.f32.mrf.mxu0
      %1708 = vmatprep.mubr.bf16.mxu0 %v841
      %1709 = vmatmul.mubr.bf16.gmra.mxu0 %v840
      %v1710 = vpop.f32.mrf.mxu0
      %v1711 = vadd.f32 %v1550, %v1710
      %v1712 = vpop.f32.mrf.mxu0
      %v1713 = vpop.f32.mrf.mxu0
      %v1714 = vadd.f32 %v1553, %v1713
      %v1715 = vpop.f32.mrf.mxu0
      %1716 = vmatprep.mubr.bf16.mxu0 %v844
      %1717 = vmatmul.mubr.bf16.gmra.mxu0 %v843
      %v1718 = vpop.f32.mrf.mxu0
      %v1719 = vadd.f32 %v1558, %v1718
      %v1720 = vpop.f32.mrf.mxu0
      %v1721 = vpop.f32.mrf.mxu0
      %v1722 = vadd.f32 %v1561, %v1721
      %v1723 = vpop.f32.mrf.mxu0
      %1724 = vmatprep.mubr.bf16.mxu0 %v847
      %1725 = vmatmul.mubr.bf16.gmra.mxu0 %v846
      %v1726 = vpop.f32.mrf.mxu0
      %v1727 = vadd.f32 %v1566, %v1726
      %v1728 = vpop.f32.mrf.mxu0
      %v1729 = vpop.f32.mrf.mxu0
      %v1730 = vadd.f32 %v1569, %v1729
      %v1731 = vpop.f32.mrf.mxu0
      %1732 = vmatprep.mubr.bf16.mxu0 %v850
      %1733 = vmatmul.mubr.bf16.gmra.mxu0 %v849
      %v1734 = vpop.f32.mrf.mxu0
      %v1735 = vadd.f32 %v1574, %v1734
      %v1736 = vpop.f32.mrf.mxu0
      %v1737 = vpop.f32.mrf.mxu0
      %v1738 = vadd.f32 %v1577, %v1737
      %v1739 = vpop.f32.mrf.mxu0
      %1740 = vmatprep.mubr.bf16.mxu0 %v853
      %1741 = vmatmul.mubr.bf16.gmra.mxu0 %v852
      %v1742 = vpop.f32.mrf.mxu0
      %v1743 = vadd.f32 %v1582, %v1742
      %v1744 = vpop.f32.mrf.mxu0
      %v1745 = vpop.f32.mrf.mxu0
      %v1746 = vadd.f32 %v1585, %v1745
      %v1747 = vpop.f32.mrf.mxu0
      %1748 = vmatprep.mubr.bf16.mxu0 %v856
      %1749 = vmatmul.mubr.bf16.gmra.mxu0 %v855
      %v1750 = vpop.f32.mrf.mxu0
      %v1751 = vadd.f32 %v1590, %v1750
      %v1752 = vpop.f32.mrf.mxu0
      %v1753 = vpop.f32.mrf.mxu0
      %v1754 = vadd.f32 %v1593, %v1753
      %v1755 = vpop.f32.mrf.mxu0
      %1756 = vdwg.mxu0
      %1757 = vmatprep.subr.bf16.mxu0 0
      %1758 = vmatpush1.bf16.msra.mxu0 %v1330
      %1759 = vmatprep.subr.bf16.mxu0 0
      %1760 = vmatpush1.bf16.msra.mxu0 %v1329
      %1761 = vmatprep.subr.bf16.mxu0 0
      %1762 = vmatpush1.bf16.msra.mxu0 %v1328
      %1763 = vmatprep.subr.bf16.mxu0 0
      %1764 = vmatpush1.bf16.msra.mxu0 %v1327
      %1765 = vmatprep.subr.bf16.mxu0 0
      %1766 = vmatpush1.bf16.msra.mxu0 %v1326
      %1767 = vmatprep.subr.bf16.mxu0 0
      %1768 = vmatpush1.bf16.msra.mxu0 %v1325
      %1769 = vmatprep.subr.bf16.mxu0 0
      %1770 = vmatpush1.bf16.msra.mxu0 %v1324
      %1771 = vmatprep.subr.bf16.mxu0 0
      %1772 = vmatpush1.bf16.msra.mxu0 %v1323
      %1773 = vmatprep.subr.bf16.mxu0 0
      %1774 = vmatpush2.bf16.msra.mxu0 %v1338
      %1775 = vmatprep.subr.bf16.mxu0 0
      %1776 = vmatpush2.bf16.msra.mxu0 %v1337
      %1777 = vmatprep.subr.bf16.mxu0 0
      %1778 = vmatpush2.bf16.msra.mxu0 %v1336
      %1779 = vmatprep.subr.bf16.mxu0 0
      %1780 = vmatpush2.bf16.msra.mxu0 %v1335
      %1781 = vmatprep.subr.bf16.mxu0 0
      %1782 = vmatpush2.bf16.msra.mxu0 %v1334
      %1783 = vmatprep.subr.bf16.mxu0 0
      %1784 = vmatpush2.bf16.msra.mxu0 %v1333
      %1785 = vmatprep.subr.bf16.mxu0 0
      %1786 = vmatpush2.bf16.msra.mxu0 %v1332
      %1787 = vmatprep.subr.bf16.mxu0 0
      %1788 = vmatpush2.bf16.msra.mxu0 %v1331
      %1789 = vmatprep.mubr.bf16.mxu0 %v813
      %1790 = vmatmul.mubr.bf16.gmra.mxu0 %v812
      %v1791 = vpop.f32.mrf.mxu0
      %v1792 = vadd.f32 %v1631, %v1791
      %v1793 = vpop.f32.mrf.mxu0
      %v1794 = vpop.f32.mrf.mxu0
      %v1795 = vadd.f32 %v1634, %v1794
      %v1796 = vpop.f32.mrf.mxu0
      %1797 = vmatprep.mubr.bf16.mxu0 %v816
      %1798 = vmatmul.mubr.bf16.gmra.mxu0 %v815
      %v1799 = vpop.f32.mrf.mxu0
      %v1800 = vadd.f32 %v1639, %v1799
      %v1801 = vpop.f32.mrf.mxu0
      %v1802 = vpop.f32.mrf.mxu0
      %v1803 = vadd.f32 %v1642, %v1802
      %v1804 = vpop.f32.mrf.mxu0
      %1805 = vmatprep.mubr.bf16.mxu0 %v819
      %1806 = vmatmul.mubr.bf16.gmra.mxu0 %v818
      %v1807 = vpop.f32.mrf.mxu0
      %v1808 = vadd.f32 %v1647, %v1807
      %v1809 = vpop.f32.mrf.mxu0
      %v1810 = vpop.f32.mrf.mxu0
      %v1811 = vadd.f32 %v1650, %v1810
      %v1812 = vpop.f32.mrf.mxu0
      %1813 = vmatprep.mubr.bf16.mxu0 %v822
      %1814 = vmatmul.mubr.bf16.gmra.mxu0 %v821
      %v1815 = vpop.f32.mrf.mxu0
      %v1816 = vadd.f32 %v1655, %v1815
      %v1817 = vpop.f32.mrf.mxu0
      %v1818 = vpop.f32.mrf.mxu0
      %v1819 = vadd.f32 %v1658, %v1818
      %v1820 = vpop.f32.mrf.mxu0
      %1821 = vmatprep.mubr.bf16.mxu0 %v825
      %1822 = vmatmul.mubr.bf16.gmra.mxu0 %v824
      %v1823 = vpop.f32.mrf.mxu0
      %v1824 = vadd.f32 %v1663, %v1823
      %v1825 = vpop.f32.mrf.mxu0
      %v1826 = vpop.f32.mrf.mxu0
      %v1827 = vadd.f32 %v1666, %v1826
      %v1828 = vpop.f32.mrf.mxu0
      %1829 = vmatprep.mubr.bf16.mxu0 %v828
      %1830 = vmatmul.mubr.bf16.gmra.mxu0 %v827
      %v1831 = vpop.f32.mrf.mxu0
      %v1832 = vadd.f32 %v1671, %v1831
      %v1833 = vpop.f32.mrf.mxu0
      %v1834 = vpop.f32.mrf.mxu0
      %v1835 = vadd.f32 %v1674, %v1834
      %v1836 = vpop.f32.mrf.mxu0
      %1837 = vmatprep.mubr.bf16.mxu0 %v831
      %1838 = vmatmul.mubr.bf16.gmra.mxu0 %v830
      %v1839 = vpop.f32.mrf.mxu0
      %v1840 = vadd.f32 %v1679, %v1839
      %v1841 = vpop.f32.mrf.mxu0
      %v1842 = vpop.f32.mrf.mxu0
      %v1843 = vadd.f32 %v1682, %v1842
      %v1844 = vpop.f32.mrf.mxu0
      %1845 = vmatprep.mubr.bf16.mxu0 %v834
      %1846 = vmatmul.mubr.bf16.gmra.mxu0 %v833
      %v1847 = vpop.f32.mrf.mxu0
      %v1848 = vadd.f32 %v1687, %v1847
      %v1849 = vpop.f32.mrf.mxu0
      %v1850 = vpop.f32.mrf.mxu0
      %v1851 = vadd.f32 %v1690, %v1850
      %v1852 = vpop.f32.mrf.mxu0
      %1853 = vmatprep.mubr.bf16.mxu0 %v837
      %1854 = vmatmul.mubr.bf16.gmra.mxu0 %v836
      %v1855 = vpop.f32.mrf.mxu0
      %v1856 = vadd.f32 %v1695, %v1855
      %v1857 = vpop.f32.mrf.mxu0
      %v1858 = vpop.f32.mrf.mxu0
      %v1859 = vadd.f32 %v1698, %v1858
      %v1860 = vpop.f32.mrf.mxu0
      %1861 = vmatprep.mubr.bf16.mxu0 %v840
      %1862 = vmatmul.mubr.bf16.gmra.mxu0 %v839
      %v1863 = vpop.f32.mrf.mxu0
      %v1864 = vadd.f32 %v1703, %v1863
      %v1865 = vpop.f32.mrf.mxu0
      %v1866 = vpop.f32.mrf.mxu0
      %v1867 = vadd.f32 %v1706, %v1866
      %v1868 = vpop.f32.mrf.mxu0
      %1869 = vmatprep.mubr.bf16.mxu0 %v843
      %1870 = vmatmul.mubr.bf16.gmra.mxu0 %v842
      %v1871 = vpop.f32.mrf.mxu0
      %v1872 = vadd.f32 %v1711, %v1871
      %v1873 = vpop.f32.mrf.mxu0
      %v1874 = vpop.f32.mrf.mxu0
      %v1875 = vadd.f32 %v1714, %v1874
      %v1876 = vpop.f32.mrf.mxu0
      %1877 = vmatprep.mubr.bf16.mxu0 %v846
      %1878 = vmatmul.mubr.bf16.gmra.mxu0 %v845
      %v1879 = vpop.f32.mrf.mxu0
      %v1880 = vadd.f32 %v1719, %v1879
      %v1881 = vpop.f32.mrf.mxu0
      %v1882 = vpop.f32.mrf.mxu0
      %v1883 = vadd.f32 %v1722, %v1882
      %v1884 = vpop.f32.mrf.mxu0
      %1885 = vmatprep.mubr.bf16.mxu0 %v849
      %1886 = vmatmul.mubr.bf16.gmra.mxu0 %v848
      %v1887 = vpop.f32.mrf.mxu0
      %v1888 = vadd.f32 %v1727, %v1887
      %v1889 = vpop.f32.mrf.mxu0
      %v1890 = vpop.f32.mrf.mxu0
      %v1891 = vadd.f32 %v1730, %v1890
      %v1892 = vpop.f32.mrf.mxu0
      %1893 = vmatprep.mubr.bf16.mxu0 %v852
      %1894 = vmatmul.mubr.bf16.gmra.mxu0 %v851
      %v1895 = vpop.f32.mrf.mxu0
      %v1896 = vadd.f32 %v1735, %v1895
      %v1897 = vpop.f32.mrf.mxu0
      %v1898 = vpop.f32.mrf.mxu0
      %v1899 = vadd.f32 %v1738, %v1898
      %v1900 = vpop.f32.mrf.mxu0
      %1901 = vmatprep.mubr.bf16.mxu0 %v855
      %1902 = vmatmul.mubr.bf16.gmra.mxu0 %v854
      %v1903 = vpop.f32.mrf.mxu0
      %v1904 = vadd.f32 %v1743, %v1903
      %v1905 = vpop.f32.mrf.mxu0
      %v1906 = vpop.f32.mrf.mxu0
      %v1907 = vadd.f32 %v1746, %v1906
      %v1908 = vpop.f32.mrf.mxu0
      %1909 = vmatprep.mubr.bf16.mxu0 %v858
      %1910 = vmatmul.mubr.bf16.gmra.mxu0 %v857
      %v1911 = vpop.f32.mrf.mxu0
      %v1912 = vadd.f32 %v1751, %v1911
      %v1913 = vpop.f32.mrf.mxu0
      %v1914 = vpop.f32.mrf.mxu0
      %v1915 = vadd.f32 %v1754, %v1914
      %v1916 = vpop.f32.mrf.mxu0
      %1917 = vdwg.mxu0
      %1918 = vmatprep.subr.bf16.mxu0 0
      %1919 = vmatpush1.bf16.msra.mxu0 %v1346
      %1920 = vmatprep.subr.bf16.mxu0 0
      %1921 = vmatpush1.bf16.msra.mxu0 %v1345
      %1922 = vmatprep.subr.bf16.mxu0 0
      %1923 = vmatpush1.bf16.msra.mxu0 %v1344
      %1924 = vmatprep.subr.bf16.mxu0 0
      %1925 = vmatpush1.bf16.msra.mxu0 %v1343
      %1926 = vmatprep.subr.bf16.mxu0 0
      %1927 = vmatpush1.bf16.msra.mxu0 %v1342
      %1928 = vmatprep.subr.bf16.mxu0 0
      %1929 = vmatpush1.bf16.msra.mxu0 %v1341
      %1930 = vmatprep.subr.bf16.mxu0 0
      %1931 = vmatpush1.bf16.msra.mxu0 %v1340
      %1932 = vmatprep.subr.bf16.mxu0 0
      %1933 = vmatpush1.bf16.msra.mxu0 %v1339
      %1934 = vmatprep.subr.bf16.mxu0 0
      %1935 = vmatpush2.bf16.msra.mxu0 %v1354
      %1936 = vmatprep.subr.bf16.mxu0 0
      %1937 = vmatpush2.bf16.msra.mxu0 %v1353
      %1938 = vmatprep.subr.bf16.mxu0 0
      %1939 = vmatpush2.bf16.msra.mxu0 %v1352
      %1940 = vmatprep.subr.bf16.mxu0 0
      %1941 = vmatpush2.bf16.msra.mxu0 %v1351
      %1942 = vmatprep.subr.bf16.mxu0 0
      %1943 = vmatpush2.bf16.msra.mxu0 %v1350
      %1944 = vmatprep.subr.bf16.mxu0 0
      %1945 = vmatpush2.bf16.msra.mxu0 %v1349
      %1946 = vmatprep.subr.bf16.mxu0 0
      %1947 = vmatpush2.bf16.msra.mxu0 %v1348
      %1948 = vmatprep.subr.bf16.mxu0 0
      %1949 = vmatpush2.bf16.msra.mxu0 %v1347
      %1950 = vmatprep.mubr.bf16.mxu0 %v815
      %1951 = vmatmul.mubr.bf16.gmra.mxu0 %v814
      %v1952 = vpop.f32.mrf.mxu0
      %v1953 = vadd.f32 %v1792, %v1952
      %v1954 = vpop.f32.mrf.mxu0
      %v1955 = vpop.f32.mrf.mxu0
      %v1956 = vadd.f32 %v1795, %v1955
      %v1957 = vpop.f32.mrf.mxu0
      %1958 = vmatprep.mubr.bf16.mxu0 %v818
      %1959 = vmatmul.mubr.bf16.gmra.mxu0 %v817
      %v1960 = vpop.f32.mrf.mxu0
      %v1961 = vadd.f32 %v1800, %v1960
      %v1962 = vpop.f32.mrf.mxu0
      %v1963 = vpop.f32.mrf.mxu0
      %v1964 = vadd.f32 %v1803, %v1963
      %v1965 = vpop.f32.mrf.mxu0
      %1966 = vmatprep.mubr.bf16.mxu0 %v821
      %1967 = vmatmul.mubr.bf16.gmra.mxu0 %v820
      %v1968 = vpop.f32.mrf.mxu0
      %v1969 = vadd.f32 %v1808, %v1968
      %v1970 = vpop.f32.mrf.mxu0
      %v1971 = vpop.f32.mrf.mxu0
      %v1972 = vadd.f32 %v1811, %v1971
      %v1973 = vpop.f32.mrf.mxu0
      %1974 = vmatprep.mubr.bf16.mxu0 %v824
      %1975 = vmatmul.mubr.bf16.gmra.mxu0 %v823
      %v1976 = vpop.f32.mrf.mxu0
      %v1977 = vadd.f32 %v1816, %v1976
      %v1978 = vpop.f32.mrf.mxu0
      %v1979 = vpop.f32.mrf.mxu0
      %v1980 = vadd.f32 %v1819, %v1979
      %v1981 = vpop.f32.mrf.mxu0
      %1982 = vmatprep.mubr.bf16.mxu0 %v827
      %1983 = vmatmul.mubr.bf16.gmra.mxu0 %v826
      %v1984 = vpop.f32.mrf.mxu0
      %v1985 = vadd.f32 %v1824, %v1984
      %v1986 = vpop.f32.mrf.mxu0
      %v1987 = vpop.f32.mrf.mxu0
      %v1988 = vadd.f32 %v1827, %v1987
      %v1989 = vpop.f32.mrf.mxu0
      %1990 = vmatprep.mubr.bf16.mxu0 %v830
      %1991 = vmatmul.mubr.bf16.gmra.mxu0 %v829
      %v1992 = vpop.f32.mrf.mxu0
      %v1993 = vadd.f32 %v1832, %v1992
      %v1994 = vpop.f32.mrf.mxu0
      %v1995 = vpop.f32.mrf.mxu0
      %v1996 = vadd.f32 %v1835, %v1995
      %v1997 = vpop.f32.mrf.mxu0
      %1998 = vmatprep.mubr.bf16.mxu0 %v833
      %1999 = vmatmul.mubr.bf16.gmra.mxu0 %v832
      %v2000 = vpop.f32.mrf.mxu0
      %v2001 = vadd.f32 %v1840, %v2000
      %v2002 = vpop.f32.mrf.mxu0
      %v2003 = vpop.f32.mrf.mxu0
      %v2004 = vadd.f32 %v1843, %v2003
      %v2005 = vpop.f32.mrf.mxu0
      %2006 = vmatprep.mubr.bf16.mxu0 %v836
      %2007 = vmatmul.mubr.bf16.gmra.mxu0 %v835
      %v2008 = vpop.f32.mrf.mxu0
      %v2009 = vadd.f32 %v1848, %v2008
      %v2010 = vpop.f32.mrf.mxu0
      %v2011 = vpop.f32.mrf.mxu0
      %v2012 = vadd.f32 %v1851, %v2011
      %v2013 = vpop.f32.mrf.mxu0
      %2014 = vmatprep.mubr.bf16.mxu0 %v839
      %2015 = vmatmul.mubr.bf16.gmra.mxu0 %v838
      %v2016 = vpop.f32.mrf.mxu0
      %v2017 = vadd.f32 %v1856, %v2016
      %v2018 = vpop.f32.mrf.mxu0
      %v2019 = vpop.f32.mrf.mxu0
      %v2020 = vadd.f32 %v1859, %v2019
      %v2021 = vpop.f32.mrf.mxu0
      %2022 = vmatprep.mubr.bf16.mxu0 %v842
      %2023 = vmatmul.mubr.bf16.gmra.mxu0 %v841
      %v2024 = vpop.f32.mrf.mxu0
      %v2025 = vadd.f32 %v1864, %v2024
      %v2026 = vpop.f32.mrf.mxu0
      %v2027 = vpop.f32.mrf.mxu0
      %v2028 = vadd.f32 %v1867, %v2027
      %v2029 = vpop.f32.mrf.mxu0
      %2030 = vmatprep.mubr.bf16.mxu0 %v845
      %2031 = vmatmul.mubr.bf16.gmra.mxu0 %v844
      %v2032 = vpop.f32.mrf.mxu0
      %v2033 = vadd.f32 %v1872, %v2032
      %v2034 = vpop.f32.mrf.mxu0
      %v2035 = vpop.f32.mrf.mxu0
      %v2036 = vadd.f32 %v1875, %v2035
      %v2037 = vpop.f32.mrf.mxu0
      %2038 = vmatprep.mubr.bf16.mxu0 %v848
      %2039 = vmatmul.mubr.bf16.gmra.mxu0 %v847
      %v2040 = vpop.f32.mrf.mxu0
      %v2041 = vadd.f32 %v1880, %v2040
      %v2042 = vpop.f32.mrf.mxu0
      %v2043 = vpop.f32.mrf.mxu0
      %v2044 = vadd.f32 %v1883, %v2043
      %v2045 = vpop.f32.mrf.mxu0
      %2046 = vmatprep.mubr.bf16.mxu0 %v851
      %2047 = vmatmul.mubr.bf16.gmra.mxu0 %v850
      %v2048 = vpop.f32.mrf.mxu0
      %v2049 = vadd.f32 %v1888, %v2048
      %v2050 = vpop.f32.mrf.mxu0
      %v2051 = vpop.f32.mrf.mxu0
      %v2052 = vadd.f32 %v1891, %v2051
      %v2053 = vpop.f32.mrf.mxu0
      %2054 = vmatprep.mubr.bf16.mxu0 %v854
      %2055 = vmatmul.mubr.bf16.gmra.mxu0 %v853
      %v2056 = vpop.f32.mrf.mxu0
      %v2057 = vadd.f32 %v1896, %v2056
      %v2058 = vpop.f32.mrf.mxu0
      %v2059 = vpop.f32.mrf.mxu0
      %v2060 = vadd.f32 %v1899, %v2059
      %v2061 = vpop.f32.mrf.mxu0
      %2062 = vmatprep.mubr.bf16.mxu0 %v857
      %2063 = vmatmul.mubr.bf16.gmra.mxu0 %v856
      %v2064 = vpop.f32.mrf.mxu0
      %v2065 = vadd.f32 %v1904, %v2064
      %v2066 = vpop.f32.mrf.mxu0
      %v2067 = vpop.f32.mrf.mxu0
      %v2068 = vadd.f32 %v1907, %v2067
      %v2069 = vpop.f32.mrf.mxu0
      %2070 = vmatprep.mubr.bf16.mxu0 %v809
      %2071 = vmatmul.mubr.bf16.gmra.mxu0 %v808
      %v2072 = vpop.f32.mrf.mxu0
      %v2073 = vadd.f32 %v1912, %v2072
      %v2074 = vpop.f32.mrf.mxu0
      %v2075 = vpop.f32.mrf.mxu0
      %v2076 = vadd.f32 %v1915, %v2075
      %v2077 = vpop.f32.mrf.mxu0
      %2078 = vdwg.mxu0
      %2079 = vmatprep.subr.bf16.mxu0 0
      %2080 = vmatpush1.bf16.msra.mxu0 %v1362
      %2081 = vmatprep.subr.bf16.mxu0 0
      %2082 = vmatpush1.bf16.msra.mxu0 %v1361
      %2083 = vmatprep.subr.bf16.mxu0 0
      %2084 = vmatpush1.bf16.msra.mxu0 %v1360
      %2085 = vmatprep.subr.bf16.mxu0 0
      %2086 = vmatpush1.bf16.msra.mxu0 %v1359
      %2087 = vmatprep.subr.bf16.mxu0 0
      %2088 = vmatpush1.bf16.msra.mxu0 %v1358
      %2089 = vmatprep.subr.bf16.mxu0 0
      %2090 = vmatpush1.bf16.msra.mxu0 %v1357
      %2091 = vmatprep.subr.bf16.mxu0 0
      %2092 = vmatpush1.bf16.msra.mxu0 %v1356
      %2093 = vmatprep.subr.bf16.mxu0 0
      %2094 = vmatpush1.bf16.msra.mxu0 %v1355
      %2095 = vmatprep.subr.bf16.mxu0 0
      %2096 = vmatpush2.bf16.msra.mxu0 0
      %2097 = vmatprep.subr.bf16.mxu0 0
      %2098 = vmatpush2.bf16.msra.mxu0 0
      %2099 = vmatprep.subr.bf16.mxu0 0
      %2100 = vmatpush2.bf16.msra.mxu0 0
      %2101 = vmatprep.subr.bf16.mxu0 0
      %2102 = vmatpush2.bf16.msra.mxu0 0
      %2103 = vmatprep.subr.bf16.mxu0 0
      %2104 = vmatpush2.bf16.msra.mxu0 0
      %2105 = vmatprep.subr.bf16.mxu0 0
      %2106 = vmatpush2.bf16.msra.mxu0 0
      %2107 = vmatprep.subr.bf16.mxu0 0
      %2108 = vmatpush2.bf16.msra.mxu0 0
      %2109 = vmatprep.subr.bf16.mxu0 0
      %2110 = vmatpush2.bf16.msra.mxu0 0
      %2111 = vmatprep.mubr.bf16.mxu0 0
      %2112 = vmatmul.mubr.bf16.gmra.mxu0 %v816
      %v2113 = vpop.f32.mrf.mxu0
      %v2114 = vadd.f32 %v1953, %v2113
      %v2115 = vpop.f32.mrf.mxu0
      %v2116 = vpop.f32.mrf.mxu0
      %v2117 = vadd.f32 %v1956, %v2116
      %v2118 = vpop.f32.mrf.mxu0
      %2119 = vmatprep.mubr.bf16.mxu0 0
      %2120 = vmatmul.mubr.bf16.gmra.mxu0 %v819
      %v2121 = vpop.f32.mrf.mxu0
      %v2122 = vadd.f32 %v1961, %v2121
      %v2123 = vpop.f32.mrf.mxu0
      %v2124 = vpop.f32.mrf.mxu0
      %v2125 = vadd.f32 %v1964, %v2124
      %v2126 = vpop.f32.mrf.mxu0
      %2127 = vmatprep.mubr.bf16.mxu0 0
      %2128 = vmatmul.mubr.bf16.gmra.mxu0 %v822
      %v2129 = vpop.f32.mrf.mxu0
      %v2130 = vadd.f32 %v1969, %v2129
      %v2131 = vpop.f32.mrf.mxu0
      %v2132 = vpop.f32.mrf.mxu0
      %v2133 = vadd.f32 %v1972, %v2132
      %v2134 = vpop.f32.mrf.mxu0
      %2135 = vmatprep.mubr.bf16.mxu0 0
      %2136 = vmatmul.mubr.bf16.gmra.mxu0 %v825
      %v2137 = vpop.f32.mrf.mxu0
      %v2138 = vadd.f32 %v1977, %v2137
      %v2139 = vpop.f32.mrf.mxu0
      %v2140 = vpop.f32.mrf.mxu0
      %v2141 = vadd.f32 %v1980, %v2140
      %v2142 = vpop.f32.mrf.mxu0
      %2143 = vmatprep.mubr.bf16.mxu0 0
      %2144 = vmatmul.mubr.bf16.gmra.mxu0 %v828
      %v2145 = vpop.f32.mrf.mxu0
      %v2146 = vadd.f32 %v1985, %v2145
      %v2147 = vpop.f32.mrf.mxu0
      %v2148 = vpop.f32.mrf.mxu0
      %v2149 = vadd.f32 %v1988, %v2148
      %v2150 = vpop.f32.mrf.mxu0
      %2151 = vmatprep.mubr.bf16.mxu0 0
      %2152 = vmatmul.mubr.bf16.gmra.mxu0 %v831
      %v2153 = vpop.f32.mrf.mxu0
      %v2154 = vadd.f32 %v1993, %v2153
      %v2155 = vpop.f32.mrf.mxu0
      %v2156 = vpop.f32.mrf.mxu0
      %v2157 = vadd.f32 %v1996, %v2156
      %v2158 = vpop.f32.mrf.mxu0
      %2159 = vmatprep.mubr.bf16.mxu0 0
      %2160 = vmatmul.mubr.bf16.gmra.mxu0 %v834
      %v2161 = vpop.f32.mrf.mxu0
      %v2162 = vadd.f32 %v2001, %v2161
      %v2163 = vpop.f32.mrf.mxu0
      %v2164 = vpop.f32.mrf.mxu0
      %v2165 = vadd.f32 %v2004, %v2164
      %v2166 = vpop.f32.mrf.mxu0
      %2167 = vmatprep.mubr.bf16.mxu0 0
      %2168 = vmatmul.mubr.bf16.gmra.mxu0 %v837
      %v2169 = vpop.f32.mrf.mxu0
      %v2170 = vadd.f32 %v2009, %v2169
      %v2171 = vpop.f32.mrf.mxu0
      %v2172 = vpop.f32.mrf.mxu0
      %v2173 = vadd.f32 %v2012, %v2172
      %v2174 = vpop.f32.mrf.mxu0
      %2175 = vmatprep.mubr.bf16.mxu0 0
      %2176 = vmatmul.mubr.bf16.gmra.mxu0 %v840
      %v2177 = vpop.f32.mrf.mxu0
      %v2178 = vadd.f32 %v2017, %v2177
      %v2179 = vpop.f32.mrf.mxu0
      %v2180 = vpop.f32.mrf.mxu0
      %v2181 = vadd.f32 %v2020, %v2180
      %v2182 = vpop.f32.mrf.mxu0
      %2183 = vmatprep.mubr.bf16.mxu0 0
      %2184 = vmatmul.mubr.bf16.gmra.mxu0 %v843
      %v2185 = vpop.f32.mrf.mxu0
      %v2186 = vadd.f32 %v2025, %v2185
      %v2187 = vpop.f32.mrf.mxu0
      %v2188 = vpop.f32.mrf.mxu0
      %v2189 = vadd.f32 %v2028, %v2188
      %v2190 = vpop.f32.mrf.mxu0
      %2191 = vmatprep.mubr.bf16.mxu0 0
      %2192 = vmatmul.mubr.bf16.gmra.mxu0 %v846
      %v2193 = vpop.f32.mrf.mxu0
      %v2194 = vadd.f32 %v2033, %v2193
      %v2195 = vpop.f32.mrf.mxu0
      %v2196 = vpop.f32.mrf.mxu0
      %v2197 = vadd.f32 %v2036, %v2196
      %v2198 = vpop.f32.mrf.mxu0
      %2199 = vmatprep.mubr.bf16.mxu0 0
      %2200 = vmatmul.mubr.bf16.gmra.mxu0 %v849
      %v2201 = vpop.f32.mrf.mxu0
      %v2202 = vadd.f32 %v2041, %v2201
      %v2203 = vpop.f32.mrf.mxu0
      %v2204 = vpop.f32.mrf.mxu0
      %v2205 = vadd.f32 %v2044, %v2204
      %v2206 = vpop.f32.mrf.mxu0
      %2207 = vmatprep.mubr.bf16.mxu0 0
      %2208 = vmatmul.mubr.bf16.gmra.mxu0 %v852
      %v2209 = vpop.f32.mrf.mxu0
      %v2210 = vadd.f32 %v2049, %v2209
      %v2211 = vpop.f32.mrf.mxu0
      %v2212 = vpop.f32.mrf.mxu0
      %v2213 = vadd.f32 %v2052, %v2212
      %v2214 = vpop.f32.mrf.mxu0
      %2215 = vmatprep.mubr.bf16.mxu0 0
      %2216 = vmatmul.mubr.bf16.gmra.mxu0 %v855
      %v2217 = vpop.f32.mrf.mxu0
      %v2218 = vadd.f32 %v2057, %v2217
      %v2219 = vpop.f32.mrf.mxu0
      %v2220 = vpop.f32.mrf.mxu0
      %v2221 = vadd.f32 %v2060, %v2220
      %v2222 = vpop.f32.mrf.mxu0
      %2223 = vmatprep.mubr.bf16.mxu0 0
      %2224 = vmatmul.mubr.bf16.gmra.mxu0 %v858
      %v2225 = vpop.f32.mrf.mxu0
      %v2226 = vadd.f32 %v2065, %v2225
      %v2227 = vpop.f32.mrf.mxu0
      %v2228 = vpop.f32.mrf.mxu0
      %v2229 = vadd.f32 %v2068, %v2228
      %v2230 = vpop.f32.mrf.mxu0
      %2231 = vmatprep.mubr.bf16.mxu0 0
      %2232 = vmatmul.mubr.bf16.gmra.mxu0 %v810
      %v2233 = vpop.f32.mrf.mxu0
      %v2234 = vadd.f32 %v2073, %v2233
      %v2235 = vpop.f32.mrf.mxu0
      %v2236 = vpop.f32.mrf.mxu0
      %v2237 = vadd.f32 %v2076, %v2236
      %v2238 = vpop.f32.mrf.mxu0
      %2239 = vdwg.mxu0
      %2240 = vst [vmem:[%s222] sm:$0xff] %v2114
      %2241 = vst [vmem:[%s222 + $0x8] sm:$0xff] %v2117
      %2242 = vst [vmem:[%s222 + $0x10] sm:$0xff] %v2122
      %2243 = vst [vmem:[%s222 + $0x18] sm:$0xff] %v2125
      %2244 = vst [vmem:[%s222 + $0x20] sm:$0xff] %v2130
      %2245 = vst [vmem:[%s222 + $0x28] sm:$0xff] %v2133
      %2246 = vst [vmem:[%s222 + $0x30] sm:$0xff] %v2138
      %2247 = vst [vmem:[%s222 + $0x38] sm:$0xff] %v2141
      %2248 = vst [vmem:[%s222 + $0x40] sm:$0xff] %v2146
      %2249 = vst [vmem:[%s222 + $0x48] sm:$0xff] %v2149
      %2250 = vst [vmem:[%s222 + $0x50] sm:$0xff] %v2154
      %2251 = vst [vmem:[%s222 + $0x58] sm:$0xff] %v2157
      %2252 = vst [vmem:[%s222 + $0x60] sm:$0xff] %v2162
      %2253 = vst [vmem:[%s222 + $0x68] sm:$0xff] %v2165
      %2254 = vst [vmem:[%s222 + $0x70] sm:$0xff] %v2170
      %2255 = vst [vmem:[%s222 + $0x78] sm:$0xff] %v2173
      %2256 = vst [vmem:[%s222 + $0x80] sm:$0xff] %v2178
      %2257 = vst [vmem:[%s222 + $0x88] sm:$0xff] %v2181
      %2258 = vst [vmem:[%s222 + $0x90] sm:$0xff] %v2186
      %2259 = vst [vmem:[%s222 + $0x98] sm:$0xff] %v2189
      %2260 = vst [vmem:[%s222 + $0xa0] sm:$0xff] %v2194
      %2261 = vst [vmem:[%s222 + $0xa8] sm:$0xff] %v2197
      %2262 = vst [vmem:[%s222 + $0xb0] sm:$0xff] %v2202
      %2263 = vst [vmem:[%s222 + $0xb8] sm:$0xff] %v2205
      %2264 = vst [vmem:[%s222 + $0xc0] sm:$0xff] %v2210
      %2265 = vst [vmem:[%s222 + $0xc8] sm:$0xff] %v2213
      %2266 = vst [vmem:[%s222 + $0xd0] sm:$0xff] %v2218
      %2267 = vst [vmem:[%s222 + $0xd8] sm:$0xff] %v2221
      %2268 = vst [vmem:[%s222 + $0xe0] sm:$0xff] %v2226
      %2269 = vst [vmem:[%s222 + $0xe8] sm:$0xff] %v2229
      %2270 = vst [vmem:[%s222 + $0xf0] sm:$0xff] %v2234
      %2271 = vst [vmem:[%s222 + $0xf8] sm:$0xff] %v2237
      %v2272 = vadd.f32 %v2114, %v2117
      %v2273 = vadd.f32 %v2272, %v2122
      %v2274 = vadd.f32 %v2273, %v2125
      %v2275 = vadd.f32 %v2274, %v2130
      %v2276 = vadd.f32 %v2275, %v2133
      %v2277 = vadd.f32 %v2276, %v2138
      %v2278 = vadd.f32 %v2277, %v2141
      %v2279 = vadd.f32 %v2278, %v2146
      %v2280 = vadd.f32 %v2279, %v2149
      %v2281 = vadd.f32 %v2280, %v2154
      %v2282 = vadd.f32 %v2281, %v2157
      %v2283 = vadd.f32 %v2282, %v2162
      %v2284 = vadd.f32 %v2283, %v2165
      %v2285 = vadd.f32 %v2284, %v2170
      %v2286 = vadd.f32 %v2285, %v2173
      %v2287 = vadd.f32 %v2286, %v2178
      %v2288 = vadd.f32 %v2287, %v2181
      %v2289 = vadd.f32 %v2288, %v2186
      %v2290 = vadd.f32 %v2289, %v2189
      %v2291 = vadd.f32 %v2290, %v2194
      %v2292 = vadd.f32 %v2291, %v2197
      %v2293 = vadd.f32 %v2292, %v2202
      %v2294 = vadd.f32 %v2293, %v2205
      %v2295 = vadd.f32 %v2294, %v2210
      %v2296 = vadd.f32 %v2295, %v2213
      %v2297 = vadd.f32 %v2296, %v2218
      %v2298 = vadd.f32 %v2297, %v2221
      %v2299 = vadd.f32 %v2298, %v2226
      %v2300 = vadd.f32 %v2299, %v2229
      %v2301 = vadd.f32 %v2300, %v2234
      %v2302 = vadd.f32 %v2301, %v2237
      %v2303 = vrot.slane %v2302, 4
      %v2304 = vadd.f32 %v2302, %v2303
      %v2305 = vrot.slane %v2304, 2
      %v2306 = vadd.f32 %v2304, %v2305
      %v2307 = vrot.slane %v2306, 1
      %v2308 = vadd.f32 %v2306, %v2307
      %v2309 = vmul.f32 %v2114, %v2114
      %v2310 = vmul.f32 %v2117, %v2117
      %v2311 = vmul.f32 %v2122, %v2122
      %v2312 = vmul.f32 %v2125, %v2125
      %v2313 = vmul.f32 %v2130, %v2130
      %v2314 = vmul.f32 %v2133, %v2133
      %v2315 = vmul.f32 %v2138, %v2138
      %v2316 = vmul.f32 %v2141, %v2141
      %v2317 = vmul.f32 %v2146, %v2146
      %v2318 = vmul.f32 %v2149, %v2149
      %v2319 = vmul.f32 %v2154, %v2154
      %v2320 = vmul.f32 %v2157, %v2157
      %v2321 = vmul.f32 %v2162, %v2162
      %v2322 = vmul.f32 %v2165, %v2165
      %v2323 = vmul.f32 %v2170, %v2170
      %v2324 = vmul.f32 %v2173, %v2173
      %v2325 = vmul.f32 %v2178, %v2178
      %v2326 = vmul.f32 %v2181, %v2181
      %v2327 = vmul.f32 %v2186, %v2186
      %v2328 = vmul.f32 %v2189, %v2189
      %v2329 = vmul.f32 %v2194, %v2194
      %v2330 = vmul.f32 %v2197, %v2197
      %v2331 = vmul.f32 %v2202, %v2202
      %v2332 = vmul.f32 %v2205, %v2205
      %v2333 = vmul.f32 %v2210, %v2210
      %v2334 = vmul.f32 %v2213, %v2213
      %v2335 = vmul.f32 %v2218, %v2218
      %v2336 = vmul.f32 %v2221, %v2221
      %v2337 = vmul.f32 %v2226, %v2226
      %v2338 = vmul.f32 %v2229, %v2229
      %v2339 = vmul.f32 %v2234, %v2234
      %v2340 = vmul.f32 %v2237, %v2237
      %v2341 = vadd.f32 %v2309, %v2310
      %v2342 = vadd.f32 %v2341, %v2311
      %v2343 = vadd.f32 %v2342, %v2312
      %v2344 = vadd.f32 %v2343, %v2313
      %v2345 = vadd.f32 %v2344, %v2314
      %v2346 = vadd.f32 %v2345, %v2315
      %v2347 = vadd.f32 %v2346, %v2316
      %v2348 = vadd.f32 %v2347, %v2317
      %v2349 = vadd.f32 %v2348, %v2318
      %v2350 = vadd.f32 %v2349, %v2319
      %v2351 = vadd.f32 %v2350, %v2320
      %v2352 = vadd.f32 %v2351, %v2321
      %v2353 = vadd.f32 %v2352, %v2322
      %v2354 = vadd.f32 %v2353, %v2323
      %v2355 = vadd.f32 %v2354, %v2324
      %v2356 = vadd.f32 %v2355, %v2325
      %v2357 = vadd.f32 %v2356, %v2326
      %v2358 = vadd.f32 %v2357, %v2327
      %v2359 = vadd.f32 %v2358, %v2328
      %v2360 = vadd.f32 %v2359, %v2329
      %v2361 = vadd.f32 %v2360, %v2330
      %v2362 = vadd.f32 %v2361, %v2331
      %v2363 = vadd.f32 %v2362, %v2332
      %v2364 = vadd.f32 %v2363, %v2333
      %v2365 = vadd.f32 %v2364, %v2334
      %v2366 = vadd.f32 %v2365, %v2335
      %v2367 = vadd.f32 %v2366, %v2336
      %v2368 = vadd.f32 %v2367, %v2337
      %v2369 = vadd.f32 %v2368, %v2338
      %v2370 = vadd.f32 %v2369, %v2339
      %v2371 = vadd.f32 %v2370, %v2340
      %v2372 = vrot.slane %v2371, 4
      %v2373 = vadd.f32 %v2371, %v2372
      %v2374 = vrot.slane %v2373, 2
      %v2375 = vadd.f32 %v2373, %v2374
      %v2376 = vrot.slane %v2375, 1
      %v2377 = vadd.f32 %v2375, %v2376
      %v2378 = vsel %vm399, %v2308, %v2377
      %p2379 = scmp.eq.s32.totalorder %s17, 0
      // Predicated region
      $region37: #{vit_forward_pallas.8} parent=35 // pred_check
        %p2380 = pneg %p2379
      $region38: #{vit_forward_pallas.8} parent=35 // pred_check_branch
        %2382 = sbr.rel (%p2380) target = $region40
      $region39: #{vit_forward_pallas.8} parent=35 // pred_region
        %2383 = vst [vmem:[%s5] sm:$0x3] 0.0
      $region40: #{vit_forward_pallas.8} parent=35 // pred_fallthru
        _
      %v2384 = vld [vmem:[%s5] sm:$0x3]
      %v2385 = vadd.f32 %v2384, %v2378
      %2386 = vst [vmem:[%s5] sm:$0x3] %v2385
      %p2387 = scmp.lt.s32.totalorder %s17, 1
      %s2388 = scalar_select %p2387, %s17, 1
      %s2389 = smul.addr %s2388, 32
      %s2390 = smul.addr %s2389, 8
      %s2391 = scalar_lea.vmem %s4, %s2390
      // Predicated region
      $region41: #{vit_forward_pallas.8} parent=35 // pred_check
        %p2392 = pneg %p124
      $region42: #{vit_forward_pallas.8} parent=35 // pred_check_branch
        %2394 = sbr.rel (%p2392) target = $region44
      $region43: #{vit_forward_pallas.8} parent=35 // pred_region
        _
      $region44: #{vit_forward_pallas.8} parent=35 // pred_fallthru
        _
      // Predicated region
      $region45: #{vit_forward_pallas.8} parent=35 // pred_check
        %p2395 = pneg %p145
      $region46: #{vit_forward_pallas.8} parent=35 // pred_check_branch
        %2397 = sbr.rel (%p2395) target = $region48
      $region47: #{vit_forward_pallas.8} parent=35 // pred_region
        _
      $region48: #{vit_forward_pallas.8} parent=35 // pred_fallthru
        _
      // Predicated region
      $region49: #{vit_forward_pallas.8} parent=35 // pred_check
        %p2398 = pneg %p145
      $region50: #{vit_forward_pallas.8} parent=35 // pred_check_branch
        %2400 = sbr.rel (%p2398) target = $region52
      $region51: #{vit_forward_pallas.8} parent=35 // pred_region
        _
      $region52: #{vit_forward_pallas.8} parent=35 // pred_fallthru
        _
    $region36: #{vit_forward_pallas.8} parent=5 // pred_fallthru
      _
    %p2401 = scmp.le.s32.totalorder 2, %s12
    // Predicated region
    $region53: #{vit_forward_pallas.8} parent=5 // pred_check
      %p2402 = pneg %p2401
    $region54: #{vit_forward_pallas.8} parent=5 // pred_check_branch
      %2404 = sbr.rel (%p2402) target = $region56
    $region55: #{vit_forward_pallas.8} parent=5 // pred_region
      %s2405 = ssub.s32 %s12, 2
      // Predicated region
      $region57: #{vit_forward_pallas.8} parent=55 // pred_check
        %p2406 = pneg %p130
      $region58: #{vit_forward_pallas.8} parent=55 // pred_check_branch
        %2408 = sbr.rel (%p2406) target = $region60
      $region59: #{vit_forward_pallas.8} parent=55 // pred_region
        %p2409 = scmp.lt.s32.totalorder %s18, 1
        %s2410 = scalar_select %p2409, %s18, 1
        %s2411 = smul.addr %s2410, 32
        %s2412 = smul.addr %s2411, 8
        %s2413 = scalar_lea.vmem %s4, %s2412
      $region60: #{vit_forward_pallas.8} parent=55 // pred_fallthru
        _
    $region56: #{vit_forward_pallas.8} parent=5 // pred_fallthru
      _
  $region6: #{vit_forward_pallas.8} parent=0 // loop_footer
    %s16 = sadd.s32 1, %s12
  $region7: #{vit_forward_pallas.8} parent=0 // loop_footer_branch
    %11 = sbr.rel target = $region3
  $region8: #{vit_forward_pallas.8} parent=0 // loop_exit
    _

// kernel: vit_forward_pallas.7
$region0: #{vit_forward_pallas.7}
  #allocation0 [shape = 'u32[]', space=smem, size = 0x4, offset = 0x4, fixed_abs, tag = 'smem constant byte address 0x4 - core index']
  #allocation1 [shape = 'u32[144,128]{1,0:T(1,128)}', space=vmem, size = 0x12000, scoped, tag = 'internal scratch']
  %s0 = inlined_call_operand.vmem [shape: f32[2,18,18,128], index: 0, kind: input, shape index: {}]
  %s1 = inlined_call_operand.vmem [shape: bf16[1152,128], index: 1, kind: input, shape index: {}]
  %s2 = inlined_call_operand.vmem [shape: f32[2,256,128], index: 2, kind: output, shape index: {0}]
  %s3 = inlined_call_operand.vmem [shape: f32[2,128], index: 3, kind: output, shape index: {1}]
  %4 = xla_tuple %s2, %s3
  %s5 = sld [smem:[#allocation0]]
  $region53: #{vit_forward_pallas.7} parent=0
    _
  %s7 = ssub.s32 1, %s5
  %s8 = scalar_select 0, %s7, %s5
  loop: start=0, step=1, limit=4
  $region2: #{vit_forward_pallas.7} parent=0 // loop_pre_header
    _
  $region3: #{vit_forward_pallas.7} parent=0 // loop_header
    %s10 = sphi 0, %s14
    %p11 = scmp.ge.s32.totalorder %s10, 4
    %s20 = sphi 0, %s22
    %s23 = sphi 0, %s20
    %s24 = sphi 0, %s23
    %s40 = sphi 0, %s24
    %s44 = sphi 0, %s44
    %s46 = sphi 0, %s44
    %s47 = sphi 0, %s46
    %s61 = sphi 0, %s47
    %s67 = sphi 0, %s69
    %s70 = sphi 0, %s67
    %s71 = sphi 0, %s70
    %s87 = sphi 0, %s71
    %s91 = sphi 0, %s91
    %s93 = sphi 0, %s91
    %s94 = sphi 0, %s93
    %s108 = sphi 0, %s94
  $region4: #{vit_forward_pallas.7} parent=0 // loop_header_branch
    %13 = sbr.rel (%p11) target = $region8
  $region5: #{vit_forward_pallas.7} parent=0 // loop_body
    %s15 = ssub.s32 %s10, 1
    %s16 = ssub.s32 %s10, 2
    %s17 = sadd.s32 %s10, 1
    %s18 = ssub.s32 %s10, %s17
    %p19 = scmp.eq.s32.totalorder %s18, 0
    %s21 = sadd.s32 %s20, 1
    %s22 = scalar_select %p19, %s20, %s21
    %p25 = pneg %p19
    %p26 = scmp.eq.s32.totalorder %s10, 1
    %p27 = por %p25, %p26
    %p28 = scmp.ne.s32.totalorder %s20, %s23
    %p29 = scmp.eq.s32.totalorder %s10, 0
    %p30 = por %p28, %p29
    %p31 = scmp.ne.s32.totalorder %s20, %s23
    %p32 = scmp.eq.s32.totalorder %s15, 1
    %p33 = por %p31, %p32
    %p34 = scmp.ne.s32.totalorder %s23, %s24
    %p35 = scmp.eq.s32.totalorder %s15, 0
    %p36 = por %p34, %p35
    %p37 = scmp.ne.s32.totalorder %s23, %s24
    %p38 = scmp.eq.s32.totalorder %s16, 1
    %p39 = por %p37, %p38
    %p41 = scmp.ne.s32.totalorder %s24, %s40
    %p42 = scmp.eq.s32.totalorder %s16, 0
    %p43 = por %p41, %p42
    %s45 = sadd.s32 %s44, 1
    %p48 = scmp.eq.s32.totalorder %s10, 1
    %p49 = scmp.ne.s32.totalorder %s44, %s46
    %p50 = scmp.eq.s32.totalorder %s10, 0
    %p51 = por %p49, %p50
    %p52 = scmp.ne.s32.totalorder %s44, %s46
    %p53 = scmp.eq.s32.totalorder %s15, 1
    %p54 = por %p52, %p53
    %p55 = scmp.ne.s32.totalorder %s46, %s47
    %p56 = scmp.eq.s32.totalorder %s15, 0
    %p57 = por %p55, %p56
    %p58 = scmp.ne.s32.totalorder %s46, %s47
    %p59 = scmp.eq.s32.totalorder %s16, 1
    %p60 = por %p58, %p59
    %p62 = scmp.ne.s32.totalorder %s47, %s61
    %p63 = scmp.eq.s32.totalorder %s16, 0
    %p64 = por %p62, %p63
    %s65 = ssub.s32 %s10, %s17
    %p66 = scmp.eq.s32.totalorder %s65, 0
    %s68 = sadd.s32 %s67, 1
    %s69 = scalar_select %p66, %s67, %s68
    %p72 = pneg %p66
    %p73 = scmp.eq.s32.totalorder %s10, 1
    %p74 = por %p72, %p73
    %p75 = scmp.ne.s32.totalorder %s67, %s70
    %p76 = scmp.eq.s32.totalorder %s10, 0
    %p77 = por %p75, %p76
    %p78 = scmp.ne.s32.totalorder %s67, %s70
    %p79 = scmp.eq.s32.totalorder %s15, 1
    %p80 = por %p78, %p79
    %p81 = scmp.ne.s32.totalorder %s70, %s71
    %p82 = scmp.eq.s32.totalorder %s15, 0
    %p83 = por %p81, %p82
    %p84 = scmp.ne.s32.totalorder %s70, %s71
    %p85 = scmp.eq.s32.totalorder %s16, 1
    %p86 = por %p84, %p85
    %p88 = scmp.ne.s32.totalorder %s71, %s87
    %p89 = scmp.eq.s32.totalorder %s16, 0
    %p90 = por %p88, %p89
    %s92 = sadd.s32 %s91, 1
    %p95 = scmp.eq.s32.totalorder %s10, 1
    %p96 = scmp.ne.s32.totalorder %s91, %s93
    %p97 = scmp.eq.s32.totalorder %s10, 0
    %p98 = por %p96, %p97
    %p99 = scmp.ne.s32.totalorder %s91, %s93
    %p100 = scmp.eq.s32.totalorder %s15, 1
    %p101 = por %p99, %p100
    %p102 = scmp.ne.s32.totalorder %s93, %s94
    %p103 = scmp.eq.s32.totalorder %s15, 0
    %p104 = por %p102, %p103
    %p105 = scmp.ne.s32.totalorder %s93, %s94
    %p106 = scmp.eq.s32.totalorder %s16, 1
    %p107 = por %p105, %p106
    %p109 = scmp.ne.s32.totalorder %s94, %s108
    %p110 = scmp.eq.s32.totalorder %s16, 0
    %p111 = por %p109, %p110
    %p112 = scmp.le.s32.totalorder 1, %s10
    %p113 = scmp.lt.s32.totalorder %s10, 3
    %p114 = pnand %p112, %p113
    %p115 = pneg %p114
    // Predicated region
    $region9: #{vit_forward_pallas.7} parent=5 // pred_check
      _
    $region10: #{vit_forward_pallas.7} parent=5 // pred_check_branch
      %117 = sbr.rel (%p114) target = $region12
    $region11: #{vit_forward_pallas.7} parent=5 // pred_region
      %s118 = ssub.s32 %s10, 1
      // Predicated region
      $region13: #{vit_forward_pallas.7} parent=11 // pred_check
        %p119 = pneg %p57
      $region14: #{vit_forward_pallas.7} parent=11 // pred_check_branch
        %121 = sbr.rel (%p119) target = $region16
      $region15: #{vit_forward_pallas.7} parent=11 // pred_region
        _
      $region16: #{vit_forward_pallas.7} parent=11 // pred_fallthru
        _
    $region12: #{vit_forward_pallas.7} parent=5 // pred_fallthru
      _
    %p122 = scmp.lt.s32.totalorder %s10, 2
    // Predicated region
    $region17: #{vit_forward_pallas.7} parent=5 // pred_check
      %p123 = pneg %p122
    $region18: #{vit_forward_pallas.7} parent=5 // pred_check_branch
      %125 = sbr.rel (%p123) target = $region20
    $region19: #{vit_forward_pallas.7} parent=5 // pred_region
      // Predicated region
      $region21: #{vit_forward_pallas.7} parent=19 // pred_check
        %p126 = pneg %p30
      $region22: #{vit_forward_pallas.7} parent=19 // pred_check_branch
        %128 = sbr.rel (%p126) target = $region24
      $region23: #{vit_forward_pallas.7} parent=19 // pred_region
        %p129 = scmp.lt.s32.totalorder %s10, 1
        %s130 = scalar_select %p129, %s10, 1
        %s131 = smul.addr %s130, 54
        %s132 = smul.addr %s131, 8
        %s133 = scalar_lea.vmem %s0, %s132
      $region24: #{vit_forward_pallas.7} parent=19 // pred_fallthru
        _
    $region20: #{vit_forward_pallas.7} parent=5 // pred_fallthru
      _
    %p134 = scmp.le.s32.totalorder 1, %s10
    %p135 = scmp.lt.s32.totalorder %s10, 3
    %p136 = pnand %p134, %p135
    %p137 = pneg %p136
    // Predicated region
    $region25: #{vit_forward_pallas.7} parent=5 // pred_check
      _
    $region26: #{vit_forward_pallas.7} parent=5 // pred_check_branch
      %139 = sbr.rel (%p136) target = $region28
    $region27: #{vit_forward_pallas.7} parent=5 // pred_region
      %s140 = ssub.s32 %s10, 1
      %p141 = scmp.lt.s32.totalorder %s15, 1
      %s142 = scalar_select %p141, %s15, 1
      %s143 = smul.addr %s142, 54
      %s144 = smul.addr %s143, 8
      %s145 = scalar_lea.vmem %s0, %s144
      %p146 = pneg %p36
      %p147 = pneg %p33
      %p148 = pneg %p57
      %p149 = pneg %p54
      %p150 = pneg %p83
      %p151 = pneg %p80
      %p152 = scmp.lt.s32.totalorder %s15, 1
      %s153 = scalar_select %p152, %s15, 1
      %s154 = smul.addr %s153, 32
      %s155 = smul.addr %s154, 8
      %s156 = scalar_lea.vmem %s2, %s155
      %p157 = pneg %p104
      %p158 = pneg %p101
      %p159 = scmp.lt.s32.totalorder %s15, 1
      %s160 = scalar_select %p159, %s15, 1
      %s161 = smul.addr %s160, 54
      %s162 = smul.addr %s161, 8
      %s163 = scalar_lea.vmem %s0, %s162
      %p164 = scmp.lt.s32.totalorder %s15, 1
      %s165 = scalar_select %p164, %s15, 1
      %s166 = smul.addr %s165, 32
      %s167 = smul.addr %s166, 8
      %s168 = scalar_lea.vmem %s2, %s167
      %v170 = vld [vmem:[%s163] sm:$0xff]
      %v171 = vld [vmem:[%s163 + $0x8] sm:$0xff]
      %v172 = vld [vmem:[%s163 + $0x10] sm:$0x3]
      %v173 = vld [vmem:[%s163 + $0x18] sm:$0xff]
      %v174 = vld [vmem:[%s163 + $0x20] sm:$0xff]
      %v175 = vld [vmem:[%s163 + $0x28] sm:$0x3]
      %v176 = vld [vmem:[%s163 + $0x30] sm:$0xff]
      %v177 = vld [vmem:[%s163 + $0x38] sm:$0xff]
      %v178 = vld [vmem:[%s163 + $0x40] sm:$0x3]
      %v179 = vld [vmem:[%s163 + $0x48] sm:$0xff]
      %v180 = vld [vmem:[%s163 + $0x50] sm:$0xff]
      %v181 = vld [vmem:[%s163 + $0x58] sm:$0x3]
      %v182 = vld [vmem:[%s163 + $0x60] sm:$0xff]
      %v183 = vld [vmem:[%s163 + $0x68] sm:$0xff]
      %v184 = vld [vmem:[%s163 + $0x70] sm:$0x3]
      %v185 = vld [vmem:[%s163 + $0x78] sm:$0xff]
      %v186 = vld [vmem:[%s163 + $0x80] sm:$0xff]
      %v187 = vld [vmem:[%s163 + $0x88] sm:$0x3]
      %v188 = vld [vmem:[%s163 + $0x90] sm:$0xff]
      %v189 = vld [vmem:[%s163 + $0x98] sm:$0xff]
      %v190 = vld [vmem:[%s163 + $0xa0] sm:$0x3]
      %v191 = vld [vmem:[%s163 + $0xa8] sm:$0xff]
      %v192 = vld [vmem:[%s163 + $0xb0] sm:$0xff]
      %v193 = vld [vmem:[%s163 + $0xb8] sm:$0x3]
      %v194 = vld [vmem:[%s163 + $0xc0] sm:$0xff]
      %v195 = vld [vmem:[%s163 + $0xc8] sm:$0xff]
      %v196 = vld [vmem:[%s163 + $0xd0] sm:$0x3]
      %v197 = vld [vmem:[%s163 + $0xd8] sm:$0xff]
      %v198 = vld [vmem:[%s163 + $0xe0] sm:$0xff]
      %v199 = vld [vmem:[%s163 + $0xe8] sm:$0x3]
      %v200 = vld [vmem:[%s163 + $0xf0] sm:$0xff]
      %v201 = vld [vmem:[%s163 + $0xf8] sm:$0xff]
      %v202 = vld [vmem:[%s163 + $0x100] sm:$0x3]
      %v203 = vld [vmem:[%s163 + $0x108] sm:$0xff]
      %v204 = vld [vmem:[%s163 + $0x110] sm:$0xff]
      %v205 = vld [vmem:[%s163 + $0x118] sm:$0x3]
      %v206 = vld [vmem:[%s163 + $0x120] sm:$0xff]
      %v207 = vld [vmem:[%s163 + $0x128] sm:$0xff]
      %v208 = vld [vmem:[%s163 + $0x130] sm:$0x3]
      %v209 = vld [vmem:[%s163 + $0x138] sm:$0xff]
      %v210 = vld [vmem:[%s163 + $0x140] sm:$0xff]
      %v211 = vld [vmem:[%s163 + $0x148] sm:$0x3]
      %v212 = vld [vmem:[%s163 + $0x150] sm:$0xff]
      %v213 = vld [vmem:[%s163 + $0x158] sm:$0xff]
      %v214 = vld [vmem:[%s163 + $0x160] sm:$0x3]
      %v215 = vld [vmem:[%s163 + $0x168] sm:$0xff]
      %v216 = vld [vmem:[%s163 + $0x170] sm:$0xff]
      %v217 = vld [vmem:[%s163 + $0x178] sm:$0x3]
      %v218 = vld [vmem:[%s163 + $0x180] sm:$0xff]
      %v219 = vld [vmem:[%s163 + $0x188] sm:$0xff]
      %v220 = vld [vmem:[%s163 + $0x190] sm:$0x3]
      %v221 = vld [vmem:[%s163 + $0x198] sm:$0xff]
      %v222 = vld [vmem:[%s163 + $0x1a0] sm:$0xff]
      %v223 = vld [vmem:[%s163 + $0x1a8] sm:$0x3]
      %vm272 = vcmask 1046528
      %v273 = vrot.slane %v170, 1
      %v274 = vrot.slane %v171, 1
      %v275 = vsel %vm272, %v273, %v274
      %v276 = vrot.slane %v172, 1
      %v277 = vsel %vm272, %v274, %v276
      %v278 = vrot.slane %v173, 1
      %v279 = vrot.slane %v174, 1
      %v280 = vsel %vm272, %v278, %v279
      %v281 = vrot.slane %v175, 1
      %v282 = vsel %vm272, %v279, %v281
      %v283 = vrot.slane %v176, 1
      %v284 = vrot.slane %v177, 1
      %v285 = vsel %vm272, %v283, %v284
      %v286 = vrot.slane %v178, 1
      %v287 = vsel %vm272, %v284, %v286
      %v288 = vrot.slane %v179, 1
      %v289 = vrot.slane %v180, 1
      %v290 = vsel %vm272, %v288, %v289
      %v291 = vrot.slane %v181, 1
      %v292 = vsel %vm272, %v289, %v291
      %v293 = vrot.slane %v182, 1
      %v294 = vrot.slane %v183, 1
      %v295 = vsel %vm272, %v293, %v294
      %v296 = vrot.slane %v184, 1
      %v297 = vsel %vm272, %v294, %v296
      %v298 = vrot.slane %v185, 1
      %v299 = vrot.slane %v186, 1
      %v300 = vsel %vm272, %v298, %v299
      %v301 = vrot.slane %v187, 1
      %v302 = vsel %vm272, %v299, %v301
      %v303 = vrot.slane %v188, 1
      %v304 = vrot.slane %v189, 1
      %v305 = vsel %vm272, %v303, %v304
      %v306 = vrot.slane %v190, 1
      %v307 = vsel %vm272, %v304, %v306
      %v308 = vrot.slane %v191, 1
      %v309 = vrot.slane %v192, 1
      %v310 = vsel %vm272, %v308, %v309
      %v311 = vrot.slane %v193, 1
      %v312 = vsel %vm272, %v309, %v311
      %v313 = vrot.slane %v194, 1
      %v314 = vrot.slane %v195, 1
      %v315 = vsel %vm272, %v313, %v314
      %v316 = vrot.slane %v196, 1
      %v317 = vsel %vm272, %v314, %v316
      %v318 = vrot.slane %v197, 1
      %v319 = vrot.slane %v198, 1
      %v320 = vsel %vm272, %v318, %v319
      %v321 = vrot.slane %v199, 1
      %v322 = vsel %vm272, %v319, %v321
      %v323 = vrot.slane %v200, 1
      %v324 = vrot.slane %v201, 1
      %v325 = vsel %vm272, %v323, %v324
      %v326 = vrot.slane %v202, 1
      %v327 = vsel %vm272, %v324, %v326
      %v328 = vrot.slane %v203, 1
      %v329 = vrot.slane %v204, 1
      %v330 = vsel %vm272, %v328, %v329
      %v331 = vrot.slane %v205, 1
      %v332 = vsel %vm272, %v329, %v331
      %v333 = vrot.slane %v206, 1
      %v334 = vrot.slane %v207, 1
      %v335 = vsel %vm272, %v333, %v334
      %v336 = vrot.slane %v208, 1
      %v337 = vsel %vm272, %v334, %v336
      %v338 = vrot.slane %v209, 1
      %v339 = vrot.slane %v210, 1
      %v340 = vsel %vm272, %v338, %v339
      %v341 = vrot.slane %v211, 1
      %v342 = vsel %vm272, %v339, %v341
      %v343 = vrot.slane %v212, 1
      %v344 = vrot.slane %v213, 1
      %v345 = vsel %vm272, %v343, %v344
      %v346 = vrot.slane %v214, 1
      %v347 = vsel %vm272, %v344, %v346
      %v348 = vrot.slane %v215, 1
      %v349 = vrot.slane %v216, 1
      %v350 = vsel %vm272, %v348, %v349
      %v351 = vrot.slane %v217, 1
      %v352 = vsel %vm272, %v349, %v351
      %vm385 = vcmask 1045504
      %v386 = vrot.slane %v170, 2
      %v387 = vrot.slane %v171, 2
      %v388 = vsel %vm385, %v386, %v387
      %v389 = vrot.slane %v172, 2
      %v390 = vsel %vm385, %v387, %v389
      %v391 = vrot.slane %v173, 2
      %v392 = vrot.slane %v174, 2
      %v393 = vsel %vm385, %v391, %v392
      %v394 = vrot.slane %v175, 2
      %v395 = vsel %vm385, %v392, %v394
      %v396 = vrot.slane %v176, 2
      %v397 = vrot.slane %v177, 2
      %v398 = vsel %vm385, %v396, %v397
      %v399 = vrot.slane %v178, 2
      %v400 = vsel %vm385, %v397, %v399
      %v401 = vrot.slane %v179, 2
      %v402 = vrot.slane %v180, 2
      %v403 = vsel %vm385, %v401, %v402
      %v404 = vrot.slane %v181, 2
      %v405 = vsel %vm385, %v402, %v404
      %v406 = vrot.slane %v182, 2
      %v407 = vrot.slane %v183, 2
      %v408 = vsel %vm385, %v406, %v407
      %v409 = vrot.slane %v184, 2
      %v410 = vsel %vm385, %v407, %v409
      %v411 = vrot.slane %v185, 2
      %v412 = vrot.slane %v186, 2
      %v413 = vsel %vm385, %v411, %v412
      %v414 = vrot.slane %v187, 2
      %v415 = vsel %vm385, %v412, %v414
      %v416 = vrot.slane %v188, 2
      %v417 = vrot.slane %v189, 2
      %v418 = vsel %vm385, %v416, %v417
      %v419 = vrot.slane %v190, 2
      %v420 = vsel %vm385, %v417, %v419
      %v421 = vrot.slane %v191, 2
      %v422 = vrot.slane %v192, 2
      %v423 = vsel %vm385, %v421, %v422
      %v424 = vrot.slane %v193, 2
      %v425 = vsel %vm385, %v422, %v424
      %v426 = vrot.slane %v194, 2
      %v427 = vrot.slane %v195, 2
      %v428 = vsel %vm385, %v426, %v427
      %v429 = vrot.slane %v196, 2
      %v430 = vsel %vm385, %v427, %v429
      %v431 = vrot.slane %v197, 2
      %v432 = vrot.slane %v198, 2
      %v433 = vsel %vm385, %v431, %v432
      %v434 = vrot.slane %v199, 2
      %v435 = vsel %vm385, %v432, %v434
      %v436 = vrot.slane %v200, 2
      %v437 = vrot.slane %v201, 2
      %v438 = vsel %vm385, %v436, %v437
      %v439 = vrot.slane %v202, 2
      %v440 = vsel %vm385, %v437, %v439
      %v441 = vrot.slane %v203, 2
      %v442 = vrot.slane %v204, 2
      %v443 = vsel %vm385, %v441, %v442
      %v444 = vrot.slane %v205, 2
      %v445 = vsel %vm385, %v442, %v444
      %v446 = vrot.slane %v206, 2
      %v447 = vrot.slane %v207, 2
      %v448 = vsel %vm385, %v446, %v447
      %v449 = vrot.slane %v208, 2
      %v450 = vsel %vm385, %v447, %v449
      %v451 = vrot.slane %v209, 2
      %v452 = vrot.slane %v210, 2
      %v453 = vsel %vm385, %v451, %v452
      %v454 = vrot.slane %v211, 2
      %v455 = vsel %vm385, %v452, %v454
      %v456 = vrot.slane %v212, 2
      %v457 = vrot.slane %v213, 2
      %v458 = vsel %vm385, %v456, %v457
      %v459 = vrot.slane %v214, 2
      %v460 = vsel %vm385, %v457, %v459
      %v461 = vrot.slane %v215, 2
      %v462 = vrot.slane %v216, 2
      %v463 = vsel %vm385, %v461, %v462
      %v464 = vrot.slane %v217, 2
      %v465 = vsel %vm385, %v462, %v464
      %v501 = vrot.slane %v218, 1
      %v502 = vrot.slane %v219, 1
      %v503 = vsel %vm272, %v501, %v502
      %v504 = vrot.slane %v220, 1
      %v505 = vsel %vm272, %v502, %v504
      %v508 = vrot.slane %v218, 2
      %v509 = vrot.slane %v219, 2
      %v510 = vsel %vm385, %v508, %v509
      %v511 = vrot.slane %v220, 2
      %v512 = vsel %vm385, %v509, %v511
      %v518 = vrot.slane %v221, 1
      %v519 = vrot.slane %v222, 1
      %v520 = vsel %vm272, %v518, %v519
      %v521 = vrot.slane %v223, 1
      %v522 = vsel %vm272, %v519, %v521
      %v525 = vrot.slane %v221, 2
      %v526 = vrot.slane %v222, 2
      %v527 = vsel %vm385, %v525, %v526
      %v528 = vrot.slane %v223, 2
      %v529 = vsel %vm385, %v526, %v528
      %v532 = vpack.c.bf16 %v171, %v170
      %v533 = vpack.c.bf16 %v277, %v275
      %v534 = vpack.c.bf16 %v390, %v388
      %v535 = vpack.c.bf16 %v174, %v173
      %v536 = vpack.c.bf16 %v282, %v280
      %v537 = vpack.c.bf16 %v395, %v393
      %v538 = vpack.c.bf16 %v177, %v176
      %v539 = vpack.c.bf16 %v287, %v285
      %v540 = vpack.c.bf16 %v400, %v398
      %v541 = vpack.c.bf16 %v180, %v179
      %v542 = vpack.c.bf16 %v292, %v290
      %v543 = vpack.c.bf16 %v405, %v403
      %v544 = vpack.c.bf16 %v183, %v182
      %v545 = vpack.c.bf16 %v297, %v295
      %v546 = vpack.c.bf16 %v410, %v408
      %v547 = vpack.c.bf16 %v186, %v185
      %v548 = vpack.c.bf16 %v302, %v300
      %v549 = vpack.c.bf16 %v415, %v413
      %v550 = vpack.c.bf16 %v189, %v188
      %v551 = vpack.c.bf16 %v307, %v305
      %v552 = vpack.c.bf16 %v420, %v418
      %v553 = vpack.c.bf16 %v192, %v191
      %v554 = vpack.c.bf16 %v312, %v310
      %v555 = vpack.c.bf16 %v425, %v423
      %v556 = vpack.c.bf16 %v195, %v194
      %v557 = vpack.c.bf16 %v317, %v315
      %v558 = vpack.c.bf16 %v430, %v428
      %v559 = vpack.c.bf16 %v198, %v197
      %v560 = vpack.c.bf16 %v322, %v320
      %v561 = vpack.c.bf16 %v435, %v433
      %v562 = vpack.c.bf16 %v201, %v200
      %v563 = vpack.c.bf16 %v327, %v325
      %v564 = vpack.c.bf16 %v440, %v438
      %v565 = vpack.c.bf16 %v204, %v203
      %v566 = vpack.c.bf16 %v332, %v330
      %v567 = vpack.c.bf16 %v445, %v443
      %v568 = vpack.c.bf16 %v207, %v206
      %v569 = vpack.c.bf16 %v337, %v335
      %v570 = vpack.c.bf16 %v450, %v448
      %v571 = vpack.c.bf16 %v210, %v209
      %v572 = vpack.c.bf16 %v342, %v340
      %v573 = vpack.c.bf16 %v455, %v453
      %v574 = vpack.c.bf16 %v213, %v212
      %v575 = vpack.c.bf16 %v347, %v345
      %v576 = vpack.c.bf16 %v460, %v458
      %v577 = vpack.c.bf16 %v216, %v215
      %v578 = vpack.c.bf16 %v352, %v350
      %v579 = vpack.c.bf16 %v465, %v463
      %v580 = vpack.c.bf16 %v219, %v218
      %v581 = vpack.c.bf16 %v505, %v503
      %v582 = vpack.c.bf16 %v512, %v510
      %v583 = vpack.c.bf16 %v222, %v221
      %v584 = vpack.c.bf16 %v522, %v520
      %v585 = vpack.c.bf16 %v529, %v527
      %v586 = vld [vmem:[%s1] sm:$0xf]
      %v587 = vld [vmem:[%s1 + $0x4] sm:$0xf]
      %v588 = vld [vmem:[%s1 + $0x8] sm:$0xf]
      %v589 = vld [vmem:[%s1 + $0xc] sm:$0xf]
      %v590 = vld [vmem:[%s1 + $0x10] sm:$0xf]
      %v591 = vld [vmem:[%s1 + $0x14] sm:$0xf]
      %v592 = vld [vmem:[%s1 + $0x18] sm:$0xf]
      %v593 = vld [vmem:[%s1 + $0x1c] sm:$0xf]
      %v594 = vld [vmem:[%s1 + $0x20] sm:$0xf]
      %v595 = vld [vmem:[%s1 + $0x24] sm:$0xf]
      %v596 = vld [vmem:[%s1 + $0x28] sm:$0xf]
      %v597 = vld [vmem:[%s1 + $0x2c] sm:$0xf]
      %v598 = vld [vmem:[%s1 + $0x30] sm:$0xf]
      %v599 = vld [vmem:[%s1 + $0x34] sm:$0xf]
      %v600 = vld [vmem:[%s1 + $0x38] sm:$0xf]
      %v601 = vld [vmem:[%s1 + $0x3c] sm:$0xf]
      %v602 = vld [vmem:[%s1 + $0x40] sm:$0xf]
      %v603 = vld [vmem:[%s1 + $0x44] sm:$0xf]
      %v604 = vld [vmem:[%s1 + $0x48] sm:$0xf]
      %v605 = vld [vmem:[%s1 + $0x4c] sm:$0xf]
      %v606 = vld [vmem:[%s1 + $0x50] sm:$0xf]
      %v607 = vld [vmem:[%s1 + $0x54] sm:$0xf]
      %v608 = vld [vmem:[%s1 + $0x58] sm:$0xf]
      %v609 = vld [vmem:[%s1 + $0x5c] sm:$0xf]
      %v610 = vld [vmem:[%s1 + $0x60] sm:$0xf]
      %v611 = vld [vmem:[%s1 + $0x64] sm:$0xf]
      %v612 = vld [vmem:[%s1 + $0x68] sm:$0xf]
      %v613 = vld [vmem:[%s1 + $0x6c] sm:$0xf]
      %v614 = vld [vmem:[%s1 + $0x70] sm:$0xf]
      %v615 = vld [vmem:[%s1 + $0x74] sm:$0xf]
      %v616 = vld [vmem:[%s1 + $0x78] sm:$0xf]
      %v617 = vld [vmem:[%s1 + $0x7c] sm:$0xf]
      %v618 = vld [vmem:[%s1 + $0x80] sm:$0xf]
      %v619 = vld [vmem:[%s1 + $0x84] sm:$0xf]
      %v620 = vld [vmem:[%s1 + $0x88] sm:$0xf]
      %v621 = vld [vmem:[%s1 + $0x8c] sm:$0xf]
      %v622 = vld [vmem:[%s1 + $0x90] sm:$0xf]
      %v623 = vld [vmem:[%s1 + $0x94] sm:$0xf]
      %v624 = vld [vmem:[%s1 + $0x98] sm:$0xf]
      %v625 = vld [vmem:[%s1 + $0x9c] sm:$0xf]
      %v626 = vld [vmem:[%s1 + $0xa0] sm:$0xf]
      %v627 = vld [vmem:[%s1 + $0xa4] sm:$0xf]
      %v628 = vld [vmem:[%s1 + $0xa8] sm:$0xf]
      %v629 = vld [vmem:[%s1 + $0xac] sm:$0xf]
      %v630 = vld [vmem:[%s1 + $0xb0] sm:$0xf]
      %v631 = vld [vmem:[%s1 + $0xb4] sm:$0xf]
      %v632 = vld [vmem:[%s1 + $0xb8] sm:$0xf]
      %v633 = vld [vmem:[%s1 + $0xbc] sm:$0xf]
      %v634 = vld [vmem:[%s1 + $0xc0] sm:$0xf]
      %v635 = vld [vmem:[%s1 + $0xc4] sm:$0xf]
      %v636 = vld [vmem:[%s1 + $0xc8] sm:$0xf]
      %v637 = vld [vmem:[%s1 + $0xcc] sm:$0xf]
      %v638 = vld [vmem:[%s1 + $0xd0] sm:$0xf]
      %v639 = vld [vmem:[%s1 + $0xd4] sm:$0xf]
      %v640 = vld [vmem:[%s1 + $0xd8] sm:$0xf]
      %v641 = vld [vmem:[%s1 + $0xdc] sm:$0xf]
      %v642 = vld [vmem:[%s1 + $0xe0] sm:$0xf]
      %v643 = vld [vmem:[%s1 + $0xe4] sm:$0xf]
      %v644 = vld [vmem:[%s1 + $0xe8] sm:$0xf]
      %v645 = vld [vmem:[%s1 + $0xec] sm:$0xf]
      %v646 = vld [vmem:[%s1 + $0xf0] sm:$0xf]
      %v647 = vld [vmem:[%s1 + $0xf4] sm:$0xf]
      %v648 = vld [vmem:[%s1 + $0xf8] sm:$0xf]
      %v649 = vld [vmem:[%s1 + $0xfc] sm:$0xf]
      %v650 = vld [vmem:[%s1 + $0x100] sm:$0xf]
      %v651 = vld [vmem:[%s1 + $0x104] sm:$0xf]
      %v652 = vld [vmem:[%s1 + $0x108] sm:$0xf]
      %v653 = vld [vmem:[%s1 + $0x10c] sm:$0xf]
      %v654 = vld [vmem:[%s1 + $0x110] sm:$0xf]
      %v655 = vld [vmem:[%s1 + $0x114] sm:$0xf]
      %v656 = vld [vmem:[%s1 + $0x118] sm:$0xf]
      %v657 = vld [vmem:[%s1 + $0x11c] sm:$0xf]
      %v658 = vld [vmem:[%s1 + $0x120] sm:$0xf]
      %v659 = vld [vmem:[%s1 + $0x124] sm:$0xf]
      %v660 = vld [vmem:[%s1 + $0x128] sm:$0xf]
      %v661 = vld [vmem:[%s1 + $0x12c] sm:$0xf]
      %v662 = vld [vmem:[%s1 + $0x130] sm:$0xf]
      %v663 = vld [vmem:[%s1 + $0x134] sm:$0xf]
      %v664 = vld [vmem:[%s1 + $0x138] sm:$0xf]
      %v665 = vld [vmem:[%s1 + $0x13c] sm:$0xf]
      %v666 = vld [vmem:[%s1 + $0x140] sm:$0xf]
      %v667 = vld [vmem:[%s1 + $0x144] sm:$0xf]
      %v668 = vld [vmem:[%s1 + $0x148] sm:$0xf]
      %v669 = vld [vmem:[%s1 + $0x14c] sm:$0xf]
      %v670 = vld [vmem:[%s1 + $0x150] sm:$0xf]
      %v671 = vld [vmem:[%s1 + $0x154] sm:$0xf]
      %v672 = vld [vmem:[%s1 + $0x158] sm:$0xf]
      %v673 = vld [vmem:[%s1 + $0x15c] sm:$0xf]
      %v674 = vld [vmem:[%s1 + $0x160] sm:$0xf]
      %v675 = vld [vmem:[%s1 + $0x164] sm:$0xf]
      %v676 = vld [vmem:[%s1 + $0x168] sm:$0xf]
      %v677 = vld [vmem:[%s1 + $0x16c] sm:$0xf]
      %v678 = vld [vmem:[%s1 + $0x170] sm:$0xf]
      %v679 = vld [vmem:[%s1 + $0x174] sm:$0xf]
      %v680 = vld [vmem:[%s1 + $0x178] sm:$0xf]
      %v681 = vld [vmem:[%s1 + $0x17c] sm:$0xf]
      %v682 = vld [vmem:[%s1 + $0x180] sm:$0xf]
      %v683 = vld [vmem:[%s1 + $0x184] sm:$0xf]
      %v684 = vld [vmem:[%s1 + $0x188] sm:$0xf]
      %v685 = vld [vmem:[%s1 + $0x18c] sm:$0xf]
      %v686 = vld [vmem:[%s1 + $0x190] sm:$0xf]
      %v687 = vld [vmem:[%s1 + $0x194] sm:$0xf]
      %v688 = vld [vmem:[%s1 + $0x198] sm:$0xf]
      %v689 = vld [vmem:[%s1 + $0x19c] sm:$0xf]
      %v690 = vld [vmem:[%s1 + $0x1a0] sm:$0xf]
      %v691 = vld [vmem:[%s1 + $0x1a4] sm:$0xf]
      %v692 = vld [vmem:[%s1 + $0x1a8] sm:$0xf]
      %v693 = vld [vmem:[%s1 + $0x1ac] sm:$0xf]
      %v694 = vld [vmem:[%s1 + $0x1b0] sm:$0xf]
      %v695 = vld [vmem:[%s1 + $0x1b4] sm:$0xf]
      %v696 = vld [vmem:[%s1 + $0x1b8] sm:$0xf]
      %v697 = vld [vmem:[%s1 + $0x1bc] sm:$0xf]
      %v698 = vld [vmem:[%s1 + $0x1c0] sm:$0xf]
      %v699 = vld [vmem:[%s1 + $0x1c4] sm:$0xf]
      %v700 = vld [vmem:[%s1 + $0x1c8] sm:$0xf]
      %v701 = vld [vmem:[%s1 + $0x1cc] sm:$0xf]
      %v702 = vld [vmem:[%s1 + $0x1d0] sm:$0xf]
      %v703 = vld [vmem:[%s1 + $0x1d4] sm:$0xf]
      %v704 = vld [vmem:[%s1 + $0x1d8] sm:$0xf]
      %v705 = vld [vmem:[%s1 + $0x1dc] sm:$0xf]
      %v706 = vld [vmem:[%s1 + $0x1e0] sm:$0xf]
      %v707 = vld [vmem:[%s1 + $0x1e4] sm:$0xf]
      %v708 = vld [vmem:[%s1 + $0x1e8] sm:$0xf]
      %v709 = vld [vmem:[%s1 + $0x1ec] sm:$0xf]
      %v710 = vld [vmem:[%s1 + $0x1f0] sm:$0xf]
      %v711 = vld [vmem:[%s1 + $0x1f4] sm:$0xf]
      %v712 = vld [vmem:[%s1 + $0x1f8] sm:$0xf]
      %v713 = vld [vmem:[%s1 + $0x1fc] sm:$0xf]
      %v714 = vld [vmem:[%s1 + $0x200] sm:$0xf]
      %v715 = vld [vmem:[%s1 + $0x204] sm:$0xf]
      %v716 = vld [vmem:[%s1 + $0x208] sm:$0xf]
      %v717 = vld [vmem:[%s1 + $0x20c] sm:$0xf]
      %v718 = vld [vmem:[%s1 + $0x210] sm:$0xf]
      %v719 = vld [vmem:[%s1 + $0x214] sm:$0xf]
      %v720 = vld [vmem:[%s1 + $0x218] sm:$0xf]
      %v721 = vld [vmem:[%s1 + $0x21c] sm:$0xf]
      %v722 = vld [vmem:[%s1 + $0x220] sm:$0xf]
      %v723 = vld [vmem:[%s1 + $0x224] sm:$0xf]
      %v724 = vld [vmem:[%s1 + $0x228] sm:$0xf]
      %v725 = vld [vmem:[%s1 + $0x22c] sm:$0xf]
      %v726 = vld [vmem:[%s1 + $0x230] sm:$0xf]
      %v727 = vld [vmem:[%s1 + $0x234] sm:$0xf]
      %v728 = vld [vmem:[%s1 + $0x238] sm:$0xf]
      %v729 = vld [vmem:[%s1 + $0x23c] sm:$0xf]
      %v874 = vunpack.c.l.b16 %v586
      %v875 = vunpack.c.l.b16 %v587
      %v876 = vunpack.c.l.b16 %v588
      %v877 = vunpack.c.l.b16 %v589
      %v878 = vunpack.c.l.b16 %v590
      %v879 = vunpack.c.l.b16 %v591
      %v880 = vunpack.c.l.b16 %v592
      %v881 = vunpack.c.l.b16 %v593
      %v882 = vunpack.c.l.b16 %v594
      %v883 = vunpack.c.l.b16 %v595
      %v884 = vunpack.c.l.b16 %v596
      %v885 = vunpack.c.l.b16 %v597
      %v886 = vunpack.c.l.b16 %v598
      %v887 = vunpack.c.l.b16 %v599
      %v888 = vunpack.c.l.b16 %v600
      %v889 = vunpack.c.l.b16 %v601
      %v890 = vunpack.c.l.b16 %v602
      %v891 = vunpack.c.l.b16 %v603
      %v892 = vunpack.c.l.b16 %v604
      %v893 = vunpack.c.l.b16 %v605
      %v894 = vunpack.c.l.b16 %v606
      %v895 = vunpack.c.l.b16 %v607
      %v896 = vunpack.c.l.b16 %v608
      %v897 = vunpack.c.l.b16 %v609
      %v898 = vunpack.c.l.b16 %v610
      %v899 = vunpack.c.l.b16 %v611
      %v900 = vunpack.c.l.b16 %v612
      %v901 = vunpack.c.l.b16 %v613
      %v902 = vunpack.c.l.b16 %v614
      %v903 = vunpack.c.l.b16 %v615
      %v904 = vunpack.c.l.b16 %v616
      %v905 = vunpack.c.l.b16 %v617
      %v906 = vunpack.c.l.b16 %v618
      %v907 = vunpack.c.l.b16 %v619
      %v908 = vunpack.c.l.b16 %v620
      %v909 = vunpack.c.l.b16 %v621
      %v910 = vunpack.c.l.b16 %v622
      %v911 = vunpack.c.l.b16 %v623
      %v912 = vunpack.c.l.b16 %v624
      %v913 = vunpack.c.l.b16 %v625
      %v914 = vunpack.c.l.b16 %v626
      %v915 = vunpack.c.l.b16 %v627
      %v916 = vunpack.c.l.b16 %v628
      %v917 = vunpack.c.l.b16 %v629
      %v918 = vunpack.c.l.b16 %v630
      %v919 = vunpack.c.l.b16 %v631
      %v920 = vunpack.c.l.b16 %v632
      %v921 = vunpack.c.l.b16 %v633
      %v922 = vunpack.c.l.b16 %v634
      %v923 = vunpack.c.l.b16 %v635
      %v924 = vunpack.c.l.b16 %v636
      %v925 = vunpack.c.l.b16 %v637
      %v926 = vunpack.c.l.b16 %v638
      %v927 = vunpack.c.l.b16 %v639
      %v928 = vunpack.c.l.b16 %v640
      %v929 = vunpack.c.l.b16 %v641
      %v930 = vunpack.c.l.b16 %v642
      %v931 = vunpack.c.l.b16 %v643
      %v932 = vunpack.c.l.b16 %v644
      %v933 = vunpack.c.l.b16 %v645
      %v934 = vunpack.c.l.b16 %v646
      %v935 = vunpack.c.l.b16 %v647
      %v936 = vunpack.c.l.b16 %v648
      %v937 = vunpack.c.l.b16 %v649
      %v938 = vunpack.c.l.b16 %v650
      %v939 = vunpack.c.l.b16 %v651
      %v940 = vunpack.c.l.b16 %v652
      %v941 = vunpack.c.l.b16 %v653
      %v942 = vunpack.c.l.b16 %v654
      %v943 = vunpack.c.l.b16 %v655
      %v944 = vunpack.c.l.b16 %v656
      %v945 = vunpack.c.l.b16 %v657
      %v946 = vunpack.c.l.b16 %v658
      %v947 = vunpack.c.l.b16 %v659
      %v948 = vunpack.c.l.b16 %v660
      %v949 = vunpack.c.l.b16 %v661
      %v950 = vunpack.c.l.b16 %v662
      %v951 = vunpack.c.l.b16 %v663
      %v952 = vunpack.c.l.b16 %v664
      %v953 = vunpack.c.l.b16 %v665
      %v954 = vunpack.c.l.b16 %v666
      %v955 = vunpack.c.l.b16 %v667
      %v956 = vunpack.c.l.b16 %v668
      %v957 = vunpack.c.l.b16 %v669
      %v958 = vunpack.c.l.b16 %v670
      %v959 = vunpack.c.l.b16 %v671
      %v960 = vunpack.c.l.b16 %v672
      %v961 = vunpack.c.l.b16 %v673
      %v962 = vunpack.c.l.b16 %v674
      %v963 = vunpack.c.l.b16 %v675
      %v964 = vunpack.c.l.b16 %v676
      %v965 = vunpack.c.l.b16 %v677
      %v966 = vunpack.c.l.b16 %v678
      %v967 = vunpack.c.l.b16 %v679
      %v968 = vunpack.c.l.b16 %v680
      %v969 = vunpack.c.l.b16 %v681
      %v970 = vunpack.c.l.b16 %v682
      %v971 = vunpack.c.l.b16 %v683
      %v972 = vunpack.c.l.b16 %v684
      %v973 = vunpack.c.l.b16 %v685
      %v974 = vunpack.c.l.b16 %v686
      %v975 = vunpack.c.l.b16 %v687
      %v976 = vunpack.c.l.b16 %v688
      %v977 = vunpack.c.l.b16 %v689
      %v978 = vunpack.c.l.b16 %v690
      %v979 = vunpack.c.l.b16 %v691
      %v980 = vunpack.c.l.b16 %v692
      %v981 = vunpack.c.l.b16 %v693
      %v982 = vunpack.c.l.b16 %v694
      %v983 = vunpack.c.l.b16 %v695
      %v984 = vunpack.c.l.b16 %v696
      %v985 = vunpack.c.l.b16 %v697
      %v986 = vunpack.c.l.b16 %v698
      %v987 = vunpack.c.l.b16 %v699
      %v988 = vunpack.c.l.b16 %v700
      %v989 = vunpack.c.l.b16 %v701
      %v990 = vunpack.c.l.b16 %v702
      %v991 = vunpack.c.l.b16 %v703
      %v992 = vunpack.c.l.b16 %v704
      %v993 = vunpack.c.l.b16 %v705
      %v994 = vunpack.c.l.b16 %v706
      %v995 = vunpack.c.l.b16 %v707
      %v996 = vunpack.c.l.b16 %v708
      %v997 = vunpack.c.l.b16 %v709
      %v998 = vunpack.c.l.b16 %v710
      %v999 = vunpack.c.l.b16 %v711
      %v1000 = vunpack.c.l.b16 %v712
      %v1001 = vunpack.c.l.b16 %v713
      %v1002 = vunpack.c.l.b16 %v714
      %v1003 = vunpack.c.l.b16 %v715
      %v1004 = vunpack.c.l.b16 %v716
      %v1005 = vunpack.c.l.b16 %v717
      %v1006 = vunpack.c.l.b16 %v718
      %v1007 = vunpack.c.l.b16 %v719
      %v1008 = vunpack.c.l.b16 %v720
      %v1009 = vunpack.c.l.b16 %v721
      %v1010 = vunpack.c.l.b16 %v722
      %v1011 = vunpack.c.l.b16 %v723
      %v1012 = vunpack.c.l.b16 %v724
      %v1013 = vunpack.c.l.b16 %v725
      %v1014 = vunpack.c.l.b16 %v726
      %v1015 = vunpack.c.l.b16 %v727
      %v1016 = vunpack.c.l.b16 %v728
      %v1017 = vunpack.c.l.b16 %v729
      %v1018 = vpack.c.b16 %v875, %v874
      %v1019 = vpack.c.b16 %v877, %v876
      %v1020 = vpack.c.b16 %v879, %v878
      %v1021 = vpack.c.b16 %v881, %v880
      %v1022 = vpack.c.b16 %v883, %v882
      %v1023 = vpack.c.b16 %v885, %v884
      %v1024 = vpack.c.b16 %v887, %v886
      %v1025 = vpack.c.b16 %v889, %v888
      %v1026 = vpack.c.b16 %v891, %v890
      %v1027 = vpack.c.b16 %v893, %v892
      %v1028 = vpack.c.b16 %v895, %v894
      %v1029 = vpack.c.b16 %v897, %v896
      %v1030 = vpack.c.b16 %v899, %v898
      %v1031 = vpack.c.b16 %v901, %v900
      %v1032 = vpack.c.b16 %v903, %v902
      %v1033 = vpack.c.b16 %v905, %v904
      %v1034 = vpack.c.b16 %v907, %v906
      %v1035 = vpack.c.b16 %v909, %v908
      %v1036 = vpack.c.b16 %v911, %v910
      %v1037 = vpack.c.b16 %v913, %v912
      %v1038 = vpack.c.b16 %v915, %v914
      %v1039 = vpack.c.b16 %v917, %v916
      %v1040 = vpack.c.b16 %v919, %v918
      %v1041 = vpack.c.b16 %v921, %v920
      %v1042 = vpack.c.b16 %v923, %v922
      %v1043 = vpack.c.b16 %v925, %v924
      %v1044 = vpack.c.b16 %v927, %v926
      %v1045 = vpack.c.b16 %v929, %v928
      %v1046 = vpack.c.b16 %v931, %v930
      %v1047 = vpack.c.b16 %v933, %v932
      %v1048 = vpack.c.b16 %v935, %v934
      %v1049 = vpack.c.b16 %v937, %v936
      %v1050 = vpack.c.b16 %v939, %v938
      %v1051 = vpack.c.b16 %v941, %v940
      %v1052 = vpack.c.b16 %v943, %v942
      %v1053 = vpack.c.b16 %v945, %v944
      %v1054 = vpack.c.b16 %v947, %v946
      %v1055 = vpack.c.b16 %v949, %v948
      %v1056 = vpack.c.b16 %v951, %v950
      %v1057 = vpack.c.b16 %v953, %v952
      %v1058 = vpack.c.b16 %v955, %v954
      %v1059 = vpack.c.b16 %v957, %v956
      %v1060 = vpack.c.b16 %v959, %v958
      %v1061 = vpack.c.b16 %v961, %v960
      %v1062 = vpack.c.b16 %v963, %v962
      %v1063 = vpack.c.b16 %v965, %v964
      %v1064 = vpack.c.b16 %v967, %v966
      %v1065 = vpack.c.b16 %v969, %v968
      %v1066 = vpack.c.b16 %v971, %v970
      %v1067 = vpack.c.b16 %v973, %v972
      %v1068 = vpack.c.b16 %v975, %v974
      %v1069 = vpack.c.b16 %v977, %v976
      %v1070 = vpack.c.b16 %v979, %v978
      %v1071 = vpack.c.b16 %v981, %v980
      %v1072 = vpack.c.b16 %v983, %v982
      %v1073 = vpack.c.b16 %v985, %v984
      %v1074 = vpack.c.b16 %v987, %v986
      %v1075 = vpack.c.b16 %v989, %v988
      %v1076 = vpack.c.b16 %v991, %v990
      %v1077 = vpack.c.b16 %v993, %v992
      %v1078 = vpack.c.b16 %v995, %v994
      %v1079 = vpack.c.b16 %v997, %v996
      %v1080 = vpack.c.b16 %v999, %v998
      %v1081 = vpack.c.b16 %v1001, %v1000
      %v1082 = vpack.c.b16 %v1003, %v1002
      %v1083 = vpack.c.b16 %v1005, %v1004
      %v1084 = vpack.c.b16 %v1007, %v1006
      %v1085 = vpack.c.b16 %v1009, %v1008
      %v1086 = vpack.c.b16 %v1011, %v1010
      %v1087 = vpack.c.b16 %v1013, %v1012
      %v1088 = vpack.c.b16 %v1015, %v1014
      %v1089 = vpack.c.b16 %v1017, %v1016
      %1162 = vmatprep.subr.bf16.mxu0 0
      %1163 = vmatpush1.bf16.msra.mxu0 %v1025
      %1164 = vmatprep.subr.bf16.mxu0 0
      %1165 = vmatpush1.bf16.msra.mxu0 %v1024
      %1166 = vmatprep.subr.bf16.mxu0 0
      %1167 = vmatpush1.bf16.msra.mxu0 %v1023
      %1168 = vmatprep.subr.bf16.mxu0 0
      %1169 = vmatpush1.bf16.msra.mxu0 %v1022
      %1170 = vmatprep.subr.bf16.mxu0 0
      %1171 = vmatpush1.bf16.msra.mxu0 %v1021
      %1172 = vmatprep.subr.bf16.mxu0 0
      %1173 = vmatpush1.bf16.msra.mxu0 %v1020
      %1174 = vmatprep.subr.bf16.mxu0 0
      %1175 = vmatpush1.bf16.msra.mxu0 %v1019
      %1176 = vmatprep.subr.bf16.mxu0 0
      %1177 = vmatpush1.bf16.msra.mxu0 %v1018
      %1178 = vmatprep.subr.bf16.mxu0 0
      %1179 = vmatpush2.bf16.msra.mxu0 %v1033
      %1180 = vmatprep.subr.bf16.mxu0 0
      %1181 = vmatpush2.bf16.msra.mxu0 %v1032
      %1182 = vmatprep.subr.bf16.mxu0 0
      %1183 = vmatpush2.bf16.msra.mxu0 %v1031
      %1184 = vmatprep.subr.bf16.mxu0 0
      %1185 = vmatpush2.bf16.msra.mxu0 %v1030
      %1186 = vmatprep.subr.bf16.mxu0 0
      %1187 = vmatpush2.bf16.msra.mxu0 %v1029
      %1188 = vmatprep.subr.bf16.mxu0 0
      %1189 = vmatpush2.bf16.msra.mxu0 %v1028
      %1190 = vmatprep.subr.bf16.mxu0 0
      %1191 = vmatpush2.bf16.msra.mxu0 %v1027
      %1192 = vmatprep.subr.bf16.mxu0 0
      %1193 = vmatpush2.bf16.msra.mxu0 %v1026
      %1194 = vmatprep.mubr.bf16.mxu0 %v533
      %1195 = vmatmul.mubr.bf16.gmra.mxu0 %v532
      %v1196 = vpop.f32.mrf.mxu0
      %v1197 = vadd.f32 0.0, %v1196
      %v1198 = vpop.f32.mrf.mxu0
      %v1199 = vpop.f32.mrf.mxu0
      %v1200 = vadd.f32 0.0, %v1199
      %v1201 = vpop.f32.mrf.mxu0
      %1202 = vmatprep.mubr.bf16.mxu0 %v536
      %1203 = vmatmul.mubr.bf16.gmra.mxu0 %v535
      %v1204 = vpop.f32.mrf.mxu0
      %v1205 = vadd.f32 0.0, %v1204
      %v1206 = vpop.f32.mrf.mxu0
      %v1207 = vpop.f32.mrf.mxu0
      %v1208 = vadd.f32 0.0, %v1207
      %v1209 = vpop.f32.mrf.mxu0
      %1210 = vmatprep.mubr.bf16.mxu0 %v539
      %1211 = vmatmul.mubr.bf16.gmra.mxu0 %v538
      %v1212 = vpop.f32.mrf.mxu0
      %v1213 = vadd.f32 0.0, %v1212
      %v1214 = vpop.f32.mrf.mxu0
      %v1215 = vpop.f32.mrf.mxu0
      %v1216 = vadd.f32 0.0, %v1215
      %v1217 = vpop.f32.mrf.mxu0
      %1218 = vmatprep.mubr.bf16.mxu0 %v542
      %1219 = vmatmul.mubr.bf16.gmra.mxu0 %v541
      %v1220 = vpop.f32.mrf.mxu0
      %v1221 = vadd.f32 0.0, %v1220
      %v1222 = vpop.f32.mrf.mxu0
      %v1223 = vpop.f32.mrf.mxu0
      %v1224 = vadd.f32 0.0, %v1223
      %v1225 = vpop.f32.mrf.mxu0
      %1226 = vmatprep.mubr.bf16.mxu0 %v545
      %1227 = vmatmul.mubr.bf16.gmra.mxu0 %v544
      %v1228 = vpop.f32.mrf.mxu0
      %v1229 = vadd.f32 0.0, %v1228
      %v1230 = vpop.f32.mrf.mxu0
      %v1231 = vpop.f32.mrf.mxu0
      %v1232 = vadd.f32 0.0, %v1231
      %v1233 = vpop.f32.mrf.mxu0
      %1234 = vmatprep.mubr.bf16.mxu0 %v548
      %1235 = vmatmul.mubr.bf16.gmra.mxu0 %v547
      %v1236 = vpop.f32.mrf.mxu0
      %v1237 = vadd.f32 0.0, %v1236
      %v1238 = vpop.f32.mrf.mxu0
      %v1239 = vpop.f32.mrf.mxu0
      %v1240 = vadd.f32 0.0, %v1239
      %v1241 = vpop.f32.mrf.mxu0
      %1242 = vmatprep.mubr.bf16.mxu0 %v551
      %1243 = vmatmul.mubr.bf16.gmra.mxu0 %v550
      %v1244 = vpop.f32.mrf.mxu0
      %v1245 = vadd.f32 0.0, %v1244
      %v1246 = vpop.f32.mrf.mxu0
      %v1247 = vpop.f32.mrf.mxu0
      %v1248 = vadd.f32 0.0, %v1247
      %v1249 = vpop.f32.mrf.mxu0
      %1250 = vmatprep.mubr.bf16.mxu0 %v554
      %1251 = vmatmul.mubr.bf16.gmra.mxu0 %v553
      %v1252 = vpop.f32.mrf.mxu0
      %v1253 = vadd.f32 0.0, %v1252
      %v1254 = vpop.f32.mrf.mxu0
      %v1255 = vpop.f32.mrf.mxu0
      %v1256 = vadd.f32 0.0, %v1255
      %v1257 = vpop.f32.mrf.mxu0
      %1258 = vmatprep.mubr.bf16.mxu0 %v557
      %1259 = vmatmul.mubr.bf16.gmra.mxu0 %v556
      %v1260 = vpop.f32.mrf.mxu0
      %v1261 = vadd.f32 0.0, %v1260
      %v1262 = vpop.f32.mrf.mxu0
      %v1263 = vpop.f32.mrf.mxu0
      %v1264 = vadd.f32 0.0, %v1263
      %v1265 = vpop.f32.mrf.mxu0
      %1266 = vmatprep.mubr.bf16.mxu0 %v560
      %1267 = vmatmul.mubr.bf16.gmra.mxu0 %v559
      %v1268 = vpop.f32.mrf.mxu0
      %v1269 = vadd.f32 0.0, %v1268
      %v1270 = vpop.f32.mrf.mxu0
      %v1271 = vpop.f32.mrf.mxu0
      %v1272 = vadd.f32 0.0, %v1271
      %v1273 = vpop.f32.mrf.mxu0
      %1274 = vmatprep.mubr.bf16.mxu0 %v563
      %1275 = vmatmul.mubr.bf16.gmra.mxu0 %v562
      %v1276 = vpop.f32.mrf.mxu0
      %v1277 = vadd.f32 0.0, %v1276
      %v1278 = vpop.f32.mrf.mxu0
      %v1279 = vpop.f32.mrf.mxu0
      %v1280 = vadd.f32 0.0, %v1279
      %v1281 = vpop.f32.mrf.mxu0
      %1282 = vmatprep.mubr.bf16.mxu0 %v566
      %1283 = vmatmul.mubr.bf16.gmra.mxu0 %v565
      %v1284 = vpop.f32.mrf.mxu0
      %v1285 = vadd.f32 0.0, %v1284
      %v1286 = vpop.f32.mrf.mxu0
      %v1287 = vpop.f32.mrf.mxu0
      %v1288 = vadd.f32 0.0, %v1287
      %v1289 = vpop.f32.mrf.mxu0
      %1290 = vmatprep.mubr.bf16.mxu0 %v569
      %1291 = vmatmul.mubr.bf16.gmra.mxu0 %v568
      %v1292 = vpop.f32.mrf.mxu0
      %v1293 = vadd.f32 0.0, %v1292
      %v1294 = vpop.f32.mrf.mxu0
      %v1295 = vpop.f32.mrf.mxu0
      %v1296 = vadd.f32 0.0, %v1295
      %v1297 = vpop.f32.mrf.mxu0
      %1298 = vmatprep.mubr.bf16.mxu0 %v572
      %1299 = vmatmul.mubr.bf16.gmra.mxu0 %v571
      %v1300 = vpop.f32.mrf.mxu0
      %v1301 = vadd.f32 0.0, %v1300
      %v1302 = vpop.f32.mrf.mxu0
      %v1303 = vpop.f32.mrf.mxu0
      %v1304 = vadd.f32 0.0, %v1303
      %v1305 = vpop.f32.mrf.mxu0
      %1306 = vmatprep.mubr.bf16.mxu0 %v575
      %1307 = vmatmul.mubr.bf16.gmra.mxu0 %v574
      %v1308 = vpop.f32.mrf.mxu0
      %v1309 = vadd.f32 0.0, %v1308
      %v1310 = vpop.f32.mrf.mxu0
      %v1311 = vpop.f32.mrf.mxu0
      %v1312 = vadd.f32 0.0, %v1311
      %v1313 = vpop.f32.mrf.mxu0
      %1314 = vmatprep.mubr.bf16.mxu0 %v578
      %1315 = vmatmul.mubr.bf16.gmra.mxu0 %v577
      %v1316 = vpop.f32.mrf.mxu0
      %v1317 = vadd.f32 0.0, %v1316
      %v1318 = vpop.f32.mrf.mxu0
      %v1319 = vpop.f32.mrf.mxu0
      %v1320 = vadd.f32 0.0, %v1319
      %v1321 = vpop.f32.mrf.mxu0
      %1322 = vdwg.mxu0
      %1323 = vmatprep.subr.bf16.mxu0 0
      %1324 = vmatpush1.bf16.msra.mxu0 %v1041
      %1325 = vmatprep.subr.bf16.mxu0 0
      %1326 = vmatpush1.bf16.msra.mxu0 %v1040
      %1327 = vmatprep.subr.bf16.mxu0 0
      %1328 = vmatpush1.bf16.msra.mxu0 %v1039
      %1329 = vmatprep.subr.bf16.mxu0 0
      %1330 = vmatpush1.bf16.msra.mxu0 %v1038
      %1331 = vmatprep.subr.bf16.mxu0 0
      %1332 = vmatpush1.bf16.msra.mxu0 %v1037
      %1333 = vmatprep.subr.bf16.mxu0 0
      %1334 = vmatpush1.bf16.msra.mxu0 %v1036
      %1335 = vmatprep.subr.bf16.mxu0 0
      %1336 = vmatpush1.bf16.msra.mxu0 %v1035
      %1337 = vmatprep.subr.bf16.mxu0 0
      %1338 = vmatpush1.bf16.msra.mxu0 %v1034
      %1339 = vmatprep.subr.bf16.mxu0 0
      %1340 = vmatpush2.bf16.msra.mxu0 %v1049
      %1341 = vmatprep.subr.bf16.mxu0 0
      %1342 = vmatpush2.bf16.msra.mxu0 %v1048
      %1343 = vmatprep.subr.bf16.mxu0 0
      %1344 = vmatpush2.bf16.msra.mxu0 %v1047
      %1345 = vmatprep.subr.bf16.mxu0 0
      %1346 = vmatpush2.bf16.msra.mxu0 %v1046
      %1347 = vmatprep.subr.bf16.mxu0 0
      %1348 = vmatpush2.bf16.msra.mxu0 %v1045
      %1349 = vmatprep.subr.bf16.mxu0 0
      %1350 = vmatpush2.bf16.msra.mxu0 %v1044
      %1351 = vmatprep.subr.bf16.mxu0 0
      %1352 = vmatpush2.bf16.msra.mxu0 %v1043
      %1353 = vmatprep.subr.bf16.mxu0 0
      %1354 = vmatpush2.bf16.msra.mxu0 %v1042
      %1355 = vmatprep.mubr.bf16.mxu0 %v535
      %1356 = vmatmul.mubr.bf16.gmra.mxu0 %v534
      %v1357 = vpop.f32.mrf.mxu0
      %v1358 = vadd.f32 %v1197, %v1357
      %v1359 = vpop.f32.mrf.mxu0
      %v1360 = vpop.f32.mrf.mxu0
      %v1361 = vadd.f32 %v1200, %v1360
      %v1362 = vpop.f32.mrf.mxu0
      %1363 = vmatprep.mubr.bf16.mxu0 %v538
      %1364 = vmatmul.mubr.bf16.gmra.mxu0 %v537
      %v1365 = vpop.f32.mrf.mxu0
      %v1366 = vadd.f32 %v1205, %v1365
      %v1367 = vpop.f32.mrf.mxu0
      %v1368 = vpop.f32.mrf.mxu0
      %v1369 = vadd.f32 %v1208, %v1368
      %v1370 = vpop.f32.mrf.mxu0
      %1371 = vmatprep.mubr.bf16.mxu0 %v541
      %1372 = vmatmul.mubr.bf16.gmra.mxu0 %v540
      %v1373 = vpop.f32.mrf.mxu0
      %v1374 = vadd.f32 %v1213, %v1373
      %v1375 = vpop.f32.mrf.mxu0
      %v1376 = vpop.f32.mrf.mxu0
      %v1377 = vadd.f32 %v1216, %v1376
      %v1378 = vpop.f32.mrf.mxu0
      %1379 = vmatprep.mubr.bf16.mxu0 %v544
      %1380 = vmatmul.mubr.bf16.gmra.mxu0 %v543
      %v1381 = vpop.f32.mrf.mxu0
      %v1382 = vadd.f32 %v1221, %v1381
      %v1383 = vpop.f32.mrf.mxu0
      %v1384 = vpop.f32.mrf.mxu0
      %v1385 = vadd.f32 %v1224, %v1384
      %v1386 = vpop.f32.mrf.mxu0
      %1387 = vmatprep.mubr.bf16.mxu0 %v547
      %1388 = vmatmul.mubr.bf16.gmra.mxu0 %v546
      %v1389 = vpop.f32.mrf.mxu0
      %v1390 = vadd.f32 %v1229, %v1389
      %v1391 = vpop.f32.mrf.mxu0
      %v1392 = vpop.f32.mrf.mxu0
      %v1393 = vadd.f32 %v1232, %v1392
      %v1394 = vpop.f32.mrf.mxu0
      %1395 = vmatprep.mubr.bf16.mxu0 %v550
      %1396 = vmatmul.mubr.bf16.gmra.mxu0 %v549
      %v1397 = vpop.f32.mrf.mxu0
      %v1398 = vadd.f32 %v1237, %v1397
      %v1399 = vpop.f32.mrf.mxu0
      %v1400 = vpop.f32.mrf.mxu0
      %v1401 = vadd.f32 %v1240, %v1400
      %v1402 = vpop.f32.mrf.mxu0
      %1403 = vmatprep.mubr.bf16.mxu0 %v553
      %1404 = vmatmul.mubr.bf16.gmra.mxu0 %v552
      %v1405 = vpop.f32.mrf.mxu0
      %v1406 = vadd.f32 %v1245, %v1405
      %v1407 = vpop.f32.mrf.mxu0
      %v1408 = vpop.f32.mrf.mxu0
      %v1409 = vadd.f32 %v1248, %v1408
      %v1410 = vpop.f32.mrf.mxu0
      %1411 = vmatprep.mubr.bf16.mxu0 %v556
      %1412 = vmatmul.mubr.bf16.gmra.mxu0 %v555
      %v1413 = vpop.f32.mrf.mxu0
      %v1414 = vadd.f32 %v1253, %v1413
      %v1415 = vpop.f32.mrf.mxu0
      %v1416 = vpop.f32.mrf.mxu0
      %v1417 = vadd.f32 %v1256, %v1416
      %v1418 = vpop.f32.mrf.mxu0
      %1419 = vmatprep.mubr.bf16.mxu0 %v559
      %1420 = vmatmul.mubr.bf16.gmra.mxu0 %v558
      %v1421 = vpop.f32.mrf.mxu0
      %v1422 = vadd.f32 %v1261, %v1421
      %v1423 = vpop.f32.mrf.mxu0
      %v1424 = vpop.f32.mrf.mxu0
      %v1425 = vadd.f32 %v1264, %v1424
      %v1426 = vpop.f32.mrf.mxu0
      %1427 = vmatprep.mubr.bf16.mxu0 %v562
      %1428 = vmatmul.mubr.bf16.gmra.mxu0 %v561
      %v1429 = vpop.f32.mrf.mxu0
      %v1430 = vadd.f32 %v1269, %v1429
      %v1431 = vpop.f32.mrf.mxu0
      %v1432 = vpop.f32.mrf.mxu0
      %v1433 = vadd.f32 %v1272, %v1432
      %v1434 = vpop.f32.mrf.mxu0
      %1435 = vmatprep.mubr.bf16.mxu0 %v565
      %1436 = vmatmul.mubr.bf16.gmra.mxu0 %v564
      %v1437 = vpop.f32.mrf.mxu0
      %v1438 = vadd.f32 %v1277, %v1437
      %v1439 = vpop.f32.mrf.mxu0
      %v1440 = vpop.f32.mrf.mxu0
      %v1441 = vadd.f32 %v1280, %v1440
      %v1442 = vpop.f32.mrf.mxu0
      %1443 = vmatprep.mubr.bf16.mxu0 %v568
      %1444 = vmatmul.mubr.bf16.gmra.mxu0 %v567
      %v1445 = vpop.f32.mrf.mxu0
      %v1446 = vadd.f32 %v1285, %v1445
      %v1447 = vpop.f32.mrf.mxu0
      %v1448 = vpop.f32.mrf.mxu0
      %v1449 = vadd.f32 %v1288, %v1448
      %v1450 = vpop.f32.mrf.mxu0
      %1451 = vmatprep.mubr.bf16.mxu0 %v571
      %1452 = vmatmul.mubr.bf16.gmra.mxu0 %v570
      %v1453 = vpop.f32.mrf.mxu0
      %v1454 = vadd.f32 %v1293, %v1453
      %v1455 = vpop.f32.mrf.mxu0
      %v1456 = vpop.f32.mrf.mxu0
      %v1457 = vadd.f32 %v1296, %v1456
      %v1458 = vpop.f32.mrf.mxu0
      %1459 = vmatprep.mubr.bf16.mxu0 %v574
      %1460 = vmatmul.mubr.bf16.gmra.mxu0 %v573
      %v1461 = vpop.f32.mrf.mxu0
      %v1462 = vadd.f32 %v1301, %v1461
      %v1463 = vpop.f32.mrf.mxu0
      %v1464 = vpop.f32.mrf.mxu0
      %v1465 = vadd.f32 %v1304, %v1464
      %v1466 = vpop.f32.mrf.mxu0
      %1467 = vmatprep.mubr.bf16.mxu0 %v577
      %1468 = vmatmul.mubr.bf16.gmra.mxu0 %v576
      %v1469 = vpop.f32.mrf.mxu0
      %v1470 = vadd.f32 %v1309, %v1469
      %v1471 = vpop.f32.mrf.mxu0
      %v1472 = vpop.f32.mrf.mxu0
      %v1473 = vadd.f32 %v1312, %v1472
      %v1474 = vpop.f32.mrf.mxu0
      %1475 = vmatprep.mubr.bf16.mxu0 %v580
      %1476 = vmatmul.mubr.bf16.gmra.mxu0 %v579
      %v1477 = vpop.f32.mrf.mxu0
      %v1478 = vadd.f32 %v1317, %v1477
      %v1479 = vpop.f32.mrf.mxu0
      %v1480 = vpop.f32.mrf.mxu0
      %v1481 = vadd.f32 %v1320, %v1480
      %v1482 = vpop.f32.mrf.mxu0
      %1483 = vdwg.mxu0
      %1484 = vmatprep.subr.bf16.mxu0 0
      %1485 = vmatpush1.bf16.msra.mxu0 %v1057
      %1486 = vmatprep.subr.bf16.mxu0 0
      %1487 = vmatpush1.bf16.msra.mxu0 %v1056
      %1488 = vmatprep.subr.bf16.mxu0 0
      %1489 = vmatpush1.bf16.msra.mxu0 %v1055
      %1490 = vmatprep.subr.bf16.mxu0 0
      %1491 = vmatpush1.bf16.msra.mxu0 %v1054
      %1492 = vmatprep.subr.bf16.mxu0 0
      %1493 = vmatpush1.bf16.msra.mxu0 %v1053
      %1494 = vmatprep.subr.bf16.mxu0 0
      %1495 = vmatpush1.bf16.msra.mxu0 %v1052
      %1496 = vmatprep.subr.bf16.mxu0 0
      %1497 = vmatpush1.bf16.msra.mxu0 %v1051
      %1498 = vmatprep.subr.bf16.mxu0 0
      %1499 = vmatpush1.bf16.msra.mxu0 %v1050
      %1500 = vmatprep.subr.bf16.mxu0 0
      %1501 = vmatpush2.bf16.msra.mxu0 %v1065
      %1502 = vmatprep.subr.bf16.mxu0 0
      %1503 = vmatpush2.bf16.msra.mxu0 %v1064
      %1504 = vmatprep.subr.bf16.mxu0 0
      %1505 = vmatpush2.bf16.msra.mxu0 %v1063
      %1506 = vmatprep.subr.bf16.mxu0 0
      %1507 = vmatpush2.bf16.msra.mxu0 %v1062
      %1508 = vmatprep.subr.bf16.mxu0 0
      %1509 = vmatpush2.bf16.msra.mxu0 %v1061
      %1510 = vmatprep.subr.bf16.mxu0 0
      %1511 = vmatpush2.bf16.msra.mxu0 %v1060
      %1512 = vmatprep.subr.bf16.mxu0 0
      %1513 = vmatpush2.bf16.msra.mxu0 %v1059
      %1514 = vmatprep.subr.bf16.mxu0 0
      %1515 = vmatpush2.bf16.msra.mxu0 %v1058
      %1516 = vmatprep.mubr.bf16.mxu0 %v537
      %1517 = vmatmul.mubr.bf16.gmra.mxu0 %v536
      %v1518 = vpop.f32.mrf.mxu0
      %v1519 = vadd.f32 %v1358, %v1518
      %v1520 = vpop.f32.mrf.mxu0
      %v1521 = vpop.f32.mrf.mxu0
      %v1522 = vadd.f32 %v1361, %v1521
      %v1523 = vpop.f32.mrf.mxu0
      %1524 = vmatprep.mubr.bf16.mxu0 %v540
      %1525 = vmatmul.mubr.bf16.gmra.mxu0 %v539
      %v1526 = vpop.f32.mrf.mxu0
      %v1527 = vadd.f32 %v1366, %v1526
      %v1528 = vpop.f32.mrf.mxu0
      %v1529 = vpop.f32.mrf.mxu0
      %v1530 = vadd.f32 %v1369, %v1529
      %v1531 = vpop.f32.mrf.mxu0
      %1532 = vmatprep.mubr.bf16.mxu0 %v543
      %1533 = vmatmul.mubr.bf16.gmra.mxu0 %v542
      %v1534 = vpop.f32.mrf.mxu0
      %v1535 = vadd.f32 %v1374, %v1534
      %v1536 = vpop.f32.mrf.mxu0
      %v1537 = vpop.f32.mrf.mxu0
      %v1538 = vadd.f32 %v1377, %v1537
      %v1539 = vpop.f32.mrf.mxu0
      %1540 = vmatprep.mubr.bf16.mxu0 %v546
      %1541 = vmatmul.mubr.bf16.gmra.mxu0 %v545
      %v1542 = vpop.f32.mrf.mxu0
      %v1543 = vadd.f32 %v1382, %v1542
      %v1544 = vpop.f32.mrf.mxu0
      %v1545 = vpop.f32.mrf.mxu0
      %v1546 = vadd.f32 %v1385, %v1545
      %v1547 = vpop.f32.mrf.mxu0
      %1548 = vmatprep.mubr.bf16.mxu0 %v549
      %1549 = vmatmul.mubr.bf16.gmra.mxu0 %v548
      %v1550 = vpop.f32.mrf.mxu0
      %v1551 = vadd.f32 %v1390, %v1550
      %v1552 = vpop.f32.mrf.mxu0
      %v1553 = vpop.f32.mrf.mxu0
      %v1554 = vadd.f32 %v1393, %v1553
      %v1555 = vpop.f32.mrf.mxu0
      %1556 = vmatprep.mubr.bf16.mxu0 %v552
      %1557 = vmatmul.mubr.bf16.gmra.mxu0 %v551
      %v1558 = vpop.f32.mrf.mxu0
      %v1559 = vadd.f32 %v1398, %v1558
      %v1560 = vpop.f32.mrf.mxu0
      %v1561 = vpop.f32.mrf.mxu0
      %v1562 = vadd.f32 %v1401, %v1561
      %v1563 = vpop.f32.mrf.mxu0
      %1564 = vmatprep.mubr.bf16.mxu0 %v555
      %1565 = vmatmul.mubr.bf16.gmra.mxu0 %v554
      %v1566 = vpop.f32.mrf.mxu0
      %v1567 = vadd.f32 %v1406, %v1566
      %v1568 = vpop.f32.mrf.mxu0
      %v1569 = vpop.f32.mrf.mxu0
      %v1570 = vadd.f32 %v1409, %v1569
      %v1571 = vpop.f32.mrf.mxu0
      %1572 = vmatprep.mubr.bf16.mxu0 %v558
      %1573 = vmatmul.mubr.bf16.gmra.mxu0 %v557
      %v1574 = vpop.f32.mrf.mxu0
      %v1575 = vadd.f32 %v1414, %v1574
      %v1576 = vpop.f32.mrf.mxu0
      %v1577 = vpop.f32.mrf.mxu0
      %v1578 = vadd.f32 %v1417, %v1577
      %v1579 = vpop.f32.mrf.mxu0
      %1580 = vmatprep.mubr.bf16.mxu0 %v561
      %1581 = vmatmul.mubr.bf16.gmra.mxu0 %v560
      %v1582 = vpop.f32.mrf.mxu0
      %v1583 = vadd.f32 %v1422, %v1582
      %v1584 = vpop.f32.mrf.mxu0
      %v1585 = vpop.f32.mrf.mxu0
      %v1586 = vadd.f32 %v1425, %v1585
      %v1587 = vpop.f32.mrf.mxu0
      %1588 = vmatprep.mubr.bf16.mxu0 %v564
      %1589 = vmatmul.mubr.bf16.gmra.mxu0 %v563
      %v1590 = vpop.f32.mrf.mxu0
      %v1591 = vadd.f32 %v1430, %v1590
      %v1592 = vpop.f32.mrf.mxu0
      %v1593 = vpop.f32.mrf.mxu0
      %v1594 = vadd.f32 %v1433, %v1593
      %v1595 = vpop.f32.mrf.mxu0
      %1596 = vmatprep.mubr.bf16.mxu0 %v567
      %1597 = vmatmul.mubr.bf16.gmra.mxu0 %v566
      %v1598 = vpop.f32.mrf.mxu0
      %v1599 = vadd.f32 %v1438, %v1598
      %v1600 = vpop.f32.mrf.mxu0
      %v1601 = vpop.f32.mrf.mxu0
      %v1602 = vadd.f32 %v1441, %v1601
      %v1603 = vpop.f32.mrf.mxu0
      %1604 = vmatprep.mubr.bf16.mxu0 %v570
      %1605 = vmatmul.mubr.bf16.gmra.mxu0 %v569
      %v1606 = vpop.f32.mrf.mxu0
      %v1607 = vadd.f32 %v1446, %v1606
      %v1608 = vpop.f32.mrf.mxu0
      %v1609 = vpop.f32.mrf.mxu0
      %v1610 = vadd.f32 %v1449, %v1609
      %v1611 = vpop.f32.mrf.mxu0
      %1612 = vmatprep.mubr.bf16.mxu0 %v573
      %1613 = vmatmul.mubr.bf16.gmra.mxu0 %v572
      %v1614 = vpop.f32.mrf.mxu0
      %v1615 = vadd.f32 %v1454, %v1614
      %v1616 = vpop.f32.mrf.mxu0
      %v1617 = vpop.f32.mrf.mxu0
      %v1618 = vadd.f32 %v1457, %v1617
      %v1619 = vpop.f32.mrf.mxu0
      %1620 = vmatprep.mubr.bf16.mxu0 %v576
      %1621 = vmatmul.mubr.bf16.gmra.mxu0 %v575
      %v1622 = vpop.f32.mrf.mxu0
      %v1623 = vadd.f32 %v1462, %v1622
      %v1624 = vpop.f32.mrf.mxu0
      %v1625 = vpop.f32.mrf.mxu0
      %v1626 = vadd.f32 %v1465, %v1625
      %v1627 = vpop.f32.mrf.mxu0
      %1628 = vmatprep.mubr.bf16.mxu0 %v579
      %1629 = vmatmul.mubr.bf16.gmra.mxu0 %v578
      %v1630 = vpop.f32.mrf.mxu0
      %v1631 = vadd.f32 %v1470, %v1630
      %v1632 = vpop.f32.mrf.mxu0
      %v1633 = vpop.f32.mrf.mxu0
      %v1634 = vadd.f32 %v1473, %v1633
      %v1635 = vpop.f32.mrf.mxu0
      %1636 = vmatprep.mubr.bf16.mxu0 %v582
      %1637 = vmatmul.mubr.bf16.gmra.mxu0 %v581
      %v1638 = vpop.f32.mrf.mxu0
      %v1639 = vadd.f32 %v1478, %v1638
      %v1640 = vpop.f32.mrf.mxu0
      %v1641 = vpop.f32.mrf.mxu0
      %v1642 = vadd.f32 %v1481, %v1641
      %v1643 = vpop.f32.mrf.mxu0
      %1644 = vdwg.mxu0
      %1645 = vmatprep.subr.bf16.mxu0 0
      %1646 = vmatpush1.bf16.msra.mxu0 %v1073
      %1647 = vmatprep.subr.bf16.mxu0 0
      %1648 = vmatpush1.bf16.msra.mxu0 %v1072
      %1649 = vmatprep.subr.bf16.mxu0 0
      %1650 = vmatpush1.bf16.msra.mxu0 %v1071
      %1651 = vmatprep.subr.bf16.mxu0 0
      %1652 = vmatpush1.bf16.msra.mxu0 %v1070
      %1653 = vmatprep.subr.bf16.mxu0 0
      %1654 = vmatpush1.bf16.msra.mxu0 %v1069
      %1655 = vmatprep.subr.bf16.mxu0 0
      %1656 = vmatpush1.bf16.msra.mxu0 %v1068
      %1657 = vmatprep.subr.bf16.mxu0 0
      %1658 = vmatpush1.bf16.msra.mxu0 %v1067
      %1659 = vmatprep.subr.bf16.mxu0 0
      %1660 = vmatpush1.bf16.msra.mxu0 %v1066
      %1661 = vmatprep.subr.bf16.mxu0 0
      %1662 = vmatpush2.bf16.msra.mxu0 %v1081
      %1663 = vmatprep.subr.bf16.mxu0 0
      %1664 = vmatpush2.bf16.msra.mxu0 %v1080
      %1665 = vmatprep.subr.bf16.mxu0 0
      %1666 = vmatpush2.bf16.msra.mxu0 %v1079
      %1667 = vmatprep.subr.bf16.mxu0 0
      %1668 = vmatpush2.bf16.msra.mxu0 %v1078
      %1669 = vmatprep.subr.bf16.mxu0 0
      %1670 = vmatpush2.bf16.msra.mxu0 %v1077
      %1671 = vmatprep.subr.bf16.mxu0 0
      %1672 = vmatpush2.bf16.msra.mxu0 %v1076
      %1673 = vmatprep.subr.bf16.mxu0 0
      %1674 = vmatpush2.bf16.msra.mxu0 %v1075
      %1675 = vmatprep.subr.bf16.mxu0 0
      %1676 = vmatpush2.bf16.msra.mxu0 %v1074
      %1677 = vmatprep.mubr.bf16.mxu0 %v539
      %1678 = vmatmul.mubr.bf16.gmra.mxu0 %v538
      %v1679 = vpop.f32.mrf.mxu0
      %v1680 = vadd.f32 %v1519, %v1679
      %v1681 = vpop.f32.mrf.mxu0
      %v1682 = vpop.f32.mrf.mxu0
      %v1683 = vadd.f32 %v1522, %v1682
      %v1684 = vpop.f32.mrf.mxu0
      %1685 = vmatprep.mubr.bf16.mxu0 %v542
      %1686 = vmatmul.mubr.bf16.gmra.mxu0 %v541
      %v1687 = vpop.f32.mrf.mxu0
      %v1688 = vadd.f32 %v1527, %v1687
      %v1689 = vpop.f32.mrf.mxu0
      %v1690 = vpop.f32.mrf.mxu0
      %v1691 = vadd.f32 %v1530, %v1690
      %v1692 = vpop.f32.mrf.mxu0
      %1693 = vmatprep.mubr.bf16.mxu0 %v545
      %1694 = vmatmul.mubr.bf16.gmra.mxu0 %v544
      %v1695 = vpop.f32.mrf.mxu0
      %v1696 = vadd.f32 %v1535, %v1695
      %v1697 = vpop.f32.mrf.mxu0
      %v1698 = vpop.f32.mrf.mxu0
      %v1699 = vadd.f32 %v1538, %v1698
      %v1700 = vpop.f32.mrf.mxu0
      %1701 = vmatprep.mubr.bf16.mxu0 %v548
      %1702 = vmatmul.mubr.bf16.gmra.mxu0 %v547
      %v1703 = vpop.f32.mrf.mxu0
      %v1704 = vadd.f32 %v1543, %v1703
      %v1705 = vpop.f32.mrf.mxu0
      %v1706 = vpop.f32.mrf.mxu0
      %v1707 = vadd.f32 %v1546, %v1706
      %v1708 = vpop.f32.mrf.mxu0
      %1709 = vmatprep.mubr.bf16.mxu0 %v551
      %1710 = vmatmul.mubr.bf16.gmra.mxu0 %v550
      %v1711 = vpop.f32.mrf.mxu0
      %v1712 = vadd.f32 %v1551, %v1711
      %v1713 = vpop.f32.mrf.mxu0
      %v1714 = vpop.f32.mrf.mxu0
      %v1715 = vadd.f32 %v1554, %v1714
      %v1716 = vpop.f32.mrf.mxu0
      %1717 = vmatprep.mubr.bf16.mxu0 %v554
      %1718 = vmatmul.mubr.bf16.gmra.mxu0 %v553
      %v1719 = vpop.f32.mrf.mxu0
      %v1720 = vadd.f32 %v1559, %v1719
      %v1721 = vpop.f32.mrf.mxu0
      %v1722 = vpop.f32.mrf.mxu0
      %v1723 = vadd.f32 %v1562, %v1722
      %v1724 = vpop.f32.mrf.mxu0
      %1725 = vmatprep.mubr.bf16.mxu0 %v557
      %1726 = vmatmul.mubr.bf16.gmra.mxu0 %v556
      %v1727 = vpop.f32.mrf.mxu0
      %v1728 = vadd.f32 %v1567, %v1727
      %v1729 = vpop.f32.mrf.mxu0
      %v1730 = vpop.f32.mrf.mxu0
      %v1731 = vadd.f32 %v1570, %v1730
      %v1732 = vpop.f32.mrf.mxu0
      %1733 = vmatprep.mubr.bf16.mxu0 %v560
      %1734 = vmatmul.mubr.bf16.gmra.mxu0 %v559
      %v1735 = vpop.f32.mrf.mxu0
      %v1736 = vadd.f32 %v1575, %v1735
      %v1737 = vpop.f32.mrf.mxu0
      %v1738 = vpop.f32.mrf.mxu0
      %v1739 = vadd.f32 %v1578, %v1738
      %v1740 = vpop.f32.mrf.mxu0
      %1741 = vmatprep.mubr.bf16.mxu0 %v563
      %1742 = vmatmul.mubr.bf16.gmra.mxu0 %v562
      %v1743 = vpop.f32.mrf.mxu0
      %v1744 = vadd.f32 %v1583, %v1743
      %v1745 = vpop.f32.mrf.mxu0
      %v1746 = vpop.f32.mrf.mxu0
      %v1747 = vadd.f32 %v1586, %v1746
      %v1748 = vpop.f32.mrf.mxu0
      %1749 = vmatprep.mubr.bf16.mxu0 %v566
      %1750 = vmatmul.mubr.bf16.gmra.mxu0 %v565
      %v1751 = vpop.f32.mrf.mxu0
      %v1752 = vadd.f32 %v1591, %v1751
      %v1753 = vpop.f32.mrf.mxu0
      %v1754 = vpop.f32.mrf.mxu0
      %v1755 = vadd.f32 %v1594, %v1754
      %v1756 = vpop.f32.mrf.mxu0
      %1757 = vmatprep.mubr.bf16.mxu0 %v569
      %1758 = vmatmul.mubr.bf16.gmra.mxu0 %v568
      %v1759 = vpop.f32.mrf.mxu0
      %v1760 = vadd.f32 %v1599, %v1759
      %v1761 = vpop.f32.mrf.mxu0
      %v1762 = vpop.f32.mrf.mxu0
      %v1763 = vadd.f32 %v1602, %v1762
      %v1764 = vpop.f32.mrf.mxu0
      %1765 = vmatprep.mubr.bf16.mxu0 %v572
      %1766 = vmatmul.mubr.bf16.gmra.mxu0 %v571
      %v1767 = vpop.f32.mrf.mxu0
      %v1768 = vadd.f32 %v1607, %v1767
      %v1769 = vpop.f32.mrf.mxu0
      %v1770 = vpop.f32.mrf.mxu0
      %v1771 = vadd.f32 %v1610, %v1770
      %v1772 = vpop.f32.mrf.mxu0
      %1773 = vmatprep.mubr.bf16.mxu0 %v575
      %1774 = vmatmul.mubr.bf16.gmra.mxu0 %v574
      %v1775 = vpop.f32.mrf.mxu0
      %v1776 = vadd.f32 %v1615, %v1775
      %v1777 = vpop.f32.mrf.mxu0
      %v1778 = vpop.f32.mrf.mxu0
      %v1779 = vadd.f32 %v1618, %v1778
      %v1780 = vpop.f32.mrf.mxu0
      %1781 = vmatprep.mubr.bf16.mxu0 %v578
      %1782 = vmatmul.mubr.bf16.gmra.mxu0 %v577
      %v1783 = vpop.f32.mrf.mxu0
      %v1784 = vadd.f32 %v1623, %v1783
      %v1785 = vpop.f32.mrf.mxu0
      %v1786 = vpop.f32.mrf.mxu0
      %v1787 = vadd.f32 %v1626, %v1786
      %v1788 = vpop.f32.mrf.mxu0
      %1789 = vmatprep.mubr.bf16.mxu0 %v581
      %1790 = vmatmul.mubr.bf16.gmra.mxu0 %v580
      %v1791 = vpop.f32.mrf.mxu0
      %v1792 = vadd.f32 %v1631, %v1791
      %v1793 = vpop.f32.mrf.mxu0
      %v1794 = vpop.f32.mrf.mxu0
      %v1795 = vadd.f32 %v1634, %v1794
      %v1796 = vpop.f32.mrf.mxu0
      %1797 = vmatprep.mubr.bf16.mxu0 %v584
      %1798 = vmatmul.mubr.bf16.gmra.mxu0 %v583
      %v1799 = vpop.f32.mrf.mxu0
      %v1800 = vadd.f32 %v1639, %v1799
      %v1801 = vpop.f32.mrf.mxu0
      %v1802 = vpop.f32.mrf.mxu0
      %v1803 = vadd.f32 %v1642, %v1802
      %v1804 = vpop.f32.mrf.mxu0
      %1805 = vdwg.mxu0
      %1806 = vmatprep.subr.bf16.mxu0 0
      %1807 = vmatpush1.bf16.msra.mxu0 %v1089
      %1808 = vmatprep.subr.bf16.mxu0 0
      %1809 = vmatpush1.bf16.msra.mxu0 %v1088
      %1810 = vmatprep.subr.bf16.mxu0 0
      %1811 = vmatpush1.bf16.msra.mxu0 %v1087
      %1812 = vmatprep.subr.bf16.mxu0 0
      %1813 = vmatpush1.bf16.msra.mxu0 %v1086
      %1814 = vmatprep.subr.bf16.mxu0 0
      %1815 = vmatpush1.bf16.msra.mxu0 %v1085
      %1816 = vmatprep.subr.bf16.mxu0 0
      %1817 = vmatpush1.bf16.msra.mxu0 %v1084
      %1818 = vmatprep.subr.bf16.mxu0 0
      %1819 = vmatpush1.bf16.msra.mxu0 %v1083
      %1820 = vmatprep.subr.bf16.mxu0 0
      %1821 = vmatpush1.bf16.msra.mxu0 %v1082
      %1822 = vmatprep.subr.bf16.mxu0 0
      %1823 = vmatpush2.bf16.msra.mxu0 0
      %1824 = vmatprep.subr.bf16.mxu0 0
      %1825 = vmatpush2.bf16.msra.mxu0 0
      %1826 = vmatprep.subr.bf16.mxu0 0
      %1827 = vmatpush2.bf16.msra.mxu0 0
      %1828 = vmatprep.subr.bf16.mxu0 0
      %1829 = vmatpush2.bf16.msra.mxu0 0
      %1830 = vmatprep.subr.bf16.mxu0 0
      %1831 = vmatpush2.bf16.msra.mxu0 0
      %1832 = vmatprep.subr.bf16.mxu0 0
      %1833 = vmatpush2.bf16.msra.mxu0 0
      %1834 = vmatprep.subr.bf16.mxu0 0
      %1835 = vmatpush2.bf16.msra.mxu0 0
      %1836 = vmatprep.subr.bf16.mxu0 0
      %1837 = vmatpush2.bf16.msra.mxu0 0
      %1838 = vmatprep.mubr.bf16.mxu0 0
      %1839 = vmatmul.mubr.bf16.gmra.mxu0 %v540
      %v1840 = vpop.f32.mrf.mxu0
      %v1841 = vadd.f32 %v1680, %v1840
      %v1842 = vpop.f32.mrf.mxu0
      %v1843 = vpop.f32.mrf.mxu0
      %v1844 = vadd.f32 %v1683, %v1843
      %v1845 = vpop.f32.mrf.mxu0
      %1846 = vmatprep.mubr.bf16.mxu0 0
      %1847 = vmatmul.mubr.bf16.gmra.mxu0 %v543
      %v1848 = vpop.f32.mrf.mxu0
      %v1849 = vadd.f32 %v1688, %v1848
      %v1850 = vpop.f32.mrf.mxu0
      %v1851 = vpop.f32.mrf.mxu0
      %v1852 = vadd.f32 %v1691, %v1851
      %v1853 = vpop.f32.mrf.mxu0
      %1854 = vmatprep.mubr.bf16.mxu0 0
      %1855 = vmatmul.mubr.bf16.gmra.mxu0 %v546
      %v1856 = vpop.f32.mrf.mxu0
      %v1857 = vadd.f32 %v1696, %v1856
      %v1858 = vpop.f32.mrf.mxu0
      %v1859 = vpop.f32.mrf.mxu0
      %v1860 = vadd.f32 %v1699, %v1859
      %v1861 = vpop.f32.mrf.mxu0
      %1862 = vmatprep.mubr.bf16.mxu0 0
      %1863 = vmatmul.mubr.bf16.gmra.mxu0 %v549
      %v1864 = vpop.f32.mrf.mxu0
      %v1865 = vadd.f32 %v1704, %v1864
      %v1866 = vpop.f32.mrf.mxu0
      %v1867 = vpop.f32.mrf.mxu0
      %v1868 = vadd.f32 %v1707, %v1867
      %v1869 = vpop.f32.mrf.mxu0
      %1870 = vmatprep.mubr.bf16.mxu0 0
      %1871 = vmatmul.mubr.bf16.gmra.mxu0 %v552
      %v1872 = vpop.f32.mrf.mxu0
      %v1873 = vadd.f32 %v1712, %v1872
      %v1874 = vpop.f32.mrf.mxu0
      %v1875 = vpop.f32.mrf.mxu0
      %v1876 = vadd.f32 %v1715, %v1875
      %v1877 = vpop.f32.mrf.mxu0
      %1878 = vmatprep.mubr.bf16.mxu0 0
      %1879 = vmatmul.mubr.bf16.gmra.mxu0 %v555
      %v1880 = vpop.f32.mrf.mxu0
      %v1881 = vadd.f32 %v1720, %v1880
      %v1882 = vpop.f32.mrf.mxu0
      %v1883 = vpop.f32.mrf.mxu0
      %v1884 = vadd.f32 %v1723, %v1883
      %v1885 = vpop.f32.mrf.mxu0
      %1886 = vmatprep.mubr.bf16.mxu0 0
      %1887 = vmatmul.mubr.bf16.gmra.mxu0 %v558
      %v1888 = vpop.f32.mrf.mxu0
      %v1889 = vadd.f32 %v1728, %v1888
      %v1890 = vpop.f32.mrf.mxu0
      %v1891 = vpop.f32.mrf.mxu0
      %v1892 = vadd.f32 %v1731, %v1891
      %v1893 = vpop.f32.mrf.mxu0
      %1894 = vmatprep.mubr.bf16.mxu0 0
      %1895 = vmatmul.mubr.bf16.gmra.mxu0 %v561
      %v1896 = vpop.f32.mrf.mxu0
      %v1897 = vadd.f32 %v1736, %v1896
      %v1898 = vpop.f32.mrf.mxu0
      %v1899 = vpop.f32.mrf.mxu0
      %v1900 = vadd.f32 %v1739, %v1899
      %v1901 = vpop.f32.mrf.mxu0
      %1902 = vmatprep.mubr.bf16.mxu0 0
      %1903 = vmatmul.mubr.bf16.gmra.mxu0 %v564
      %v1904 = vpop.f32.mrf.mxu0
      %v1905 = vadd.f32 %v1744, %v1904
      %v1906 = vpop.f32.mrf.mxu0
      %v1907 = vpop.f32.mrf.mxu0
      %v1908 = vadd.f32 %v1747, %v1907
      %v1909 = vpop.f32.mrf.mxu0
      %1910 = vmatprep.mubr.bf16.mxu0 0
      %1911 = vmatmul.mubr.bf16.gmra.mxu0 %v567
      %v1912 = vpop.f32.mrf.mxu0
      %v1913 = vadd.f32 %v1752, %v1912
      %v1914 = vpop.f32.mrf.mxu0
      %v1915 = vpop.f32.mrf.mxu0
      %v1916 = vadd.f32 %v1755, %v1915
      %v1917 = vpop.f32.mrf.mxu0
      %1918 = vmatprep.mubr.bf16.mxu0 0
      %1919 = vmatmul.mubr.bf16.gmra.mxu0 %v570
      %v1920 = vpop.f32.mrf.mxu0
      %v1921 = vadd.f32 %v1760, %v1920
      %v1922 = vpop.f32.mrf.mxu0
      %v1923 = vpop.f32.mrf.mxu0
      %v1924 = vadd.f32 %v1763, %v1923
      %v1925 = vpop.f32.mrf.mxu0
      %1926 = vmatprep.mubr.bf16.mxu0 0
      %1927 = vmatmul.mubr.bf16.gmra.mxu0 %v573
      %v1928 = vpop.f32.mrf.mxu0
      %v1929 = vadd.f32 %v1768, %v1928
      %v1930 = vpop.f32.mrf.mxu0
      %v1931 = vpop.f32.mrf.mxu0
      %v1932 = vadd.f32 %v1771, %v1931
      %v1933 = vpop.f32.mrf.mxu0
      %1934 = vmatprep.mubr.bf16.mxu0 0
      %1935 = vmatmul.mubr.bf16.gmra.mxu0 %v576
      %v1936 = vpop.f32.mrf.mxu0
      %v1937 = vadd.f32 %v1776, %v1936
      %v1938 = vpop.f32.mrf.mxu0
      %v1939 = vpop.f32.mrf.mxu0
      %v1940 = vadd.f32 %v1779, %v1939
      %v1941 = vpop.f32.mrf.mxu0
      %1942 = vmatprep.mubr.bf16.mxu0 0
      %1943 = vmatmul.mubr.bf16.gmra.mxu0 %v579
      %v1944 = vpop.f32.mrf.mxu0
      %v1945 = vadd.f32 %v1784, %v1944
      %v1946 = vpop.f32.mrf.mxu0
      %v1947 = vpop.f32.mrf.mxu0
      %v1948 = vadd.f32 %v1787, %v1947
      %v1949 = vpop.f32.mrf.mxu0
      %1950 = vmatprep.mubr.bf16.mxu0 0
      %1951 = vmatmul.mubr.bf16.gmra.mxu0 %v582
      %v1952 = vpop.f32.mrf.mxu0
      %v1953 = vadd.f32 %v1792, %v1952
      %v1954 = vpop.f32.mrf.mxu0
      %v1955 = vpop.f32.mrf.mxu0
      %v1956 = vadd.f32 %v1795, %v1955
      %v1957 = vpop.f32.mrf.mxu0
      %1958 = vmatprep.mubr.bf16.mxu0 0
      %1959 = vmatmul.mubr.bf16.gmra.mxu0 %v585
      %v1960 = vpop.f32.mrf.mxu0
      %v1961 = vadd.f32 %v1800, %v1960
      %v1962 = vpop.f32.mrf.mxu0
      %v1963 = vpop.f32.mrf.mxu0
      %v1964 = vadd.f32 %v1803, %v1963
      %v1965 = vpop.f32.mrf.mxu0
      %1966 = vdwg.mxu0
      %1967 = vst [vmem:[%s168] sm:$0xff] %v1841
      %1968 = vst [vmem:[%s168 + $0x8] sm:$0xff] %v1844
      %1969 = vst [vmem:[%s168 + $0x10] sm:$0xff] %v1849
      %1970 = vst [vmem:[%s168 + $0x18] sm:$0xff] %v1852
      %1971 = vst [vmem:[%s168 + $0x20] sm:$0xff] %v1857
      %1972 = vst [vmem:[%s168 + $0x28] sm:$0xff] %v1860
      %1973 = vst [vmem:[%s168 + $0x30] sm:$0xff] %v1865
      %1974 = vst [vmem:[%s168 + $0x38] sm:$0xff] %v1868
      %1975 = vst [vmem:[%s168 + $0x40] sm:$0xff] %v1873
      %1976 = vst [vmem:[%s168 + $0x48] sm:$0xff] %v1876
      %1977 = vst [vmem:[%s168 + $0x50] sm:$0xff] %v1881
      %1978 = vst [vmem:[%s168 + $0x58] sm:$0xff] %v1884
      %1979 = vst [vmem:[%s168 + $0x60] sm:$0xff] %v1889
      %1980 = vst [vmem:[%s168 + $0x68] sm:$0xff] %v1892
      %1981 = vst [vmem:[%s168 + $0x70] sm:$0xff] %v1897
      %1982 = vst [vmem:[%s168 + $0x78] sm:$0xff] %v1900
      %1983 = vst [vmem:[%s168 + $0x80] sm:$0xff] %v1905
      %1984 = vst [vmem:[%s168 + $0x88] sm:$0xff] %v1908
      %1985 = vst [vmem:[%s168 + $0x90] sm:$0xff] %v1913
      %1986 = vst [vmem:[%s168 + $0x98] sm:$0xff] %v1916
      %1987 = vst [vmem:[%s168 + $0xa0] sm:$0xff] %v1921
      %1988 = vst [vmem:[%s168 + $0xa8] sm:$0xff] %v1924
      %1989 = vst [vmem:[%s168 + $0xb0] sm:$0xff] %v1929
      %1990 = vst [vmem:[%s168 + $0xb8] sm:$0xff] %v1932
      %1991 = vst [vmem:[%s168 + $0xc0] sm:$0xff] %v1937
      %1992 = vst [vmem:[%s168 + $0xc8] sm:$0xff] %v1940
      %1993 = vst [vmem:[%s168 + $0xd0] sm:$0xff] %v1945
      %1994 = vst [vmem:[%s168 + $0xd8] sm:$0xff] %v1948
      %1995 = vst [vmem:[%s168 + $0xe0] sm:$0xff] %v1953
      %1996 = vst [vmem:[%s168 + $0xe8] sm:$0xff] %v1956
      %1997 = vst [vmem:[%s168 + $0xf0] sm:$0xff] %v1961
      %1998 = vst [vmem:[%s168 + $0xf8] sm:$0xff] %v1964
      %v1999 = vadd.f32 %v1841, %v1844
      %v2000 = vadd.f32 %v1999, %v1849
      %v2001 = vadd.f32 %v2000, %v1852
      %v2002 = vadd.f32 %v2001, %v1857
      %v2003 = vadd.f32 %v2002, %v1860
      %v2004 = vadd.f32 %v2003, %v1865
      %v2005 = vadd.f32 %v2004, %v1868
      %v2006 = vadd.f32 %v2005, %v1873
      %v2007 = vadd.f32 %v2006, %v1876
      %v2008 = vadd.f32 %v2007, %v1881
      %v2009 = vadd.f32 %v2008, %v1884
      %v2010 = vadd.f32 %v2009, %v1889
      %v2011 = vadd.f32 %v2010, %v1892
      %v2012 = vadd.f32 %v2011, %v1897
      %v2013 = vadd.f32 %v2012, %v1900
      %v2014 = vadd.f32 %v2013, %v1905
      %v2015 = vadd.f32 %v2014, %v1908
      %v2016 = vadd.f32 %v2015, %v1913
      %v2017 = vadd.f32 %v2016, %v1916
      %v2018 = vadd.f32 %v2017, %v1921
      %v2019 = vadd.f32 %v2018, %v1924
      %v2020 = vadd.f32 %v2019, %v1929
      %v2021 = vadd.f32 %v2020, %v1932
      %v2022 = vadd.f32 %v2021, %v1937
      %v2023 = vadd.f32 %v2022, %v1940
      %v2024 = vadd.f32 %v2023, %v1945
      %v2025 = vadd.f32 %v2024, %v1948
      %v2026 = vadd.f32 %v2025, %v1953
      %v2027 = vadd.f32 %v2026, %v1956
      %v2028 = vadd.f32 %v2027, %v1961
      %v2029 = vadd.f32 %v2028, %v1964
      %v2030 = vrot.slane %v2029, 4
      %v2031 = vadd.f32 %v2029, %v2030
      %v2032 = vrot.slane %v2031, 2
      %v2033 = vadd.f32 %v2031, %v2032
      %v2034 = vrot.slane %v2033, 1
      %v2035 = vadd.f32 %v2033, %v2034
      %v2036 = vmul.f32 %v1841, %v1841
      %v2037 = vmul.f32 %v1844, %v1844
      %v2038 = vmul.f32 %v1849, %v1849
      %v2039 = vmul.f32 %v1852, %v1852
      %v2040 = vmul.f32 %v1857, %v1857
      %v2041 = vmul.f32 %v1860, %v1860
      %v2042 = vmul.f32 %v1865, %v1865
      %v2043 = vmul.f32 %v1868, %v1868
      %v2044 = vmul.f32 %v1873, %v1873
      %v2045 = vmul.f32 %v1876, %v1876
      %v2046 = vmul.f32 %v1881, %v1881
      %v2047 = vmul.f32 %v1884, %v1884
      %v2048 = vmul.f32 %v1889, %v1889
      %v2049 = vmul.f32 %v1892, %v1892
      %v2050 = vmul.f32 %v1897, %v1897
      %v2051 = vmul.f32 %v1900, %v1900
      %v2052 = vmul.f32 %v1905, %v1905
      %v2053 = vmul.f32 %v1908, %v1908
      %v2054 = vmul.f32 %v1913, %v1913
      %v2055 = vmul.f32 %v1916, %v1916
      %v2056 = vmul.f32 %v1921, %v1921
      %v2057 = vmul.f32 %v1924, %v1924
      %v2058 = vmul.f32 %v1929, %v1929
      %v2059 = vmul.f32 %v1932, %v1932
      %v2060 = vmul.f32 %v1937, %v1937
      %v2061 = vmul.f32 %v1940, %v1940
      %v2062 = vmul.f32 %v1945, %v1945
      %v2063 = vmul.f32 %v1948, %v1948
      %v2064 = vmul.f32 %v1953, %v1953
      %v2065 = vmul.f32 %v1956, %v1956
      %v2066 = vmul.f32 %v1961, %v1961
      %v2067 = vmul.f32 %v1964, %v1964
      %v2068 = vadd.f32 %v2036, %v2037
      %v2069 = vadd.f32 %v2068, %v2038
      %v2070 = vadd.f32 %v2069, %v2039
      %v2071 = vadd.f32 %v2070, %v2040
      %v2072 = vadd.f32 %v2071, %v2041
      %v2073 = vadd.f32 %v2072, %v2042
      %v2074 = vadd.f32 %v2073, %v2043
      %v2075 = vadd.f32 %v2074, %v2044
      %v2076 = vadd.f32 %v2075, %v2045
      %v2077 = vadd.f32 %v2076, %v2046
      %v2078 = vadd.f32 %v2077, %v2047
      %v2079 = vadd.f32 %v2078, %v2048
      %v2080 = vadd.f32 %v2079, %v2049
      %v2081 = vadd.f32 %v2080, %v2050
      %v2082 = vadd.f32 %v2081, %v2051
      %v2083 = vadd.f32 %v2082, %v2052
      %v2084 = vadd.f32 %v2083, %v2053
      %v2085 = vadd.f32 %v2084, %v2054
      %v2086 = vadd.f32 %v2085, %v2055
      %v2087 = vadd.f32 %v2086, %v2056
      %v2088 = vadd.f32 %v2087, %v2057
      %v2089 = vadd.f32 %v2088, %v2058
      %v2090 = vadd.f32 %v2089, %v2059
      %v2091 = vadd.f32 %v2090, %v2060
      %v2092 = vadd.f32 %v2091, %v2061
      %v2093 = vadd.f32 %v2092, %v2062
      %v2094 = vadd.f32 %v2093, %v2063
      %v2095 = vadd.f32 %v2094, %v2064
      %v2096 = vadd.f32 %v2095, %v2065
      %v2097 = vadd.f32 %v2096, %v2066
      %v2098 = vadd.f32 %v2097, %v2067
      %v2099 = vrot.slane %v2098, 4
      %v2100 = vadd.f32 %v2098, %v2099
      %v2101 = vrot.slane %v2100, 2
      %v2102 = vadd.f32 %v2100, %v2101
      %v2103 = vrot.slane %v2102, 1
      %v2104 = vadd.f32 %v2102, %v2103
      %vm2105 = vcmask 1040384
      %v2106 = vsel %vm2105, %v2035, %v2104
      %p2107 = scmp.eq.s32.totalorder %s15, 0
      // Predicated region
      $region29: #{vit_forward_pallas.7} parent=27 // pred_check
        %p2108 = pneg %p2107
      $region30: #{vit_forward_pallas.7} parent=27 // pred_check_branch
        %2110 = sbr.rel (%p2108) target = $region32
      $region31: #{vit_forward_pallas.7} parent=27 // pred_region
        %2111 = vst [vmem:[%s3] sm:$0x3] 0.0
      $region32: #{vit_forward_pallas.7} parent=27 // pred_fallthru
        _
      %v2112 = vld [vmem:[%s3] sm:$0x3]
      %v2113 = vadd.f32 %v2112, %v2106
      %2114 = vst [vmem:[%s3] sm:$0x3] %v2113
      %p2115 = scmp.lt.s32.totalorder %s15, 1
      %s2116 = scalar_select %p2115, %s15, 1
      %s2117 = smul.addr %s2116, 32
      %s2118 = smul.addr %s2117, 8
      %s2119 = scalar_lea.vmem %s2, %s2118
      // Predicated region
      $region33: #{vit_forward_pallas.7} parent=27 // pred_check
        %p2120 = pneg %p80
      $region34: #{vit_forward_pallas.7} parent=27 // pred_check_branch
        %2122 = sbr.rel (%p2120) target = $region36
      $region35: #{vit_forward_pallas.7} parent=27 // pred_region
        _
      $region36: #{vit_forward_pallas.7} parent=27 // pred_fallthru
        _
      // Predicated region
      $region37: #{vit_forward_pallas.7} parent=27 // pred_check
        %p2123 = pneg %p101
      $region38: #{vit_forward_pallas.7} parent=27 // pred_check_branch
        %2125 = sbr.rel (%p2123) target = $region40
      $region39: #{vit_forward_pallas.7} parent=27 // pred_region
        _
      $region40: #{vit_forward_pallas.7} parent=27 // pred_fallthru
        _
      // Predicated region
      $region41: #{vit_forward_pallas.7} parent=27 // pred_check
        %p2126 = pneg %p101
      $region42: #{vit_forward_pallas.7} parent=27 // pred_check_branch
        %2128 = sbr.rel (%p2126) target = $region44
      $region43: #{vit_forward_pallas.7} parent=27 // pred_region
        _
      $region44: #{vit_forward_pallas.7} parent=27 // pred_fallthru
        _
    $region28: #{vit_forward_pallas.7} parent=5 // pred_fallthru
      _
    %p2129 = scmp.le.s32.totalorder 2, %s10
    // Predicated region
    $region45: #{vit_forward_pallas.7} parent=5 // pred_check
      %p2130 = pneg %p2129
    $region46: #{vit_forward_pallas.7} parent=5 // pred_check_branch
      %2132 = sbr.rel (%p2130) target = $region48
    $region47: #{vit_forward_pallas.7} parent=5 // pred_region
      %s2133 = ssub.s32 %s10, 2
      // Predicated region
      $region49: #{vit_forward_pallas.7} parent=47 // pred_check
        %p2134 = pneg %p86
      $region50: #{vit_forward_pallas.7} parent=47 // pred_check_branch
        %2136 = sbr.rel (%p2134) target = $region52
      $region51: #{vit_forward_pallas.7} parent=47 // pred_region
        %p2137 = scmp.lt.s32.totalorder %s16, 1
        %s2138 = scalar_select %p2137, %s16, 1
        %s2139 = smul.addr %s2138, 32
        %s2140 = smul.addr %s2139, 8
        %s2141 = scalar_lea.vmem %s2, %s2140
      $region52: #{vit_forward_pallas.7} parent=47 // pred_fallthru
        _
    $region48: #{vit_forward_pallas.7} parent=5 // pred_fallthru
      _
  $region6: #{vit_forward_pallas.7} parent=0 // loop_footer
    %s14 = sadd.s32 1, %s10
  $region7: #{vit_forward_pallas.7} parent=0 // loop_footer_branch
    %9 = sbr.rel target = $region3
  $region8: #{vit_forward_pallas.7} parent=0 // loop_exit
    _

// kernel: vit_forward_pallas.13
$region0: #{vit_forward_pallas.13}
  #allocation0 [shape = 'u32[]', space=smem, size = 0x4, offset = 0x4, fixed_abs, tag = 'smem constant byte address 0x4 - core index']
  #allocation1 [shape = 'u32[144,128]{1,0:T(1,128)}', space=vmem, size = 0x12000, scoped, tag = 'internal scratch']
  %s0 = inlined_call_operand.vmem [shape: f32[2,17,32], index: 0, kind: input, shape index: {}]
  %s1 = inlined_call_operand.vmem [shape: f32[1,32], index: 1, kind: input, shape index: {}]
  %s2 = inlined_call_operand.vmem [shape: f32[1,32], index: 2, kind: input, shape index: {}]
  %s3 = inlined_call_operand.vmem [shape: bf16[32,10], index: 3, kind: input, shape index: {}]
  %s4 = inlined_call_operand.vmem [shape: f32[1,10], index: 4, kind: input, shape index: {}]
  %s5 = inlined_call_operand.hbm [shape: f32[2,10], index: 5, kind: output, shape index: {}]
  %s6 = sld [smem:[#allocation0]]
  $region30: #{vit_forward_pallas.13} parent=0
    _
  %s8 = ssub.s32 1, %s6
  %s9 = scalar_select 0, %s8, %s6
  $region1: #{vit_forward_pallas.13} parent=0
    #allocation2 [shape = 'u8[1024]{0}', space=vmem, size = 0x400, scoped, tag = 'output window, operand 0, single buffered']
    #allocation3 [shape = 's32[1]{0}', space=sflag, size = 0x4, scoped, tag = 'scoped memory for vit_forward_pallas.13']
    %10 = vsyncpa [#allocation3], 0
    // Predicated region
    $region2: #{vit_forward_pallas.13} parent=1 // pred_check
      _
    $region3: #{vit_forward_pallas.13} parent=1 // pred_check_branch
      %12 = sbr.rel (0) target = $region5
    $region4: #{vit_forward_pallas.13} parent=1 // pred_region
      _
    $region5: #{vit_forward_pallas.13} parent=1 // pred_fallthru
      _
    // Predicated region
    $region6: #{vit_forward_pallas.13} parent=1 // pred_check
      _
    $region7: #{vit_forward_pallas.13} parent=1 // pred_check_branch
      %14 = sbr.rel (0) target = $region9
    $region8: #{vit_forward_pallas.13} parent=1 // pred_region
      _
    $region9: #{vit_forward_pallas.13} parent=1 // pred_fallthru
      _
    // Predicated region
    $region10: #{vit_forward_pallas.13} parent=1 // pred_check
      _
    $region11: #{vit_forward_pallas.13} parent=1 // pred_check_branch
      %16 = sbr.rel (0) target = $region13
    $region12: #{vit_forward_pallas.13} parent=1 // pred_region
      _
    $region13: #{vit_forward_pallas.13} parent=1 // pred_fallthru
      _
    // Predicated region
    $region14: #{vit_forward_pallas.13} parent=1 // pred_check
      _
    $region15: #{vit_forward_pallas.13} parent=1 // pred_check_branch
      %18 = sbr.rel (0) target = $region17
    $region16: #{vit_forward_pallas.13} parent=1 // pred_region
      _
    $region17: #{vit_forward_pallas.13} parent=1 // pred_fallthru
      _
    // Predicated region
    $region18: #{vit_forward_pallas.13} parent=1 // pred_check
      _
    $region19: #{vit_forward_pallas.13} parent=1 // pred_check_branch
      %20 = sbr.rel (0) target = $region21
    $region20: #{vit_forward_pallas.13} parent=1 // pred_region
      _
    $region21: #{vit_forward_pallas.13} parent=1 // pred_fallthru
      _
    %v22 = vld [vmem:[%s0] sm:$0xff]
    %v23 = vld [vmem:[%s0 + $0x18] sm:$0xff]
    %v24 = vld [vmem:[%s1] sm:$0x1]
    %v25 = vld [vmem:[%s2] sm:$0x1]
    %v28 = vrot.slane %v23, 7
    %vm29 = vcmask 1041409
    %v30 = vsel %vm29, %v28, %v22
    %vm32 = vcmask 254976
    %v33 = vsel %vm32, %v30, 0.0
    %34 = vadd.xlane.f32.xlu0 %v33
    %v35 = vpop.xlane.xlu0 %34
    %v36 = vrcp.pop 32.0
    %v37 = vmul.f32 %v35, %v36
    %v39 = vrot.slane %v37, 1
    %v42 = vsub.f32 %v22, %v37
    %v43 = vsub.f32 %v23, %v39
    %v44 = vmul.f32 %v42, %v42
    %v45 = vmul.f32 %v43, %v43
    %v48 = vrot.slane %v45, 7
    %v49 = vsel %vm29, %v48, %v44
    %v51 = vsel %vm32, %v49, 0.0
    %52 = vadd.xlane.f32.xlu0 %v51
    %v53 = vpop.xlane.xlu0 %52
    %v54 = vmul.f32 %v53, %v36
    %v55 = vadd.f32 %v54, 1e-05
    %v56 = vrsqrt.pop %v55
    %v58 = vrot.slane %v56, 1
    %v61 = vmul.f32 %v42, %v56
    %v62 = vmul.f32 %v43, %v58
    %v64 = vlaneseq
    %v65 = vshrl.u32 %v64, 7
    %v66 = vsub.s32 0, %v65
    %v67 = vrot.slane %v24, %v66
    %v69 = vmul.f32 %v61, %v67
    %v70 = vmul.f32 %v62, %v67
    %v72 = vlaneseq
    %v73 = vshrl.u32 %v72, 7
    %v74 = vsub.s32 0, %v73
    %v75 = vrot.slane %v25, %v74
    %v77 = vadd.f32 %v69, %v75
    %v78 = vadd.f32 %v70, %v75
    %v79 = vpack.c.bf16 %v77, %v77
    %v80 = vpack.c.bf16 %v78, %v78
    %v81 = vld [vmem:[%s3] sm:$0xf]
    %v82 = vld [vmem:[%s3 + $0x4] sm:$0xf]
    %v83 = vld [vmem:[%s3 + $0x8] sm:$0xf]
    %v84 = vld [vmem:[%s3 + $0xc] sm:$0xf]
    %v85 = vld [vmem:[%s4] sm:$0x1]
    %v87 = vlaneseq
    %v88 = vshrl.u32 %v87, 7
    %v89 = vsub.s32 0, %v88
    %v90 = vrot.slane %v85, %v89
    %v94 = vunpack.c.l.b16 %v79
    %v95 = vunpack.c.l.b16 %v80
    %v96 = vrot.slane %v95, 7
    %v97 = vsel %vm29, %v96, %v94
    %v98 = vpack.c.b16 %v97, %v97
    %v103 = vunpack.c.l.b16 %v81
    %v104 = vunpack.c.l.b16 %v82
    %v105 = vunpack.c.l.b16 %v83
    %v106 = vunpack.c.l.b16 %v84
    %v107 = vpack.c.b16 %v104, %v103
    %v108 = vpack.c.b16 %v106, %v105
    %vm111 = vcmask 261120
    %v113 = vsel %vm111, %v98, 0
    %115 = vmatprep.subr.bf16.mxu0 0
    %116 = vmatpush1.bf16.msra.mxu0 0
    %117 = vmatprep.subr.bf16.mxu0 0
    %118 = vmatpush1.bf16.msra.mxu0 0
    %119 = vmatprep.subr.bf16.mxu0 0
    %120 = vmatpush1.bf16.msra.mxu0 0
    %121 = vmatprep.subr.bf16.mxu0 0
    %122 = vmatpush1.bf16.msra.mxu0 0
    %123 = vmatprep.subr.bf16.mxu0 0
    %124 = vmatpush1.bf16.msra.mxu0 0
    %125 = vmatprep.subr.bf16.mxu0 0
    %126 = vmatpush1.bf16.msra.mxu0 0
    %127 = vmatprep.subr.bf16.mxu0 0
    %128 = vmatpush1.bf16.msra.mxu0 %v108
    %129 = vmatprep.subr.bf16.mxu0 0
    %130 = vmatpush1.bf16.msra.mxu0 %v107
    %131 = vmatprep.subr.bf16.mxu0 0
    %132 = vmatpush2.bf16.msra.mxu0 0
    %133 = vmatprep.subr.bf16.mxu0 0
    %134 = vmatpush2.bf16.msra.mxu0 0
    %135 = vmatprep.subr.bf16.mxu0 0
    %136 = vmatpush2.bf16.msra.mxu0 0
    %137 = vmatprep.subr.bf16.mxu0 0
    %138 = vmatpush2.bf16.msra.mxu0 0
    %139 = vmatprep.subr.bf16.mxu0 0
    %140 = vmatpush2.bf16.msra.mxu0 0
    %141 = vmatprep.subr.bf16.mxu0 0
    %142 = vmatpush2.bf16.msra.mxu0 0
    %143 = vmatprep.subr.bf16.mxu0 0
    %144 = vmatpush2.bf16.msra.mxu0 0
    %145 = vmatprep.subr.bf16.mxu0 0
    %146 = vmatpush2.bf16.msra.mxu0 0
    %147 = vmatprep.mubr.bf16.mxu0 0
    %148 = vmatmul.mubr.bf16.gmra.mxu0 %v113
    %v149 = vpop.f32.mrf.mxu0
    %v150 = vadd.f32 %v90, %v149
    %v151 = vpop.f32.mrf.mxu0
    %v152 = vpop.f32.mrf.mxu0
    %v153 = vpop.f32.mrf.mxu0
    %154 = vdwg.mxu0
    %vm155 = vcmask 74752
    %156 = vst.msk [vmem:[#allocation2] sm:$0x3] %vm155, %v150
    // Predicated region
    $region22: #{vit_forward_pallas.13} parent=1 // pred_check
      _
    $region23: #{vit_forward_pallas.13} parent=1 // pred_check_branch
      %158 = sbr.rel (0) target = $region25
    $region24: #{vit_forward_pallas.13} parent=1 // pred_region
      %s160 = ssub.s32 32, 32
      %161 = vsyncadd [#allocation3], %s160
      %s163 = sshll.u32 [#allocation2], 4
      %s164 = int_to_ptr.vmem [resolvable:$true] %s163
      %166 = dma.vmem_to_hbm [thread:$0]  %s164, 32, %s5, [#allocation3]
    $region25: #{vit_forward_pallas.13} parent=1 // pred_fallthru
      _
    // Predicated region
    $region26: #{vit_forward_pallas.13} parent=1 // pred_check
      _
    $region27: #{vit_forward_pallas.13} parent=1 // pred_check_branch
      %168 = sbr.rel (0) target = $region29
    $region28: #{vit_forward_pallas.13} parent=1 // pred_region
      %169 = dma.done [#allocation3], 32
    $region29: #{vit_forward_pallas.13} parent=1 // pred_fallthru
      _
    %170 = vsyncpa [#allocation3], 1

// kernel: vit_forward_pallas.11
$region0: #{vit_forward_pallas.11}
  #allocation0 [shape = 'u32[]', space=smem, size = 0x4, offset = 0x4, fixed_abs, tag = 'smem constant byte address 0x4 - core index']
  #allocation1 [shape = 'u32[144,128]{1,0:T(1,128)}', space=vmem, size = 0x12000, scoped, tag = 'internal scratch']
  %s0 = inlined_call_operand.vmem [shape: f32[2,17,32], index: 0, kind: input, shape index: {}]
  %s1 = inlined_call_operand.vmem [shape: f32[1,32], index: 1, kind: input, shape index: {}]
  %s2 = inlined_call_operand.vmem [shape: f32[1,32], index: 2, kind: input, shape index: {}]
  %s3 = inlined_call_operand.vmem [shape: bf16[32,32], index: 3, kind: input, shape index: {}]
  %s4 = inlined_call_operand.vmem [shape: f32[1,32], index: 4, kind: input, shape index: {}]
  %s5 = inlined_call_operand.vmem [shape: bf16[32,32], index: 5, kind: input, shape index: {}]
  %s6 = inlined_call_operand.vmem [shape: f32[1,32], index: 6, kind: input, shape index: {}]
  %s7 = inlined_call_operand.vmem [shape: bf16[32,32], index: 7, kind: input, shape index: {}]
  %s8 = inlined_call_operand.vmem [shape: f32[1,32], index: 8, kind: input, shape index: {}]
  %s9 = inlined_call_operand.vmem [shape: bf16[32,32], index: 9, kind: input, shape index: {}]
  %s10 = inlined_call_operand.vmem [shape: f32[1,32], index: 10, kind: input, shape index: {}]
  %s11 = inlined_call_operand.vmem [shape: f32[1,32], index: 11, kind: input, shape index: {}]
  %s12 = inlined_call_operand.vmem [shape: f32[1,32], index: 12, kind: input, shape index: {}]
  %s13 = inlined_call_operand.vmem [shape: bf16[32,64], index: 13, kind: input, shape index: {}]
  %s14 = inlined_call_operand.vmem [shape: f32[1,64], index: 14, kind: input, shape index: {}]
  %s15 = inlined_call_operand.vmem [shape: bf16[64,32], index: 15, kind: input, shape index: {}]
  %s16 = inlined_call_operand.vmem [shape: f32[1,32], index: 16, kind: input, shape index: {}]
  %s17 = inlined_call_operand.vmem [shape: f32[2,17,32], index: 17, kind: output, shape index: {}]
  %s18 = sld [smem:[#allocation0]]
  $region101: #{vit_forward_pallas.11} parent=0
    _
  %s20 = ssub.s32 1, %s18
  %s21 = scalar_select 0, %s20, %s18
  loop: start=0, step=1, limit=4
  $region2: #{vit_forward_pallas.11} parent=0 // loop_pre_header
    _
  $region3: #{vit_forward_pallas.11} parent=0 // loop_header
    %s23 = sphi 0, %s27
    %p24 = scmp.ge.s32.totalorder %s23, 4
    %s33 = sphi 0, %s35
    %s36 = sphi 0, %s33
    %s37 = sphi 0, %s36
    %s53 = sphi 0, %s37
    %s57 = sphi 0, %s57
    %s59 = sphi 0, %s57
    %s60 = sphi 0, %s59
    %s74 = sphi 0, %s60
    %s78 = sphi 0, %s78
    %s80 = sphi 0, %s78
    %s81 = sphi 0, %s80
    %s95 = sphi 0, %s81
    %s99 = sphi 0, %s99
    %s101 = sphi 0, %s99
    %s102 = sphi 0, %s101
    %s116 = sphi 0, %s102
    %s120 = sphi 0, %s120
    %s122 = sphi 0, %s120
    %s123 = sphi 0, %s122
    %s137 = sphi 0, %s123
    %s141 = sphi 0, %s141
    %s143 = sphi 0, %s141
    %s144 = sphi 0, %s143
    %s158 = sphi 0, %s144
    %s162 = sphi 0, %s162
    %s164 = sphi 0, %s162
    %s165 = sphi 0, %s164
    %s179 = sphi 0, %s165
    %s183 = sphi 0, %s183
    %s185 = sphi 0, %s183
    %s186 = sphi 0, %s185
    %s200 = sphi 0, %s186
    %s204 = sphi 0, %s204
    %s206 = sphi 0, %s204
    %s207 = sphi 0, %s206
    %s221 = sphi 0, %s207
    %s225 = sphi 0, %s225
    %s227 = sphi 0, %s225
    %s228 = sphi 0, %s227
    %s242 = sphi 0, %s228
    %s246 = sphi 0, %s246
    %s248 = sphi 0, %s246
    %s249 = sphi 0, %s248
    %s263 = sphi 0, %s249
    %s267 = sphi 0, %s267
    %s269 = sphi 0, %s267
    %s270 = sphi 0, %s269
    %s284 = sphi 0, %s270
    %s288 = sphi 0, %s288
    %s290 = sphi 0, %s288
    %s291 = sphi 0, %s290
    %s305 = sphi 0, %s291
    %s309 = sphi 0, %s309
    %s311 = sphi 0, %s309
    %s312 = sphi 0, %s311
    %s326 = sphi 0, %s312
    %s330 = sphi 0, %s330
    %s332 = sphi 0, %s330
    %s333 = sphi 0, %s332
    %s347 = sphi 0, %s333
    %s351 = sphi 0, %s351
    %s353 = sphi 0, %s351
    %s354 = sphi 0, %s353
    %s368 = sphi 0, %s354
    %s372 = sphi 0, %s372
    %s374 = sphi 0, %s372
    %s375 = sphi 0, %s374
    %s389 = sphi 0, %s375
    %s395 = sphi 0, %s397
    %s398 = sphi 0, %s395
    %s399 = sphi 0, %s398
    %s415 = sphi 0, %s399
  $region4: #{vit_forward_pallas.11} parent=0 // loop_header_branch
    %26 = sbr.rel (%p24) target = $region8
  $region5: #{vit_forward_pallas.11} parent=0 // loop_body
    %s28 = ssub.s32 %s23, 1
    %s29 = ssub.s32 %s23, 2
    %s30 = sadd.s32 %s23, 1
    %s31 = ssub.s32 %s23, %s30
    %p32 = scmp.eq.s32.totalorder %s31, 0
    %s34 = sadd.s32 %s33, 1
    %s35 = scalar_select %p32, %s33, %s34
    %p38 = pneg %p32
    %p39 = scmp.eq.s32.totalorder %s23, 1
    %p40 = por %p38, %p39
    %p41 = scmp.ne.s32.totalorder %s33, %s36
    %p42 = scmp.eq.s32.totalorder %s23, 0
    %p43 = por %p41, %p42
    %p44 = scmp.ne.s32.totalorder %s33, %s36
    %p45 = scmp.eq.s32.totalorder %s28, 1
    %p46 = por %p44, %p45
    %p47 = scmp.ne.s32.totalorder %s36, %s37
    %p48 = scmp.eq.s32.totalorder %s28, 0
    %p49 = por %p47, %p48
    %p50 = scmp.ne.s32.totalorder %s36, %s37
    %p51 = scmp.eq.s32.totalorder %s29, 1
    %p52 = por %p50, %p51
    %p54 = scmp.ne.s32.totalorder %s37, %s53
    %p55 = scmp.eq.s32.totalorder %s29, 0
    %p56 = por %p54, %p55
    %s58 = sadd.s32 %s57, 1
    %p61 = scmp.eq.s32.totalorder %s23, 1
    %p62 = scmp.ne.s32.totalorder %s57, %s59
    %p63 = scmp.eq.s32.totalorder %s23, 0
    %p64 = por %p62, %p63
    %p65 = scmp.ne.s32.totalorder %s57, %s59
    %p66 = scmp.eq.s32.totalorder %s28, 1
    %p67 = por %p65, %p66
    %p68 = scmp.ne.s32.totalorder %s59, %s60
    %p69 = scmp.eq.s32.totalorder %s28, 0
    %p70 = por %p68, %p69
    %p71 = scmp.ne.s32.totalorder %s59, %s60
    %p72 = scmp.eq.s32.totalorder %s29, 1
    %p73 = por %p71, %p72
    %p75 = scmp.ne.s32.totalorder %s60, %s74
    %p76 = scmp.eq.s32.totalorder %s29, 0
    %p77 = por %p75, %p76
    %s79 = sadd.s32 %s78, 1
    %p82 = scmp.eq.s32.totalorder %s23, 1
    %p83 = scmp.ne.s32.totalorder %s78, %s80
    %p84 = scmp.eq.s32.totalorder %s23, 0
    %p85 = por %p83, %p84
    %p86 = scmp.ne.s32.totalorder %s78, %s80
    %p87 = scmp.eq.s32.totalorder %s28, 1
    %p88 = por %p86, %p87
    %p89 = scmp.ne.s32.totalorder %s80, %s81
    %p90 = scmp.eq.s32.totalorder %s28, 0
    %p91 = por %p89, %p90
    %p92 = scmp.ne.s32.totalorder %s80, %s81
    %p93 = scmp.eq.s32.totalorder %s29, 1
    %p94 = por %p92, %p93
    %p96 = scmp.ne.s32.totalorder %s81, %s95
    %p97 = scmp.eq.s32.totalorder %s29, 0
    %p98 = por %p96, %p97
    %s100 = sadd.s32 %s99, 1
    %p103 = scmp.eq.s32.totalorder %s23, 1
    %p104 = scmp.ne.s32.totalorder %s99, %s101
    %p105 = scmp.eq.s32.totalorder %s23, 0
    %p106 = por %p104, %p105
    %p107 = scmp.ne.s32.totalorder %s99, %s101
    %p108 = scmp.eq.s32.totalorder %s28, 1
    %p109 = por %p107, %p108
    %p110 = scmp.ne.s32.totalorder %s101, %s102
    %p111 = scmp.eq.s32.totalorder %s28, 0
    %p112 = por %p110, %p111
    %p113 = scmp.ne.s32.totalorder %s101, %s102
    %p114 = scmp.eq.s32.totalorder %s29, 1
    %p115 = por %p113, %p114
    %p117 = scmp.ne.s32.totalorder %s102, %s116
    %p118 = scmp.eq.s32.totalorder %s29, 0
    %p119 = por %p117, %p118
    %s121 = sadd.s32 %s120, 1
    %p124 = scmp.eq.s32.totalorder %s23, 1
    %p125 = scmp.ne.s32.totalorder %s120, %s122
    %p126 = scmp.eq.s32.totalorder %s23, 0
    %p127 = por %p125, %p126
    %p128 = scmp.ne.s32.totalorder %s120, %s122
    %p129 = scmp.eq.s32.totalorder %s28, 1
    %p130 = por %p128, %p129
    %p131 = scmp.ne.s32.totalorder %s122, %s123
    %p132 = scmp.eq.s32.totalorder %s28, 0
    %p133 = por %p131, %p132
    %p134 = scmp.ne.s32.totalorder %s122, %s123
    %p135 = scmp.eq.s32.totalorder %s29, 1
    %p136 = por %p134, %p135
    %p138 = scmp.ne.s32.totalorder %s123, %s137
    %p139 = scmp.eq.s32.totalorder %s29, 0
    %p140 = por %p138, %p139
    %s142 = sadd.s32 %s141, 1
    %p145 = scmp.eq.s32.totalorder %s23, 1
    %p146 = scmp.ne.s32.totalorder %s141, %s143
    %p147 = scmp.eq.s32.totalorder %s23, 0
    %p148 = por %p146, %p147
    %p149 = scmp.ne.s32.totalorder %s141, %s143
    %p150 = scmp.eq.s32.totalorder %s28, 1
    %p151 = por %p149, %p150
    %p152 = scmp.ne.s32.totalorder %s143, %s144
    %p153 = scmp.eq.s32.totalorder %s28, 0
    %p154 = por %p152, %p153
    %p155 = scmp.ne.s32.totalorder %s143, %s144
    %p156 = scmp.eq.s32.totalorder %s29, 1
    %p157 = por %p155, %p156
    %p159 = scmp.ne.s32.totalorder %s144, %s158
    %p160 = scmp.eq.s32.totalorder %s29, 0
    %p161 = por %p159, %p160
    %s163 = sadd.s32 %s162, 1
    %p166 = scmp.eq.s32.totalorder %s23, 1
    %p167 = scmp.ne.s32.totalorder %s162, %s164
    %p168 = scmp.eq.s32.totalorder %s23, 0
    %p169 = por %p167, %p168
    %p170 = scmp.ne.s32.totalorder %s162, %s164
    %p171 = scmp.eq.s32.totalorder %s28, 1
    %p172 = por %p170, %p171
    %p173 = scmp.ne.s32.totalorder %s164, %s165
    %p174 = scmp.eq.s32.totalorder %s28, 0
    %p175 = por %p173, %p174
    %p176 = scmp.ne.s32.totalorder %s164, %s165
    %p177 = scmp.eq.s32.totalorder %s29, 1
    %p178 = por %p176, %p177
    %p180 = scmp.ne.s32.totalorder %s165, %s179
    %p181 = scmp.eq.s32.totalorder %s29, 0
    %p182 = por %p180, %p181
    %s184 = sadd.s32 %s183, 1
    %p187 = scmp.eq.s32.totalorder %s23, 1
    %p188 = scmp.ne.s32.totalorder %s183, %s185
    %p189 = scmp.eq.s32.totalorder %s23, 0
    %p190 = por %p188, %p189
    %p191 = scmp.ne.s32.totalorder %s183, %s185
    %p192 = scmp.eq.s32.totalorder %s28, 1
    %p193 = por %p191, %p192
    %p194 = scmp.ne.s32.totalorder %s185, %s186
    %p195 = scmp.eq.s32.totalorder %s28, 0
    %p196 = por %p194, %p195
    %p197 = scmp.ne.s32.totalorder %s185, %s186
    %p198 = scmp.eq.s32.totalorder %s29, 1
    %p199 = por %p197, %p198
    %p201 = scmp.ne.s32.totalorder %s186, %s200
    %p202 = scmp.eq.s32.totalorder %s29, 0
    %p203 = por %p201, %p202
    %s205 = sadd.s32 %s204, 1
    %p208 = scmp.eq.s32.totalorder %s23, 1
    %p209 = scmp.ne.s32.totalorder %s204, %s206
    %p210 = scmp.eq.s32.totalorder %s23, 0
    %p211 = por %p209, %p210
    %p212 = scmp.ne.s32.totalorder %s204, %s206
    %p213 = scmp.eq.s32.totalorder %s28, 1
    %p214 = por %p212, %p213
    %p215 = scmp.ne.s32.totalorder %s206, %s207
    %p216 = scmp.eq.s32.totalorder %s28, 0
    %p217 = por %p215, %p216
    %p218 = scmp.ne.s32.totalorder %s206, %s207
    %p219 = scmp.eq.s32.totalorder %s29, 1
    %p220 = por %p218, %p219
    %p222 = scmp.ne.s32.totalorder %s207, %s221
    %p223 = scmp.eq.s32.totalorder %s29, 0
    %p224 = por %p222, %p223
    %s226 = sadd.s32 %s225, 1
    %p229 = scmp.eq.s32.totalorder %s23, 1
    %p230 = scmp.ne.s32.totalorder %s225, %s227
    %p231 = scmp.eq.s32.totalorder %s23, 0
    %p232 = por %p230, %p231
    %p233 = scmp.ne.s32.totalorder %s225, %s227
    %p234 = scmp.eq.s32.totalorder %s28, 1
    %p235 = por %p233, %p234
    %p236 = scmp.ne.s32.totalorder %s227, %s228
    %p237 = scmp.eq.s32.totalorder %s28, 0
    %p238 = por %p236, %p237
    %p239 = scmp.ne.s32.totalorder %s227, %s228
    %p240 = scmp.eq.s32.totalorder %s29, 1
    %p241 = por %p239, %p240
    %p243 = scmp.ne.s32.totalorder %s228, %s242
    %p244 = scmp.eq.s32.totalorder %s29, 0
    %p245 = por %p243, %p244
    %s247 = sadd.s32 %s246, 1
    %p250 = scmp.eq.s32.totalorder %s23, 1
    %p251 = scmp.ne.s32.totalorder %s246, %s248
    %p252 = scmp.eq.s32.totalorder %s23, 0
    %p253 = por %p251, %p252
    %p254 = scmp.ne.s32.totalorder %s246, %s248
    %p255 = scmp.eq.s32.totalorder %s28, 1
    %p256 = por %p254, %p255
    %p257 = scmp.ne.s32.totalorder %s248, %s249
    %p258 = scmp.eq.s32.totalorder %s28, 0
    %p259 = por %p257, %p258
    %p260 = scmp.ne.s32.totalorder %s248, %s249
    %p261 = scmp.eq.s32.totalorder %s29, 1
    %p262 = por %p260, %p261
    %p264 = scmp.ne.s32.totalorder %s249, %s263
    %p265 = scmp.eq.s32.totalorder %s29, 0
    %p266 = por %p264, %p265
    %s268 = sadd.s32 %s267, 1
    %p271 = scmp.eq.s32.totalorder %s23, 1
    %p272 = scmp.ne.s32.totalorder %s267, %s269
    %p273 = scmp.eq.s32.totalorder %s23, 0
    %p274 = por %p272, %p273
    %p275 = scmp.ne.s32.totalorder %s267, %s269
    %p276 = scmp.eq.s32.totalorder %s28, 1
    %p277 = por %p275, %p276
    %p278 = scmp.ne.s32.totalorder %s269, %s270
    %p279 = scmp.eq.s32.totalorder %s28, 0
    %p280 = por %p278, %p279
    %p281 = scmp.ne.s32.totalorder %s269, %s270
    %p282 = scmp.eq.s32.totalorder %s29, 1
    %p283 = por %p281, %p282
    %p285 = scmp.ne.s32.totalorder %s270, %s284
    %p286 = scmp.eq.s32.totalorder %s29, 0
    %p287 = por %p285, %p286
    %s289 = sadd.s32 %s288, 1
    %p292 = scmp.eq.s32.totalorder %s23, 1
    %p293 = scmp.ne.s32.totalorder %s288, %s290
    %p294 = scmp.eq.s32.totalorder %s23, 0
    %p295 = por %p293, %p294
    %p296 = scmp.ne.s32.totalorder %s288, %s290
    %p297 = scmp.eq.s32.totalorder %s28, 1
    %p298 = por %p296, %p297
    %p299 = scmp.ne.s32.totalorder %s290, %s291
    %p300 = scmp.eq.s32.totalorder %s28, 0
    %p301 = por %p299, %p300
    %p302 = scmp.ne.s32.totalorder %s290, %s291
    %p303 = scmp.eq.s32.totalorder %s29, 1
    %p304 = por %p302, %p303
    %p306 = scmp.ne.s32.totalorder %s291, %s305
    %p307 = scmp.eq.s32.totalorder %s29, 0
    %p308 = por %p306, %p307
    %s310 = sadd.s32 %s309, 1
    %p313 = scmp.eq.s32.totalorder %s23, 1
    %p314 = scmp.ne.s32.totalorder %s309, %s311
    %p315 = scmp.eq.s32.totalorder %s23, 0
    %p316 = por %p314, %p315
    %p317 = scmp.ne.s32.totalorder %s309, %s311
    %p318 = scmp.eq.s32.totalorder %s28, 1
    %p319 = por %p317, %p318
    %p320 = scmp.ne.s32.totalorder %s311, %s312
    %p321 = scmp.eq.s32.totalorder %s28, 0
    %p322 = por %p320, %p321
    %p323 = scmp.ne.s32.totalorder %s311, %s312
    %p324 = scmp.eq.s32.totalorder %s29, 1
    %p325 = por %p323, %p324
    %p327 = scmp.ne.s32.totalorder %s312, %s326
    %p328 = scmp.eq.s32.totalorder %s29, 0
    %p329 = por %p327, %p328
    %s331 = sadd.s32 %s330, 1
    %p334 = scmp.eq.s32.totalorder %s23, 1
    %p335 = scmp.ne.s32.totalorder %s330, %s332
    %p336 = scmp.eq.s32.totalorder %s23, 0
    %p337 = por %p335, %p336
    %p338 = scmp.ne.s32.totalorder %s330, %s332
    %p339 = scmp.eq.s32.totalorder %s28, 1
    %p340 = por %p338, %p339
    %p341 = scmp.ne.s32.totalorder %s332, %s333
    %p342 = scmp.eq.s32.totalorder %s28, 0
    %p343 = por %p341, %p342
    %p344 = scmp.ne.s32.totalorder %s332, %s333
    %p345 = scmp.eq.s32.totalorder %s29, 1
    %p346 = por %p344, %p345
    %p348 = scmp.ne.s32.totalorder %s333, %s347
    %p349 = scmp.eq.s32.totalorder %s29, 0
    %p350 = por %p348, %p349
    %s352 = sadd.s32 %s351, 1
    %p355 = scmp.eq.s32.totalorder %s23, 1
    %p356 = scmp.ne.s32.totalorder %s351, %s353
    %p357 = scmp.eq.s32.totalorder %s23, 0
    %p358 = por %p356, %p357
    %p359 = scmp.ne.s32.totalorder %s351, %s353
    %p360 = scmp.eq.s32.totalorder %s28, 1
    %p361 = por %p359, %p360
    %p362 = scmp.ne.s32.totalorder %s353, %s354
    %p363 = scmp.eq.s32.totalorder %s28, 0
    %p364 = por %p362, %p363
    %p365 = scmp.ne.s32.totalorder %s353, %s354
    %p366 = scmp.eq.s32.totalorder %s29, 1
    %p367 = por %p365, %p366
    %p369 = scmp.ne.s32.totalorder %s354, %s368
    %p370 = scmp.eq.s32.totalorder %s29, 0
    %p371 = por %p369, %p370
    %s373 = sadd.s32 %s372, 1
    %p376 = scmp.eq.s32.totalorder %s23, 1
    %p377 = scmp.ne.s32.totalorder %s372, %s374
    %p378 = scmp.eq.s32.totalorder %s23, 0
    %p379 = por %p377, %p378
    %p380 = scmp.ne.s32.totalorder %s372, %s374
    %p381 = scmp.eq.s32.totalorder %s28, 1
    %p382 = por %p380, %p381
    %p383 = scmp.ne.s32.totalorder %s374, %s375
    %p384 = scmp.eq.s32.totalorder %s28, 0
    %p385 = por %p383, %p384
    %p386 = scmp.ne.s32.totalorder %s374, %s375
    %p387 = scmp.eq.s32.totalorder %s29, 1
    %p388 = por %p386, %p387
    %p390 = scmp.ne.s32.totalorder %s375, %s389
    %p391 = scmp.eq.s32.totalorder %s29, 0
    %p392 = por %p390, %p391
    %s393 = ssub.s32 %s23, %s30
    %p394 = scmp.eq.s32.totalorder %s393, 0
    %s396 = sadd.s32 %s395, 1
    %s397 = scalar_select %p394, %s395, %s396
    %p400 = pneg %p394
    %p401 = scmp.eq.s32.totalorder %s23, 1
    %p402 = por %p400, %p401
    %p403 = scmp.ne.s32.totalorder %s395, %s398
    %p404 = scmp.eq.s32.totalorder %s23, 0
    %p405 = por %p403, %p404
    %p406 = scmp.ne.s32.totalorder %s395, %s398
    %p407 = scmp.eq.s32.totalorder %s28, 1
    %p408 = por %p406, %p407
    %p409 = scmp.ne.s32.totalorder %s398, %s399
    %p410 = scmp.eq.s32.totalorder %s28, 0
    %p411 = por %p409, %p410
    %p412 = scmp.ne.s32.totalorder %s398, %s399
    %p413 = scmp.eq.s32.totalorder %s29, 1
    %p414 = por %p412, %p413
    %p416 = scmp.ne.s32.totalorder %s399, %s415
    %p417 = scmp.eq.s32.totalorder %s29, 0
    %p418 = por %p416, %p417
    %p419 = scmp.le.s32.totalorder 1, %s23
    %p420 = scmp.lt.s32.totalorder %s23, 3
    %p421 = pnand %p419, %p420
    %p422 = pneg %p421
    // Predicated region
    $region9: #{vit_forward_pallas.11} parent=5 // pred_check
      _
    $region10: #{vit_forward_pallas.11} parent=5 // pred_check_branch
      %424 = sbr.rel (%p421) target = $region12
    $region11: #{vit_forward_pallas.11} parent=5 // pred_region
      %s425 = ssub.s32 %s23, 1
      // Predicated region
      $region13: #{vit_forward_pallas.11} parent=11 // pred_check
        %p426 = pneg %p70
      $region14: #{vit_forward_pallas.11} parent=11 // pred_check_branch
        %428 = sbr.rel (%p426) target = $region16
      $region15: #{vit_forward_pallas.11} parent=11 // pred_region
        _
      $region16: #{vit_forward_pallas.11} parent=11 // pred_fallthru
        _
      // Predicated region
      $region17: #{vit_forward_pallas.11} parent=11 // pred_check
        %p429 = pneg %p91
      $region18: #{vit_forward_pallas.11} parent=11 // pred_check_branch
        %431 = sbr.rel (%p429) target = $region20
      $region19: #{vit_forward_pallas.11} parent=11 // pred_region
        _
      $region20: #{vit_forward_pallas.11} parent=11 // pred_fallthru
        _
      // Predicated region
      $region21: #{vit_forward_pallas.11} parent=11 // pred_check
        %p432 = pneg %p112
      $region22: #{vit_forward_pallas.11} parent=11 // pred_check_branch
        %434 = sbr.rel (%p432) target = $region24
      $region23: #{vit_forward_pallas.11} parent=11 // pred_region
        _
      $region24: #{vit_forward_pallas.11} parent=11 // pred_fallthru
        _
      // Predicated region
      $region25: #{vit_forward_pallas.11} parent=11 // pred_check
        %p435 = pneg %p133
      $region26: #{vit_forward_pallas.11} parent=11 // pred_check_branch
        %437 = sbr.rel (%p435) target = $region28
      $region27: #{vit_forward_pallas.11} parent=11 // pred_region
        _
      $region28: #{vit_forward_pallas.11} parent=11 // pred_fallthru
        _
      // Predicated region
      $region29: #{vit_forward_pallas.11} parent=11 // pred_check
        %p438 = pneg %p154
      $region30: #{vit_forward_pallas.11} parent=11 // pred_check_branch
        %440 = sbr.rel (%p438) target = $region32
      $region31: #{vit_forward_pallas.11} parent=11 // pred_region
        _
      $region32: #{vit_forward_pallas.11} parent=11 // pred_fallthru
        _
      // Predicated region
      $region33: #{vit_forward_pallas.11} parent=11 // pred_check
        %p441 = pneg %p175
      $region34: #{vit_forward_pallas.11} parent=11 // pred_check_branch
        %443 = sbr.rel (%p441) target = $region36
      $region35: #{vit_forward_pallas.11} parent=11 // pred_region
        _
      $region36: #{vit_forward_pallas.11} parent=11 // pred_fallthru
        _
      // Predicated region
      $region37: #{vit_forward_pallas.11} parent=11 // pred_check
        %p444 = pneg %p196
      $region38: #{vit_forward_pallas.11} parent=11 // pred_check_branch
        %446 = sbr.rel (%p444) target = $region40
      $region39: #{vit_forward_pallas.11} parent=11 // pred_region
        _
      $region40: #{vit_forward_pallas.11} parent=11 // pred_fallthru
        _
      // Predicated region
      $region41: #{vit_forward_pallas.11} parent=11 // pred_check
        %p447 = pneg %p217
      $region42: #{vit_forward_pallas.11} parent=11 // pred_check_branch
        %449 = sbr.rel (%p447) target = $region44
      $region43: #{vit_forward_pallas.11} parent=11 // pred_region
        _
      $region44: #{vit_forward_pallas.11} parent=11 // pred_fallthru
        _
      // Predicated region
      $region45: #{vit_forward_pallas.11} parent=11 // pred_check
        %p450 = pneg %p238
      $region46: #{vit_forward_pallas.11} parent=11 // pred_check_branch
        %452 = sbr.rel (%p450) target = $region48
      $region47: #{vit_forward_pallas.11} parent=11 // pred_region
        _
      $region48: #{vit_forward_pallas.11} parent=11 // pred_fallthru
        _
      // Predicated region
      $region49: #{vit_forward_pallas.11} parent=11 // pred_check
        %p453 = pneg %p259
      $region50: #{vit_forward_pallas.11} parent=11 // pred_check_branch
        %455 = sbr.rel (%p453) target = $region52
      $region51: #{vit_forward_pallas.11} parent=11 // pred_region
        _
      $region52: #{vit_forward_pallas.11} parent=11 // pred_fallthru
        _
      // Predicated region
      $region53: #{vit_forward_pallas.11} parent=11 // pred_check
        %p456 = pneg %p280
      $region54: #{vit_forward_pallas.11} parent=11 // pred_check_branch
        %458 = sbr.rel (%p456) target = $region56
      $region55: #{vit_forward_pallas.11} parent=11 // pred_region
        _
      $region56: #{vit_forward_pallas.11} parent=11 // pred_fallthru
        _
      // Predicated region
      $region57: #{vit_forward_pallas.11} parent=11 // pred_check
        %p459 = pneg %p301
      $region58: #{vit_forward_pallas.11} parent=11 // pred_check_branch
        %461 = sbr.rel (%p459) target = $region60
      $region59: #{vit_forward_pallas.11} parent=11 // pred_region
        _
      $region60: #{vit_forward_pallas.11} parent=11 // pred_fallthru
        _
      // Predicated region
      $region61: #{vit_forward_pallas.11} parent=11 // pred_check
        %p462 = pneg %p322
      $region62: #{vit_forward_pallas.11} parent=11 // pred_check_branch
        %464 = sbr.rel (%p462) target = $region64
      $region63: #{vit_forward_pallas.11} parent=11 // pred_region
        _
      $region64: #{vit_forward_pallas.11} parent=11 // pred_fallthru
        _
      // Predicated region
      $region65: #{vit_forward_pallas.11} parent=11 // pred_check
        %p465 = pneg %p343
      $region66: #{vit_forward_pallas.11} parent=11 // pred_check_branch
        %467 = sbr.rel (%p465) target = $region68
      $region67: #{vit_forward_pallas.11} parent=11 // pred_region
        _
      $region68: #{vit_forward_pallas.11} parent=11 // pred_fallthru
        _
      // Predicated region
      $region69: #{vit_forward_pallas.11} parent=11 // pred_check
        %p468 = pneg %p364
      $region70: #{vit_forward_pallas.11} parent=11 // pred_check_branch
        %470 = sbr.rel (%p468) target = $region72
      $region71: #{vit_forward_pallas.11} parent=11 // pred_region
        _
      $region72: #{vit_forward_pallas.11} parent=11 // pred_fallthru
        _
      // Predicated region
      $region73: #{vit_forward_pallas.11} parent=11 // pred_check
        %p471 = pneg %p385
      $region74: #{vit_forward_pallas.11} parent=11 // pred_check_branch
        %473 = sbr.rel (%p471) target = $region76
      $region75: #{vit_forward_pallas.11} parent=11 // pred_region
        _
      $region76: #{vit_forward_pallas.11} parent=11 // pred_fallthru
        _
    $region12: #{vit_forward_pallas.11} parent=5 // pred_fallthru
      _
    %p474 = scmp.lt.s32.totalorder %s23, 2
    // Predicated region
    $region77: #{vit_forward_pallas.11} parent=5 // pred_check
      %p475 = pneg %p474
    $region78: #{vit_forward_pallas.11} parent=5 // pred_check_branch
      %477 = sbr.rel (%p475) target = $region80
    $region79: #{vit_forward_pallas.11} parent=5 // pred_region
      // Predicated region
      $region81: #{vit_forward_pallas.11} parent=79 // pred_check
        %p478 = pneg %p43
      $region82: #{vit_forward_pallas.11} parent=79 // pred_check_branch
        %480 = sbr.rel (%p478) target = $region84
      $region83: #{vit_forward_pallas.11} parent=79 // pred_region
        %p481 = scmp.lt.s32.totalorder %s23, 1
        %s482 = scalar_select %p481, %s23, 1
        %s483 = smul.addr %s482, 3
        %s484 = smul.addr %s483, 8
        %s485 = scalar_lea.vmem %s0, %s484
      $region84: #{vit_forward_pallas.11} parent=79 // pred_fallthru
        _
    $region80: #{vit_forward_pallas.11} parent=5 // pred_fallthru
      _
    %p486 = scmp.le.s32.totalorder 1, %s23
    %p487 = scmp.lt.s32.totalorder %s23, 3
    %p488 = pnand %p486, %p487
    %p489 = pneg %p488
    // Predicated region
    $region85: #{vit_forward_pallas.11} parent=5 // pred_check
      _
    $region86: #{vit_forward_pallas.11} parent=5 // pred_check_branch
      %491 = sbr.rel (%p488) target = $region88
    $region87: #{vit_forward_pallas.11} parent=5 // pred_region
      %s492 = ssub.s32 %s23, 1
      %p493 = scmp.lt.s32.totalorder %s28, 1
      %s494 = scalar_select %p493, %s28, 1
      %s495 = smul.addr %s494, 3
      %s496 = smul.addr %s495, 8
      %s497 = scalar_lea.vmem %s0, %s496
      %p498 = pneg %p49
      %p499 = pneg %p46
      %p500 = pneg %p70
      %p501 = pneg %p67
      %p502 = pneg %p91
      %p503 = pneg %p88
      %p504 = pneg %p112
      %p505 = pneg %p109
      %p506 = pneg %p133
      %p507 = pneg %p130
      %p508 = pneg %p154
      %p509 = pneg %p151
      %p510 = pneg %p175
      %p511 = pneg %p172
      %p512 = pneg %p196
      %p513 = pneg %p193
      %p514 = pneg %p217
      %p515 = pneg %p214
      %p516 = pneg %p238
      %p517 = pneg %p235
      %p518 = pneg %p259
      %p519 = pneg %p256
      %p520 = pneg %p280
      %p521 = pneg %p277
      %p522 = pneg %p301
      %p523 = pneg %p298
      %p524 = pneg %p322
      %p525 = pneg %p319
      %p526 = pneg %p343
      %p527 = pneg %p340
      %p528 = pneg %p364
      %p529 = pneg %p361
      %p530 = pneg %p385
      %p531 = pneg %p382
      %p532 = pneg %p411
      %p533 = pneg %p408
      %p534 = scmp.lt.s32.totalorder %s28, 1
      %s535 = scalar_select %p534, %s28, 1
      %s536 = smul.addr %s535, 3
      %s537 = smul.addr %s536, 8
      %s538 = scalar_lea.vmem %s17, %s537
      %p539 = scmp.lt.s32.totalorder %s28, 1
      %s540 = scalar_select %p539, %s28, 1
      %s541 = smul.addr %s540, 3
      %s542 = smul.addr %s541, 8
      %s543 = scalar_lea.vmem %s0, %s542
      %p544 = scmp.lt.s32.totalorder %s28, 1
      %s545 = scalar_select %p544, %s28, 1
      %s546 = smul.addr %s545, 3
      %s547 = smul.addr %s546, 8
      %s548 = scalar_lea.vmem %s17, %s547
      %v550 = vld [vmem:[%s543] sm:$0xff]
      %v551 = vld [vmem:[%s543 + $0x8] sm:$0xff]
      %v552 = vld [vmem:[%s543 + $0x10] sm:$0x1]
      %v553 = vld [vmem:[%s1] sm:$0x1]
      %v554 = vld [vmem:[%s2] sm:$0x1]
      %vm555 = vcmask 261120
      %v556 = vsel %vm555, %v550, 0.0
      %557 = vadd.xlane.f32.xlu0 %v556
      %v558 = vpop.xlane.xlu0 %557
      %v559 = vsel %vm555, %v551, 0.0
      %560 = vadd.xlane.f32.xlu0 %v559
      %v561 = vpop.xlane.xlu0 %560
      %vm562 = vcmask 253952
      %v563 = vsel %vm562, %v552, 0.0
      %564 = vadd.xlane.f32.xlu0 %v563
      %v565 = vpop.xlane.xlu0 %564
      %v566 = vrcp.pop 32.0
      %v567 = vmul.f32 %v558, %v566
      %v568 = vmul.f32 %v561, %v566
      %v569 = vmul.f32 %v565, %v566
      %v570 = vsub.f32 %v550, %v567
      %v571 = vsub.f32 %v551, %v568
      %v572 = vsub.f32 %v552, %v569
      %v573 = vmul.f32 %v570, %v570
      %v574 = vmul.f32 %v571, %v571
      %v575 = vmul.f32 %v572, %v572
      %v576 = vsel %vm555, %v573, 0.0
      %577 = vadd.xlane.f32.xlu0 %v576
      %v578 = vpop.xlane.xlu0 %577
      %v579 = vsel %vm555, %v574, 0.0
      %580 = vadd.xlane.f32.xlu0 %v579
      %v581 = vpop.xlane.xlu0 %580
      %v582 = vsel %vm562, %v575, 0.0
      %583 = vadd.xlane.f32.xlu0 %v582
      %v584 = vpop.xlane.xlu0 %583
      %v585 = vmul.f32 %v578, %v566
      %v586 = vmul.f32 %v581, %v566
      %v587 = vmul.f32 %v584, %v566
      %v588 = vadd.f32 %v585, 1e-05
      %v589 = vadd.f32 %v586, 1e-05
      %v590 = vadd.f32 %v587, 1e-05
      %v591 = vrsqrt.pop %v588
      %v592 = vrsqrt.pop %v589
      %v593 = vrsqrt.pop %v590
      %v594 = vmul.f32 %v570, %v591
      %v595 = vmul.f32 %v571, %v592
      %v596 = vmul.f32 %v572, %v593
      %v598 = vlaneseq
      %v599 = vshrl.u32 %v598, 7
      %v600 = vsub.s32 0, %v599
      %v601 = vrot.slane %v553, %v600
      %v603 = vmul.f32 %v594, %v601
      %v604 = vmul.f32 %v595, %v601
      %v605 = vmul.f32 %v596, %v601
      %v607 = vlaneseq
      %v608 = vshrl.u32 %v607, 7
      %v609 = vsub.s32 0, %v608
      %v610 = vrot.slane %v554, %v609
      %v612 = vadd.f32 %v603, %v610
      %v613 = vadd.f32 %v604, %v610
      %v614 = vadd.f32 %v605, %v610
      %v615 = vpack.c.bf16 %v613, %v612
      %v616 = vpack.c.bf16 %v614, %v614
      %v617 = vld [vmem:[%s3] sm:$0xf]
      %v618 = vld [vmem:[%s3 + $0x4] sm:$0xf]
      %v619 = vld [vmem:[%s3 + $0x8] sm:$0xf]
      %v620 = vld [vmem:[%s3 + $0xc] sm:$0xf]
      %v621 = vld [vmem:[%s4] sm:$0x1]
      %v623 = vlaneseq
      %v624 = vshrl.u32 %v623, 7
      %v625 = vsub.s32 0, %v624
      %v626 = vrot.slane %v621, %v625
      %v632 = vunpack.c.l.b16 %v617
      %v633 = vunpack.c.l.b16 %v618
      %v634 = vunpack.c.l.b16 %v619
      %v635 = vunpack.c.l.b16 %v620
      %v636 = vpack.c.b16 %v633, %v632
      %v637 = vpack.c.b16 %v635, %v634
      %v641 = vsel %vm555, %v615, 0
      %v644 = vsel %vm555, %v616, 0
      %646 = vmatprep.subr.bf16.mxu0 0
      %647 = vmatpush1.bf16.msra.mxu0 0
      %648 = vmatprep.subr.bf16.mxu0 0
      %649 = vmatpush1.bf16.msra.mxu0 0
      %650 = vmatprep.subr.bf16.mxu0 0
      %651 = vmatpush1.bf16.msra.mxu0 0
      %652 = vmatprep.subr.bf16.mxu0 0
      %653 = vmatpush1.bf16.msra.mxu0 0
      %654 = vmatprep.subr.bf16.mxu0 0
      %655 = vmatpush1.bf16.msra.mxu0 0
      %656 = vmatprep.subr.bf16.mxu0 0
      %657 = vmatpush1.bf16.msra.mxu0 0
      %658 = vmatprep.subr.bf16.mxu0 0
      %659 = vmatpush1.bf16.msra.mxu0 %v637
      %660 = vmatprep.subr.bf16.mxu0 0
      %661 = vmatpush1.bf16.msra.mxu0 %v636
      %662 = vmatprep.subr.bf16.mxu0 0
      %663 = vmatpush2.bf16.msra.mxu0 0
      %664 = vmatprep.subr.bf16.mxu0 0
      %665 = vmatpush2.bf16.msra.mxu0 0
      %666 = vmatprep.subr.bf16.mxu0 0
      %667 = vmatpush2.bf16.msra.mxu0 0
      %668 = vmatprep.subr.bf16.mxu0 0
      %669 = vmatpush2.bf16.msra.mxu0 0
      %670 = vmatprep.subr.bf16.mxu0 0
      %671 = vmatpush2.bf16.msra.mxu0 0
      %672 = vmatprep.subr.bf16.mxu0 0
      %673 = vmatpush2.bf16.msra.mxu0 0
      %674 = vmatprep.subr.bf16.mxu0 0
      %675 = vmatpush2.bf16.msra.mxu0 0
      %676 = vmatprep.subr.bf16.mxu0 0
      %677 = vmatpush2.bf16.msra.mxu0 0
      %678 = vmatprep.mubr.bf16.mxu0 0
      %679 = vmatmul.mubr.bf16.gmra.mxu0 %v641
      %v680 = vpop.f32.mrf.mxu0
      %v681 = vadd.f32 %v626, %v680
      %v682 = vpop.f32.mrf.mxu0
      %v683 = vpop.f32.mrf.mxu0
      %v684 = vadd.f32 %v626, %v683
      %v685 = vpop.f32.mrf.mxu0
      %686 = vmatprep.mubr.bf16.mxu0 0
      %687 = vmatmul.mubr.bf16.gmra.mxu0 %v644
      %v688 = vpop.f32.mrf.mxu0
      %v689 = vadd.f32 %v626, %v688
      %v690 = vpop.f32.mrf.mxu0
      %v691 = vpop.f32.mrf.mxu0
      %v692 = vpop.f32.mrf.mxu0
      %693 = vdwg.mxu0
      %v694 = vld [vmem:[%s5] sm:$0xf]
      %v695 = vld [vmem:[%s5 + $0x4] sm:$0xf]
      %v696 = vld [vmem:[%s5 + $0x8] sm:$0xf]
      %v697 = vld [vmem:[%s5 + $0xc] sm:$0xf]
      %v698 = vld [vmem:[%s6] sm:$0x1]
      %v700 = vlaneseq
      %v701 = vshrl.u32 %v700, 7
      %v702 = vsub.s32 0, %v701
      %v703 = vrot.slane %v698, %v702
      %v709 = vunpack.c.l.b16 %v694
      %v710 = vunpack.c.l.b16 %v695
      %v711 = vunpack.c.l.b16 %v696
      %v712 = vunpack.c.l.b16 %v697
      %v713 = vpack.c.b16 %v710, %v709
      %v714 = vpack.c.b16 %v712, %v711
      %717 = vmatprep.subr.bf16.mxu0 0
      %718 = vmatpush1.bf16.msra.mxu0 0
      %719 = vmatprep.subr.bf16.mxu0 0
      %720 = vmatpush1.bf16.msra.mxu0 0
      %721 = vmatprep.subr.bf16.mxu0 0
      %722 = vmatpush1.bf16.msra.mxu0 0
      %723 = vmatprep.subr.bf16.mxu0 0
      %724 = vmatpush1.bf16.msra.mxu0 0
      %725 = vmatprep.subr.bf16.mxu0 0
      %726 = vmatpush1.bf16.msra.mxu0 0
      %727 = vmatprep.subr.bf16.mxu0 0
      %728 = vmatpush1.bf16.msra.mxu0 0
      %729 = vmatprep.subr.bf16.mxu0 0
      %730 = vmatpush1.bf16.msra.mxu0 %v714
      %731 = vmatprep.subr.bf16.mxu0 0
      %732 = vmatpush1.bf16.msra.mxu0 %v713
      %733 = vmatprep.subr.bf16.mxu0 0
      %734 = vmatpush2.bf16.msra.mxu0 0
      %735 = vmatprep.subr.bf16.mxu0 0
      %736 = vmatpush2.bf16.msra.mxu0 0
      %737 = vmatprep.subr.bf16.mxu0 0
      %738 = vmatpush2.bf16.msra.mxu0 0
      %739 = vmatprep.subr.bf16.mxu0 0
      %740 = vmatpush2.bf16.msra.mxu0 0
      %741 = vmatprep.subr.bf16.mxu0 0
      %742 = vmatpush2.bf16.msra.mxu0 0
      %743 = vmatprep.subr.bf16.mxu0 0
      %744 = vmatpush2.bf16.msra.mxu0 0
      %745 = vmatprep.subr.bf16.mxu0 0
      %746 = vmatpush2.bf16.msra.mxu0 0
      %747 = vmatprep.subr.bf16.mxu0 0
      %748 = vmatpush2.bf16.msra.mxu0 0
      %749 = vmatprep.mubr.bf16.mxu0 0
      %750 = vmatmul.mubr.bf16.gmra.mxu0 %v641
      %v751 = vpop.f32.mrf.mxu0
      %v752 = vadd.f32 %v703, %v751
      %v753 = vpop.f32.mrf.mxu0
      %v754 = vpop.f32.mrf.mxu0
      %v755 = vadd.f32 %v703, %v754
      %v756 = vpop.f32.mrf.mxu0
      %757 = vmatprep.mubr.bf16.mxu0 0
      %758 = vmatmul.mubr.bf16.gmra.mxu0 %v644
      %v759 = vpop.f32.mrf.mxu0
      %v760 = vadd.f32 %v703, %v759
      %v761 = vpop.f32.mrf.mxu0
      %v762 = vpop.f32.mrf.mxu0
      %v763 = vpop.f32.mrf.mxu0
      %764 = vdwg.mxu0
      %v765 = vld [vmem:[%s7] sm:$0xf]
      %v766 = vld [vmem:[%s7 + $0x4] sm:$0xf]
      %v767 = vld [vmem:[%s7 + $0x8] sm:$0xf]
      %v768 = vld [vmem:[%s7 + $0xc] sm:$0xf]
      %v769 = vld [vmem:[%s8] sm:$0x1]
      %v771 = vlaneseq
      %v772 = vshrl.u32 %v771, 7
      %v773 = vsub.s32 0, %v772
      %v774 = vrot.slane %v769, %v773
      %v780 = vunpack.c.l.b16 %v765
      %v781 = vunpack.c.l.b16 %v766
      %v782 = vunpack.c.l.b16 %v767
      %v783 = vunpack.c.l.b16 %v768
      %v784 = vpack.c.b16 %v781, %v780
      %v785 = vpack.c.b16 %v783, %v782
      %788 = vmatprep.subr.bf16.mxu0 0
      %789 = vmatpush1.bf16.msra.mxu0 0
      %790 = vmatprep.subr.bf16.mxu0 0
      %791 = vmatpush1.bf16.msra.mxu0 0
      %792 = vmatprep.subr.bf16.mxu0 0
      %793 = vmatpush1.bf16.msra.mxu0 0
      %794 = vmatprep.subr.bf16.mxu0 0
      %795 = vmatpush1.bf16.msra.mxu0 0
      %796 = vmatprep.subr.bf16.mxu0 0
      %797 = vmatpush1.bf16.msra.mxu0 0
      %798 = vmatprep.subr.bf16.mxu0 0
      %799 = vmatpush1.bf16.msra.mxu0 0
      %800 = vmatprep.subr.bf16.mxu0 0
      %801 = vmatpush1.bf16.msra.mxu0 %v785
      %802 = vmatprep.subr.bf16.mxu0 0
      %803 = vmatpush1.bf16.msra.mxu0 %v784
      %804 = vmatprep.subr.bf16.mxu0 0
      %805 = vmatpush2.bf16.msra.mxu0 0
      %806 = vmatprep.subr.bf16.mxu0 0
      %807 = vmatpush2.bf16.msra.mxu0 0
      %808 = vmatprep.subr.bf16.mxu0 0
      %809 = vmatpush2.bf16.msra.mxu0 0
      %810 = vmatprep.subr.bf16.mxu0 0
      %811 = vmatpush2.bf16.msra.mxu0 0
      %812 = vmatprep.subr.bf16.mxu0 0
      %813 = vmatpush2.bf16.msra.mxu0 0
      %814 = vmatprep.subr.bf16.mxu0 0
      %815 = vmatpush2.bf16.msra.mxu0 0
      %816 = vmatprep.subr.bf16.mxu0 0
      %817 = vmatpush2.bf16.msra.mxu0 0
      %818 = vmatprep.subr.bf16.mxu0 0
      %819 = vmatpush2.bf16.msra.mxu0 0
      %820 = vmatprep.mubr.bf16.mxu0 0
      %821 = vmatmul.mubr.bf16.gmra.mxu0 %v641
      %v822 = vpop.f32.mrf.mxu0
      %v823 = vadd.f32 %v774, %v822
      %v824 = vpop.f32.mrf.mxu0
      %v825 = vpop.f32.mrf.mxu0
      %v826 = vadd.f32 %v774, %v825
      %v827 = vpop.f32.mrf.mxu0
      %828 = vmatprep.mubr.bf16.mxu0 0
      %829 = vmatmul.mubr.bf16.gmra.mxu0 %v644
      %v830 = vpop.f32.mrf.mxu0
      %v831 = vadd.f32 %v774, %v830
      %v832 = vpop.f32.mrf.mxu0
      %v833 = vpop.f32.mrf.mxu0
      %v834 = vpop.f32.mrf.mxu0
      %835 = vdwg.mxu0
      %v836 = vld [vmem:[%s9] sm:$0xf]
      %v837 = vld [vmem:[%s9 + $0x4] sm:$0xf]
      %v838 = vld [vmem:[%s9 + $0x8] sm:$0xf]
      %v839 = vld [vmem:[%s9 + $0xc] sm:$0xf]
      %v840 = vld [vmem:[%s10] sm:$0x1]
      %v842 = vlaneseq
      %v843 = vshrl.u32 %v842, 7
      %v844 = vsub.s32 0, %v843
      %v845 = vrot.slane %v840, %v844
      %v847 = vadd.f32 %v845, 0.0
      %v848 = vpack.c.bf16 %v684, %v681
      %v849 = vpack.c.bf16 %v689, %v689
      %v850 = vpack.c.bf16 %v755, %v752
      %v851 = vpack.c.bf16 %v760, %v760
      %v852 = vpack.c.bf16 %v826, %v823
      %v853 = vpack.c.bf16 %v831, %v831
      %vm854 = vcmask 64512
      %v856 = vsel %vm854, %v848, 0
      %v859 = vsel %vm854, %v849, 0
      %v862 = vsel %vm854, %v850, 0
      %v865 = vsel %vm854, %v851, 0
      %867 = vmatprep.subr.bf16.mxu0 0
      %868 = vmatpush1.bf16.xpose.msra.mxu0 0
      %869 = vmatprep.subr.bf16.mxu0 0
      %870 = vmatpush1.bf16.xpose.msra.mxu0 0
      %871 = vmatprep.subr.bf16.mxu0 0
      %872 = vmatpush1.bf16.xpose.msra.mxu0 0
      %873 = vmatprep.subr.bf16.mxu0 0
      %874 = vmatpush1.bf16.xpose.msra.mxu0 0
      %875 = vmatprep.subr.bf16.mxu0 0
      %876 = vmatpush1.bf16.xpose.msra.mxu0 0
      %877 = vmatprep.subr.bf16.mxu0 0
      %878 = vmatpush1.bf16.xpose.msra.mxu0 0
      %879 = vmatprep.subr.bf16.mxu0 0
      %880 = vmatpush1.bf16.xpose.msra.mxu0 %v865
      %881 = vmatprep.subr.bf16.mxu0 0
      %882 = vmatpush1.bf16.xpose.msra.mxu0 %v862
      %883 = vmatprep.subr.bf16.mxu0 0
      %884 = vmatpush2.bf16.xpose.msra.mxu0 0
      %885 = vmatprep.subr.bf16.mxu0 0
      %886 = vmatpush2.bf16.xpose.msra.mxu0 0
      %887 = vmatprep.subr.bf16.mxu0 0
      %888 = vmatpush2.bf16.xpose.msra.mxu0 0
      %889 = vmatprep.subr.bf16.mxu0 0
      %890 = vmatpush2.bf16.xpose.msra.mxu0 0
      %891 = vmatprep.subr.bf16.mxu0 0
      %892 = vmatpush2.bf16.xpose.msra.mxu0 0
      %893 = vmatprep.subr.bf16.mxu0 0
      %894 = vmatpush2.bf16.xpose.msra.mxu0 0
      %895 = vmatprep.subr.bf16.mxu0 0
      %896 = vmatpush2.bf16.xpose.msra.mxu0 0
      %897 = vmatprep.subr.bf16.mxu0 0
      %898 = vmatpush2.bf16.xpose.msra.mxu0 0
      %899 = vmatprep.mubr.bf16.mxu0 0
      %900 = vmatmul.mubr.bf16.gmra.mxu0 %v856
      %v901 = vpop.f32.mrf.mxu0
      %v902 = vadd.f32 0.0, %v901
      %v903 = vpop.f32.mrf.mxu0
      %v904 = vpop.f32.mrf.mxu0
      %v905 = vadd.f32 0.0, %v904
      %v906 = vpop.f32.mrf.mxu0
      %907 = vmatprep.mubr.bf16.mxu0 0
      %908 = vmatmul.mubr.bf16.gmra.mxu0 %v859
      %v909 = vpop.f32.mrf.mxu0
      %v910 = vadd.f32 0.0, %v909
      %v911 = vpop.f32.mrf.mxu0
      %v912 = vpop.f32.mrf.mxu0
      %v913 = vpop.f32.mrf.mxu0
      %914 = vdwg.mxu0
      %v915 = vmul.f32 %v902, 0.35355338
      %v916 = vmul.f32 %v905, 0.35355338
      %v917 = vmul.f32 %v910, 0.35355338
      %vm918 = vcmask 138240
      %v919 = vsel %vm918, %v915, -inf
      %920 = vmax.xlane.f32.xlu0 %v919
      %v921 = vpop.xlane.xlu0 %920
      %v922 = vsel %vm918, %v916, -inf
      %923 = vmax.xlane.f32.xlu0 %v922
      %v924 = vpop.xlane.xlu0 %923
      %vm925 = vcmask 131072
      %v926 = vsel %vm925, %v917, -inf
      %927 = vmax.xlane.f32.xlu0 %v926
      %v928 = vpop.xlane.xlu0 %927
      %v929 = vsub.f32 %v915, %v921
      %v930 = vsub.f32 %v916, %v924
      %v931 = vsub.f32 %v917, %v928
      %v932 = vmul.f32 %v929, 1.442695
      %v933 = vpow.pop %v932
      %v934 = vmul.f32 %v930, 1.442695
      %v935 = vpow.pop %v934
      %v936 = vmul.f32 %v931, 1.442695
      %v937 = vpow.pop %v936
      %v938 = vsel %vm918, %v933, 0.0
      %939 = vadd.xlane.f32.xlu0 %v938
      %v940 = vpop.xlane.xlu0 %939
      %v941 = vsel %vm918, %v935, 0.0
      %942 = vadd.xlane.f32.xlu0 %v941
      %v943 = vpop.xlane.xlu0 %942
      %v944 = vsel %vm925, %v937, 0.0
      %945 = vadd.xlane.f32.xlu0 %v944
      %v946 = vpop.xlane.xlu0 %945
      %v947 = vrcp.pop %v940
      %v948 = vmul.f32 %v933, %v947
      %v949 = vrcp.pop %v943
      %v950 = vmul.f32 %v935, %v949
      %v951 = vrcp.pop %v946
      %v952 = vmul.f32 %v937, %v951
      %v953 = vpack.c.bf16 %v950, %v948
      %v954 = vpack.c.bf16 %v952, %v952
      %v956 = vsel %vm918, %v953, 0
      %v959 = vsel %vm918, %v954, 0
      %vm961 = vcmask 1040384
      %v962 = vsel 0, 4294967295, 65535
      %v963 = vsel %vm961, %v962, 0
      %v965 = vand.u32 %v853, %v963
      %967 = vmatprep.subr.bf16.mxu0 0
      %968 = vmatpush1.bf16.msra.mxu0 0
      %969 = vmatprep.subr.bf16.mxu0 0
      %970 = vmatpush1.bf16.msra.mxu0 0
      %971 = vmatprep.subr.bf16.mxu0 0
      %972 = vmatpush1.bf16.msra.mxu0 0
      %973 = vmatprep.subr.bf16.mxu0 0
      %974 = vmatpush1.bf16.msra.mxu0 0
      %975 = vmatprep.subr.bf16.mxu0 0
      %976 = vmatpush1.bf16.msra.mxu0 0
      %977 = vmatprep.subr.bf16.mxu0 0
      %978 = vmatpush1.bf16.msra.mxu0 0
      %979 = vmatprep.subr.bf16.mxu0 0
      %980 = vmatpush1.bf16.msra.mxu0 %v965
      %981 = vmatprep.subr.bf16.mxu0 0
      %982 = vmatpush1.bf16.msra.mxu0 %v852
      %983 = vmatprep.subr.bf16.mxu0 0
      %984 = vmatpush2.bf16.msra.mxu0 0
      %985 = vmatprep.subr.bf16.mxu0 0
      %986 = vmatpush2.bf16.msra.mxu0 0
      %987 = vmatprep.subr.bf16.mxu0 0
      %988 = vmatpush2.bf16.msra.mxu0 0
      %989 = vmatprep.subr.bf16.mxu0 0
      %990 = vmatpush2.bf16.msra.mxu0 0
      %991 = vmatprep.subr.bf16.mxu0 0
      %992 = vmatpush2.bf16.msra.mxu0 0
      %993 = vmatprep.subr.bf16.mxu0 0
      %994 = vmatpush2.bf16.msra.mxu0 0
      %995 = vmatprep.subr.bf16.mxu0 0
      %996 = vmatpush2.bf16.msra.mxu0 0
      %997 = vmatprep.subr.bf16.mxu0 0
      %998 = vmatpush2.bf16.msra.mxu0 0
      %999 = vmatprep.mubr.bf16.mxu0 0
      %1000 = vmatmul.mubr.bf16.gmra.mxu0 %v956
      %v1001 = vpop.f32.mrf.mxu0
      %v1002 = vadd.f32 0.0, %v1001
      %v1003 = vpop.f32.mrf.mxu0
      %v1004 = vpop.f32.mrf.mxu0
      %v1005 = vadd.f32 0.0, %v1004
      %v1006 = vpop.f32.mrf.mxu0
      %1007 = vmatprep.mubr.bf16.mxu0 0
      %1008 = vmatmul.mubr.bf16.gmra.mxu0 %v959
      %v1009 = vpop.f32.mrf.mxu0
      %v1010 = vadd.f32 0.0, %v1009
      %v1011 = vpop.f32.mrf.mxu0
      %v1012 = vpop.f32.mrf.mxu0
      %v1013 = vpop.f32.mrf.mxu0
      %1014 = vdwg.mxu0
      %v1015 = vpack.c.bf16 %v1005, %v1002
      %v1016 = vpack.c.bf16 %v1010, %v1010
      %v1018 = vsel %vm854, %v1015, 0
      %v1021 = vsel %vm854, %v1016, 0
      %vm1023 = vcmask 1043456
      %v1025 = vsel %vm1023, %v836, 0
      %1027 = vmatprep.subr.bf16.mxu0 0
      %1028 = vmatpush1.bf16.msra.mxu0 0
      %1029 = vmatprep.subr.bf16.mxu0 0
      %1030 = vmatpush1.bf16.msra.mxu0 0
      %1031 = vmatprep.subr.bf16.mxu0 0
      %1032 = vmatpush1.bf16.msra.mxu0 0
      %1033 = vmatprep.subr.bf16.mxu0 0
      %1034 = vmatpush1.bf16.msra.mxu0 0
      %1035 = vmatprep.subr.bf16.mxu0 0
      %1036 = vmatpush1.bf16.msra.mxu0 0
      %1037 = vmatprep.subr.bf16.mxu0 0
      %1038 = vmatpush1.bf16.msra.mxu0 0
      %1039 = vmatprep.subr.bf16.mxu0 0
      %1040 = vmatpush1.bf16.msra.mxu0 0
      %1041 = vmatprep.subr.bf16.mxu0 0
      %1042 = vmatpush1.bf16.msra.mxu0 %v1025
      %1043 = vmatprep.subr.bf16.mxu0 0
      %1044 = vmatpush2.bf16.msra.mxu0 0
      %1045 = vmatprep.subr.bf16.mxu0 0
      %1046 = vmatpush2.bf16.msra.mxu0 0
      %1047 = vmatprep.subr.bf16.mxu0 0
      %1048 = vmatpush2.bf16.msra.mxu0 0
      %1049 = vmatprep.subr.bf16.mxu0 0
      %1050 = vmatpush2.bf16.msra.mxu0 0
      %1051 = vmatprep.subr.bf16.mxu0 0
      %1052 = vmatpush2.bf16.msra.mxu0 0
      %1053 = vmatprep.subr.bf16.mxu0 0
      %1054 = vmatpush2.bf16.msra.mxu0 0
      %1055 = vmatprep.subr.bf16.mxu0 0
      %1056 = vmatpush2.bf16.msra.mxu0 0
      %1057 = vmatprep.subr.bf16.mxu0 0
      %1058 = vmatpush2.bf16.msra.mxu0 0
      %1059 = vmatprep.mubr.bf16.mxu0 0
      %1060 = vmatmul.mubr.bf16.gmra.mxu0 %v1018
      %v1061 = vpop.f32.mrf.mxu0
      %v1062 = vadd.f32 0.0, %v1061
      %v1063 = vpop.f32.mrf.mxu0
      %v1064 = vpop.f32.mrf.mxu0
      %v1065 = vadd.f32 0.0, %v1064
      %v1066 = vpop.f32.mrf.mxu0
      %1067 = vmatprep.mubr.bf16.mxu0 0
      %1068 = vmatmul.mubr.bf16.gmra.mxu0 %v1021
      %v1069 = vpop.f32.mrf.mxu0
      %v1070 = vadd.f32 0.0, %v1069
      %v1071 = vpop.f32.mrf.mxu0
      %v1072 = vpop.f32.mrf.mxu0
      %v1073 = vpop.f32.mrf.mxu0
      %1074 = vdwg.mxu0
      %v1075 = vadd.f32 %v847, %v1062
      %v1076 = vadd.f32 %v847, %v1065
      %v1077 = vadd.f32 %v847, %v1070
      %1080 = vrot.lane.b32.xlu0 %v848, 120
      %v1081 = vpop.permute.xlu0 %1080
      %1082 = vrot.lane.b32.xlu0 %v849, 120
      %v1083 = vpop.permute.xlu0 %1082
      %1086 = vrot.lane.b32.xlu0 %v850, 120
      %v1087 = vpop.permute.xlu0 %1086
      %1088 = vrot.lane.b32.xlu0 %v851, 120
      %v1089 = vpop.permute.xlu0 %1088
      %v1091 = vsel %vm854, %v1081, 0
      %v1094 = vsel %vm854, %v1083, 0
      %v1097 = vsel %vm854, %v1087, 0
      %v1100 = vsel %vm854, %v1089, 0
      %1102 = vmatprep.subr.bf16.mxu0 0
      %1103 = vmatpush1.bf16.xpose.msra.mxu0 0
      %1104 = vmatprep.subr.bf16.mxu0 0
      %1105 = vmatpush1.bf16.xpose.msra.mxu0 0
      %1106 = vmatprep.subr.bf16.mxu0 0
      %1107 = vmatpush1.bf16.xpose.msra.mxu0 0
      %1108 = vmatprep.subr.bf16.mxu0 0
      %1109 = vmatpush1.bf16.xpose.msra.mxu0 0
      %1110 = vmatprep.subr.bf16.mxu0 0
      %1111 = vmatpush1.bf16.xpose.msra.mxu0 0
      %1112 = vmatprep.subr.bf16.mxu0 0
      %1113 = vmatpush1.bf16.xpose.msra.mxu0 0
      %1114 = vmatprep.subr.bf16.mxu0 0
      %1115 = vmatpush1.bf16.xpose.msra.mxu0 %v1100
      %1116 = vmatprep.subr.bf16.mxu0 0
      %1117 = vmatpush1.bf16.xpose.msra.mxu0 %v1097
      %1118 = vmatprep.subr.bf16.mxu0 0
      %1119 = vmatpush2.bf16.xpose.msra.mxu0 0
      %1120 = vmatprep.subr.bf16.mxu0 0
      %1121 = vmatpush2.bf16.xpose.msra.mxu0 0
      %1122 = vmatprep.subr.bf16.mxu0 0
      %1123 = vmatpush2.bf16.xpose.msra.mxu0 0
      %1124 = vmatprep.subr.bf16.mxu0 0
      %1125 = vmatpush2.bf16.xpose.msra.mxu0 0
      %1126 = vmatprep.subr.bf16.mxu0 0
      %1127 = vmatpush2.bf16.xpose.msra.mxu0 0
      %1128 = vmatprep.subr.bf16.mxu0 0
      %1129 = vmatpush2.bf16.xpose.msra.mxu0 0
      %1130 = vmatprep.subr.bf16.mxu0 0
      %1131 = vmatpush2.bf16.xpose.msra.mxu0 0
      %1132 = vmatprep.subr.bf16.mxu0 0
      %1133 = vmatpush2.bf16.xpose.msra.mxu0 0
      %1134 = vmatprep.mubr.bf16.mxu0 0
      %1135 = vmatmul.mubr.bf16.gmra.mxu0 %v1091
      %v1136 = vpop.f32.mrf.mxu0
      %v1137 = vadd.f32 0.0, %v1136
      %v1138 = vpop.f32.mrf.mxu0
      %v1139 = vpop.f32.mrf.mxu0
      %v1140 = vadd.f32 0.0, %v1139
      %v1141 = vpop.f32.mrf.mxu0
      %1142 = vmatprep.mubr.bf16.mxu0 0
      %1143 = vmatmul.mubr.bf16.gmra.mxu0 %v1094
      %v1144 = vpop.f32.mrf.mxu0
      %v1145 = vadd.f32 0.0, %v1144
      %v1146 = vpop.f32.mrf.mxu0
      %v1147 = vpop.f32.mrf.mxu0
      %v1148 = vpop.f32.mrf.mxu0
      %1149 = vdwg.mxu0
      %v1150 = vmul.f32 %v1137, 0.35355338
      %v1151 = vmul.f32 %v1140, 0.35355338
      %v1152 = vmul.f32 %v1145, 0.35355338
      %v1153 = vsel %vm918, %v1150, -inf
      %1154 = vmax.xlane.f32.xlu0 %v1153
      %v1155 = vpop.xlane.xlu0 %1154
      %v1156 = vsel %vm918, %v1151, -inf
      %1157 = vmax.xlane.f32.xlu0 %v1156
      %v1158 = vpop.xlane.xlu0 %1157
      %v1159 = vsel %vm925, %v1152, -inf
      %1160 = vmax.xlane.f32.xlu0 %v1159
      %v1161 = vpop.xlane.xlu0 %1160
      %v1162 = vsub.f32 %v1150, %v1155
      %v1163 = vsub.f32 %v1151, %v1158
      %v1164 = vsub.f32 %v1152, %v1161
      %v1165 = vmul.f32 %v1162, 1.442695
      %v1166 = vpow.pop %v1165
      %v1167 = vmul.f32 %v1163, 1.442695
      %v1168 = vpow.pop %v1167
      %v1169 = vmul.f32 %v1164, 1.442695
      %v1170 = vpow.pop %v1169
      %v1171 = vsel %vm918, %v1166, 0.0
      %1172 = vadd.xlane.f32.xlu0 %v1171
      %v1173 = vpop.xlane.xlu0 %1172
      %v1174 = vsel %vm918, %v1168, 0.0
      %1175 = vadd.xlane.f32.xlu0 %v1174
      %v1176 = vpop.xlane.xlu0 %1175
      %v1177 = vsel %vm925, %v1170, 0.0
      %1178 = vadd.xlane.f32.xlu0 %v1177
      %v1179 = vpop.xlane.xlu0 %1178
      %v1180 = vrcp.pop %v1173
      %v1181 = vmul.f32 %v1166, %v1180
      %v1182 = vrcp.pop %v1176
      %v1183 = vmul.f32 %v1168, %v1182
      %v1184 = vrcp.pop %v1179
      %v1185 = vmul.f32 %v1170, %v1184
      %v1186 = vpack.c.bf16 %v1183, %v1181
      %v1187 = vpack.c.bf16 %v1185, %v1185
      %1190 = vrot.lane.b32.xlu0 %v852, 120
      %v1191 = vpop.permute.xlu0 %1190
      %1192 = vrot.lane.b32.xlu0 %v853, 120
      %v1193 = vpop.permute.xlu0 %1192
      %v1196 = vsel %vm918, %v1186, 0
      %v1199 = vsel %vm918, %v1187, 0
      %v1202 = vand.u32 %v1193, %v963
      %1204 = vmatprep.subr.bf16.mxu0 0
      %1205 = vmatpush1.bf16.msra.mxu0 0
      %1206 = vmatprep.subr.bf16.mxu0 0
      %1207 = vmatpush1.bf16.msra.mxu0 0
      %1208 = vmatprep.subr.bf16.mxu0 0
      %1209 = vmatpush1.bf16.msra.mxu0 0
      %1210 = vmatprep.subr.bf16.mxu0 0
      %1211 = vmatpush1.bf16.msra.mxu0 0
      %1212 = vmatprep.subr.bf16.mxu0 0
      %1213 = vmatpush1.bf16.msra.mxu0 0
      %1214 = vmatprep.subr.bf16.mxu0 0
      %1215 = vmatpush1.bf16.msra.mxu0 0
      %1216 = vmatprep.subr.bf16.mxu0 0
      %1217 = vmatpush1.bf16.msra.mxu0 %v1202
      %1218 = vmatprep.subr.bf16.mxu0 0
      %1219 = vmatpush1.bf16.msra.mxu0 %v1191
      %1220 = vmatprep.subr.bf16.mxu0 0
      %1221 = vmatpush2.bf16.msra.mxu0 0
      %1222 = vmatprep.subr.bf16.mxu0 0
      %1223 = vmatpush2.bf16.msra.mxu0 0
      %1224 = vmatprep.subr.bf16.mxu0 0
      %1225 = vmatpush2.bf16.msra.mxu0 0
      %1226 = vmatprep.subr.bf16.mxu0 0
      %1227 = vmatpush2.bf16.msra.mxu0 0
      %1228 = vmatprep.subr.bf16.mxu0 0
      %1229 = vmatpush2.bf16.msra.mxu0 0
      %1230 = vmatprep.subr.bf16.mxu0 0
      %1231 = vmatpush2.bf16.msra.mxu0 0
      %1232 = vmatprep.subr.bf16.mxu0 0
      %1233 = vmatpush2.bf16.msra.mxu0 0
      %1234 = vmatprep.subr.bf16.mxu0 0
      %1235 = vmatpush2.bf16.msra.mxu0 0
      %1236 = vmatprep.mubr.bf16.mxu0 0
      %1237 = vmatmul.mubr.bf16.gmra.mxu0 %v1196
      %v1238 = vpop.f32.mrf.mxu0
      %v1239 = vadd.f32 0.0, %v1238
      %v1240 = vpop.f32.mrf.mxu0
      %v1241 = vpop.f32.mrf.mxu0
      %v1242 = vadd.f32 0.0, %v1241
      %v1243 = vpop.f32.mrf.mxu0
      %1244 = vmatprep.mubr.bf16.mxu0 0
      %1245 = vmatmul.mubr.bf16.gmra.mxu0 %v1199
      %v1246 = vpop.f32.mrf.mxu0
      %v1247 = vadd.f32 0.0, %v1246
      %v1248 = vpop.f32.mrf.mxu0
      %v1249 = vpop.f32.mrf.mxu0
      %v1250 = vpop.f32.mrf.mxu0
      %1251 = vdwg.mxu0
      %v1252 = vpack.c.bf16 %v1242, %v1239
      %v1253 = vpack.c.bf16 %v1247, %v1247
      %v1255 = vsel %vm854, %v1252, 0
      %v1258 = vsel %vm854, %v1253, 0
      %v1261 = vsel %vm1023, %v837, 0
      %1263 = vmatprep.subr.bf16.mxu0 0
      %1264 = vmatpush1.bf16.msra.mxu0 0
      %1265 = vmatprep.subr.bf16.mxu0 0
      %1266 = vmatpush1.bf16.msra.mxu0 0
      %1267 = vmatprep.subr.bf16.mxu0 0
      %1268 = vmatpush1.bf16.msra.mxu0 0
      %1269 = vmatprep.subr.bf16.mxu0 0
      %1270 = vmatpush1.bf16.msra.mxu0 0
      %1271 = vmatprep.subr.bf16.mxu0 0
      %1272 = vmatpush1.bf16.msra.mxu0 0
      %1273 = vmatprep.subr.bf16.mxu0 0
      %1274 = vmatpush1.bf16.msra.mxu0 0
      %1275 = vmatprep.subr.bf16.mxu0 0
      %1276 = vmatpush1.bf16.msra.mxu0 0
      %1277 = vmatprep.subr.bf16.mxu0 0
      %1278 = vmatpush1.bf16.msra.mxu0 %v1261
      %1279 = vmatprep.subr.bf16.mxu0 0
      %1280 = vmatpush2.bf16.msra.mxu0 0
      %1281 = vmatprep.subr.bf16.mxu0 0
      %1282 = vmatpush2.bf16.msra.mxu0 0
      %1283 = vmatprep.subr.bf16.mxu0 0
      %1284 = vmatpush2.bf16.msra.mxu0 0
      %1285 = vmatprep.subr.bf16.mxu0 0
      %1286 = vmatpush2.bf16.msra.mxu0 0
      %1287 = vmatprep.subr.bf16.mxu0 0
      %1288 = vmatpush2.bf16.msra.mxu0 0
      %1289 = vmatprep.subr.bf16.mxu0 0
      %1290 = vmatpush2.bf16.msra.mxu0 0
      %1291 = vmatprep.subr.bf16.mxu0 0
      %1292 = vmatpush2.bf16.msra.mxu0 0
      %1293 = vmatprep.subr.bf16.mxu0 0
      %1294 = vmatpush2.bf16.msra.mxu0 0
      %1295 = vmatprep.mubr.bf16.mxu0 0
      %1296 = vmatmul.mubr.bf16.gmra.mxu0 %v1255
      %v1297 = vpop.f32.mrf.mxu0
      %v1298 = vadd.f32 0.0, %v1297
      %v1299 = vpop.f32.mrf.mxu0
      %v1300 = vpop.f32.mrf.mxu0
      %v1301 = vadd.f32 0.0, %v1300
      %v1302 = vpop.f32.mrf.mxu0
      %1303 = vmatprep.mubr.bf16.mxu0 0
      %1304 = vmatmul.mubr.bf16.gmra.mxu0 %v1258
      %v1305 = vpop.f32.mrf.mxu0
      %v1306 = vadd.f32 0.0, %v1305
      %v1307 = vpop.f32.mrf.mxu0
      %v1308 = vpop.f32.mrf.mxu0
      %v1309 = vpop.f32.mrf.mxu0
      %1310 = vdwg.mxu0
      %v1311 = vadd.f32 %v1075, %v1298
      %v1312 = vadd.f32 %v1076, %v1301
      %v1313 = vadd.f32 %v1077, %v1306
      %1314 = vrot.lane.b32.xlu0 %v848, 112
      %v1315 = vpop.permute.xlu0 %1314
      %1316 = vrot.lane.b32.xlu0 %v849, 112
      %v1317 = vpop.permute.xlu0 %1316
      %1318 = vrot.lane.b32.xlu0 %v850, 112
      %v1319 = vpop.permute.xlu0 %1318
      %1320 = vrot.lane.b32.xlu0 %v851, 112
      %v1321 = vpop.permute.xlu0 %1320
      %v1323 = vsel %vm854, %v1315, 0
      %v1326 = vsel %vm854, %v1317, 0
      %v1329 = vsel %vm854, %v1319, 0
      %v1332 = vsel %vm854, %v1321, 0
      %1334 = vmatprep.subr.bf16.mxu0 0
      %1335 = vmatpush1.bf16.xpose.msra.mxu0 0
      %1336 = vmatprep.subr.bf16.mxu0 0
      %1337 = vmatpush1.bf16.xpose.msra.mxu0 0
      %1338 = vmatprep.subr.bf16.mxu0 0
      %1339 = vmatpush1.bf16.xpose.msra.mxu0 0
      %1340 = vmatprep.subr.bf16.mxu0 0
      %1341 = vmatpush1.bf16.xpose.msra.mxu0 0
      %1342 = vmatprep.subr.bf16.mxu0 0
      %1343 = vmatpush1.bf16.xpose.msra.mxu0 0
      %1344 = vmatprep.subr.bf16.mxu0 0
      %1345 = vmatpush1.bf16.xpose.msra.mxu0 0
      %1346 = vmatprep.subr.bf16.mxu0 0
      %1347 = vmatpush1.bf16.xpose.msra.mxu0 %v1332
      %1348 = vmatprep.subr.bf16.mxu0 0
      %1349 = vmatpush1.bf16.xpose.msra.mxu0 %v1329
      %1350 = vmatprep.subr.bf16.mxu0 0
      %1351 = vmatpush2.bf16.xpose.msra.mxu0 0
      %1352 = vmatprep.subr.bf16.mxu0 0
      %1353 = vmatpush2.bf16.xpose.msra.mxu0 0
      %1354 = vmatprep.subr.bf16.mxu0 0
      %1355 = vmatpush2.bf16.xpose.msra.mxu0 0
      %1356 = vmatprep.subr.bf16.mxu0 0
      %1357 = vmatpush2.bf16.xpose.msra.mxu0 0
      %1358 = vmatprep.subr.bf16.mxu0 0
      %1359 = vmatpush2.bf16.xpose.msra.mxu0 0
      %1360 = vmatprep.subr.bf16.mxu0 0
      %1361 = vmatpush2.bf16.xpose.msra.mxu0 0
      %1362 = vmatprep.subr.bf16.mxu0 0
      %1363 = vmatpush2.bf16.xpose.msra.mxu0 0
      %1364 = vmatprep.subr.bf16.mxu0 0
      %1365 = vmatpush2.bf16.xpose.msra.mxu0 0
      %1366 = vmatprep.mubr.bf16.mxu0 0
      %1367 = vmatmul.mubr.bf16.gmra.mxu0 %v1323
      %v1368 = vpop.f32.mrf.mxu0
      %v1369 = vadd.f32 0.0, %v1368
      %v1370 = vpop.f32.mrf.mxu0
      %v1371 = vpop.f32.mrf.mxu0
      %v1372 = vadd.f32 0.0, %v1371
      %v1373 = vpop.f32.mrf.mxu0
      %1374 = vmatprep.mubr.bf16.mxu0 0
      %1375 = vmatmul.mubr.bf16.gmra.mxu0 %v1326
      %v1376 = vpop.f32.mrf.mxu0
      %v1377 = vadd.f32 0.0, %v1376
      %v1378 = vpop.f32.mrf.mxu0
      %v1379 = vpop.f32.mrf.mxu0
      %v1380 = vpop.f32.mrf.mxu0
      %1381 = vdwg.mxu0
      %v1382 = vmul.f32 %v1369, 0.35355338
      %v1383 = vmul.f32 %v1372, 0.35355338
      %v1384 = vmul.f32 %v1377, 0.35355338
      %v1385 = vsel %vm918, %v1382, -inf
      %1386 = vmax.xlane.f32.xlu0 %v1385
      %v1387 = vpop.xlane.xlu0 %1386
      %v1388 = vsel %vm918, %v1383, -inf
      %1389 = vmax.xlane.f32.xlu0 %v1388
      %v1390 = vpop.xlane.xlu0 %1389
      %v1391 = vsel %vm925, %v1384, -inf
      %1392 = vmax.xlane.f32.xlu0 %v1391
      %v1393 = vpop.xlane.xlu0 %1392
      %v1394 = vsub.f32 %v1382, %v1387
      %v1395 = vsub.f32 %v1383, %v1390
      %v1396 = vsub.f32 %v1384, %v1393
      %v1397 = vmul.f32 %v1394, 1.442695
      %v1398 = vpow.pop %v1397
      %v1399 = vmul.f32 %v1395, 1.442695
      %v1400 = vpow.pop %v1399
      %v1401 = vmul.f32 %v1396, 1.442695
      %v1402 = vpow.pop %v1401
      %v1403 = vsel %vm918, %v1398, 0.0
      %1404 = vadd.xlane.f32.xlu0 %v1403
      %v1405 = vpop.xlane.xlu0 %1404
      %v1406 = vsel %vm918, %v1400, 0.0
      %1407 = vadd.xlane.f32.xlu0 %v1406
      %v1408 = vpop.xlane.xlu0 %1407
      %v1409 = vsel %vm925, %v1402, 0.0
      %1410 = vadd.xlane.f32.xlu0 %v1409
      %v1411 = vpop.xlane.xlu0 %1410
      %v1412 = vrcp.pop %v1405
      %v1413 = vmul.f32 %v1398, %v1412
      %v1414 = vrcp.pop %v1408
      %v1415 = vmul.f32 %v1400, %v1414
      %v1416 = vrcp.pop %v1411
      %v1417 = vmul.f32 %v1402, %v1416
      %v1418 = vpack.c.bf16 %v1415, %v1413
      %v1419 = vpack.c.bf16 %v1417, %v1417
      %1420 = vrot.lane.b32.xlu0 %v852, 112
      %v1421 = vpop.permute.xlu0 %1420
      %1422 = vrot.lane.b32.xlu0 %v853, 112
      %v1423 = vpop.permute.xlu0 %1422
      %v1426 = vsel %vm918, %v1418, 0
      %v1429 = vsel %vm918, %v1419, 0
      %v1432 = vand.u32 %v1423, %v963
      %1434 = vmatprep.subr.bf16.mxu0 0
      %1435 = vmatpush1.bf16.msra.mxu0 0
      %1436 = vmatprep.subr.bf16.mxu0 0
      %1437 = vmatpush1.bf16.msra.mxu0 0
      %1438 = vmatprep.subr.bf16.mxu0 0
      %1439 = vmatpush1.bf16.msra.mxu0 0
      %1440 = vmatprep.subr.bf16.mxu0 0
      %1441 = vmatpush1.bf16.msra.mxu0 0
      %1442 = vmatprep.subr.bf16.mxu0 0
      %1443 = vmatpush1.bf16.msra.mxu0 0
      %1444 = vmatprep.subr.bf16.mxu0 0
      %1445 = vmatpush1.bf16.msra.mxu0 0
      %1446 = vmatprep.subr.bf16.mxu0 0
      %1447 = vmatpush1.bf16.msra.mxu0 %v1432
      %1448 = vmatprep.subr.bf16.mxu0 0
      %1449 = vmatpush1.bf16.msra.mxu0 %v1421
      %1450 = vmatprep.subr.bf16.mxu0 0
      %1451 = vmatpush2.bf16.msra.mxu0 0
      %1452 = vmatprep.subr.bf16.mxu0 0
      %1453 = vmatpush2.bf16.msra.mxu0 0
      %1454 = vmatprep.subr.bf16.mxu0 0
      %1455 = vmatpush2.bf16.msra.mxu0 0
      %1456 = vmatprep.subr.bf16.mxu0 0
      %1457 = vmatpush2.bf16.msra.mxu0 0
      %1458 = vmatprep.subr.bf16.mxu0 0
      %1459 = vmatpush2.bf16.msra.mxu0 0
      %1460 = vmatprep.subr.bf16.mxu0 0
      %1461 = vmatpush2.bf16.msra.mxu0 0
      %1462 = vmatprep.subr.bf16.mxu0 0
      %1463 = vmatpush2.bf16.msra.mxu0 0
      %1464 = vmatprep.subr.bf16.mxu0 0
      %1465 = vmatpush2.bf16.msra.mxu0 0
      %1466 = vmatprep.mubr.bf16.mxu0 0
      %1467 = vmatmul.mubr.bf16.gmra.mxu0 %v1426
      %v1468 = vpop.f32.mrf.mxu0
      %v1469 = vadd.f32 0.0, %v1468
      %v1470 = vpop.f32.mrf.mxu0
      %v1471 = vpop.f32.mrf.mxu0
      %v1472 = vadd.f32 0.0, %v1471
      %v1473 = vpop.f32.mrf.mxu0
      %1474 = vmatprep.mubr.bf16.mxu0 0
      %1475 = vmatmul.mubr.bf16.gmra.mxu0 %v1429
      %v1476 = vpop.f32.mrf.mxu0
      %v1477 = vadd.f32 0.0, %v1476
      %v1478 = vpop.f32.mrf.mxu0
      %v1479 = vpop.f32.mrf.mxu0
      %v1480 = vpop.f32.mrf.mxu0
      %1481 = vdwg.mxu0
      %v1482 = vpack.c.bf16 %v1472, %v1469
      %v1483 = vpack.c.bf16 %v1477, %v1477
      %v1485 = vsel %vm854, %v1482, 0
      %v1488 = vsel %vm854, %v1483, 0
      %v1491 = vsel %vm1023, %v838, 0
      %1493 = vmatprep.subr.bf16.mxu0 0
      %1494 = vmatpush1.bf16.msra.mxu0 0
      %1495 = vmatprep.subr.bf16.mxu0 0
      %1496 = vmatpush1.bf16.msra.mxu0 0
      %1497 = vmatprep.subr.bf16.mxu0 0
      %1498 = vmatpush1.bf16.msra.mxu0 0
      %1499 = vmatprep.subr.bf16.mxu0 0
      %1500 = vmatpush1.bf16.msra.mxu0 0
      %1501 = vmatprep.subr.bf16.mxu0 0
      %1502 = vmatpush1.bf16.msra.mxu0 0
      %1503 = vmatprep.subr.bf16.mxu0 0
      %1504 = vmatpush1.bf16.msra.mxu0 0
      %1505 = vmatprep.subr.bf16.mxu0 0
      %1506 = vmatpush1.bf16.msra.mxu0 0
      %1507 = vmatprep.subr.bf16.mxu0 0
      %1508 = vmatpush1.bf16.msra.mxu0 %v1491
      %1509 = vmatprep.subr.bf16.mxu0 0
      %1510 = vmatpush2.bf16.msra.mxu0 0
      %1511 = vmatprep.subr.bf16.mxu0 0
      %1512 = vmatpush2.bf16.msra.mxu0 0
      %1513 = vmatprep.subr.bf16.mxu0 0
      %1514 = vmatpush2.bf16.msra.mxu0 0
      %1515 = vmatprep.subr.bf16.mxu0 0
      %1516 = vmatpush2.bf16.msra.mxu0 0
      %1517 = vmatprep.subr.bf16.mxu0 0
      %1518 = vmatpush2.bf16.msra.mxu0 0
      %1519 = vmatprep.subr.bf16.mxu0 0
      %1520 = vmatpush2.bf16.msra.mxu0 0
      %1521 = vmatprep.subr.bf16.mxu0 0
      %1522 = vmatpush2.bf16.msra.mxu0 0
      %1523 = vmatprep.subr.bf16.mxu0 0
      %1524 = vmatpush2.bf16.msra.mxu0 0
      %1525 = vmatprep.mubr.bf16.mxu0 0
      %1526 = vmatmul.mubr.bf16.gmra.mxu0 %v1485
      %v1527 = vpop.f32.mrf.mxu0
      %v1528 = vadd.f32 0.0, %v1527
      %v1529 = vpop.f32.mrf.mxu0
      %v1530 = vpop.f32.mrf.mxu0
      %v1531 = vadd.f32 0.0, %v1530
      %v1532 = vpop.f32.mrf.mxu0
      %1533 = vmatprep.mubr.bf16.mxu0 0
      %1534 = vmatmul.mubr.bf16.gmra.mxu0 %v1488
      %v1535 = vpop.f32.mrf.mxu0
      %v1536 = vadd.f32 0.0, %v1535
      %v1537 = vpop.f32.mrf.mxu0
      %v1538 = vpop.f32.mrf.mxu0
      %v1539 = vpop.f32.mrf.mxu0
      %1540 = vdwg.mxu0
      %v1541 = vadd.f32 %v1311, %v1528
      %v1542 = vadd.f32 %v1312, %v1531
      %v1543 = vadd.f32 %v1313, %v1536
      %1544 = vrot.lane.b32.xlu0 %v848, 104
      %v1545 = vpop.permute.xlu0 %1544
      %1546 = vrot.lane.b32.xlu0 %v849, 104
      %v1547 = vpop.permute.xlu0 %1546
      %1548 = vrot.lane.b32.xlu0 %v850, 104
      %v1549 = vpop.permute.xlu0 %1548
      %1550 = vrot.lane.b32.xlu0 %v851, 104
      %v1551 = vpop.permute.xlu0 %1550
      %v1553 = vsel %vm854, %v1545, 0
      %v1556 = vsel %vm854, %v1547, 0
      %v1559 = vsel %vm854, %v1549, 0
      %v1562 = vsel %vm854, %v1551, 0
      %1564 = vmatprep.subr.bf16.mxu0 0
      %1565 = vmatpush1.bf16.xpose.msra.mxu0 0
      %1566 = vmatprep.subr.bf16.mxu0 0
      %1567 = vmatpush1.bf16.xpose.msra.mxu0 0
      %1568 = vmatprep.subr.bf16.mxu0 0
      %1569 = vmatpush1.bf16.xpose.msra.mxu0 0
      %1570 = vmatprep.subr.bf16.mxu0 0
      %1571 = vmatpush1.bf16.xpose.msra.mxu0 0
      %1572 = vmatprep.subr.bf16.mxu0 0
      %1573 = vmatpush1.bf16.xpose.msra.mxu0 0
      %1574 = vmatprep.subr.bf16.mxu0 0
      %1575 = vmatpush1.bf16.xpose.msra.mxu0 0
      %1576 = vmatprep.subr.bf16.mxu0 0
      %1577 = vmatpush1.bf16.xpose.msra.mxu0 %v1562
      %1578 = vmatprep.subr.bf16.mxu0 0
      %1579 = vmatpush1.bf16.xpose.msra.mxu0 %v1559
      %1580 = vmatprep.subr.bf16.mxu0 0
      %1581 = vmatpush2.bf16.xpose.msra.mxu0 0
      %1582 = vmatprep.subr.bf16.mxu0 0
      %1583 = vmatpush2.bf16.xpose.msra.mxu0 0
      %1584 = vmatprep.subr.bf16.mxu0 0
      %1585 = vmatpush2.bf16.xpose.msra.mxu0 0
      %1586 = vmatprep.subr.bf16.mxu0 0
      %1587 = vmatpush2.bf16.xpose.msra.mxu0 0
      %1588 = vmatprep.subr.bf16.mxu0 0
      %1589 = vmatpush2.bf16.xpose.msra.mxu0 0
      %1590 = vmatprep.subr.bf16.mxu0 0
      %1591 = vmatpush2.bf16.xpose.msra.mxu0 0
      %1592 = vmatprep.subr.bf16.mxu0 0
      %1593 = vmatpush2.bf16.xpose.msra.mxu0 0
      %1594 = vmatprep.subr.bf16.mxu0 0
      %1595 = vmatpush2.bf16.xpose.msra.mxu0 0
      %1596 = vmatprep.mubr.bf16.mxu0 0
      %1597 = vmatmul.mubr.bf16.gmra.mxu0 %v1553
      %v1598 = vpop.f32.mrf.mxu0
      %v1599 = vadd.f32 0.0, %v1598
      %v1600 = vpop.f32.mrf.mxu0
      %v1601 = vpop.f32.mrf.mxu0
      %v1602 = vadd.f32 0.0, %v1601
      %v1603 = vpop.f32.mrf.mxu0
      %1604 = vmatprep.mubr.bf16.mxu0 0
      %1605 = vmatmul.mubr.bf16.gmra.mxu0 %v1556
      %v1606 = vpop.f32.mrf.mxu0
      %v1607 = vadd.f32 0.0, %v1606
      %v1608 = vpop.f32.mrf.mxu0
      %v1609 = vpop.f32.mrf.mxu0
      %v1610 = vpop.f32.mrf.mxu0
      %1611 = vdwg.mxu0
      %v1612 = vmul.f32 %v1599, 0.35355338
      %v1613 = vmul.f32 %v1602, 0.35355338
      %v1614 = vmul.f32 %v1607, 0.35355338
      %v1615 = vsel %vm918, %v1612, -inf
      %1616 = vmax.xlane.f32.xlu0 %v1615
      %v1617 = vpop.xlane.xlu0 %1616
      %v1618 = vsel %vm918, %v1613, -inf
      %1619 = vmax.xlane.f32.xlu0 %v1618
      %v1620 = vpop.xlane.xlu0 %1619
      %v1621 = vsel %vm925, %v1614, -inf
      %1622 = vmax.xlane.f32.xlu0 %v1621
      %v1623 = vpop.xlane.xlu0 %1622
      %v1624 = vsub.f32 %v1612, %v1617
      %v1625 = vsub.f32 %v1613, %v1620
      %v1626 = vsub.f32 %v1614, %v1623
      %v1627 = vmul.f32 %v1624, 1.442695
      %v1628 = vpow.pop %v1627
      %v1629 = vmul.f32 %v1625, 1.442695
      %v1630 = vpow.pop %v1629
      %v1631 = vmul.f32 %v1626, 1.442695
      %v1632 = vpow.pop %v1631
      %v1633 = vsel %vm918, %v1628, 0.0
      %1634 = vadd.xlane.f32.xlu0 %v1633
      %v1635 = vpop.xlane.xlu0 %1634
      %v1636 = vsel %vm918, %v1630, 0.0
      %1637 = vadd.xlane.f32.xlu0 %v1636
      %v1638 = vpop.xlane.xlu0 %1637
      %v1639 = vsel %vm925, %v1632, 0.0
      %1640 = vadd.xlane.f32.xlu0 %v1639
      %v1641 = vpop.xlane.xlu0 %1640
      %v1642 = vrcp.pop %v1635
      %v1643 = vmul.f32 %v1628, %v1642
      %v1644 = vrcp.pop %v1638
      %v1645 = vmul.f32 %v1630, %v1644
      %v1646 = vrcp.pop %v1641
      %v1647 = vmul.f32 %v1632, %v1646
      %v1648 = vpack.c.bf16 %v1645, %v1643
      %v1649 = vpack.c.bf16 %v1647, %v1647
      %1650 = vrot.lane.b32.xlu0 %v852, 104
      %v1651 = vpop.permute.xlu0 %1650
      %1652 = vrot.lane.b32.xlu0 %v853, 104
      %v1653 = vpop.permute.xlu0 %1652
      %v1656 = vsel %vm918, %v1648, 0
      %v1659 = vsel %vm918, %v1649, 0
      %v1662 = vand.u32 %v1653, %v963
      %1664 = vmatprep.subr.bf16.mxu0 0
      %1665 = vmatpush1.bf16.msra.mxu0 0
      %1666 = vmatprep.subr.bf16.mxu0 0
      %1667 = vmatpush1.bf16.msra.mxu0 0
      %1668 = vmatprep.subr.bf16.mxu0 0
      %1669 = vmatpush1.bf16.msra.mxu0 0
      %1670 = vmatprep.subr.bf16.mxu0 0
      %1671 = vmatpush1.bf16.msra.mxu0 0
      %1672 = vmatprep.subr.bf16.mxu0 0
      %1673 = vmatpush1.bf16.msra.mxu0 0
      %1674 = vmatprep.subr.bf16.mxu0 0
      %1675 = vmatpush1.bf16.msra.mxu0 0
      %1676 = vmatprep.subr.bf16.mxu0 0
      %1677 = vmatpush1.bf16.msra.mxu0 %v1662
      %1678 = vmatprep.subr.bf16.mxu0 0
      %1679 = vmatpush1.bf16.msra.mxu0 %v1651
      %1680 = vmatprep.subr.bf16.mxu0 0
      %1681 = vmatpush2.bf16.msra.mxu0 0
      %1682 = vmatprep.subr.bf16.mxu0 0
      %1683 = vmatpush2.bf16.msra.mxu0 0
      %1684 = vmatprep.subr.bf16.mxu0 0
      %1685 = vmatpush2.bf16.msra.mxu0 0
      %1686 = vmatprep.subr.bf16.mxu0 0
      %1687 = vmatpush2.bf16.msra.mxu0 0
      %1688 = vmatprep.subr.bf16.mxu0 0
      %1689 = vmatpush2.bf16.msra.mxu0 0
      %1690 = vmatprep.subr.bf16.mxu0 0
      %1691 = vmatpush2.bf16.msra.mxu0 0
      %1692 = vmatprep.subr.bf16.mxu0 0
      %1693 = vmatpush2.bf16.msra.mxu0 0
      %1694 = vmatprep.subr.bf16.mxu0 0
      %1695 = vmatpush2.bf16.msra.mxu0 0
      %1696 = vmatprep.mubr.bf16.mxu0 0
      %1697 = vmatmul.mubr.bf16.gmra.mxu0 %v1656
      %v1698 = vpop.f32.mrf.mxu0
      %v1699 = vadd.f32 0.0, %v1698
      %v1700 = vpop.f32.mrf.mxu0
      %v1701 = vpop.f32.mrf.mxu0
      %v1702 = vadd.f32 0.0, %v1701
      %v1703 = vpop.f32.mrf.mxu0
      %1704 = vmatprep.mubr.bf16.mxu0 0
      %1705 = vmatmul.mubr.bf16.gmra.mxu0 %v1659
      %v1706 = vpop.f32.mrf.mxu0
      %v1707 = vadd.f32 0.0, %v1706
      %v1708 = vpop.f32.mrf.mxu0
      %v1709 = vpop.f32.mrf.mxu0
      %v1710 = vpop.f32.mrf.mxu0
      %1711 = vdwg.mxu0
      %v1712 = vpack.c.bf16 %v1702, %v1699
      %v1713 = vpack.c.bf16 %v1707, %v1707
      %v1715 = vsel %vm854, %v1712, 0
      %v1718 = vsel %vm854, %v1713, 0
      %v1721 = vsel %vm1023, %v839, 0
      %1723 = vmatprep.subr.bf16.mxu0 0
      %1724 = vmatpush1.bf16.msra.mxu0 0
      %1725 = vmatprep.subr.bf16.mxu0 0
      %1726 = vmatpush1.bf16.msra.mxu0 0
      %1727 = vmatprep.subr.bf16.mxu0 0
      %1728 = vmatpush1.bf16.msra.mxu0 0
      %1729 = vmatprep.subr.bf16.mxu0 0
      %1730 = vmatpush1.bf16.msra.mxu0 0
      %1731 = vmatprep.subr.bf16.mxu0 0
      %1732 = vmatpush1.bf16.msra.mxu0 0
      %1733 = vmatprep.subr.bf16.mxu0 0
      %1734 = vmatpush1.bf16.msra.mxu0 0
      %1735 = vmatprep.subr.bf16.mxu0 0
      %1736 = vmatpush1.bf16.msra.mxu0 0
      %1737 = vmatprep.subr.bf16.mxu0 0
      %1738 = vmatpush1.bf16.msra.mxu0 %v1721
      %1739 = vmatprep.subr.bf16.mxu0 0
      %1740 = vmatpush2.bf16.msra.mxu0 0
      %1741 = vmatprep.subr.bf16.mxu0 0
      %1742 = vmatpush2.bf16.msra.mxu0 0
      %1743 = vmatprep.subr.bf16.mxu0 0
      %1744 = vmatpush2.bf16.msra.mxu0 0
      %1745 = vmatprep.subr.bf16.mxu0 0
      %1746 = vmatpush2.bf16.msra.mxu0 0
      %1747 = vmatprep.subr.bf16.mxu0 0
      %1748 = vmatpush2.bf16.msra.mxu0 0
      %1749 = vmatprep.subr.bf16.mxu0 0
      %1750 = vmatpush2.bf16.msra.mxu0 0
      %1751 = vmatprep.subr.bf16.mxu0 0
      %1752 = vmatpush2.bf16.msra.mxu0 0
      %1753 = vmatprep.subr.bf16.mxu0 0
      %1754 = vmatpush2.bf16.msra.mxu0 0
      %1755 = vmatprep.mubr.bf16.mxu0 0
      %1756 = vmatmul.mubr.bf16.gmra.mxu0 %v1715
      %v1757 = vpop.f32.mrf.mxu0
      %v1758 = vadd.f32 0.0, %v1757
      %v1759 = vpop.f32.mrf.mxu0
      %v1760 = vpop.f32.mrf.mxu0
      %v1761 = vadd.f32 0.0, %v1760
      %v1762 = vpop.f32.mrf.mxu0
      %1763 = vmatprep.mubr.bf16.mxu0 0
      %1764 = vmatmul.mubr.bf16.gmra.mxu0 %v1718
      %v1765 = vpop.f32.mrf.mxu0
      %v1766 = vadd.f32 0.0, %v1765
      %v1767 = vpop.f32.mrf.mxu0
      %v1768 = vpop.f32.mrf.mxu0
      %v1769 = vpop.f32.mrf.mxu0
      %1770 = vdwg.mxu0
      %v1771 = vadd.f32 %v1541, %v1758
      %v1772 = vadd.f32 %v1542, %v1761
      %v1773 = vadd.f32 %v1543, %v1766
      %v1774 = vadd.f32 %v550, %v1771
      %v1775 = vadd.f32 %v551, %v1772
      %v1776 = vadd.f32 %v552, %v1773
      %v1777 = vld [vmem:[%s11] sm:$0x1]
      %v1778 = vld [vmem:[%s12] sm:$0x1]
      %v1779 = vsel %vm555, %v1774, 0.0
      %1780 = vadd.xlane.f32.xlu0 %v1779
      %v1781 = vpop.xlane.xlu0 %1780
      %v1782 = vsel %vm555, %v1775, 0.0
      %1783 = vadd.xlane.f32.xlu0 %v1782
      %v1784 = vpop.xlane.xlu0 %1783
      %v1785 = vsel %vm562, %v1776, 0.0
      %1786 = vadd.xlane.f32.xlu0 %v1785
      %v1787 = vpop.xlane.xlu0 %1786
      %v1788 = vmul.f32 %v1781, %v566
      %v1789 = vmul.f32 %v1784, %v566
      %v1790 = vmul.f32 %v1787, %v566
      %v1791 = vsub.f32 %v1774, %v1788
      %v1792 = vsub.f32 %v1775, %v1789
      %v1793 = vsub.f32 %v1776, %v1790
      %v1794 = vmul.f32 %v1791, %v1791
      %v1795 = vmul.f32 %v1792, %v1792
      %v1796 = vmul.f32 %v1793, %v1793
      %v1797 = vsel %vm555, %v1794, 0.0
      %1798 = vadd.xlane.f32.xlu0 %v1797
      %v1799 = vpop.xlane.xlu0 %1798
      %v1800 = vsel %vm555, %v1795, 0.0
      %1801 = vadd.xlane.f32.xlu0 %v1800
      %v1802 = vpop.xlane.xlu0 %1801
      %v1803 = vsel %vm562, %v1796, 0.0
      %1804 = vadd.xlane.f32.xlu0 %v1803
      %v1805 = vpop.xlane.xlu0 %1804
      %v1806 = vmul.f32 %v1799, %v566
      %v1807 = vmul.f32 %v1802, %v566
      %v1808 = vmul.f32 %v1805, %v566
      %v1809 = vadd.f32 %v1806, 1e-05
      %v1810 = vadd.f32 %v1807, 1e-05
      %v1811 = vadd.f32 %v1808, 1e-05
      %v1812 = vrsqrt.pop %v1809
      %v1813 = vrsqrt.pop %v1810
      %v1814 = vrsqrt.pop %v1811
      %v1815 = vmul.f32 %v1791, %v1812
      %v1816 = vmul.f32 %v1792, %v1813
      %v1817 = vmul.f32 %v1793, %v1814
      %v1819 = vlaneseq
      %v1820 = vshrl.u32 %v1819, 7
      %v1821 = vsub.s32 0, %v1820
      %v1822 = vrot.slane %v1777, %v1821
      %v1824 = vmul.f32 %v1815, %v1822
      %v1825 = vmul.f32 %v1816, %v1822
      %v1826 = vmul.f32 %v1817, %v1822
      %v1828 = vlaneseq
      %v1829 = vshrl.u32 %v1828, 7
      %v1830 = vsub.s32 0, %v1829
      %v1831 = vrot.slane %v1778, %v1830
      %v1833 = vadd.f32 %v1824, %v1831
      %v1834 = vadd.f32 %v1825, %v1831
      %v1835 = vadd.f32 %v1826, %v1831
      %v1836 = vpack.c.bf16 %v1834, %v1833
      %v1837 = vpack.c.bf16 %v1835, %v1835
      %v1838 = vld [vmem:[%s13] sm:$0xf]
      %v1839 = vld [vmem:[%s13 + $0x4] sm:$0xf]
      %v1840 = vld [vmem:[%s13 + $0x8] sm:$0xf]
      %v1841 = vld [vmem:[%s13 + $0xc] sm:$0xf]
      %v1842 = vld [vmem:[%s14] sm:$0x1]
      %v1844 = vlaneseq
      %v1845 = vshrl.u32 %v1844, 7
      %v1846 = vsub.s32 0, %v1845
      %v1847 = vrot.slane %v1842, %v1846
      %v1853 = vunpack.c.l.b16 %v1838
      %v1854 = vunpack.c.l.b16 %v1839
      %v1855 = vunpack.c.l.b16 %v1840
      %v1856 = vunpack.c.l.b16 %v1841
      %v1857 = vpack.c.b16 %v1854, %v1853
      %v1858 = vpack.c.b16 %v1856, %v1855
      %v1862 = vsel %vm555, %v1836, 0
      %v1865 = vsel %vm555, %v1837, 0
      %1867 = vmatprep.subr.bf16.mxu0 0
      %1868 = vmatpush1.bf16.msra.mxu0 0
      %1869 = vmatprep.subr.bf16.mxu0 0
      %1870 = vmatpush1.bf16.msra.mxu0 0
      %1871 = vmatprep.subr.bf16.mxu0 0
      %1872 = vmatpush1.bf16.msra.mxu0 0
      %1873 = vmatprep.subr.bf16.mxu0 0
      %1874 = vmatpush1.bf16.msra.mxu0 0
      %1875 = vmatprep.subr.bf16.mxu0 0
      %1876 = vmatpush1.bf16.msra.mxu0 0
      %1877 = vmatprep.subr.bf16.mxu0 0
      %1878 = vmatpush1.bf16.msra.mxu0 0
      %1879 = vmatprep.subr.bf16.mxu0 0
      %1880 = vmatpush1.bf16.msra.mxu0 %v1858
      %1881 = vmatprep.subr.bf16.mxu0 0
      %1882 = vmatpush1.bf16.msra.mxu0 %v1857
      %1883 = vmatprep.subr.bf16.mxu0 0
      %1884 = vmatpush2.bf16.msra.mxu0 0
      %1885 = vmatprep.subr.bf16.mxu0 0
      %1886 = vmatpush2.bf16.msra.mxu0 0
      %1887 = vmatprep.subr.bf16.mxu0 0
      %1888 = vmatpush2.bf16.msra.mxu0 0
      %1889 = vmatprep.subr.bf16.mxu0 0
      %1890 = vmatpush2.bf16.msra.mxu0 0
      %1891 = vmatprep.subr.bf16.mxu0 0
      %1892 = vmatpush2.bf16.msra.mxu0 0
      %1893 = vmatprep.subr.bf16.mxu0 0
      %1894 = vmatpush2.bf16.msra.mxu0 0
      %1895 = vmatprep.subr.bf16.mxu0 0
      %1896 = vmatpush2.bf16.msra.mxu0 0
      %1897 = vmatprep.subr.bf16.mxu0 0
      %1898 = vmatpush2.bf16.msra.mxu0 0
      %1899 = vmatprep.mubr.bf16.mxu0 0
      %1900 = vmatmul.mubr.bf16.gmra.mxu0 %v1862
      %v1901 = vpop.f32.mrf.mxu0
      %v1902 = vadd.f32 %v1847, %v1901
      %v1903 = vpop.f32.mrf.mxu0
      %v1904 = vpop.f32.mrf.mxu0
      %v1905 = vadd.f32 %v1847, %v1904
      %v1906 = vpop.f32.mrf.mxu0
      %1907 = vmatprep.mubr.bf16.mxu0 0
      %1908 = vmatmul.mubr.bf16.gmra.mxu0 %v1865
      %v1909 = vpop.f32.mrf.mxu0
      %v1910 = vadd.f32 %v1847, %v1909
      %v1911 = vpop.f32.mrf.mxu0
      %v1912 = vpop.f32.mrf.mxu0
      %v1913 = vpop.f32.mrf.mxu0
      %1914 = vdwg.mxu0
      %v1915 = vmul.f32 %v1902, 0.5
      %v1916 = vmul.f32 %v1905, 0.5
      %v1917 = vmul.f32 %v1910, 0.5
      %v1918 = vmul.f32 %v1902, 0.044715
      %v1919 = vmul.f32 %v1905, 0.044715
      %v1920 = vmul.f32 %v1910, 0.044715
      %v1921 = vmul.f32 %v1918, %v1902
      %v1922 = vmul.f32 %v1919, %v1905
      %v1923 = vmul.f32 %v1920, %v1910
      %v1924 = vmul.f32 %v1921, %v1902
      %v1925 = vmul.f32 %v1922, %v1905
      %v1926 = vmul.f32 %v1923, %v1910
      %v1927 = vadd.f32 %v1902, %v1924
      %v1928 = vadd.f32 %v1905, %v1925
      %v1929 = vadd.f32 %v1910, %v1926
      %v1930 = vmul.f32 %v1927, 0.7978846
      %v1931 = vmul.f32 %v1928, 0.7978846
      %v1932 = vmul.f32 %v1929, 0.7978846
      %v1933 = vtanh.pop %v1930
      %v1934 = vtanh.pop %v1931
      %v1935 = vtanh.pop %v1932
      %v1936 = vadd.f32 %v1933, 1.0
      %v1937 = vadd.f32 %v1934, 1.0
      %v1938 = vadd.f32 %v1935, 1.0
      %v1939 = vmul.f32 %v1915, %v1936
      %v1940 = vmul.f32 %v1916, %v1937
      %v1941 = vmul.f32 %v1917, %v1938
      %v1942 = vpack.c.bf16 %v1940, %v1939
      %v1943 = vpack.c.bf16 %v1941, %v1941
      %v1944 = vld [vmem:[%s15] sm:$0xf]
      %v1945 = vld [vmem:[%s15 + $0x4] sm:$0xf]
      %v1946 = vld [vmem:[%s15 + $0x8] sm:$0xf]
      %v1947 = vld [vmem:[%s15 + $0xc] sm:$0xf]
      %v1948 = vld [vmem:[%s15 + $0x10] sm:$0xf]
      %v1949 = vld [vmem:[%s15 + $0x14] sm:$0xf]
      %v1950 = vld [vmem:[%s15 + $0x18] sm:$0xf]
      %v1951 = vld [vmem:[%s15 + $0x1c] sm:$0xf]
      %v1952 = vld [vmem:[%s16] sm:$0x1]
      %v1954 = vlaneseq
      %v1955 = vshrl.u32 %v1954, 7
      %v1956 = vsub.s32 0, %v1955
      %v1957 = vrot.slane %v1952, %v1956
      %v1967 = vunpack.c.l.b16 %v1944
      %v1968 = vunpack.c.l.b16 %v1945
      %v1969 = vunpack.c.l.b16 %v1946
      %v1970 = vunpack.c.l.b16 %v1947
      %v1971 = vunpack.c.l.b16 %v1948
      %v1972 = vunpack.c.l.b16 %v1949
      %v1973 = vunpack.c.l.b16 %v1950
      %v1974 = vunpack.c.l.b16 %v1951
      %v1975 = vpack.c.b16 %v1968, %v1967
      %v1976 = vpack.c.b16 %v1970, %v1969
      %v1977 = vpack.c.b16 %v1972, %v1971
      %v1978 = vpack.c.b16 %v1974, %v1973
      %vm1983 = vcmask 523264
      %v1985 = vsel %vm1983, %v1942, 0
      %v1988 = vsel %vm1983, %v1943, 0
      %1990 = vmatprep.subr.bf16.mxu0 0
      %1991 = vmatpush1.bf16.msra.mxu0 0
      %1992 = vmatprep.subr.bf16.mxu0 0
      %1993 = vmatpush1.bf16.msra.mxu0 0
      %1994 = vmatprep.subr.bf16.mxu0 0
      %1995 = vmatpush1.bf16.msra.mxu0 0
      %1996 = vmatprep.subr.bf16.mxu0 0
      %1997 = vmatpush1.bf16.msra.mxu0 0
      %1998 = vmatprep.subr.bf16.mxu0 0
      %1999 = vmatpush1.bf16.msra.mxu0 %v1978
      %2000 = vmatprep.subr.bf16.mxu0 0
      %2001 = vmatpush1.bf16.msra.mxu0 %v1977
      %2002 = vmatprep.subr.bf16.mxu0 0
      %2003 = vmatpush1.bf16.msra.mxu0 %v1976
      %2004 = vmatprep.subr.bf16.mxu0 0
      %2005 = vmatpush1.bf16.msra.mxu0 %v1975
      %2006 = vmatprep.subr.bf16.mxu0 0
      %2007 = vmatpush2.bf16.msra.mxu0 0
      %2008 = vmatprep.subr.bf16.mxu0 0
      %2009 = vmatpush2.bf16.msra.mxu0 0
      %2010 = vmatprep.subr.bf16.mxu0 0
      %2011 = vmatpush2.bf16.msra.mxu0 0
      %2012 = vmatprep.subr.bf16.mxu0 0
      %2013 = vmatpush2.bf16.msra.mxu0 0
      %2014 = vmatprep.subr.bf16.mxu0 0
      %2015 = vmatpush2.bf16.msra.mxu0 0
      %2016 = vmatprep.subr.bf16.mxu0 0
      %2017 = vmatpush2.bf16.msra.mxu0 0
      %2018 = vmatprep.subr.bf16.mxu0 0
      %2019 = vmatpush2.bf16.msra.mxu0 0
      %2020 = vmatprep.subr.bf16.mxu0 0
      %2021 = vmatpush2.bf16.msra.mxu0 0
      %2022 = vmatprep.mubr.bf16.mxu0 0
      %2023 = vmatmul.mubr.bf16.gmra.mxu0 %v1985
      %v2024 = vpop.f32.mrf.mxu0
      %v2025 = vadd.f32 %v1957, %v2024
      %v2026 = vpop.f32.mrf.mxu0
      %v2027 = vpop.f32.mrf.mxu0
      %v2028 = vadd.f32 %v1957, %v2027
      %v2029 = vpop.f32.mrf.mxu0
      %2030 = vmatprep.mubr.bf16.mxu0 0
      %2031 = vmatmul.mubr.bf16.gmra.mxu0 %v1988
      %v2032 = vpop.f32.mrf.mxu0
      %v2033 = vadd.f32 %v1957, %v2032
      %v2034 = vpop.f32.mrf.mxu0
      %v2035 = vpop.f32.mrf.mxu0
      %v2036 = vpop.f32.mrf.mxu0
      %2037 = vdwg.mxu0
      %v2038 = vadd.f32 %v1774, %v1833
      %v2039 = vadd.f32 %v1775, %v1834
      %v2040 = vadd.f32 %v1776, %v1835
      %v2041 = vadd.f32 %v2038, %v2025
      %v2042 = vadd.f32 %v2039, %v2028
      %v2043 = vadd.f32 %v2040, %v2033
      %2044 = vst.msk [vmem:[%s548] sm:$0xff] %vm555, %v2041
      %2045 = vst.msk [vmem:[%s548 + $0x8] sm:$0xff] %vm555, %v2042
      %2046 = vst.msk [vmem:[%s548 + $0x10] sm:$0x1] %vm562, %v2043
      %p2047 = scmp.lt.s32.totalorder %s28, 1
      %s2048 = scalar_select %p2047, %s28, 1
      %s2049 = smul.addr %s2048, 3
      %s2050 = smul.addr %s2049, 8
      %s2051 = scalar_lea.vmem %s17, %s2050
      // Predicated region
      $region89: #{vit_forward_pallas.11} parent=87 // pred_check
        %p2052 = pneg %p408
      $region90: #{vit_forward_pallas.11} parent=87 // pred_check_branch
        %2054 = sbr.rel (%p2052) target = $region92
      $region91: #{vit_forward_pallas.11} parent=87 // pred_region
        _
      $region92: #{vit_forward_pallas.11} parent=87 // pred_fallthru
        _
    $region88: #{vit_forward_pallas.11} parent=5 // pred_fallthru
      _
    %p2055 = scmp.le.s32.totalorder 2, %s23
    // Predicated region
    $region93: #{vit_forward_pallas.11} parent=5 // pred_check
      %p2056 = pneg %p2055
    $region94: #{vit_forward_pallas.11} parent=5 // pred_check_branch
      %2058 = sbr.rel (%p2056) target = $region96
    $region95: #{vit_forward_pallas.11} parent=5 // pred_region
      %s2059 = ssub.s32 %s23, 2
      // Predicated region
      $region97: #{vit_forward_pallas.11} parent=95 // pred_check
        %p2060 = pneg %p414
      $region98: #{vit_forward_pallas.11} parent=95 // pred_check_branch
        %2062 = sbr.rel (%p2060) target = $region100
      $region99: #{vit_forward_pallas.11} parent=95 // pred_region
        %p2063 = scmp.lt.s32.totalorder %s29, 1
        %s2064 = scalar_select %p2063, %s29, 1
        %s2065 = smul.addr %s2064, 3
        %s2066 = smul.addr %s2065, 8
        %s2067 = scalar_lea.vmem %s17, %s2066
      $region100: #{vit_forward_pallas.11} parent=95 // pred_fallthru
        _
    $region96: #{vit_forward_pallas.11} parent=5 // pred_fallthru
      _
  $region6: #{vit_forward_pallas.11} parent=0 // loop_footer
    %s27 = sadd.s32 1, %s23
  $region7: #{vit_forward_pallas.11} parent=0 // loop_footer_branch
    %22 = sbr.rel target = $region3
  $region8: #{vit_forward_pallas.11} parent=0 // loop_exit
    _

</llo_original>
